<compile_context>
chip_gen: v7x
topology: tpu7x:2x2x1
jax: 0.10.0
libtpu: 0.0.40
codegen_flags: <defaults>
</compile_context>

<pallas_src>
import jax
import jax.numpy as jnp
from jax.experimental import pallas as pl
from jax.experimental.pallas import tpu as pltpu

H = W = 8            # board size implied by fc1 = Linear(128*8*8, 256)
KH = KW = 3
C0 = 16              # conv1 input channels padded 14 -> 16 for clean lane layout
C1, C2, C3 = 32, 64, 128
FC1_IN = C3 * H * W  # 8192
FC1_OUT = 256
DEFAULT_TB = 8       # boards per grid step (M = TB*64 rows per conv matmul)


# ---------------------------------------------------------------------------
# Fused kernel: conv1 -> conv2 -> conv3 -> fc1 -> fc2 for TB boards per step.
#   x_ref    : (TB, 10, 10, 16) f32  zero-padded NHWC input tile
#   wN_ref   : (3, 3, cin, cout) bf16 ; bN_ref : (1, cout) f32
#   fc1w_ref : (8192, 256) bf16 (rows pre-permuted to NHWC flatten order)
#   fc2w_ref : (1, 256) f32 ; o_ref : (TB, 1) f32
#   padN_ref : VMEM scratch holding the zero-padded intermediate activations
# Each 3x3 conv = 9 shifted (TB*64, cin) @ (cin, cout) bf16 MXU matmuls with
# f32 accumulation (kept over im2col-concatenate to avoid lane-concat relayouts).
# ---------------------------------------------------------------------------
def thunderbyte_fused_kernel(x_ref, w1_ref, b1_ref, w2_ref, b2_ref,
                             w3_ref, b3_ref, fc1w_ref, fc1b_ref,
                             fc2w_ref, fc2b_ref, o_ref, pad2_ref, pad3_ref):
    TB = x_ref.shape[0]
    M = TB * H * W

    def conv3x3_relu(src_ref, w_ref, b_ref):
        cin = src_ref.shape[-1]
        cout = w_ref.shape[-1]
        acc = jnp.zeros((M, cout), dtype=jnp.float32)
        for ky in range(KH):
            for kx in range(KW):
                patch = src_ref[:, ky:ky + H, kx:kx + W, :]
                patch = patch.reshape(M, cin).astype(jnp.bfloat16)
                acc = acc + jnp.dot(patch, w_ref[ky, kx],
                                    preferred_element_type=jnp.float32)
        return jnp.maximum(acc + b_ref[...], 0.0)           # (M, cout) f32

    # conv1 (reads the padded NHWC input tile directly)
    h1 = conv3x3_relu(x_ref, w1_ref, b1_ref)                 # (M, 32)

    # conv2: zero-pad the intermediate inside VMEM scratch (never touches HBM)
    pad2_ref[...] = jnp.zeros_like(pad2_ref)
    pad2_ref[:, 1:1 + H, 1:1 + W, :] = h1.reshape(TB, H, W, C1)
    h2 = conv3x3_relu(pad2_ref, w2_ref, b2_ref)              # (M, 64)

    # conv3
    pad3_ref[...] = jnp.zeros_like(pad3_ref)
    pad3_ref[:, 1:1 + H, 1:1 + W, :] = h2.reshape(TB, H, W, C2)
    h3 = conv3x3_relu(pad3_ref, w3_ref, b3_ref)              # (M, 128)

    # fc1: fc1 weight rows were pre-permuted to NHWC flatten order (hw*128 + c),
    # so the conv output flattens directly -- no NCHW transpose anywhere.
    flat = h3.reshape(TB, H * W * C3).astype(jnp.bfloat16)   # (TB, 8192)
    fc1 = jnp.dot(flat, fc1w_ref[...], preferred_element_type=jnp.float32)
    fc1 = jnp.maximum(fc1 + fc1b_ref[...], 0.0)              # (TB, 256)

    # fc2 (out_features = 1): multiply + lane reduction instead of an N=1 matmul
    out = jnp.sum(fc1 * fc2w_ref[...], axis=-1, keepdims=True) + fc2b_ref[...]
    o_ref[...] = jnp.tanh(out)


# ---------------------------------------------------------------------------
# Wrapper: batch tiling, spatial/channel padding, single pallas_call.
# ---------------------------------------------------------------------------
def thunderbyte_forward(x_nchw, kp):
    """x_nchw: (B, 14, 8, 8) float32 -> (B, 1) float32."""
    B = x_nchw.shape[0]
    TB = min(DEFAULT_TB, B)
    Bp = ((B + TB - 1) // TB) * TB

    # NCHW -> NHWC (tiny), zero-pad spatial (conv pad=1), channels 14 -> 16,
    # and batch up to a multiple of the batch tile.
    x = jnp.transpose(x_nchw, (0, 2, 3, 1)).astype(jnp.float32)
    x = jnp.pad(x, ((0, Bp - B), (1, 1), (1, 1), (0, C0 - x.shape[-1])))

    out = pl.pallas_call(
        thunderbyte_fused_kernel,
        out_shape=jax.ShapeDtypeStruct((Bp, 1), jnp.float32),
        grid=(Bp // TB,),
        in_specs=[
            pl.BlockSpec((TB, H + 2, W + 2, C0), lambda i: (i, 0, 0, 0)),
            pl.BlockSpec((KH, KW, C0, C1), lambda i: (0, 0, 0, 0)),
            pl.BlockSpec((1, C1), lambda i: (0, 0)),
            pl.BlockSpec((KH, KW, C1, C2), lambda i: (0, 0, 0, 0)),
            pl.BlockSpec((1, C2), lambda i: (0, 0)),
            pl.BlockSpec((KH, KW, C2, C3), lambda i: (0, 0, 0, 0)),
            pl.BlockSpec((1, C3), lambda i: (0, 0)),
            pl.BlockSpec((FC1_IN, FC1_OUT), lambda i: (0, 0)),
            pl.BlockSpec((1, FC1_OUT), lambda i: (0, 0)),
            pl.BlockSpec((1, FC1_OUT), lambda i: (0, 0)),
            pl.BlockSpec((1, 1), lambda i: (0, 0)),
        ],
        out_specs=pl.BlockSpec((TB, 1), lambda i: (i, 0)),
        scratch_shapes=[
            pltpu.VMEM((TB, H + 2, W + 2, C1), jnp.float32),
            pltpu.VMEM((TB, H + 2, W + 2, C2), jnp.float32),
        ],
        compiler_params=pltpu.CompilerParams(
            dimension_semantics=("parallel",),
            vmem_limit_bytes=32 << 20,
        ),
    )(x, kp["w1"], kp["b1"], kp["w2"], kp["b2"], kp["w3"], kp["b3"],
      kp["fc1_w"], kp["fc1_b"], kp["fc2_w"], kp["fc2_b"])
    return out[:B]


# ---------------------------------------------------------------------------
# Parameters: PyTorch-shaped init + one-time repack into kernel layout.
# ---------------------------------------------------------------------------
def init_params(key):
    """Deterministic PyTorch-shaped params (Conv2d: (Cout,Cin,kh,kw); Linear: (out,in))."""
    ks = jax.random.split(key, 10)

    def u(k, shape, fan_in):
        bound = 1.0 / jnp.sqrt(fan_in)
        return jax.random.uniform(k, shape, jnp.float32, -bound, bound)

    return {
        "c1_w": u(ks[0], (C1, 14, 3, 3), 14 * 9),  "c1_b": u(ks[1], (C1,), 14 * 9),
        "c2_w": u(ks[2], (C2, C1, 3, 3), C1 * 9),  "c2_b": u(ks[3], (C2,), C1 * 9),
        "c3_w": u(ks[4], (C3, C2, 3, 3), C2 * 9),  "c3_b": u(ks[5], (C3,), C2 * 9),
        "fc1_w": u(ks[6], (FC1_OUT, FC1_IN), FC1_IN),
        "fc1_b": u(ks[7], (FC1_OUT,), FC1_IN),
        "fc2_w": u(ks[8], (1, FC1_OUT), FC1_OUT),
        "fc2_b": u(ks[9], (1,), FC1_OUT),
    }


def prepare_params(p):
    """One-time repack of PyTorch-layout params into the kernel layout (hoisted
    out of the forward pass: no per-call weight transposes)."""
    def hwio_bf16(w, cin_pad=None):
        w = jnp.transpose(w, (2, 3, 1, 0))                  # (kh, kw, cin, cout)
        if cin_pad is not None and cin_pad > w.shape[2]:
            w = jnp.pad(w, ((0, 0), (0, 0), (0, cin_pad - w.shape[2]), (0, 0)))
        return w.astype(jnp.bfloat16)

    # fc1 weight: (256, 8192) with columns ordered c*64 + hw (PyTorch NCHW flatten)
    # -> (8192, 256) with rows ordered hw*128 + c (our NHWC flatten), stored bf16.
    fc1 = p["fc1_w"].reshape(FC1_OUT, C3, H * W)            # (out, c, hw)
    fc1 = jnp.transpose(fc1, (2, 1, 0)).reshape(FC1_IN, FC1_OUT)

    f32 = jnp.float32
    return {
        "w1": hwio_bf16(p["c1_w"], C0), "b1": p["c1_b"].reshape(1, C1).astype(f32),
        "w2": hwio_bf16(p["c2_w"]),     "b2": p["c2_b"].reshape(1, C2).astype(f32),
        "w3": hwio_bf16(p["c3_w"]),     "b3": p["c3_b"].reshape(1, C3).astype(f32),
        "fc1_w": fc1.astype(jnp.bfloat16),
        "fc1_b": p["fc1_b"].reshape(1, FC1_OUT).astype(f32),
        "fc2_w": p["fc2_w"].reshape(1, FC1_OUT).astype(f32),
        "fc2_b": p["fc2_b"].reshape(1, 1).astype(f32),
    }


if __name__ == "__main__":
    key = jax.random.PRNGKey(0)
    k_params, k_x = jax.random.split(key)
    params = init_params(k_params)
    kparams = prepare_params(params)      # one-time weight repack, not per forward

    # Chess board planes: batch=2, 14 channels, 8x8 board (NCHW like PyTorch)
    x = jax.random.normal(k_x, (2, 14, 8, 8), dtype=jnp.float32)

    fwd = jax.jit(thunderbyte_forward)
    out = jax.block_until_ready(fwd(x, kparams))
    assert out.shape == (2, 1), out.shape
    assert bool(jnp.all(jnp.isfinite(out))), "non-finite output"
    print("KERNEL_OK")
</pallas_src>

<mosaic_0001>
module attributes {stable_mosaic.version = 11 : i64} {
  func.func @thunderbyte_fused_kernel(%arg0: i32, %arg1: memref<2x10x10x16xf32, #tpu.memory_space<vmem>>, %arg2: memref<3x3x16x32xbf16, #tpu.memory_space<vmem>>, %arg3: memref<1x32xf32, #tpu.memory_space<vmem>>, %arg4: memref<3x3x32x64xbf16, #tpu.memory_space<vmem>>, %arg5: memref<1x64xf32, #tpu.memory_space<vmem>>, %arg6: memref<3x3x64x128xbf16, #tpu.memory_space<vmem>>, %arg7: memref<1x128xf32, #tpu.memory_space<vmem>>, %arg8: memref<8192x256xbf16, #tpu.memory_space<vmem>>, %arg9: memref<1x256xf32, #tpu.memory_space<vmem>>, %arg10: memref<1x256xf32, #tpu.memory_space<vmem>>, %arg11: memref<1x1xf32, #tpu.memory_space<vmem>>, %arg12: memref<2x1xf32, #tpu.memory_space<vmem>>, %arg13: memref<2x10x10x32xf32, #tpu.memory_space<vmem>>, %arg14: memref<2x10x10x64xf32, #tpu.memory_space<vmem>>) attributes {dimension_semantics = [#tpu.dimension_semantics<parallel>], iteration_bounds = array<i64: 1>, scalar_prefetch = 0 : i64, scratch_operands = 2 : i64, tpu.core_type = #tpu.core_type<tc>, window_params = [{transform_indices = @transform_0, window_bounds = array<i64: 2, 10, 10, 16>}, {pipeline_mode = #tpu.pipeline_mode<synchronous>, transform_indices = @transform_1, window_bounds = array<i64: 3, 3, 16, 32>}, {pipeline_mode = #tpu.pipeline_mode<synchronous>, transform_indices = @transform_2, window_bounds = array<i64: 1, 32>}, {pipeline_mode = #tpu.pipeline_mode<synchronous>, transform_indices = @transform_3, window_bounds = array<i64: 3, 3, 32, 64>}, {pipeline_mode = #tpu.pipeline_mode<synchronous>, transform_indices = @transform_4, window_bounds = array<i64: 1, 64>}, {pipeline_mode = #tpu.pipeline_mode<synchronous>, transform_indices = @transform_5, window_bounds = array<i64: 3, 3, 64, 128>}, {pipeline_mode = #tpu.pipeline_mode<synchronous>, transform_indices = @transform_6, window_bounds = array<i64: 1, 128>}, {pipeline_mode = #tpu.pipeline_mode<synchronous>, transform_indices = @transform_7, window_bounds = array<i64: 8192, 256>}, {pipeline_mode = #tpu.pipeline_mode<synchronous>, transform_indices = @transform_8, window_bounds = array<i64: 1, 256>}, {pipeline_mode = #tpu.pipeline_mode<synchronous>, transform_indices = @transform_9, window_bounds = array<i64: 1, 256>}, {pipeline_mode = #tpu.pipeline_mode<synchronous>, transform_indices = @transform_10, window_bounds = array<i64: 1, 1>}, {transform_indices = @transform_11, window_bounds = array<i64: 2, 1>}]} {
    %cst = arith.constant 0.000000e+00 : f32
    %0 = vector.broadcast %cst : f32 to vector<128x32xf32>
    %c0 = arith.constant 0 : index
    %c0_0 = arith.constant 0 : index
    %c0_1 = arith.constant 0 : index
    %c0_2 = arith.constant 0 : index
    %1 = vector.load %arg1[%c0, %c0_0, %c0_1, %c0_2] : memref<2x10x10x16xf32, #tpu.memory_space<vmem>>, vector<2x8x8x16xf32>
    %2 = vector.shape_cast %1 : vector<2x8x8x16xf32> to vector<128x16xf32>
    %3 = arith.truncf %2 : vector<128x16xf32> to vector<128x16xbf16>
    %c0_3 = arith.constant 0 : index
    %c0_4 = arith.constant 0 : index
    %c0_5 = arith.constant 0 : index
    %c0_6 = arith.constant 0 : index
    %4 = vector.load %arg2[%c0_3, %c0_4, %c0_5, %c0_6] : memref<3x3x16x32xbf16, #tpu.memory_space<vmem>>, vector<1x1x16x32xbf16>
    %5 = vector.shape_cast %4 : vector<1x1x16x32xbf16> to vector<16x32xbf16>
    %cst_7 = arith.constant dense<0.000000e+00> : vector<128x32xf32>
    %6 = tpu.matmul %3, %5, %cst_7 {dimension_numbers = #tpu.dot_dimension_numbers<[1], [0], [0], [1], [0, 0, 1, 1], [], []>} : vector<128x16xbf16>, vector<16x32xbf16>, vector<128x32xf32> -> vector<128x32xf32>
    %7 = arith.addf %0, %6 : vector<128x32xf32>
    %c0_8 = arith.constant 0 : index
    %c0_9 = arith.constant 0 : index
    %c1 = arith.constant 1 : index
    %c0_10 = arith.constant 0 : index
    %8 = vector.load %arg1[%c0_8, %c0_9, %c1, %c0_10] : memref<2x10x10x16xf32, #tpu.memory_space<vmem>>, vector<2x8x8x16xf32>
    %9 = vector.shape_cast %8 : vector<2x8x8x16xf32> to vector<128x16xf32>
    %10 = arith.truncf %9 : vector<128x16xf32> to vector<128x16xbf16>
    %c0_11 = arith.constant 0 : index
    %c1_12 = arith.constant 1 : index
    %c0_13 = arith.constant 0 : index
    %c0_14 = arith.constant 0 : index
    %11 = vector.load %arg2[%c0_11, %c1_12, %c0_13, %c0_14] : memref<3x3x16x32xbf16, #tpu.memory_space<vmem>>, vector<1x1x16x32xbf16>
    %12 = vector.shape_cast %11 : vector<1x1x16x32xbf16> to vector<16x32xbf16>
    %cst_15 = arith.constant dense<0.000000e+00> : vector<128x32xf32>
    %13 = tpu.matmul %10, %12, %cst_15 {dimension_numbers = #tpu.dot_dimension_numbers<[1], [0], [0], [1], [0, 0, 1, 1], [], []>} : vector<128x16xbf16>, vector<16x32xbf16>, vector<128x32xf32> -> vector<128x32xf32>
    %14 = arith.addf %7, %13 : vector<128x32xf32>
    %c0_16 = arith.constant 0 : index
    %c0_17 = arith.constant 0 : index
    %c2 = arith.constant 2 : index
    %c0_18 = arith.constant 0 : index
    %15 = vector.load %arg1[%c0_16, %c0_17, %c2, %c0_18] : memref<2x10x10x16xf32, #tpu.memory_space<vmem>>, vector<2x8x8x16xf32>
    %16 = vector.shape_cast %15 : vector<2x8x8x16xf32> to vector<128x16xf32>
    %17 = arith.truncf %16 : vector<128x16xf32> to vector<128x16xbf16>
    %c0_19 = arith.constant 0 : index
    %c2_20 = arith.constant 2 : index
    %c0_21 = arith.constant 0 : index
    %c0_22 = arith.constant 0 : index
    %18 = vector.load %arg2[%c0_19, %c2_20, %c0_21, %c0_22] : memref<3x3x16x32xbf16, #tpu.memory_space<vmem>>, vector<1x1x16x32xbf16>
    %19 = vector.shape_cast %18 : vector<1x1x16x32xbf16> to vector<16x32xbf16>
    %cst_23 = arith.constant dense<0.000000e+00> : vector<128x32xf32>
    %20 = tpu.matmul %17, %19, %cst_23 {dimension_numbers = #tpu.dot_dimension_numbers<[1], [0], [0], [1], [0, 0, 1, 1], [], []>} : vector<128x16xbf16>, vector<16x32xbf16>, vector<128x32xf32> -> vector<128x32xf32>
    %21 = arith.addf %14, %20 : vector<128x32xf32>
    %c0_24 = arith.constant 0 : index
    %c1_25 = arith.constant 1 : index
    %c0_26 = arith.constant 0 : index
    %c0_27 = arith.constant 0 : index
    %22 = vector.load %arg1[%c0_24, %c1_25, %c0_26, %c0_27] : memref<2x10x10x16xf32, #tpu.memory_space<vmem>>, vector<2x8x8x16xf32>
    %23 = vector.shape_cast %22 : vector<2x8x8x16xf32> to vector<128x16xf32>
    %24 = arith.truncf %23 : vector<128x16xf32> to vector<128x16xbf16>
    %c1_28 = arith.constant 1 : index
    %c0_29 = arith.constant 0 : index
    %c0_30 = arith.constant 0 : index
    %c0_31 = arith.constant 0 : index
    %25 = vector.load %arg2[%c1_28, %c0_29, %c0_30, %c0_31] : memref<3x3x16x32xbf16, #tpu.memory_space<vmem>>, vector<1x1x16x32xbf16>
    %26 = vector.shape_cast %25 : vector<1x1x16x32xbf16> to vector<16x32xbf16>
    %cst_32 = arith.constant dense<0.000000e+00> : vector<128x32xf32>
    %27 = tpu.matmul %24, %26, %cst_32 {dimension_numbers = #tpu.dot_dimension_numbers<[1], [0], [0], [1], [0, 0, 1, 1], [], []>} : vector<128x16xbf16>, vector<16x32xbf16>, vector<128x32xf32> -> vector<128x32xf32>
    %28 = arith.addf %21, %27 : vector<128x32xf32>
    %c0_33 = arith.constant 0 : index
    %c1_34 = arith.constant 1 : index
    %c1_35 = arith.constant 1 : index
    %c0_36 = arith.constant 0 : index
    %29 = vector.load %arg1[%c0_33, %c1_34, %c1_35, %c0_36] : memref<2x10x10x16xf32, #tpu.memory_space<vmem>>, vector<2x8x8x16xf32>
    %30 = vector.shape_cast %29 : vector<2x8x8x16xf32> to vector<128x16xf32>
    %31 = arith.truncf %30 : vector<128x16xf32> to vector<128x16xbf16>
    %c1_37 = arith.constant 1 : index
    %c1_38 = arith.constant 1 : index
    %c0_39 = arith.constant 0 : index
    %c0_40 = arith.constant 0 : index
    %32 = vector.load %arg2[%c1_37, %c1_38, %c0_39, %c0_40] : memref<3x3x16x32xbf16, #tpu.memory_space<vmem>>, vector<1x1x16x32xbf16>
    %33 = vector.shape_cast %32 : vector<1x1x16x32xbf16> to vector<16x32xbf16>
    %cst_41 = arith.constant dense<0.000000e+00> : vector<128x32xf32>
    %34 = tpu.matmul %31, %33, %cst_41 {dimension_numbers = #tpu.dot_dimension_numbers<[1], [0], [0], [1], [0, 0, 1, 1], [], []>} : vector<128x16xbf16>, vector<16x32xbf16>, vector<128x32xf32> -> vector<128x32xf32>
    %35 = arith.addf %28, %34 : vector<128x32xf32>
    %c0_42 = arith.constant 0 : index
    %c1_43 = arith.constant 1 : index
    %c2_44 = arith.constant 2 : index
    %c0_45 = arith.constant 0 : index
    %36 = vector.load %arg1[%c0_42, %c1_43, %c2_44, %c0_45] : memref<2x10x10x16xf32, #tpu.memory_space<vmem>>, vector<2x8x8x16xf32>
    %37 = vector.shape_cast %36 : vector<2x8x8x16xf32> to vector<128x16xf32>
    %38 = arith.truncf %37 : vector<128x16xf32> to vector<128x16xbf16>
    %c1_46 = arith.constant 1 : index
    %c2_47 = arith.constant 2 : index
    %c0_48 = arith.constant 0 : index
    %c0_49 = arith.constant 0 : index
    %39 = vector.load %arg2[%c1_46, %c2_47, %c0_48, %c0_49] : memref<3x3x16x32xbf16, #tpu.memory_space<vmem>>, vector<1x1x16x32xbf16>
    %40 = vector.shape_cast %39 : vector<1x1x16x32xbf16> to vector<16x32xbf16>
    %cst_50 = arith.constant dense<0.000000e+00> : vector<128x32xf32>
    %41 = tpu.matmul %38, %40, %cst_50 {dimension_numbers = #tpu.dot_dimension_numbers<[1], [0], [0], [1], [0, 0, 1, 1], [], []>} : vector<128x16xbf16>, vector<16x32xbf16>, vector<128x32xf32> -> vector<128x32xf32>
    %42 = arith.addf %35, %41 : vector<128x32xf32>
    %c0_51 = arith.constant 0 : index
    %c2_52 = arith.constant 2 : index
    %c0_53 = arith.constant 0 : index
    %c0_54 = arith.constant 0 : index
    %43 = vector.load %arg1[%c0_51, %c2_52, %c0_53, %c0_54] : memref<2x10x10x16xf32, #tpu.memory_space<vmem>>, vector<2x8x8x16xf32>
    %44 = vector.shape_cast %43 : vector<2x8x8x16xf32> to vector<128x16xf32>
    %45 = arith.truncf %44 : vector<128x16xf32> to vector<128x16xbf16>
    %c2_55 = arith.constant 2 : index
    %c0_56 = arith.constant 0 : index
    %c0_57 = arith.constant 0 : index
    %c0_58 = arith.constant 0 : index
    %46 = vector.load %arg2[%c2_55, %c0_56, %c0_57, %c0_58] : memref<3x3x16x32xbf16, #tpu.memory_space<vmem>>, vector<1x1x16x32xbf16>
    %47 = vector.shape_cast %46 : vector<1x1x16x32xbf16> to vector<16x32xbf16>
    %cst_59 = arith.constant dense<0.000000e+00> : vector<128x32xf32>
    %48 = tpu.matmul %45, %47, %cst_59 {dimension_numbers = #tpu.dot_dimension_numbers<[1], [0], [0], [1], [0, 0, 1, 1], [], []>} : vector<128x16xbf16>, vector<16x32xbf16>, vector<128x32xf32> -> vector<128x32xf32>
    %49 = arith.addf %42, %48 : vector<128x32xf32>
    %c0_60 = arith.constant 0 : index
    %c2_61 = arith.constant 2 : index
    %c1_62 = arith.constant 1 : index
    %c0_63 = arith.constant 0 : index
    %50 = vector.load %arg1[%c0_60, %c2_61, %c1_62, %c0_63] : memref<2x10x10x16xf32, #tpu.memory_space<vmem>>, vector<2x8x8x16xf32>
    %51 = vector.shape_cast %50 : vector<2x8x8x16xf32> to vector<128x16xf32>
    %52 = arith.truncf %51 : vector<128x16xf32> to vector<128x16xbf16>
    %c2_64 = arith.constant 2 : index
    %c1_65 = arith.constant 1 : index
    %c0_66 = arith.constant 0 : index
    %c0_67 = arith.constant 0 : index
    %53 = vector.load %arg2[%c2_64, %c1_65, %c0_66, %c0_67] : memref<3x3x16x32xbf16, #tpu.memory_space<vmem>>, vector<1x1x16x32xbf16>
    %54 = vector.shape_cast %53 : vector<1x1x16x32xbf16> to vector<16x32xbf16>
    %cst_68 = arith.constant dense<0.000000e+00> : vector<128x32xf32>
    %55 = tpu.matmul %52, %54, %cst_68 {dimension_numbers = #tpu.dot_dimension_numbers<[1], [0], [0], [1], [0, 0, 1, 1], [], []>} : vector<128x16xbf16>, vector<16x32xbf16>, vector<128x32xf32> -> vector<128x32xf32>
    %56 = arith.addf %49, %55 : vector<128x32xf32>
    %c0_69 = arith.constant 0 : index
    %c2_70 = arith.constant 2 : index
    %c2_71 = arith.constant 2 : index
    %c0_72 = arith.constant 0 : index
    %57 = vector.load %arg1[%c0_69, %c2_70, %c2_71, %c0_72] : memref<2x10x10x16xf32, #tpu.memory_space<vmem>>, vector<2x8x8x16xf32>
    %58 = vector.shape_cast %57 : vector<2x8x8x16xf32> to vector<128x16xf32>
    %59 = arith.truncf %58 : vector<128x16xf32> to vector<128x16xbf16>
    %c2_73 = arith.constant 2 : index
    %c2_74 = arith.constant 2 : index
    %c0_75 = arith.constant 0 : index
    %c0_76 = arith.constant 0 : index
    %60 = vector.load %arg2[%c2_73, %c2_74, %c0_75, %c0_76] : memref<3x3x16x32xbf16, #tpu.memory_space<vmem>>, vector<1x1x16x32xbf16>
    %61 = vector.shape_cast %60 : vector<1x1x16x32xbf16> to vector<16x32xbf16>
    %cst_77 = arith.constant dense<0.000000e+00> : vector<128x32xf32>
    %62 = tpu.matmul %59, %61, %cst_77 {dimension_numbers = #tpu.dot_dimension_numbers<[1], [0], [0], [1], [0, 0, 1, 1], [], []>} : vector<128x16xbf16>, vector<16x32xbf16>, vector<128x32xf32> -> vector<128x32xf32>
    %63 = arith.addf %56, %62 : vector<128x32xf32>
    %c0_78 = arith.constant 0 : index
    %c0_79 = arith.constant 0 : index
    %64 = vector.load %arg3[%c0_78, %c0_79] : memref<1x32xf32, #tpu.memory_space<vmem>>, vector<1x32xf32>
    %65 = vector.broadcast %64 : vector<1x32xf32> to vector<128x32xf32>
    %66 = arith.addf %63, %65 : vector<128x32xf32>
    %cst_80 = arith.constant 0.000000e+00 : f32
    %67 = vector.broadcast %cst_80 : f32 to vector<128x32xf32>
    %68 = arith.maximumf %66, %67 : vector<128x32xf32>
    %cst_81 = arith.constant 0.000000e+00 : f32
    %69 = vector.broadcast %cst_81 : f32 to vector<2x10x10x32xf32>
    %c0_82 = arith.constant 0 : index
    %c0_83 = arith.constant 0 : index
    %c0_84 = arith.constant 0 : index
    %c0_85 = arith.constant 0 : index
    %70 = vector.load %arg13[%c0_82, %c0_83, %c0_84, %c0_85] : memref<2x10x10x32xf32, #tpu.memory_space<vmem>>, vector<2x10x10x32xf32>
    tpu.vector_store %arg13[%c0_82, %c0_83, %c0_84, %c0_85], %69 {strides = array<i32>} : memref<2x10x10x32xf32, #tpu.memory_space<vmem>>, vector<2x10x10x32xf32>,
    %71 = vector.shape_cast %68 : vector<128x32xf32> to vector<2x8x8x32xf32>
    %c0_86 = arith.constant 0 : index
    %c1_87 = arith.constant 1 : index
    %c1_88 = arith.constant 1 : index
    %c0_89 = arith.constant 0 : index
    %72 = vector.load %arg13[%c0_86, %c1_87, %c1_88, %c0_89] : memref<2x10x10x32xf32, #tpu.memory_space<vmem>>, vector<2x8x8x32xf32>
    tpu.vector_store %arg13[%c0_86, %c1_87, %c1_88, %c0_89], %71 {strides = array<i32>} : memref<2x10x10x32xf32, #tpu.memory_space<vmem>>, vector<2x8x8x32xf32>,
    %cst_90 = arith.constant 0.000000e+00 : f32
    %73 = vector.broadcast %cst_90 : f32 to vector<128x64xf32>
    %c0_91 = arith.constant 0 : index
    %c0_92 = arith.constant 0 : index
    %c0_93 = arith.constant 0 : index
    %c0_94 = arith.constant 0 : index
    %74 = vector.load %arg13[%c0_91, %c0_92, %c0_93, %c0_94] : memref<2x10x10x32xf32, #tpu.memory_space<vmem>>, vector<2x8x8x32xf32>
    %75 = vector.shape_cast %74 : vector<2x8x8x32xf32> to vector<128x32xf32>
    %76 = arith.truncf %75 : vector<128x32xf32> to vector<128x32xbf16>
    %c0_95 = arith.constant 0 : index
    %c0_96 = arith.constant 0 : index
    %c0_97 = arith.constant 0 : index
    %c0_98 = arith.constant 0 : index
    %77 = vector.load %arg4[%c0_95, %c0_96, %c0_97, %c0_98] : memref<3x3x32x64xbf16, #tpu.memory_space<vmem>>, vector<1x1x32x64xbf16>
    %78 = vector.shape_cast %77 : vector<1x1x32x64xbf16> to vector<32x64xbf16>
    %cst_99 = arith.constant dense<0.000000e+00> : vector<128x64xf32>
    %79 = tpu.matmul %76, %78, %cst_99 {dimension_numbers = #tpu.dot_dimension_numbers<[1], [0], [0], [1], [0, 0, 1, 1], [], []>} : vector<128x32xbf16>, vector<32x64xbf16>, vector<128x64xf32> -> vector<128x64xf32>
    %80 = arith.addf %73, %79 : vector<128x64xf32>
    %c0_100 = arith.constant 0 : index
    %c0_101 = arith.constant 0 : index
    %c1_102 = arith.constant 1 : index
    %c0_103 = arith.constant 0 : index
    %81 = vector.load %arg13[%c0_100, %c0_101, %c1_102, %c0_103] : memref<2x10x10x32xf32, #tpu.memory_space<vmem>>, vector<2x8x8x32xf32>
    %82 = vector.shape_cast %81 : vector<2x8x8x32xf32> to vector<128x32xf32>
    %83 = arith.truncf %82 : vector<128x32xf32> to vector<128x32xbf16>
    %c0_104 = arith.constant 0 : index
    %c1_105 = arith.constant 1 : index
    %c0_106 = arith.constant 0 : index
    %c0_107 = arith.constant 0 : index
    %84 = vector.load %arg4[%c0_104, %c1_105, %c0_106, %c0_107] : memref<3x3x32x64xbf16, #tpu.memory_space<vmem>>, vector<1x1x32x64xbf16>
    %85 = vector.shape_cast %84 : vector<1x1x32x64xbf16> to vector<32x64xbf16>
    %cst_108 = arith.constant dense<0.000000e+00> : vector<128x64xf32>
    %86 = tpu.matmul %83, %85, %cst_108 {dimension_numbers = #tpu.dot_dimension_numbers<[1], [0], [0], [1], [0, 0, 1, 1], [], []>} : vector<128x32xbf16>, vector<32x64xbf16>, vector<128x64xf32> -> vector<128x64xf32>
    %87 = arith.addf %80, %86 : vector<128x64xf32>
    %c0_109 = arith.constant 0 : index
    %c0_110 = arith.constant 0 : index
    %c2_111 = arith.constant 2 : index
    %c0_112 = arith.constant 0 : index
    %88 = vector.load %arg13[%c0_109, %c0_110, %c2_111, %c0_112] : memref<2x10x10x32xf32, #tpu.memory_space<vmem>>, vector<2x8x8x32xf32>
    %89 = vector.shape_cast %88 : vector<2x8x8x32xf32> to vector<128x32xf32>
    %90 = arith.truncf %89 : vector<128x32xf32> to vector<128x32xbf16>
    %c0_113 = arith.constant 0 : index
    %c2_114 = arith.constant 2 : index
    %c0_115 = arith.constant 0 : index
    %c0_116 = arith.constant 0 : index
    %91 = vector.load %arg4[%c0_113, %c2_114, %c0_115, %c0_116] : memref<3x3x32x64xbf16, #tpu.memory_space<vmem>>, vector<1x1x32x64xbf16>
    %92 = vector.shape_cast %91 : vector<1x1x32x64xbf16> to vector<32x64xbf16>
    %cst_117 = arith.constant dense<0.000000e+00> : vector<128x64xf32>
    %93 = tpu.matmul %90, %92, %cst_117 {dimension_numbers = #tpu.dot_dimension_numbers<[1], [0], [0], [1], [0, 0, 1, 1], [], []>} : vector<128x32xbf16>, vector<32x64xbf16>, vector<128x64xf32> -> vector<128x64xf32>
    %94 = arith.addf %87, %93 : vector<128x64xf32>
    %c0_118 = arith.constant 0 : index
    %c1_119 = arith.constant 1 : index
    %c0_120 = arith.constant 0 : index
    %c0_121 = arith.constant 0 : index
    %95 = vector.load %arg13[%c0_118, %c1_119, %c0_120, %c0_121] : memref<2x10x10x32xf32, #tpu.memory_space<vmem>>, vector<2x8x8x32xf32>
    %96 = vector.shape_cast %95 : vector<2x8x8x32xf32> to vector<128x32xf32>
    %97 = arith.truncf %96 : vector<128x32xf32> to vector<128x32xbf16>
    %c1_122 = arith.constant 1 : index
    %c0_123 = arith.constant 0 : index
    %c0_124 = arith.constant 0 : index
    %c0_125 = arith.constant 0 : index
    %98 = vector.load %arg4[%c1_122, %c0_123, %c0_124, %c0_125] : memref<3x3x32x64xbf16, #tpu.memory_space<vmem>>, vector<1x1x32x64xbf16>
    %99 = vector.shape_cast %98 : vector<1x1x32x64xbf16> to vector<32x64xbf16>
    %cst_126 = arith.constant dense<0.000000e+00> : vector<128x64xf32>
    %100 = tpu.matmul %97, %99, %cst_126 {dimension_numbers = #tpu.dot_dimension_numbers<[1], [0], [0], [1], [0, 0, 1, 1], [], []>} : vector<128x32xbf16>, vector<32x64xbf16>, vector<128x64xf32> -> vector<128x64xf32>
    %101 = arith.addf %94, %100 : vector<128x64xf32>
    %c0_127 = arith.constant 0 : index
    %c1_128 = arith.constant 1 : index
    %c1_129 = arith.constant 1 : index
    %c0_130 = arith.constant 0 : index
    %102 = vector.load %arg13[%c0_127, %c1_128, %c1_129, %c0_130] : memref<2x10x10x32xf32, #tpu.memory_space<vmem>>, vector<2x8x8x32xf32>
    %103 = vector.shape_cast %102 : vector<2x8x8x32xf32> to vector<128x32xf32>
    %104 = arith.truncf %103 : vector<128x32xf32> to vector<128x32xbf16>
    %c1_131 = arith.constant 1 : index
    %c1_132 = arith.constant 1 : index
    %c0_133 = arith.constant 0 : index
    %c0_134 = arith.constant 0 : index
    %105 = vector.load %arg4[%c1_131, %c1_132, %c0_133, %c0_134] : memref<3x3x32x64xbf16, #tpu.memory_space<vmem>>, vector<1x1x32x64xbf16>
    %106 = vector.shape_cast %105 : vector<1x1x32x64xbf16> to vector<32x64xbf16>
    %cst_135 = arith.constant dense<0.000000e+00> : vector<128x64xf32>
    %107 = tpu.matmul %104, %106, %cst_135 {dimension_numbers = #tpu.dot_dimension_numbers<[1], [0], [0], [1], [0, 0, 1, 1], [], []>} : vector<128x32xbf16>, vector<32x64xbf16>, vector<128x64xf32> -> vector<128x64xf32>
    %108 = arith.addf %101, %107 : vector<128x64xf32>
    %c0_136 = arith.constant 0 : index
    %c1_137 = arith.constant 1 : index
    %c2_138 = arith.constant 2 : index
    %c0_139 = arith.constant 0 : index
    %109 = vector.load %arg13[%c0_136, %c1_137, %c2_138, %c0_139] : memref<2x10x10x32xf32, #tpu.memory_space<vmem>>, vector<2x8x8x32xf32>
    %110 = vector.shape_cast %109 : vector<2x8x8x32xf32> to vector<128x32xf32>
    %111 = arith.truncf %110 : vector<128x32xf32> to vector<128x32xbf16>
    %c1_140 = arith.constant 1 : index
    %c2_141 = arith.constant 2 : index
    %c0_142 = arith.constant 0 : index
    %c0_143 = arith.constant 0 : index
    %112 = vector.load %arg4[%c1_140, %c2_141, %c0_142, %c0_143] : memref<3x3x32x64xbf16, #tpu.memory_space<vmem>>, vector<1x1x32x64xbf16>
    %113 = vector.shape_cast %112 : vector<1x1x32x64xbf16> to vector<32x64xbf16>
    %cst_144 = arith.constant dense<0.000000e+00> : vector<128x64xf32>
    %114 = tpu.matmul %111, %113, %cst_144 {dimension_numbers = #tpu.dot_dimension_numbers<[1], [0], [0], [1], [0, 0, 1, 1], [], []>} : vector<128x32xbf16>, vector<32x64xbf16>, vector<128x64xf32> -> vector<128x64xf32>
    %115 = arith.addf %108, %114 : vector<128x64xf32>
    %c0_145 = arith.constant 0 : index
    %c2_146 = arith.constant 2 : index
    %c0_147 = arith.constant 0 : index
    %c0_148 = arith.constant 0 : index
    %116 = vector.load %arg13[%c0_145, %c2_146, %c0_147, %c0_148] : memref<2x10x10x32xf32, #tpu.memory_space<vmem>>, vector<2x8x8x32xf32>
    %117 = vector.shape_cast %116 : vector<2x8x8x32xf32> to vector<128x32xf32>
    %118 = arith.truncf %117 : vector<128x32xf32> to vector<128x32xbf16>
    %c2_149 = arith.constant 2 : index
    %c0_150 = arith.constant 0 : index
    %c0_151 = arith.constant 0 : index
    %c0_152 = arith.constant 0 : index
    %119 = vector.load %arg4[%c2_149, %c0_150, %c0_151, %c0_152] : memref<3x3x32x64xbf16, #tpu.memory_space<vmem>>, vector<1x1x32x64xbf16>
    %120 = vector.shape_cast %119 : vector<1x1x32x64xbf16> to vector<32x64xbf16>
    %cst_153 = arith.constant dense<0.000000e+00> : vector<128x64xf32>
    %121 = tpu.matmul %118, %120, %cst_153 {dimension_numbers = #tpu.dot_dimension_numbers<[1], [0], [0], [1], [0, 0, 1, 1], [], []>} : vector<128x32xbf16>, vector<32x64xbf16>, vector<128x64xf32> -> vector<128x64xf32>
    %122 = arith.addf %115, %121 : vector<128x64xf32>
    %c0_154 = arith.constant 0 : index
    %c2_155 = arith.constant 2 : index
    %c1_156 = arith.constant 1 : index
    %c0_157 = arith.constant 0 : index
    %123 = vector.load %arg13[%c0_154, %c2_155, %c1_156, %c0_157] : memref<2x10x10x32xf32, #tpu.memory_space<vmem>>, vector<2x8x8x32xf32>
    %124 = vector.shape_cast %123 : vector<2x8x8x32xf32> to vector<128x32xf32>
    %125 = arith.truncf %124 : vector<128x32xf32> to vector<128x32xbf16>
    %c2_158 = arith.constant 2 : index
    %c1_159 = arith.constant 1 : index
    %c0_160 = arith.constant 0 : index
    %c0_161 = arith.constant 0 : index
    %126 = vector.load %arg4[%c2_158, %c1_159, %c0_160, %c0_161] : memref<3x3x32x64xbf16, #tpu.memory_space<vmem>>, vector<1x1x32x64xbf16>
    %127 = vector.shape_cast %126 : vector<1x1x32x64xbf16> to vector<32x64xbf16>
    %cst_162 = arith.constant dense<0.000000e+00> : vector<128x64xf32>
    %128 = tpu.matmul %125, %127, %cst_162 {dimension_numbers = #tpu.dot_dimension_numbers<[1], [0], [0], [1], [0, 0, 1, 1], [], []>} : vector<128x32xbf16>, vector<32x64xbf16>, vector<128x64xf32> -> vector<128x64xf32>
    %129 = arith.addf %122, %128 : vector<128x64xf32>
    %c0_163 = arith.constant 0 : index
    %c2_164 = arith.constant 2 : index
    %c2_165 = arith.constant 2 : index
    %c0_166 = arith.constant 0 : index
    %130 = vector.load %arg13[%c0_163, %c2_164, %c2_165, %c0_166] : memref<2x10x10x32xf32, #tpu.memory_space<vmem>>, vector<2x8x8x32xf32>
    %131 = vector.shape_cast %130 : vector<2x8x8x32xf32> to vector<128x32xf32>
    %132 = arith.truncf %131 : vector<128x32xf32> to vector<128x32xbf16>
    %c2_167 = arith.constant 2 : index
    %c2_168 = arith.constant 2 : index
    %c0_169 = arith.constant 0 : index
    %c0_170 = arith.constant 0 : index
    %133 = vector.load %arg4[%c2_167, %c2_168, %c0_169, %c0_170] : memref<3x3x32x64xbf16, #tpu.memory_space<vmem>>, vector<1x1x32x64xbf16>
    %134 = vector.shape_cast %133 : vector<1x1x32x64xbf16> to vector<32x64xbf16>
    %cst_171 = arith.constant dense<0.000000e+00> : vector<128x64xf32>
    %135 = tpu.matmul %132, %134, %cst_171 {dimension_numbers = #tpu.dot_dimension_numbers<[1], [0], [0], [1], [0, 0, 1, 1], [], []>} : vector<128x32xbf16>, vector<32x64xbf16>, vector<128x64xf32> -> vector<128x64xf32>
    %136 = arith.addf %129, %135 : vector<128x64xf32>
    %c0_172 = arith.constant 0 : index
    %c0_173 = arith.constant 0 : index
    %137 = vector.load %arg5[%c0_172, %c0_173] : memref<1x64xf32, #tpu.memory_space<vmem>>, vector<1x64xf32>
    %138 = vector.broadcast %137 : vector<1x64xf32> to vector<128x64xf32>
    %139 = arith.addf %136, %138 : vector<128x64xf32>
    %cst_174 = arith.constant 0.000000e+00 : f32
    %140 = vector.broadcast %cst_174 : f32 to vector<128x64xf32>
    %141 = arith.maximumf %139, %140 : vector<128x64xf32>
    %cst_175 = arith.constant 0.000000e+00 : f32
    %142 = vector.broadcast %cst_175 : f32 to vector<2x10x10x64xf32>
    %c0_176 = arith.constant 0 : index
    %c0_177 = arith.constant 0 : index
    %c0_178 = arith.constant 0 : index
    %c0_179 = arith.constant 0 : index
    %143 = vector.load %arg14[%c0_176, %c0_177, %c0_178, %c0_179] : memref<2x10x10x64xf32, #tpu.memory_space<vmem>>, vector<2x10x10x64xf32>
    tpu.vector_store %arg14[%c0_176, %c0_177, %c0_178, %c0_179], %142 {strides = array<i32>} : memref<2x10x10x64xf32, #tpu.memory_space<vmem>>, vector<2x10x10x64xf32>,
    %144 = vector.shape_cast %141 : vector<128x64xf32> to vector<2x8x8x64xf32>
    %c0_180 = arith.constant 0 : index
    %c1_181 = arith.constant 1 : index
    %c1_182 = arith.constant 1 : index
    %c0_183 = arith.constant 0 : index
    %145 = vector.load %arg14[%c0_180, %c1_181, %c1_182, %c0_183] : memref<2x10x10x64xf32, #tpu.memory_space<vmem>>, vector<2x8x8x64xf32>
    tpu.vector_store %arg14[%c0_180, %c1_181, %c1_182, %c0_183], %144 {strides = array<i32>} : memref<2x10x10x64xf32, #tpu.memory_space<vmem>>, vector<2x8x8x64xf32>,
    %cst_184 = arith.constant 0.000000e+00 : f32
    %146 = vector.broadcast %cst_184 : f32 to vector<128x128xf32>
    %c0_185 = arith.constant 0 : index
    %c0_186 = arith.constant 0 : index
    %c0_187 = arith.constant 0 : index
    %c0_188 = arith.constant 0 : index
    %147 = vector.load %arg14[%c0_185, %c0_186, %c0_187, %c0_188] : memref<2x10x10x64xf32, #tpu.memory_space<vmem>>, vector<2x8x8x64xf32>
    %148 = vector.shape_cast %147 : vector<2x8x8x64xf32> to vector<128x64xf32>
    %149 = arith.truncf %148 : vector<128x64xf32> to vector<128x64xbf16>
    %c0_189 = arith.constant 0 : index
    %c0_190 = arith.constant 0 : index
    %c0_191 = arith.constant 0 : index
    %c0_192 = arith.constant 0 : index
    %150 = vector.load %arg6[%c0_189, %c0_190, %c0_191, %c0_192] : memref<3x3x64x128xbf16, #tpu.memory_space<vmem>>, vector<1x1x64x128xbf16>
    %151 = vector.shape_cast %150 : vector<1x1x64x128xbf16> to vector<64x128xbf16>
    %cst_193 = arith.constant dense<0.000000e+00> : vector<128x128xf32>
    %152 = tpu.matmul %149, %151, %cst_193 {dimension_numbers = #tpu.dot_dimension_numbers<[1], [0], [0], [1], [0, 0, 1, 1], [], []>} : vector<128x64xbf16>, vector<64x128xbf16>, vector<128x128xf32> -> vector<128x128xf32>
    %153 = arith.addf %146, %152 : vector<128x128xf32>
    %c0_194 = arith.constant 0 : index
    %c0_195 = arith.constant 0 : index
    %c1_196 = arith.constant 1 : index
    %c0_197 = arith.constant 0 : index
    %154 = vector.load %arg14[%c0_194, %c0_195, %c1_196, %c0_197] : memref<2x10x10x64xf32, #tpu.memory_space<vmem>>, vector<2x8x8x64xf32>
    %155 = vector.shape_cast %154 : vector<2x8x8x64xf32> to vector<128x64xf32>
    %156 = arith.truncf %155 : vector<128x64xf32> to vector<128x64xbf16>
    %c0_198 = arith.constant 0 : index
    %c1_199 = arith.constant 1 : index
    %c0_200 = arith.constant 0 : index
    %c0_201 = arith.constant 0 : index
    %157 = vector.load %arg6[%c0_198, %c1_199, %c0_200, %c0_201] : memref<3x3x64x128xbf16, #tpu.memory_space<vmem>>, vector<1x1x64x128xbf16>
    %158 = vector.shape_cast %157 : vector<1x1x64x128xbf16> to vector<64x128xbf16>
    %cst_202 = arith.constant dense<0.000000e+00> : vector<128x128xf32>
    %159 = tpu.matmul %156, %158, %cst_202 {dimension_numbers = #tpu.dot_dimension_numbers<[1], [0], [0], [1], [0, 0, 1, 1], [], []>} : vector<128x64xbf16>, vector<64x128xbf16>, vector<128x128xf32> -> vector<128x128xf32>
    %160 = arith.addf %153, %159 : vector<128x128xf32>
    %c0_203 = arith.constant 0 : index
    %c0_204 = arith.constant 0 : index
    %c2_205 = arith.constant 2 : index
    %c0_206 = arith.constant 0 : index
    %161 = vector.load %arg14[%c0_203, %c0_204, %c2_205, %c0_206] : memref<2x10x10x64xf32, #tpu.memory_space<vmem>>, vector<2x8x8x64xf32>
    %162 = vector.shape_cast %161 : vector<2x8x8x64xf32> to vector<128x64xf32>
    %163 = arith.truncf %162 : vector<128x64xf32> to vector<128x64xbf16>
    %c0_207 = arith.constant 0 : index
    %c2_208 = arith.constant 2 : index
    %c0_209 = arith.constant 0 : index
    %c0_210 = arith.constant 0 : index
    %164 = vector.load %arg6[%c0_207, %c2_208, %c0_209, %c0_210] : memref<3x3x64x128xbf16, #tpu.memory_space<vmem>>, vector<1x1x64x128xbf16>
    %165 = vector.shape_cast %164 : vector<1x1x64x128xbf16> to vector<64x128xbf16>
    %cst_211 = arith.constant dense<0.000000e+00> : vector<128x128xf32>
    %166 = tpu.matmul %163, %165, %cst_211 {dimension_numbers = #tpu.dot_dimension_numbers<[1], [0], [0], [1], [0, 0, 1, 1], [], []>} : vector<128x64xbf16>, vector<64x128xbf16>, vector<128x128xf32> -> vector<128x128xf32>
    %167 = arith.addf %160, %166 : vector<128x128xf32>
    %c0_212 = arith.constant 0 : index
    %c1_213 = arith.constant 1 : index
    %c0_214 = arith.constant 0 : index
    %c0_215 = arith.constant 0 : index
    %168 = vector.load %arg14[%c0_212, %c1_213, %c0_214, %c0_215] : memref<2x10x10x64xf32, #tpu.memory_space<vmem>>, vector<2x8x8x64xf32>
    %169 = vector.shape_cast %168 : vector<2x8x8x64xf32> to vector<128x64xf32>
    %170 = arith.truncf %169 : vector<128x64xf32> to vector<128x64xbf16>
    %c1_216 = arith.constant 1 : index
    %c0_217 = arith.constant 0 : index
    %c0_218 = arith.constant 0 : index
    %c0_219 = arith.constant 0 : index
    %171 = vector.load %arg6[%c1_216, %c0_217, %c0_218, %c0_219] : memref<3x3x64x128xbf16, #tpu.memory_space<vmem>>, vector<1x1x64x128xbf16>
    %172 = vector.shape_cast %171 : vector<1x1x64x128xbf16> to vector<64x128xbf16>
    %cst_220 = arith.constant dense<0.000000e+00> : vector<128x128xf32>
    %173 = tpu.matmul %170, %172, %cst_220 {dimension_numbers = #tpu.dot_dimension_numbers<[1], [0], [0], [1], [0, 0, 1, 1], [], []>} : vector<128x64xbf16>, vector<64x128xbf16>, vector<128x128xf32> -> vector<128x128xf32>
    %174 = arith.addf %167, %173 : vector<128x128xf32>
    %c0_221 = arith.constant 0 : index
    %c1_222 = arith.constant 1 : index
    %c1_223 = arith.constant 1 : index
    %c0_224 = arith.constant 0 : index
    %175 = vector.load %arg14[%c0_221, %c1_222, %c1_223, %c0_224] : memref<2x10x10x64xf32, #tpu.memory_space<vmem>>, vector<2x8x8x64xf32>
    %176 = vector.shape_cast %175 : vector<2x8x8x64xf32> to vector<128x64xf32>
    %177 = arith.truncf %176 : vector<128x64xf32> to vector<128x64xbf16>
    %c1_225 = arith.constant 1 : index
    %c1_226 = arith.constant 1 : index
    %c0_227 = arith.constant 0 : index
    %c0_228 = arith.constant 0 : index
    %178 = vector.load %arg6[%c1_225, %c1_226, %c0_227, %c0_228] : memref<3x3x64x128xbf16, #tpu.memory_space<vmem>>, vector<1x1x64x128xbf16>
    %179 = vector.shape_cast %178 : vector<1x1x64x128xbf16> to vector<64x128xbf16>
    %cst_229 = arith.constant dense<0.000000e+00> : vector<128x128xf32>
    %180 = tpu.matmul %177, %179, %cst_229 {dimension_numbers = #tpu.dot_dimension_numbers<[1], [0], [0], [1], [0, 0, 1, 1], [], []>} : vector<128x64xbf16>, vector<64x128xbf16>, vector<128x128xf32> -> vector<128x128xf32>
    %181 = arith.addf %174, %180 : vector<128x128xf32>
    %c0_230 = arith.constant 0 : index
    %c1_231 = arith.constant 1 : index
    %c2_232 = arith.constant 2 : index
    %c0_233 = arith.constant 0 : index
    %182 = vector.load %arg14[%c0_230, %c1_231, %c2_232, %c0_233] : memref<2x10x10x64xf32, #tpu.memory_space<vmem>>, vector<2x8x8x64xf32>
    %183 = vector.shape_cast %182 : vector<2x8x8x64xf32> to vector<128x64xf32>
    %184 = arith.truncf %183 : vector<128x64xf32> to vector<128x64xbf16>
    %c1_234 = arith.constant 1 : index
    %c2_235 = arith.constant 2 : index
    %c0_236 = arith.constant 0 : index
    %c0_237 = arith.constant 0 : index
    %185 = vector.load %arg6[%c1_234, %c2_235, %c0_236, %c0_237] : memref<3x3x64x128xbf16, #tpu.memory_space<vmem>>, vector<1x1x64x128xbf16>
    %186 = vector.shape_cast %185 : vector<1x1x64x128xbf16> to vector<64x128xbf16>
    %cst_238 = arith.constant dense<0.000000e+00> : vector<128x128xf32>
    %187 = tpu.matmul %184, %186, %cst_238 {dimension_numbers = #tpu.dot_dimension_numbers<[1], [0], [0], [1], [0, 0, 1, 1], [], []>} : vector<128x64xbf16>, vector<64x128xbf16>, vector<128x128xf32> -> vector<128x128xf32>
    %188 = arith.addf %181, %187 : vector<128x128xf32>
    %c0_239 = arith.constant 0 : index
    %c2_240 = arith.constant 2 : index
    %c0_241 = arith.constant 0 : index
    %c0_242 = arith.constant 0 : index
    %189 = vector.load %arg14[%c0_239, %c2_240, %c0_241, %c0_242] : memref<2x10x10x64xf32, #tpu.memory_space<vmem>>, vector<2x8x8x64xf32>
    %190 = vector.shape_cast %189 : vector<2x8x8x64xf32> to vector<128x64xf32>
    %191 = arith.truncf %190 : vector<128x64xf32> to vector<128x64xbf16>
    %c2_243 = arith.constant 2 : index
    %c0_244 = arith.constant 0 : index
    %c0_245 = arith.constant 0 : index
    %c0_246 = arith.constant 0 : index
    %192 = vector.load %arg6[%c2_243, %c0_244, %c0_245, %c0_246] : memref<3x3x64x128xbf16, #tpu.memory_space<vmem>>, vector<1x1x64x128xbf16>
    %193 = vector.shape_cast %192 : vector<1x1x64x128xbf16> to vector<64x128xbf16>
    %cst_247 = arith.constant dense<0.000000e+00> : vector<128x128xf32>
    %194 = tpu.matmul %191, %193, %cst_247 {dimension_numbers = #tpu.dot_dimension_numbers<[1], [0], [0], [1], [0, 0, 1, 1], [], []>} : vector<128x64xbf16>, vector<64x128xbf16>, vector<128x128xf32> -> vector<128x128xf32>
    %195 = arith.addf %188, %194 : vector<128x128xf32>
    %c0_248 = arith.constant 0 : index
    %c2_249 = arith.constant 2 : index
    %c1_250 = arith.constant 1 : index
    %c0_251 = arith.constant 0 : index
    %196 = vector.load %arg14[%c0_248, %c2_249, %c1_250, %c0_251] : memref<2x10x10x64xf32, #tpu.memory_space<vmem>>, vector<2x8x8x64xf32>
    %197 = vector.shape_cast %196 : vector<2x8x8x64xf32> to vector<128x64xf32>
    %198 = arith.truncf %197 : vector<128x64xf32> to vector<128x64xbf16>
    %c2_252 = arith.constant 2 : index
    %c1_253 = arith.constant 1 : index
    %c0_254 = arith.constant 0 : index
    %c0_255 = arith.constant 0 : index
    %199 = vector.load %arg6[%c2_252, %c1_253, %c0_254, %c0_255] : memref<3x3x64x128xbf16, #tpu.memory_space<vmem>>, vector<1x1x64x128xbf16>
    %200 = vector.shape_cast %199 : vector<1x1x64x128xbf16> to vector<64x128xbf16>
    %cst_256 = arith.constant dense<0.000000e+00> : vector<128x128xf32>
    %201 = tpu.matmul %198, %200, %cst_256 {dimension_numbers = #tpu.dot_dimension_numbers<[1], [0], [0], [1], [0, 0, 1, 1], [], []>} : vector<128x64xbf16>, vector<64x128xbf16>, vector<128x128xf32> -> vector<128x128xf32>
    %202 = arith.addf %195, %201 : vector<128x128xf32>
    %c0_257 = arith.constant 0 : index
    %c2_258 = arith.constant 2 : index
    %c2_259 = arith.constant 2 : index
    %c0_260 = arith.constant 0 : index
    %203 = vector.load %arg14[%c0_257, %c2_258, %c2_259, %c0_260] : memref<2x10x10x64xf32, #tpu.memory_space<vmem>>, vector<2x8x8x64xf32>
    %204 = vector.shape_cast %203 : vector<2x8x8x64xf32> to vector<128x64xf32>
    %205 = arith.truncf %204 : vector<128x64xf32> to vector<128x64xbf16>
    %c2_261 = arith.constant 2 : index
    %c2_262 = arith.constant 2 : index
    %c0_263 = arith.constant 0 : index
    %c0_264 = arith.constant 0 : index
    %206 = vector.load %arg6[%c2_261, %c2_262, %c0_263, %c0_264] : memref<3x3x64x128xbf16, #tpu.memory_space<vmem>>, vector<1x1x64x128xbf16>
    %207 = vector.shape_cast %206 : vector<1x1x64x128xbf16> to vector<64x128xbf16>
    %cst_265 = arith.constant dense<0.000000e+00> : vector<128x128xf32>
    %208 = tpu.matmul %205, %207, %cst_265 {dimension_numbers = #tpu.dot_dimension_numbers<[1], [0], [0], [1], [0, 0, 1, 1], [], []>} : vector<128x64xbf16>, vector<64x128xbf16>, vector<128x128xf32> -> vector<128x128xf32>
    %209 = arith.addf %202, %208 : vector<128x128xf32>
    %c0_266 = arith.constant 0 : index
    %c0_267 = arith.constant 0 : index
    %210 = vector.load %arg7[%c0_266, %c0_267] : memref<1x128xf32, #tpu.memory_space<vmem>>, vector<1x128xf32>
    %211 = vector.broadcast %210 : vector<1x128xf32> to vector<128x128xf32>
    %212 = arith.addf %209, %211 : vector<128x128xf32>
    %cst_268 = arith.constant 0.000000e+00 : f32
    %213 = vector.broadcast %cst_268 : f32 to vector<128x128xf32>
    %214 = arith.maximumf %212, %213 : vector<128x128xf32>
    %215 = vector.shape_cast %214 : vector<128x128xf32> to vector<2x8192xf32>
    %216 = arith.truncf %215 : vector<2x8192xf32> to vector<2x8192xbf16>
    %c0_269 = arith.constant 0 : index
    %c0_270 = arith.constant 0 : index
    %217 = vector.load %arg8[%c0_269, %c0_270] : memref<8192x256xbf16, #tpu.memory_space<vmem>>, vector<8192x256xbf16>
    %cst_271 = arith.constant dense<0.000000e+00> : vector<2x256xf32>
    %218 = tpu.matmul %216, %217, %cst_271 {dimension_numbers = #tpu.dot_dimension_numbers<[1], [0], [0], [1], [0, 0, 1, 1], [], []>} : vector<2x8192xbf16>, vector<8192x256xbf16>, vector<2x256xf32> -> vector<2x256xf32>
    %c0_272 = arith.constant 0 : index
    %c0_273 = arith.constant 0 : index
    %219 = vector.load %arg9[%c0_272, %c0_273] : memref<1x256xf32, #tpu.memory_space<vmem>>, vector<1x256xf32>
    %220 = vector.broadcast %219 : vector<1x256xf32> to vector<2x256xf32>
    %221 = arith.addf %218, %220 : vector<2x256xf32>
    %cst_274 = arith.constant 0.000000e+00 : f32
    %222 = vector.broadcast %cst_274 : f32 to vector<2x256xf32>
    %223 = arith.maximumf %221, %222 : vector<2x256xf32>
    %c0_275 = arith.constant 0 : index
    %c0_276 = arith.constant 0 : index
    %224 = vector.load %arg10[%c0_275, %c0_276] : memref<1x256xf32, #tpu.memory_space<vmem>>, vector<1x256xf32>
    %225 = vector.broadcast %224 : vector<1x256xf32> to vector<2x256xf32>
    %226 = arith.mulf %223, %225 : vector<2x256xf32>
    %cst_277 = arith.constant dense<0.000000e+00> : vector<2xf32>
    %227 = vector.multi_reduction <add>, %226, %cst_277 [1] : vector<2x256xf32> to vector<2xf32>
    %228 = vector.shape_cast %227 : vector<2xf32> to vector<2x1xf32>
    %c0_278 = arith.constant 0 : index
    %c0_279 = arith.constant 0 : index
    %229 = vector.load %arg11[%c0_278, %c0_279] : memref<1x1xf32, #tpu.memory_space<vmem>>, vector<1x1xf32>
    %230 = vector.broadcast %229 : vector<1x1xf32> to vector<2x1xf32>
    %231 = arith.addf %228, %230 : vector<2x1xf32>
    %232 = math.tanh %231 : vector<2x1xf32>
    %c0_280 = arith.constant 0 : index
    %c0_281 = arith.constant 0 : index
    %233 = vector.load %arg12[%c0_280, %c0_281] : memref<2x1xf32, #tpu.memory_space<vmem>>, vector<2x1xf32>
    tpu.vector_store %arg12[%c0_280, %c0_281], %232 {strides = array<i32>} : memref<2x1xf32, #tpu.memory_space<vmem>>, vector<2x1xf32>,
    return
  }
  func.func @transform_0(%arg0: i32) -> (i32, i32, i32, i32) {
    %c0_i32 = arith.constant 0 : i32
    %c0_i32_0 = arith.constant 0 : i32
    %c0_i32_1 = arith.constant 0 : i32
    %c0_i32_2 = arith.constant 0 : i32
    return %arg0, %c0_i32, %c0_i32_0, %c0_i32_1 : i32, i32, i32, i32
  }
  func.func @transform_1(%arg0: i32) -> (i32, i32, i32, i32) {
    %c0_i32 = arith.constant 0 : i32
    %c0_i32_0 = arith.constant 0 : i32
    %c0_i32_1 = arith.constant 0 : i32
    %c0_i32_2 = arith.constant 0 : i32
    %c0_i32_3 = arith.constant 0 : i32
    return %c0_i32, %c0_i32_0, %c0_i32_1, %c0_i32_2 : i32, i32, i32, i32
  }
  func.func @transform_2(%arg0: i32) -> (i32, i32) {
    %c0_i32 = arith.constant 0 : i32
    %c0_i32_0 = arith.constant 0 : i32
    %c0_i32_1 = arith.constant 0 : i32
    return %c0_i32, %c0_i32_0 : i32, i32
  }
  func.func @transform_3(%arg0: i32) -> (i32, i32, i32, i32) {
    %c0_i32 = arith.constant 0 : i32
    %c0_i32_0 = arith.constant 0 : i32
    %c0_i32_1 = arith.constant 0 : i32
    %c0_i32_2 = arith.constant 0 : i32
    %c0_i32_3 = arith.constant 0 : i32
    return %c0_i32, %c0_i32_0, %c0_i32_1, %c0_i32_2 : i32, i32, i32, i32
  }
  func.func @transform_4(%arg0: i32) -> (i32, i32) {
    %c0_i32 = arith.constant 0 : i32
    %c0_i32_0 = arith.constant 0 : i32
    %c0_i32_1 = arith.constant 0 : i32
    return %c0_i32, %c0_i32_0 : i32, i32
  }
  func.func @transform_5(%arg0: i32) -> (i32, i32, i32, i32) {
    %c0_i32 = arith.constant 0 : i32
    %c0_i32_0 = arith.constant 0 : i32
    %c0_i32_1 = arith.constant 0 : i32
    %c0_i32_2 = arith.constant 0 : i32
    %c0_i32_3 = arith.constant 0 : i32
    return %c0_i32, %c0_i32_0, %c0_i32_1, %c0_i32_2 : i32, i32, i32, i32
  }
  func.func @transform_6(%arg0: i32) -> (i32, i32) {
    %c0_i32 = arith.constant 0 : i32
    %c0_i32_0 = arith.constant 0 : i32
    %c0_i32_1 = arith.constant 0 : i32
    return %c0_i32, %c0_i32_0 : i32, i32
  }
  func.func @transform_7(%arg0: i32) -> (i32, i32) {
    %c0_i32 = arith.constant 0 : i32
    %c0_i32_0 = arith.constant 0 : i32
    %c0_i32_1 = arith.constant 0 : i32
    return %c0_i32, %c0_i32_0 : i32, i32
  }
  func.func @transform_8(%arg0: i32) -> (i32, i32) {
    %c0_i32 = arith.constant 0 : i32
    %c0_i32_0 = arith.constant 0 : i32
    %c0_i32_1 = arith.constant 0 : i32
    return %c0_i32, %c0_i32_0 : i32, i32
  }
  func.func @transform_9(%arg0: i32) -> (i32, i32) {
    %c0_i32 = arith.constant 0 : i32
    %c0_i32_0 = arith.constant 0 : i32
    %c0_i32_1 = arith.constant 0 : i32
    return %c0_i32, %c0_i32_0 : i32, i32
  }
  func.func @transform_10(%arg0: i32) -> (i32, i32) {
    %c0_i32 = arith.constant 0 : i32
    %c0_i32_0 = arith.constant 0 : i32
    %c0_i32_1 = arith.constant 0 : i32
    return %c0_i32, %c0_i32_0 : i32, i32
  }
  func.func @transform_11(%arg0: i32) -> (i32, i32) {
    %c0_i32 = arith.constant 0 : i32
    %c0_i32_0 = arith.constant 0 : i32
    return %arg0, %c0_i32 : i32, i32
  }
}

</mosaic_0001>

<llo_original>
// kernel: thunderbyte_forward.1
$region0: #{thunderbyte_forward.1}
  #allocation0 [shape = 'u32[]', space=smem, size = 0x4, offset = 0x4, fixed_abs, tag = 'smem constant byte address 0x4 - core index']
  #allocation1 [shape = 'u32[144,128]{1,0:T(1,128)}', space=vmem, size = 0x12000, scoped, tag = 'internal scratch']
  #allocation2 [shape = 'f32[2,10,10,32]{3,2,1,0:T(8,128)}', space=vmem, size = 0x28000, scoped, tag = 'scratch operand']
  #allocation3 [shape = 'f32[2,10,10,64]{3,2,1,0:T(8,128)}', space=vmem, size = 0x28000, scoped, tag = 'scratch operand']
  #allocation4 [shape = 'f32[1,1]{1,0:T(1,128)S(1)}', space=vmem, size = 0x200, scoped, tag = 'scoped memory for thunderbyte_forward.1']
  %s0 = inlined_call_operand.vmem [shape: f32[2,10,10,16], index: 0, kind: input, shape index: {}]
  %s1 = inlined_call_operand.hbm [shape: bf16[3,3,16,32], index: 1, kind: input, shape index: {}]
  %s2 = inlined_call_operand.hbm [shape: f32[1,32], index: 2, kind: input, shape index: {}]
  %s3 = inlined_call_operand.hbm [shape: bf16[3,3,32,64], index: 3, kind: input, shape index: {}]
  %s4 = inlined_call_operand.hbm [shape: f32[1,64], index: 4, kind: input, shape index: {}]
  %s5 = inlined_call_operand.hbm [shape: bf16[3,3,64,128], index: 5, kind: input, shape index: {}]
  %s6 = inlined_call_operand.hbm [shape: f32[1,128], index: 6, kind: input, shape index: {}]
  %s7 = inlined_call_operand.hbm [shape: bf16[8192,256], index: 7, kind: input, shape index: {}]
  %s8 = inlined_call_operand.hbm [shape: f32[1,256], index: 8, kind: input, shape index: {}]
  %s9 = inlined_call_operand.hbm [shape: f32[1,256], index: 9, kind: input, shape index: {}]
  %s10 = inlined_call_operand.<no memory space> [shape: f32[1,1], index: 10, kind: input, shape index: {}]
  %s11 = inlined_call_operand.vmem [shape: f32[2,1], index: 11, kind: output, shape index: {}]
  %s12 = sld [smem:[#allocation0]]
  $region90: #{thunderbyte_forward.1} parent=0
    _
  %s14 = ssub.s32 1, %s12
  %s15 = scalar_select 0, %s14, %s12
  %v16 = vstv %s10
  %17 = vst [vmem:[#allocation4] sm:$0x1] %v16
  $region1: #{thunderbyte_forward.1} parent=0
    #allocation5 [shape = 'u8[36864]{0}', space=vmem, size = 0x9000, scoped, tag = 'input window, operand 1, single buffered']
    #allocation6 [shape = 's32[1]{0}', space=sflag, size = 0x4, scoped, tag = 'scoped memory for thunderbyte_forward.1']
    #allocation7 [shape = 'u8[512]{0}', space=vmem, size = 0x400, scoped, tag = 'input window, operand 2, single buffered']
    #allocation8 [shape = 's32[1]{0}', space=sflag, size = 0x4, scoped, tag = 'scoped memory for thunderbyte_forward.1']
    #allocation9 [shape = 'u8[73728]{0}', space=vmem, size = 0x12000, scoped, tag = 'input window, operand 3, single buffered']
    #allocation10 [shape = 'u8[512]{0}', space=vmem, size = 0x400, scoped, tag = 'input window, operand 4, single buffered']
    #allocation11 [shape = 's32[1]{0}', space=sflag, size = 0x4, scoped, tag = 'scoped memory for thunderbyte_forward.1']
    #allocation12 [shape = 'u8[147456]{0}', space=vmem, size = 0x24000, scoped, tag = 'input window, operand 5, single buffered']
    #allocation13 [shape = 'u8[512]{0}', space=vmem, size = 0x400, scoped, tag = 'input window, operand 6, single buffered']
    #allocation14 [shape = 's32[1]{0}', space=sflag, size = 0x4, scoped, tag = 'scoped memory for thunderbyte_forward.1']
    #allocation15 [shape = 'u8[4194304]{0}', space=vmem, size = 0x400000, scoped, tag = 'input window, operand 7, single buffered']
    #allocation16 [shape = 'u8[1024]{0}', space=vmem, size = 0x400, scoped, tag = 'input window, operand 8, single buffered']
    #allocation17 [shape = 's32[1]{0}', space=sflag, size = 0x4, scoped, tag = 'scoped memory for thunderbyte_forward.1']
    #allocation18 [shape = 'u8[1024]{0}', space=vmem, size = 0x400, scoped, tag = 'input window, operand 9, single buffered']
    %18 = vsyncpa [#allocation6], 0
    %19 = vsyncpa [#allocation8], 0
    %20 = vsyncpa [#allocation11], 0
    %21 = vsyncpa [#allocation14], 0
    %22 = vsyncpa [#allocation17], 0
    // Predicated region
    $region2: #{thunderbyte_forward.1} parent=1 // pred_check
      _
    $region3: #{thunderbyte_forward.1} parent=1 // pred_check_branch
      %24 = sbr.rel (0) target = $region5
    $region4: #{thunderbyte_forward.1} parent=1 // pred_region
      _
    $region5: #{thunderbyte_forward.1} parent=1 // pred_fallthru
      _
    // Predicated region
    $region6: #{thunderbyte_forward.1} parent=1 // pred_check
      _
    $region7: #{thunderbyte_forward.1} parent=1 // pred_check_branch
      %26 = sbr.rel (0) target = $region9
    $region8: #{thunderbyte_forward.1} parent=1 // pred_region
      %s28 = ssub.s32 1152, 1152
      %29 = vsyncadd [#allocation6], %s28
      %s30 = sshll.u32 [#allocation5], 4
      %s31 = int_to_ptr.vmem [resolvable:$true] %s30
      %36 = dma.hbm_to_vmem [thread:$0]  %s1, 1152, %s31, [#allocation6], 64, 64, 4
    $region9: #{thunderbyte_forward.1} parent=1 // pred_fallthru
      _
    // Predicated region
    $region10: #{thunderbyte_forward.1} parent=1 // pred_check
      _
    $region11: #{thunderbyte_forward.1} parent=1 // pred_check_branch
      %38 = sbr.rel (0) target = $region13
    $region12: #{thunderbyte_forward.1} parent=1 // pred_region
      %s40 = ssub.s32 16, 16
      %41 = vsyncadd [#allocation8], %s40
      %s43 = sshll.u32 [#allocation7], 4
      %s44 = int_to_ptr.vmem [resolvable:$true] %s43
      %46 = dma.hbm_to_vmem [thread:$0]  %s2, 16, %s44, [#allocation8]
    $region13: #{thunderbyte_forward.1} parent=1 // pred_fallthru
      _
    // Predicated region
    $region14: #{thunderbyte_forward.1} parent=1 // pred_check
      _
    $region15: #{thunderbyte_forward.1} parent=1 // pred_check_branch
      %48 = sbr.rel (0) target = $region17
    $region16: #{thunderbyte_forward.1} parent=1 // pred_region
      %s50 = ssub.s32 2304, 2304
      %51 = vsyncadd [#allocation8], %s50
      %s52 = sshll.u32 [#allocation9], 4
      %s53 = int_to_ptr.vmem [resolvable:$true] %s52
      %58 = dma.hbm_to_vmem [thread:$0]  %s3, 2304, %s53, [#allocation8], 64, 64, 4
    $region17: #{thunderbyte_forward.1} parent=1 // pred_fallthru
      _
    // Predicated region
    $region18: #{thunderbyte_forward.1} parent=1 // pred_check
      _
    $region19: #{thunderbyte_forward.1} parent=1 // pred_check_branch
      %60 = sbr.rel (0) target = $region21
    $region20: #{thunderbyte_forward.1} parent=1 // pred_region
      %s62 = ssub.s32 16, 16
      %63 = vsyncadd [#allocation11], %s62
      %s65 = sshll.u32 [#allocation10], 4
      %s66 = int_to_ptr.vmem [resolvable:$true] %s65
      %68 = dma.hbm_to_vmem [thread:$0]  %s4, 16, %s66, [#allocation11]
    $region21: #{thunderbyte_forward.1} parent=1 // pred_fallthru
      _
    // Predicated region
    $region22: #{thunderbyte_forward.1} parent=1 // pred_check
      _
    $region23: #{thunderbyte_forward.1} parent=1 // pred_check_branch
      %70 = sbr.rel (0) target = $region25
    $region24: #{thunderbyte_forward.1} parent=1 // pred_region
      %s72 = ssub.s32 4608, 4608
      %73 = vsyncadd [#allocation11], %s72
      %s74 = sshll.u32 [#allocation12], 4
      %s75 = int_to_ptr.vmem [resolvable:$true] %s74
      %80 = dma.hbm_to_vmem [thread:$0]  %s5, 4608, %s75, [#allocation11], 64, 64, 4
    $region25: #{thunderbyte_forward.1} parent=1 // pred_fallthru
      _
    // Predicated region
    $region26: #{thunderbyte_forward.1} parent=1 // pred_check
      _
    $region27: #{thunderbyte_forward.1} parent=1 // pred_check_branch
      %82 = sbr.rel (0) target = $region29
    $region28: #{thunderbyte_forward.1} parent=1 // pred_region
      %s84 = ssub.s32 16, 16
      %85 = vsyncadd [#allocation14], %s84
      %s87 = sshll.u32 [#allocation13], 4
      %s88 = int_to_ptr.vmem [resolvable:$true] %s87
      %90 = dma.hbm_to_vmem [thread:$0]  %s6, 16, %s88, [#allocation14]
    $region29: #{thunderbyte_forward.1} parent=1 // pred_fallthru
      _
    // Predicated region
    $region30: #{thunderbyte_forward.1} parent=1 // pred_check
      _
    $region31: #{thunderbyte_forward.1} parent=1 // pred_check_branch
      %92 = sbr.rel (0) target = $region33
    $region32: #{thunderbyte_forward.1} parent=1 // pred_region
      %s94 = ssub.s32 131072, 131072
      %95 = vsyncadd [#allocation14], %s94
      %s96 = sshll.u32 [#allocation15], 4
      %s97 = int_to_ptr.vmem [resolvable:$true] %s96
      %102 = dma.hbm_to_vmem [thread:$0]  %s7, 131072, %s97, [#allocation14], 128, 128, 8
    $region33: #{thunderbyte_forward.1} parent=1 // pred_fallthru
      _
    // Predicated region
    $region34: #{thunderbyte_forward.1} parent=1 // pred_check
      _
    $region35: #{thunderbyte_forward.1} parent=1 // pred_check_branch
      %104 = sbr.rel (0) target = $region37
    $region36: #{thunderbyte_forward.1} parent=1 // pred_region
      %s106 = ssub.s32 32, 32
      %107 = vsyncadd [#allocation17], %s106
      %s109 = sshll.u32 [#allocation16], 4
      %s110 = int_to_ptr.vmem [resolvable:$true] %s109
      %112 = dma.hbm_to_vmem [thread:$0]  %s8, 32, %s110, [#allocation17]
    $region37: #{thunderbyte_forward.1} parent=1 // pred_fallthru
      _
    // Predicated region
    $region38: #{thunderbyte_forward.1} parent=1 // pred_check
      _
    $region39: #{thunderbyte_forward.1} parent=1 // pred_check_branch
      %114 = sbr.rel (0) target = $region41
    $region40: #{thunderbyte_forward.1} parent=1 // pred_region
      %s116 = ssub.s32 32, 32
      %117 = vsyncadd [#allocation17], %s116
      %s119 = sshll.u32 [#allocation18], 4
      %s120 = int_to_ptr.vmem [resolvable:$true] %s119
      %122 = dma.hbm_to_vmem [thread:$0]  %s9, 32, %s120, [#allocation17]
    $region41: #{thunderbyte_forward.1} parent=1 // pred_fallthru
      _
    // Predicated region
    $region42: #{thunderbyte_forward.1} parent=1 // pred_check
      _
    $region43: #{thunderbyte_forward.1} parent=1 // pred_check_branch
      %124 = sbr.rel (0) target = $region45
    $region44: #{thunderbyte_forward.1} parent=1 // pred_region
      _
    $region45: #{thunderbyte_forward.1} parent=1 // pred_fallthru
      _
    // Predicated region
    $region46: #{thunderbyte_forward.1} parent=1 // pred_check
      _
    $region47: #{thunderbyte_forward.1} parent=1 // pred_check_branch
      %126 = sbr.rel (0) target = $region49
    $region48: #{thunderbyte_forward.1} parent=1 // pred_region
      %127 = dma.done [#allocation6], 1152
    $region49: #{thunderbyte_forward.1} parent=1 // pred_fallthru
      _
    // Predicated region
    $region50: #{thunderbyte_forward.1} parent=1 // pred_check
      _
    $region51: #{thunderbyte_forward.1} parent=1 // pred_check_branch
      %129 = sbr.rel (0) target = $region53
    $region52: #{thunderbyte_forward.1} parent=1 // pred_region
      %130 = dma.done [#allocation8], 16
    $region53: #{thunderbyte_forward.1} parent=1 // pred_fallthru
      _
    // Predicated region
    $region54: #{thunderbyte_forward.1} parent=1 // pred_check
      _
    $region55: #{thunderbyte_forward.1} parent=1 // pred_check_branch
      %132 = sbr.rel (0) target = $region57
    $region56: #{thunderbyte_forward.1} parent=1 // pred_region
      %133 = dma.done [#allocation8], 2304
    $region57: #{thunderbyte_forward.1} parent=1 // pred_fallthru
      _
    // Predicated region
    $region58: #{thunderbyte_forward.1} parent=1 // pred_check
      _
    $region59: #{thunderbyte_forward.1} parent=1 // pred_check_branch
      %135 = sbr.rel (0) target = $region61
    $region60: #{thunderbyte_forward.1} parent=1 // pred_region
      %136 = dma.done [#allocation11], 16
    $region61: #{thunderbyte_forward.1} parent=1 // pred_fallthru
      _
    // Predicated region
    $region62: #{thunderbyte_forward.1} parent=1 // pred_check
      _
    $region63: #{thunderbyte_forward.1} parent=1 // pred_check_branch
      %138 = sbr.rel (0) target = $region65
    $region64: #{thunderbyte_forward.1} parent=1 // pred_region
      %139 = dma.done [#allocation11], 4608
    $region65: #{thunderbyte_forward.1} parent=1 // pred_fallthru
      _
    // Predicated region
    $region66: #{thunderbyte_forward.1} parent=1 // pred_check
      _
    $region67: #{thunderbyte_forward.1} parent=1 // pred_check_branch
      %141 = sbr.rel (0) target = $region69
    $region68: #{thunderbyte_forward.1} parent=1 // pred_region
      %142 = dma.done [#allocation14], 16
    $region69: #{thunderbyte_forward.1} parent=1 // pred_fallthru
      _
    // Predicated region
    $region70: #{thunderbyte_forward.1} parent=1 // pred_check
      _
    $region71: #{thunderbyte_forward.1} parent=1 // pred_check_branch
      %144 = sbr.rel (0) target = $region73
    $region72: #{thunderbyte_forward.1} parent=1 // pred_region
      %145 = dma.done [#allocation14], 131072
    $region73: #{thunderbyte_forward.1} parent=1 // pred_fallthru
      _
    // Predicated region
    $region74: #{thunderbyte_forward.1} parent=1 // pred_check
      _
    $region75: #{thunderbyte_forward.1} parent=1 // pred_check_branch
      %147 = sbr.rel (0) target = $region77
    $region76: #{thunderbyte_forward.1} parent=1 // pred_region
      %148 = dma.done [#allocation17], 32
    $region77: #{thunderbyte_forward.1} parent=1 // pred_fallthru
      _
    // Predicated region
    $region78: #{thunderbyte_forward.1} parent=1 // pred_check
      _
    $region79: #{thunderbyte_forward.1} parent=1 // pred_check_branch
      %150 = sbr.rel (0) target = $region81
    $region80: #{thunderbyte_forward.1} parent=1 // pred_region
      %151 = dma.done [#allocation17], 32
    $region81: #{thunderbyte_forward.1} parent=1 // pred_fallthru
      _
    %v153 = vld [vmem:[%s0] sm:$0xff]
    %v154 = vld [vmem:[%s0 + $0x10] sm:$0xff]
    %v155 = vld [vmem:[%s0 + $0x20] sm:$0xff]
    %v156 = vld [vmem:[%s0 + $0x30] sm:$0xff]
    %v157 = vld [vmem:[%s0 + $0x40] sm:$0xff]
    %v158 = vld [vmem:[%s0 + $0x50] sm:$0xff]
    %v159 = vld [vmem:[%s0 + $0x60] sm:$0xff]
    %v160 = vld [vmem:[%s0 + $0x70] sm:$0xff]
    %v161 = vld [vmem:[%s0 + $0xa0] sm:$0xff]
    %v162 = vld [vmem:[%s0 + $0xb0] sm:$0xff]
    %v163 = vld [vmem:[%s0 + $0xc0] sm:$0xff]
    %v164 = vld [vmem:[%s0 + $0xd0] sm:$0xff]
    %v165 = vld [vmem:[%s0 + $0xe0] sm:$0xff]
    %v166 = vld [vmem:[%s0 + $0xf0] sm:$0xff]
    %v167 = vld [vmem:[%s0 + $0x100] sm:$0xff]
    %v168 = vld [vmem:[%s0 + $0x110] sm:$0xff]
    %v169 = vpack.c.bf16 %v154, %v153
    %v170 = vpack.c.bf16 %v156, %v155
    %v171 = vpack.c.bf16 %v158, %v157
    %v172 = vpack.c.bf16 %v160, %v159
    %v173 = vpack.c.bf16 %v162, %v161
    %v174 = vpack.c.bf16 %v164, %v163
    %v175 = vpack.c.bf16 %v166, %v165
    %v176 = vpack.c.bf16 %v168, %v167
    %v177 = vld [vmem:[#allocation5] sm:$0xf]
    %v178 = vld [vmem:[#allocation5 + $0x4] sm:$0xf]
    %v179 = vld [vmem:[%s0 + $0x1] sm:$0xff]
    %v180 = vld [vmem:[%s0 + $0x11] sm:$0xff]
    %v181 = vld [vmem:[%s0 + $0x21] sm:$0xff]
    %v182 = vld [vmem:[%s0 + $0x31] sm:$0xff]
    %v183 = vld [vmem:[%s0 + $0x41] sm:$0xff]
    %v184 = vld [vmem:[%s0 + $0x51] sm:$0xff]
    %v185 = vld [vmem:[%s0 + $0x61] sm:$0xff]
    %v186 = vld [vmem:[%s0 + $0x71] sm:$0xff]
    %v187 = vld [vmem:[%s0 + $0xa1] sm:$0xff]
    %v188 = vld [vmem:[%s0 + $0xb1] sm:$0xff]
    %v189 = vld [vmem:[%s0 + $0xc1] sm:$0xff]
    %v190 = vld [vmem:[%s0 + $0xd1] sm:$0xff]
    %v191 = vld [vmem:[%s0 + $0xe1] sm:$0xff]
    %v192 = vld [vmem:[%s0 + $0xf1] sm:$0xff]
    %v193 = vld [vmem:[%s0 + $0x101] sm:$0xff]
    %v194 = vld [vmem:[%s0 + $0x111] sm:$0xff]
    %v195 = vpack.c.bf16 %v180, %v179
    %v196 = vpack.c.bf16 %v182, %v181
    %v197 = vpack.c.bf16 %v184, %v183
    %v198 = vpack.c.bf16 %v186, %v185
    %v199 = vpack.c.bf16 %v188, %v187
    %v200 = vpack.c.bf16 %v190, %v189
    %v201 = vpack.c.bf16 %v192, %v191
    %v202 = vpack.c.bf16 %v194, %v193
    %s203 = scalar_lea.vmem [#allocation5], 8
    %v204 = vld [vmem:[%s203] sm:$0xf]
    %v205 = vld [vmem:[%s203 + $0x4] sm:$0xf]
    %v208 = vunpack.c.l.b16 %v204
    %v209 = vunpack.c.l.b16 %v205
    %v210 = vpack.c.b16 %v209, %v208
    %vm212 = vcmask 130048
    %v214 = vsel %vm212, %v195, 0
    %v217 = vsel %vm212, %v196, 0
    %v220 = vsel %vm212, %v197, 0
    %v223 = vsel %vm212, %v198, 0
    %v226 = vsel %vm212, %v199, 0
    %v229 = vsel %vm212, %v200, 0
    %v232 = vsel %vm212, %v201, 0
    %v235 = vsel %vm212, %v202, 0
    %237 = vmatprep.subr.bf16.mxu0 0
    %238 = vmatpush1.bf16.msra.mxu0 %v210
    %239 = vmatprep.subr.bf16.mxu0 0
    %240 = vmatpush1.bf16.msra.mxu0 0
    %241 = vmatprep.subr.bf16.mxu0 0
    %242 = vmatpush1.bf16.msra.mxu0 0
    %243 = vmatprep.subr.bf16.mxu0 0
    %244 = vmatpush1.bf16.msra.mxu0 0
    %245 = vmatprep.subr.bf16.mxu0 0
    %246 = vmatpush1.bf16.msra.mxu0 0
    %247 = vmatprep.subr.bf16.mxu0 0
    %248 = vmatpush1.bf16.msra.mxu0 0
    %249 = vmatprep.subr.bf16.mxu0 0
    %250 = vmatpush1.bf16.msra.mxu0 0
    %251 = vmatprep.subr.bf16.mxu0 0
    %252 = vmatpush1.bf16.msra.mxu0 0
    %253 = vmatprep.subr.bf16.mxu0 0
    %254 = vmatpush1.bf16.msra.mxu0 0
    %255 = vmatprep.subr.bf16.mxu0 0
    %256 = vmatpush1.bf16.msra.mxu0 0
    %257 = vmatprep.subr.bf16.mxu0 0
    %258 = vmatpush1.bf16.msra.mxu0 0
    %259 = vmatprep.subr.bf16.mxu0 0
    %260 = vmatpush1.bf16.msra.mxu0 0
    %261 = vmatprep.subr.bf16.mxu0 0
    %262 = vmatpush1.bf16.msra.mxu0 0
    %263 = vmatprep.subr.bf16.mxu0 0
    %264 = vmatpush1.bf16.msra.mxu0 0
    %265 = vmatprep.subr.bf16.mxu0 0
    %266 = vmatpush1.bf16.msra.mxu0 0
    %267 = vmatprep.subr.bf16.mxu0 0
    %268 = vmatpush1.bf16.msra.mxu0 0
    %269 = vmatprep.mubr.bf16.mxu0 0
    %270 = vmatmul.mubr.bf16.gmra.mrb[0].mxu0 %v214
    %v271 = vpop.f32.mrb[0].mxu0
    %v272 = vadd.f32 0.0, %v271
    %v273 = vpop.f32.mrb[0].mxu0
    %v274 = vpop.f32.mrb[0].mxu0
    %v275 = vadd.f32 0.0, %v274
    %v276 = vpop.f32.mrb[0].mxu0
    %277 = vmatprep.mubr.bf16.mxu0 0
    %278 = vmatmul.mubr.bf16.gmra.mrb[0].mxu0 %v217
    %v279 = vpop.f32.mrb[0].mxu0
    %v280 = vadd.f32 0.0, %v279
    %v281 = vpop.f32.mrb[0].mxu0
    %v282 = vpop.f32.mrb[0].mxu0
    %v283 = vadd.f32 0.0, %v282
    %v284 = vpop.f32.mrb[0].mxu0
    %285 = vmatprep.mubr.bf16.mxu0 0
    %286 = vmatmul.mubr.bf16.gmra.mrb[0].mxu0 %v220
    %v287 = vpop.f32.mrb[0].mxu0
    %v288 = vadd.f32 0.0, %v287
    %v289 = vpop.f32.mrb[0].mxu0
    %v290 = vpop.f32.mrb[0].mxu0
    %v291 = vadd.f32 0.0, %v290
    %v292 = vpop.f32.mrb[0].mxu0
    %293 = vmatprep.mubr.bf16.mxu0 0
    %294 = vmatmul.mubr.bf16.gmra.mrb[0].mxu0 %v223
    %v295 = vpop.f32.mrb[0].mxu0
    %v296 = vadd.f32 0.0, %v295
    %v297 = vpop.f32.mrb[0].mxu0
    %v298 = vpop.f32.mrb[0].mxu0
    %v299 = vadd.f32 0.0, %v298
    %v300 = vpop.f32.mrb[0].mxu0
    %301 = vmatprep.mubr.bf16.mxu0 0
    %302 = vmatmul.mubr.bf16.gmra.mrb[0].mxu0 %v226
    %v303 = vpop.f32.mrb[0].mxu0
    %v304 = vadd.f32 0.0, %v303
    %v305 = vpop.f32.mrb[0].mxu0
    %v306 = vpop.f32.mrb[0].mxu0
    %v307 = vadd.f32 0.0, %v306
    %v308 = vpop.f32.mrb[0].mxu0
    %309 = vmatprep.mubr.bf16.mxu0 0
    %310 = vmatmul.mubr.bf16.gmra.mrb[0].mxu0 %v229
    %v311 = vpop.f32.mrb[0].mxu0
    %v312 = vadd.f32 0.0, %v311
    %v313 = vpop.f32.mrb[0].mxu0
    %v314 = vpop.f32.mrb[0].mxu0
    %v315 = vadd.f32 0.0, %v314
    %v316 = vpop.f32.mrb[0].mxu0
    %317 = vmatprep.mubr.bf16.mxu0 0
    %318 = vmatmul.mubr.bf16.gmra.mrb[0].mxu0 %v232
    %v319 = vpop.f32.mrb[0].mxu0
    %v320 = vadd.f32 0.0, %v319
    %v321 = vpop.f32.mrb[0].mxu0
    %v322 = vpop.f32.mrb[0].mxu0
    %v323 = vadd.f32 0.0, %v322
    %v324 = vpop.f32.mrb[0].mxu0
    %325 = vmatprep.mubr.bf16.mxu0 0
    %326 = vmatmul.mubr.bf16.gmra.mrb[0].mxu0 %v235
    %v327 = vpop.f32.mrb[0].mxu0
    %v328 = vadd.f32 0.0, %v327
    %v329 = vpop.f32.mrb[0].mxu0
    %v330 = vpop.f32.mrb[0].mxu0
    %v331 = vadd.f32 0.0, %v330
    %v332 = vpop.f32.mrb[0].mxu0
    %333 = vdwg.mxu0
    %v336 = vunpack.c.l.b16 %v177
    %v337 = vunpack.c.l.b16 %v178
    %v338 = vpack.c.b16 %v337, %v336
    %v341 = vsel %vm212, %v169, 0
    %v344 = vsel %vm212, %v170, 0
    %v347 = vsel %vm212, %v171, 0
    %v350 = vsel %vm212, %v172, 0
    %v353 = vsel %vm212, %v173, 0
    %v356 = vsel %vm212, %v174, 0
    %v359 = vsel %vm212, %v175, 0
    %v362 = vsel %vm212, %v176, 0
    %364 = vmatprep.subr.bf16.mxu0 0
    %365 = vmatpush1.bf16.msra.mxu0 %v338
    %366 = vmatprep.subr.bf16.mxu0 0
    %367 = vmatpush1.bf16.msra.mxu0 0
    %368 = vmatprep.subr.bf16.mxu0 0
    %369 = vmatpush1.bf16.msra.mxu0 0
    %370 = vmatprep.subr.bf16.mxu0 0
    %371 = vmatpush1.bf16.msra.mxu0 0
    %372 = vmatprep.subr.bf16.mxu0 0
    %373 = vmatpush1.bf16.msra.mxu0 0
    %374 = vmatprep.subr.bf16.mxu0 0
    %375 = vmatpush1.bf16.msra.mxu0 0
    %376 = vmatprep.subr.bf16.mxu0 0
    %377 = vmatpush1.bf16.msra.mxu0 0
    %378 = vmatprep.subr.bf16.mxu0 0
    %379 = vmatpush1.bf16.msra.mxu0 0
    %380 = vmatprep.subr.bf16.mxu0 0
    %381 = vmatpush1.bf16.msra.mxu0 0
    %382 = vmatprep.subr.bf16.mxu0 0
    %383 = vmatpush1.bf16.msra.mxu0 0
    %384 = vmatprep.subr.bf16.mxu0 0
    %385 = vmatpush1.bf16.msra.mxu0 0
    %386 = vmatprep.subr.bf16.mxu0 0
    %387 = vmatpush1.bf16.msra.mxu0 0
    %388 = vmatprep.subr.bf16.mxu0 0
    %389 = vmatpush1.bf16.msra.mxu0 0
    %390 = vmatprep.subr.bf16.mxu0 0
    %391 = vmatpush1.bf16.msra.mxu0 0
    %392 = vmatprep.subr.bf16.mxu0 0
    %393 = vmatpush1.bf16.msra.mxu0 0
    %394 = vmatprep.subr.bf16.mxu0 0
    %395 = vmatpush1.bf16.msra.mxu0 0
    %396 = vmatprep.mubr.bf16.mxu0 0
    %397 = vmatmul.mubr.bf16.gmra.mrb[0].mxu0 %v341
    %v398 = vpop.f32.mrb[0].mxu0
    %v399 = vadd.f32 %v272, %v398
    %v400 = vpop.f32.mrb[0].mxu0
    %v401 = vpop.f32.mrb[0].mxu0
    %v402 = vadd.f32 %v275, %v401
    %v403 = vpop.f32.mrb[0].mxu0
    %404 = vmatprep.mubr.bf16.mxu0 0
    %405 = vmatmul.mubr.bf16.gmra.mrb[0].mxu0 %v344
    %v406 = vpop.f32.mrb[0].mxu0
    %v407 = vadd.f32 %v280, %v406
    %v408 = vpop.f32.mrb[0].mxu0
    %v409 = vpop.f32.mrb[0].mxu0
    %v410 = vadd.f32 %v283, %v409
    %v411 = vpop.f32.mrb[0].mxu0
    %412 = vmatprep.mubr.bf16.mxu0 0
    %413 = vmatmul.mubr.bf16.gmra.mrb[0].mxu0 %v347
    %v414 = vpop.f32.mrb[0].mxu0
    %v415 = vadd.f32 %v288, %v414
    %v416 = vpop.f32.mrb[0].mxu0
    %v417 = vpop.f32.mrb[0].mxu0
    %v418 = vadd.f32 %v291, %v417
    %v419 = vpop.f32.mrb[0].mxu0
    %420 = vmatprep.mubr.bf16.mxu0 0
    %421 = vmatmul.mubr.bf16.gmra.mrb[0].mxu0 %v350
    %v422 = vpop.f32.mrb[0].mxu0
    %v423 = vadd.f32 %v296, %v422
    %v424 = vpop.f32.mrb[0].mxu0
    %v425 = vpop.f32.mrb[0].mxu0
    %v426 = vadd.f32 %v299, %v425
    %v427 = vpop.f32.mrb[0].mxu0
    %428 = vmatprep.mubr.bf16.mxu0 0
    %429 = vmatmul.mubr.bf16.gmra.mrb[0].mxu0 %v353
    %v430 = vpop.f32.mrb[0].mxu0
    %v431 = vadd.f32 %v304, %v430
    %v432 = vpop.f32.mrb[0].mxu0
    %v433 = vpop.f32.mrb[0].mxu0
    %v434 = vadd.f32 %v307, %v433
    %v435 = vpop.f32.mrb[0].mxu0
    %436 = vmatprep.mubr.bf16.mxu0 0
    %437 = vmatmul.mubr.bf16.gmra.mrb[0].mxu0 %v356
    %v438 = vpop.f32.mrb[0].mxu0
    %v439 = vadd.f32 %v312, %v438
    %v440 = vpop.f32.mrb[0].mxu0
    %v441 = vpop.f32.mrb[0].mxu0
    %v442 = vadd.f32 %v315, %v441
    %v443 = vpop.f32.mrb[0].mxu0
    %444 = vmatprep.mubr.bf16.mxu0 0
    %445 = vmatmul.mubr.bf16.gmra.mrb[0].mxu0 %v359
    %v446 = vpop.f32.mrb[0].mxu0
    %v447 = vadd.f32 %v320, %v446
    %v448 = vpop.f32.mrb[0].mxu0
    %v449 = vpop.f32.mrb[0].mxu0
    %v450 = vadd.f32 %v323, %v449
    %v451 = vpop.f32.mrb[0].mxu0
    %452 = vmatprep.mubr.bf16.mxu0 0
    %453 = vmatmul.mubr.bf16.gmra.mrb[0].mxu0 %v362
    %v454 = vpop.f32.mrb[0].mxu0
    %v455 = vadd.f32 %v328, %v454
    %v456 = vpop.f32.mrb[0].mxu0
    %v457 = vpop.f32.mrb[0].mxu0
    %v458 = vadd.f32 %v331, %v457
    %v459 = vpop.f32.mrb[0].mxu0
    %460 = vdwg.mxu0
    %v461 = vld [vmem:[%s0 + $0x2] sm:$0xff]
    %v462 = vld [vmem:[%s0 + $0x12] sm:$0xff]
    %v463 = vld [vmem:[%s0 + $0x22] sm:$0xff]
    %v464 = vld [vmem:[%s0 + $0x32] sm:$0xff]
    %v465 = vld [vmem:[%s0 + $0x42] sm:$0xff]
    %v466 = vld [vmem:[%s0 + $0x52] sm:$0xff]
    %v467 = vld [vmem:[%s0 + $0x62] sm:$0xff]
    %v468 = vld [vmem:[%s0 + $0x72] sm:$0xff]
    %v469 = vld [vmem:[%s0 + $0xa2] sm:$0xff]
    %v470 = vld [vmem:[%s0 + $0xb2] sm:$0xff]
    %v471 = vld [vmem:[%s0 + $0xc2] sm:$0xff]
    %v472 = vld [vmem:[%s0 + $0xd2] sm:$0xff]
    %v473 = vld [vmem:[%s0 + $0xe2] sm:$0xff]
    %v474 = vld [vmem:[%s0 + $0xf2] sm:$0xff]
    %v475 = vld [vmem:[%s0 + $0x102] sm:$0xff]
    %v476 = vld [vmem:[%s0 + $0x112] sm:$0xff]
    %v477 = vpack.c.bf16 %v462, %v461
    %v478 = vpack.c.bf16 %v464, %v463
    %v479 = vpack.c.bf16 %v466, %v465
    %v480 = vpack.c.bf16 %v468, %v467
    %v481 = vpack.c.bf16 %v470, %v469
    %v482 = vpack.c.bf16 %v472, %v471
    %v483 = vpack.c.bf16 %v474, %v473
    %v484 = vpack.c.bf16 %v476, %v475
    %s485 = scalar_lea.vmem [#allocation5], 16
    %v486 = vld [vmem:[%s485] sm:$0xf]
    %v487 = vld [vmem:[%s485 + $0x4] sm:$0xf]
    %v490 = vunpack.c.l.b16 %v486
    %v491 = vunpack.c.l.b16 %v487
    %v492 = vpack.c.b16 %v491, %v490
    %v495 = vsel %vm212, %v477, 0
    %v498 = vsel %vm212, %v478, 0
    %v501 = vsel %vm212, %v479, 0
    %v504 = vsel %vm212, %v480, 0
    %v507 = vsel %vm212, %v481, 0
    %v510 = vsel %vm212, %v482, 0
    %v513 = vsel %vm212, %v483, 0
    %v516 = vsel %vm212, %v484, 0
    %518 = vmatprep.subr.bf16.mxu0 0
    %519 = vmatpush1.bf16.msra.mxu0 %v492
    %520 = vmatprep.subr.bf16.mxu0 0
    %521 = vmatpush1.bf16.msra.mxu0 0
    %522 = vmatprep.subr.bf16.mxu0 0
    %523 = vmatpush1.bf16.msra.mxu0 0
    %524 = vmatprep.subr.bf16.mxu0 0
    %525 = vmatpush1.bf16.msra.mxu0 0
    %526 = vmatprep.subr.bf16.mxu0 0
    %527 = vmatpush1.bf16.msra.mxu0 0
    %528 = vmatprep.subr.bf16.mxu0 0
    %529 = vmatpush1.bf16.msra.mxu0 0
    %530 = vmatprep.subr.bf16.mxu0 0
    %531 = vmatpush1.bf16.msra.mxu0 0
    %532 = vmatprep.subr.bf16.mxu0 0
    %533 = vmatpush1.bf16.msra.mxu0 0
    %534 = vmatprep.subr.bf16.mxu0 0
    %535 = vmatpush1.bf16.msra.mxu0 0
    %536 = vmatprep.subr.bf16.mxu0 0
    %537 = vmatpush1.bf16.msra.mxu0 0
    %538 = vmatprep.subr.bf16.mxu0 0
    %539 = vmatpush1.bf16.msra.mxu0 0
    %540 = vmatprep.subr.bf16.mxu0 0
    %541 = vmatpush1.bf16.msra.mxu0 0
    %542 = vmatprep.subr.bf16.mxu0 0
    %543 = vmatpush1.bf16.msra.mxu0 0
    %544 = vmatprep.subr.bf16.mxu0 0
    %545 = vmatpush1.bf16.msra.mxu0 0
    %546 = vmatprep.subr.bf16.mxu0 0
    %547 = vmatpush1.bf16.msra.mxu0 0
    %548 = vmatprep.subr.bf16.mxu0 0
    %549 = vmatpush1.bf16.msra.mxu0 0
    %550 = vmatprep.mubr.bf16.mxu0 0
    %551 = vmatmul.mubr.bf16.gmra.mrb[0].mxu0 %v495
    %v552 = vpop.f32.mrb[0].mxu0
    %v553 = vadd.f32 0.0, %v552
    %v554 = vpop.f32.mrb[0].mxu0
    %v555 = vpop.f32.mrb[0].mxu0
    %v556 = vadd.f32 0.0, %v555
    %v557 = vpop.f32.mrb[0].mxu0
    %558 = vmatprep.mubr.bf16.mxu0 0
    %559 = vmatmul.mubr.bf16.gmra.mrb[0].mxu0 %v498
    %v560 = vpop.f32.mrb[0].mxu0
    %v561 = vadd.f32 0.0, %v560
    %v562 = vpop.f32.mrb[0].mxu0
    %v563 = vpop.f32.mrb[0].mxu0
    %v564 = vadd.f32 0.0, %v563
    %v565 = vpop.f32.mrb[0].mxu0
    %566 = vmatprep.mubr.bf16.mxu0 0
    %567 = vmatmul.mubr.bf16.gmra.mrb[0].mxu0 %v501
    %v568 = vpop.f32.mrb[0].mxu0
    %v569 = vadd.f32 0.0, %v568
    %v570 = vpop.f32.mrb[0].mxu0
    %v571 = vpop.f32.mrb[0].mxu0
    %v572 = vadd.f32 0.0, %v571
    %v573 = vpop.f32.mrb[0].mxu0
    %574 = vmatprep.mubr.bf16.mxu0 0
    %575 = vmatmul.mubr.bf16.gmra.mrb[0].mxu0 %v504
    %v576 = vpop.f32.mrb[0].mxu0
    %v577 = vadd.f32 0.0, %v576
    %v578 = vpop.f32.mrb[0].mxu0
    %v579 = vpop.f32.mrb[0].mxu0
    %v580 = vadd.f32 0.0, %v579
    %v581 = vpop.f32.mrb[0].mxu0
    %582 = vmatprep.mubr.bf16.mxu0 0
    %583 = vmatmul.mubr.bf16.gmra.mrb[0].mxu0 %v507
    %v584 = vpop.f32.mrb[0].mxu0
    %v585 = vadd.f32 0.0, %v584
    %v586 = vpop.f32.mrb[0].mxu0
    %v587 = vpop.f32.mrb[0].mxu0
    %v588 = vadd.f32 0.0, %v587
    %v589 = vpop.f32.mrb[0].mxu0
    %590 = vmatprep.mubr.bf16.mxu0 0
    %591 = vmatmul.mubr.bf16.gmra.mrb[0].mxu0 %v510
    %v592 = vpop.f32.mrb[0].mxu0
    %v593 = vadd.f32 0.0, %v592
    %v594 = vpop.f32.mrb[0].mxu0
    %v595 = vpop.f32.mrb[0].mxu0
    %v596 = vadd.f32 0.0, %v595
    %v597 = vpop.f32.mrb[0].mxu0
    %598 = vmatprep.mubr.bf16.mxu0 0
    %599 = vmatmul.mubr.bf16.gmra.mrb[0].mxu0 %v513
    %v600 = vpop.f32.mrb[0].mxu0
    %v601 = vadd.f32 0.0, %v600
    %v602 = vpop.f32.mrb[0].mxu0
    %v603 = vpop.f32.mrb[0].mxu0
    %v604 = vadd.f32 0.0, %v603
    %v605 = vpop.f32.mrb[0].mxu0
    %606 = vmatprep.mubr.bf16.mxu0 0
    %607 = vmatmul.mubr.bf16.gmra.mrb[0].mxu0 %v516
    %v608 = vpop.f32.mrb[0].mxu0
    %v609 = vadd.f32 0.0, %v608
    %v610 = vpop.f32.mrb[0].mxu0
    %v611 = vpop.f32.mrb[0].mxu0
    %v612 = vadd.f32 0.0, %v611
    %v613 = vpop.f32.mrb[0].mxu0
    %614 = vdwg.mxu0
    %v615 = vadd.f32 %v399, %v553
    %v616 = vadd.f32 %v402, %v556
    %v617 = vadd.f32 %v407, %v561
    %v618 = vadd.f32 %v410, %v564
    %v619 = vadd.f32 %v415, %v569
    %v620 = vadd.f32 %v418, %v572
    %v621 = vadd.f32 %v423, %v577
    %v622 = vadd.f32 %v426, %v580
    %v623 = vadd.f32 %v431, %v585
    %v624 = vadd.f32 %v434, %v588
    %v625 = vadd.f32 %v439, %v593
    %v626 = vadd.f32 %v442, %v596
    %v627 = vadd.f32 %v447, %v601
    %v628 = vadd.f32 %v450, %v604
    %v629 = vadd.f32 %v455, %v609
    %v630 = vadd.f32 %v458, %v612
    %s631 = scalar_lea.vmem %s0, 16
    %v632 = vld [vmem:[%s631] sm:$0xff]
    %v633 = vld [vmem:[%s631 + $0x10] sm:$0xff]
    %v634 = vld [vmem:[%s631 + $0x20] sm:$0xff]
    %v635 = vld [vmem:[%s631 + $0x30] sm:$0xff]
    %v636 = vld [vmem:[%s631 + $0x40] sm:$0xff]
    %v637 = vld [vmem:[%s631 + $0x50] sm:$0xff]
    %v638 = vld [vmem:[%s631 + $0x60] sm:$0xff]
    %v639 = vld [vmem:[%s631 + $0x70] sm:$0xff]
    %v640 = vld [vmem:[%s631 + $0xa0] sm:$0xff]
    %v641 = vld [vmem:[%s631 + $0xb0] sm:$0xff]
    %v642 = vld [vmem:[%s631 + $0xc0] sm:$0xff]
    %v643 = vld [vmem:[%s631 + $0xd0] sm:$0xff]
    %v644 = vld [vmem:[%s631 + $0xe0] sm:$0xff]
    %v645 = vld [vmem:[%s631 + $0xf0] sm:$0xff]
    %v646 = vld [vmem:[%s631 + $0x100] sm:$0xff]
    %v647 = vld [vmem:[%s631 + $0x110] sm:$0xff]
    %v648 = vpack.c.bf16 %v633, %v632
    %v649 = vpack.c.bf16 %v635, %v634
    %v650 = vpack.c.bf16 %v637, %v636
    %v651 = vpack.c.bf16 %v639, %v638
    %v652 = vpack.c.bf16 %v641, %v640
    %v653 = vpack.c.bf16 %v643, %v642
    %v654 = vpack.c.bf16 %v645, %v644
    %v655 = vpack.c.bf16 %v647, %v646
    %s656 = scalar_lea.vmem [#allocation5], 24
    %v657 = vld [vmem:[%s656] sm:$0xf]
    %v658 = vld [vmem:[%s656 + $0x4] sm:$0xf]
    %v661 = vunpack.c.l.b16 %v657
    %v662 = vunpack.c.l.b16 %v658
    %v663 = vpack.c.b16 %v662, %v661
    %v666 = vsel %vm212, %v648, 0
    %v669 = vsel %vm212, %v649, 0
    %v672 = vsel %vm212, %v650, 0
    %v675 = vsel %vm212, %v651, 0
    %v678 = vsel %vm212, %v652, 0
    %v681 = vsel %vm212, %v653, 0
    %v684 = vsel %vm212, %v654, 0
    %v687 = vsel %vm212, %v655, 0
    %689 = vmatprep.subr.bf16.mxu0 0
    %690 = vmatpush1.bf16.msra.mxu0 %v663
    %691 = vmatprep.subr.bf16.mxu0 0
    %692 = vmatpush1.bf16.msra.mxu0 0
    %693 = vmatprep.subr.bf16.mxu0 0
    %694 = vmatpush1.bf16.msra.mxu0 0
    %695 = vmatprep.subr.bf16.mxu0 0
    %696 = vmatpush1.bf16.msra.mxu0 0
    %697 = vmatprep.subr.bf16.mxu0 0
    %698 = vmatpush1.bf16.msra.mxu0 0
    %699 = vmatprep.subr.bf16.mxu0 0
    %700 = vmatpush1.bf16.msra.mxu0 0
    %701 = vmatprep.subr.bf16.mxu0 0
    %702 = vmatpush1.bf16.msra.mxu0 0
    %703 = vmatprep.subr.bf16.mxu0 0
    %704 = vmatpush1.bf16.msra.mxu0 0
    %705 = vmatprep.subr.bf16.mxu0 0
    %706 = vmatpush1.bf16.msra.mxu0 0
    %707 = vmatprep.subr.bf16.mxu0 0
    %708 = vmatpush1.bf16.msra.mxu0 0
    %709 = vmatprep.subr.bf16.mxu0 0
    %710 = vmatpush1.bf16.msra.mxu0 0
    %711 = vmatprep.subr.bf16.mxu0 0
    %712 = vmatpush1.bf16.msra.mxu0 0
    %713 = vmatprep.subr.bf16.mxu0 0
    %714 = vmatpush1.bf16.msra.mxu0 0
    %715 = vmatprep.subr.bf16.mxu0 0
    %716 = vmatpush1.bf16.msra.mxu0 0
    %717 = vmatprep.subr.bf16.mxu0 0
    %718 = vmatpush1.bf16.msra.mxu0 0
    %719 = vmatprep.subr.bf16.mxu0 0
    %720 = vmatpush1.bf16.msra.mxu0 0
    %721 = vmatprep.mubr.bf16.mxu0 0
    %722 = vmatmul.mubr.bf16.gmra.mrb[0].mxu0 %v666
    %v723 = vpop.f32.mrb[0].mxu0
    %v724 = vadd.f32 0.0, %v723
    %v725 = vpop.f32.mrb[0].mxu0
    %v726 = vpop.f32.mrb[0].mxu0
    %v727 = vadd.f32 0.0, %v726
    %v728 = vpop.f32.mrb[0].mxu0
    %729 = vmatprep.mubr.bf16.mxu0 0
    %730 = vmatmul.mubr.bf16.gmra.mrb[0].mxu0 %v669
    %v731 = vpop.f32.mrb[0].mxu0
    %v732 = vadd.f32 0.0, %v731
    %v733 = vpop.f32.mrb[0].mxu0
    %v734 = vpop.f32.mrb[0].mxu0
    %v735 = vadd.f32 0.0, %v734
    %v736 = vpop.f32.mrb[0].mxu0
    %737 = vmatprep.mubr.bf16.mxu0 0
    %738 = vmatmul.mubr.bf16.gmra.mrb[0].mxu0 %v672
    %v739 = vpop.f32.mrb[0].mxu0
    %v740 = vadd.f32 0.0, %v739
    %v741 = vpop.f32.mrb[0].mxu0
    %v742 = vpop.f32.mrb[0].mxu0
    %v743 = vadd.f32 0.0, %v742
    %v744 = vpop.f32.mrb[0].mxu0
    %745 = vmatprep.mubr.bf16.mxu0 0
    %746 = vmatmul.mubr.bf16.gmra.mrb[0].mxu0 %v675
    %v747 = vpop.f32.mrb[0].mxu0
    %v748 = vadd.f32 0.0, %v747
    %v749 = vpop.f32.mrb[0].mxu0
    %v750 = vpop.f32.mrb[0].mxu0
    %v751 = vadd.f32 0.0, %v750
    %v752 = vpop.f32.mrb[0].mxu0
    %753 = vmatprep.mubr.bf16.mxu0 0
    %754 = vmatmul.mubr.bf16.gmra.mrb[0].mxu0 %v678
    %v755 = vpop.f32.mrb[0].mxu0
    %v756 = vadd.f32 0.0, %v755
    %v757 = vpop.f32.mrb[0].mxu0
    %v758 = vpop.f32.mrb[0].mxu0
    %v759 = vadd.f32 0.0, %v758
    %v760 = vpop.f32.mrb[0].mxu0
    %761 = vmatprep.mubr.bf16.mxu0 0
    %762 = vmatmul.mubr.bf16.gmra.mrb[0].mxu0 %v681
    %v763 = vpop.f32.mrb[0].mxu0
    %v764 = vadd.f32 0.0, %v763
    %v765 = vpop.f32.mrb[0].mxu0
    %v766 = vpop.f32.mrb[0].mxu0
    %v767 = vadd.f32 0.0, %v766
    %v768 = vpop.f32.mrb[0].mxu0
    %769 = vmatprep.mubr.bf16.mxu0 0
    %770 = vmatmul.mubr.bf16.gmra.mrb[0].mxu0 %v684
    %v771 = vpop.f32.mrb[0].mxu0
    %v772 = vadd.f32 0.0, %v771
    %v773 = vpop.f32.mrb[0].mxu0
    %v774 = vpop.f32.mrb[0].mxu0
    %v775 = vadd.f32 0.0, %v774
    %v776 = vpop.f32.mrb[0].mxu0
    %777 = vmatprep.mubr.bf16.mxu0 0
    %778 = vmatmul.mubr.bf16.gmra.mrb[0].mxu0 %v687
    %v779 = vpop.f32.mrb[0].mxu0
    %v780 = vadd.f32 0.0, %v779
    %v781 = vpop.f32.mrb[0].mxu0
    %v782 = vpop.f32.mrb[0].mxu0
    %v783 = vadd.f32 0.0, %v782
    %v784 = vpop.f32.mrb[0].mxu0
    %785 = vdwg.mxu0
    %v786 = vadd.f32 %v615, %v724
    %v787 = vadd.f32 %v616, %v727
    %v788 = vadd.f32 %v617, %v732
    %v789 = vadd.f32 %v618, %v735
    %v790 = vadd.f32 %v619, %v740
    %v791 = vadd.f32 %v620, %v743
    %v792 = vadd.f32 %v621, %v748
    %v793 = vadd.f32 %v622, %v751
    %v794 = vadd.f32 %v623, %v756
    %v795 = vadd.f32 %v624, %v759
    %v796 = vadd.f32 %v625, %v764
    %v797 = vadd.f32 %v626, %v767
    %v798 = vadd.f32 %v627, %v772
    %v799 = vadd.f32 %v628, %v775
    %v800 = vadd.f32 %v629, %v780
    %v801 = vadd.f32 %v630, %v783
    %v802 = vld [vmem:[%s631 + $0x1] sm:$0xff]
    %v803 = vld [vmem:[%s631 + $0x11] sm:$0xff]
    %v804 = vld [vmem:[%s631 + $0x21] sm:$0xff]
    %v805 = vld [vmem:[%s631 + $0x31] sm:$0xff]
    %v806 = vld [vmem:[%s631 + $0x41] sm:$0xff]
    %v807 = vld [vmem:[%s631 + $0x51] sm:$0xff]
    %v808 = vld [vmem:[%s631 + $0x61] sm:$0xff]
    %v809 = vld [vmem:[%s631 + $0x71] sm:$0xff]
    %v810 = vld [vmem:[%s631 + $0xa1] sm:$0xff]
    %v811 = vld [vmem:[%s631 + $0xb1] sm:$0xff]
    %v812 = vld [vmem:[%s631 + $0xc1] sm:$0xff]
    %v813 = vld [vmem:[%s631 + $0xd1] sm:$0xff]
    %v814 = vld [vmem:[%s631 + $0xe1] sm:$0xff]
    %v815 = vld [vmem:[%s631 + $0xf1] sm:$0xff]
    %v816 = vld [vmem:[%s631 + $0x101] sm:$0xff]
    %v817 = vld [vmem:[%s631 + $0x111] sm:$0xff]
    %v818 = vpack.c.bf16 %v803, %v802
    %v819 = vpack.c.bf16 %v805, %v804
    %v820 = vpack.c.bf16 %v807, %v806
    %v821 = vpack.c.bf16 %v809, %v808
    %v822 = vpack.c.bf16 %v811, %v810
    %v823 = vpack.c.bf16 %v813, %v812
    %v824 = vpack.c.bf16 %v815, %v814
    %v825 = vpack.c.bf16 %v817, %v816
    %s826 = scalar_lea.vmem [#allocation5], 32
    %v827 = vld [vmem:[%s826] sm:$0xf]
    %v828 = vld [vmem:[%s826 + $0x4] sm:$0xf]
    %v831 = vunpack.c.l.b16 %v827
    %v832 = vunpack.c.l.b16 %v828
    %v833 = vpack.c.b16 %v832, %v831
    %v836 = vsel %vm212, %v818, 0
    %v839 = vsel %vm212, %v819, 0
    %v842 = vsel %vm212, %v820, 0
    %v845 = vsel %vm212, %v821, 0
    %v848 = vsel %vm212, %v822, 0
    %v851 = vsel %vm212, %v823, 0
    %v854 = vsel %vm212, %v824, 0
    %v857 = vsel %vm212, %v825, 0
    %859 = vmatprep.subr.bf16.mxu0 0
    %860 = vmatpush1.bf16.msra.mxu0 %v833
    %861 = vmatprep.subr.bf16.mxu0 0
    %862 = vmatpush1.bf16.msra.mxu0 0
    %863 = vmatprep.subr.bf16.mxu0 0
    %864 = vmatpush1.bf16.msra.mxu0 0
    %865 = vmatprep.subr.bf16.mxu0 0
    %866 = vmatpush1.bf16.msra.mxu0 0
    %867 = vmatprep.subr.bf16.mxu0 0
    %868 = vmatpush1.bf16.msra.mxu0 0
    %869 = vmatprep.subr.bf16.mxu0 0
    %870 = vmatpush1.bf16.msra.mxu0 0
    %871 = vmatprep.subr.bf16.mxu0 0
    %872 = vmatpush1.bf16.msra.mxu0 0
    %873 = vmatprep.subr.bf16.mxu0 0
    %874 = vmatpush1.bf16.msra.mxu0 0
    %875 = vmatprep.subr.bf16.mxu0 0
    %876 = vmatpush1.bf16.msra.mxu0 0
    %877 = vmatprep.subr.bf16.mxu0 0
    %878 = vmatpush1.bf16.msra.mxu0 0
    %879 = vmatprep.subr.bf16.mxu0 0
    %880 = vmatpush1.bf16.msra.mxu0 0
    %881 = vmatprep.subr.bf16.mxu0 0
    %882 = vmatpush1.bf16.msra.mxu0 0
    %883 = vmatprep.subr.bf16.mxu0 0
    %884 = vmatpush1.bf16.msra.mxu0 0
    %885 = vmatprep.subr.bf16.mxu0 0
    %886 = vmatpush1.bf16.msra.mxu0 0
    %887 = vmatprep.subr.bf16.mxu0 0
    %888 = vmatpush1.bf16.msra.mxu0 0
    %889 = vmatprep.subr.bf16.mxu0 0
    %890 = vmatpush1.bf16.msra.mxu0 0
    %891 = vmatprep.mubr.bf16.mxu0 0
    %892 = vmatmul.mubr.bf16.gmra.mrb[0].mxu0 %v836
    %v893 = vpop.f32.mrb[0].mxu0
    %v894 = vadd.f32 0.0, %v893
    %v895 = vpop.f32.mrb[0].mxu0
    %v896 = vpop.f32.mrb[0].mxu0
    %v897 = vadd.f32 0.0, %v896
    %v898 = vpop.f32.mrb[0].mxu0
    %899 = vmatprep.mubr.bf16.mxu0 0
    %900 = vmatmul.mubr.bf16.gmra.mrb[0].mxu0 %v839
    %v901 = vpop.f32.mrb[0].mxu0
    %v902 = vadd.f32 0.0, %v901
    %v903 = vpop.f32.mrb[0].mxu0
    %v904 = vpop.f32.mrb[0].mxu0
    %v905 = vadd.f32 0.0, %v904
    %v906 = vpop.f32.mrb[0].mxu0
    %907 = vmatprep.mubr.bf16.mxu0 0
    %908 = vmatmul.mubr.bf16.gmra.mrb[0].mxu0 %v842
    %v909 = vpop.f32.mrb[0].mxu0
    %v910 = vadd.f32 0.0, %v909
    %v911 = vpop.f32.mrb[0].mxu0
    %v912 = vpop.f32.mrb[0].mxu0
    %v913 = vadd.f32 0.0, %v912
    %v914 = vpop.f32.mrb[0].mxu0
    %915 = vmatprep.mubr.bf16.mxu0 0
    %916 = vmatmul.mubr.bf16.gmra.mrb[0].mxu0 %v845
    %v917 = vpop.f32.mrb[0].mxu0
    %v918 = vadd.f32 0.0, %v917
    %v919 = vpop.f32.mrb[0].mxu0
    %v920 = vpop.f32.mrb[0].mxu0
    %v921 = vadd.f32 0.0, %v920
    %v922 = vpop.f32.mrb[0].mxu0
    %923 = vmatprep.mubr.bf16.mxu0 0
    %924 = vmatmul.mubr.bf16.gmra.mrb[0].mxu0 %v848
    %v925 = vpop.f32.mrb[0].mxu0
    %v926 = vadd.f32 0.0, %v925
    %v927 = vpop.f32.mrb[0].mxu0
    %v928 = vpop.f32.mrb[0].mxu0
    %v929 = vadd.f32 0.0, %v928
    %v930 = vpop.f32.mrb[0].mxu0
    %931 = vmatprep.mubr.bf16.mxu0 0
    %932 = vmatmul.mubr.bf16.gmra.mrb[0].mxu0 %v851
    %v933 = vpop.f32.mrb[0].mxu0
    %v934 = vadd.f32 0.0, %v933
    %v935 = vpop.f32.mrb[0].mxu0
    %v936 = vpop.f32.mrb[0].mxu0
    %v937 = vadd.f32 0.0, %v936
    %v938 = vpop.f32.mrb[0].mxu0
    %939 = vmatprep.mubr.bf16.mxu0 0
    %940 = vmatmul.mubr.bf16.gmra.mrb[0].mxu0 %v854
    %v941 = vpop.f32.mrb[0].mxu0
    %v942 = vadd.f32 0.0, %v941
    %v943 = vpop.f32.mrb[0].mxu0
    %v944 = vpop.f32.mrb[0].mxu0
    %v945 = vadd.f32 0.0, %v944
    %v946 = vpop.f32.mrb[0].mxu0
    %947 = vmatprep.mubr.bf16.mxu0 0
    %948 = vmatmul.mubr.bf16.gmra.mrb[0].mxu0 %v857
    %v949 = vpop.f32.mrb[0].mxu0
    %v950 = vadd.f32 0.0, %v949
    %v951 = vpop.f32.mrb[0].mxu0
    %v952 = vpop.f32.mrb[0].mxu0
    %v953 = vadd.f32 0.0, %v952
    %v954 = vpop.f32.mrb[0].mxu0
    %955 = vdwg.mxu0
    %v956 = vadd.f32 %v786, %v894
    %v957 = vadd.f32 %v787, %v897
    %v958 = vadd.f32 %v788, %v902
    %v959 = vadd.f32 %v789, %v905
    %v960 = vadd.f32 %v790, %v910
    %v961 = vadd.f32 %v791, %v913
    %v962 = vadd.f32 %v792, %v918
    %v963 = vadd.f32 %v793, %v921
    %v964 = vadd.f32 %v794, %v926
    %v965 = vadd.f32 %v795, %v929
    %v966 = vadd.f32 %v796, %v934
    %v967 = vadd.f32 %v797, %v937
    %v968 = vadd.f32 %v798, %v942
    %v969 = vadd.f32 %v799, %v945
    %v970 = vadd.f32 %v800, %v950
    %v971 = vadd.f32 %v801, %v953
    %v972 = vld [vmem:[%s631 + $0x2] sm:$0xff]
    %v973 = vld [vmem:[%s631 + $0x12] sm:$0xff]
    %v974 = vld [vmem:[%s631 + $0x22] sm:$0xff]
    %v975 = vld [vmem:[%s631 + $0x32] sm:$0xff]
    %v976 = vld [vmem:[%s631 + $0x42] sm:$0xff]
    %v977 = vld [vmem:[%s631 + $0x52] sm:$0xff]
    %v978 = vld [vmem:[%s631 + $0x62] sm:$0xff]
    %v979 = vld [vmem:[%s631 + $0x72] sm:$0xff]
    %v980 = vld [vmem:[%s631 + $0xa2] sm:$0xff]
    %v981 = vld [vmem:[%s631 + $0xb2] sm:$0xff]
    %v982 = vld [vmem:[%s631 + $0xc2] sm:$0xff]
    %v983 = vld [vmem:[%s631 + $0xd2] sm:$0xff]
    %v984 = vld [vmem:[%s631 + $0xe2] sm:$0xff]
    %v985 = vld [vmem:[%s631 + $0xf2] sm:$0xff]
    %v986 = vld [vmem:[%s631 + $0x102] sm:$0xff]
    %v987 = vld [vmem:[%s631 + $0x112] sm:$0xff]
    %v988 = vpack.c.bf16 %v973, %v972
    %v989 = vpack.c.bf16 %v975, %v974
    %v990 = vpack.c.bf16 %v977, %v976
    %v991 = vpack.c.bf16 %v979, %v978
    %v992 = vpack.c.bf16 %v981, %v980
    %v993 = vpack.c.bf16 %v983, %v982
    %v994 = vpack.c.bf16 %v985, %v984
    %v995 = vpack.c.bf16 %v987, %v986
    %s996 = scalar_lea.vmem [#allocation5], 40
    %v997 = vld [vmem:[%s996] sm:$0xf]
    %v998 = vld [vmem:[%s996 + $0x4] sm:$0xf]
    %v1001 = vunpack.c.l.b16 %v997
    %v1002 = vunpack.c.l.b16 %v998
    %v1003 = vpack.c.b16 %v1002, %v1001
    %v1006 = vsel %vm212, %v988, 0
    %v1009 = vsel %vm212, %v989, 0
    %v1012 = vsel %vm212, %v990, 0
    %v1015 = vsel %vm212, %v991, 0
    %v1018 = vsel %vm212, %v992, 0
    %v1021 = vsel %vm212, %v993, 0
    %v1024 = vsel %vm212, %v994, 0
    %v1027 = vsel %vm212, %v995, 0
    %1029 = vmatprep.subr.bf16.mxu0 0
    %1030 = vmatpush1.bf16.msra.mxu0 %v1003
    %1031 = vmatprep.subr.bf16.mxu0 0
    %1032 = vmatpush1.bf16.msra.mxu0 0
    %1033 = vmatprep.subr.bf16.mxu0 0
    %1034 = vmatpush1.bf16.msra.mxu0 0
    %1035 = vmatprep.subr.bf16.mxu0 0
    %1036 = vmatpush1.bf16.msra.mxu0 0
    %1037 = vmatprep.subr.bf16.mxu0 0
    %1038 = vmatpush1.bf16.msra.mxu0 0
    %1039 = vmatprep.subr.bf16.mxu0 0
    %1040 = vmatpush1.bf16.msra.mxu0 0
    %1041 = vmatprep.subr.bf16.mxu0 0
    %1042 = vmatpush1.bf16.msra.mxu0 0
    %1043 = vmatprep.subr.bf16.mxu0 0
    %1044 = vmatpush1.bf16.msra.mxu0 0
    %1045 = vmatprep.subr.bf16.mxu0 0
    %1046 = vmatpush1.bf16.msra.mxu0 0
    %1047 = vmatprep.subr.bf16.mxu0 0
    %1048 = vmatpush1.bf16.msra.mxu0 0
    %1049 = vmatprep.subr.bf16.mxu0 0
    %1050 = vmatpush1.bf16.msra.mxu0 0
    %1051 = vmatprep.subr.bf16.mxu0 0
    %1052 = vmatpush1.bf16.msra.mxu0 0
    %1053 = vmatprep.subr.bf16.mxu0 0
    %1054 = vmatpush1.bf16.msra.mxu0 0
    %1055 = vmatprep.subr.bf16.mxu0 0
    %1056 = vmatpush1.bf16.msra.mxu0 0
    %1057 = vmatprep.subr.bf16.mxu0 0
    %1058 = vmatpush1.bf16.msra.mxu0 0
    %1059 = vmatprep.subr.bf16.mxu0 0
    %1060 = vmatpush1.bf16.msra.mxu0 0
    %1061 = vmatprep.mubr.bf16.mxu0 0
    %1062 = vmatmul.mubr.bf16.gmra.mrb[0].mxu0 %v1006
    %v1063 = vpop.f32.mrb[0].mxu0
    %v1064 = vadd.f32 0.0, %v1063
    %v1065 = vpop.f32.mrb[0].mxu0
    %v1066 = vpop.f32.mrb[0].mxu0
    %v1067 = vadd.f32 0.0, %v1066
    %v1068 = vpop.f32.mrb[0].mxu0
    %1069 = vmatprep.mubr.bf16.mxu0 0
    %1070 = vmatmul.mubr.bf16.gmra.mrb[0].mxu0 %v1009
    %v1071 = vpop.f32.mrb[0].mxu0
    %v1072 = vadd.f32 0.0, %v1071
    %v1073 = vpop.f32.mrb[0].mxu0
    %v1074 = vpop.f32.mrb[0].mxu0
    %v1075 = vadd.f32 0.0, %v1074
    %v1076 = vpop.f32.mrb[0].mxu0
    %1077 = vmatprep.mubr.bf16.mxu0 0
    %1078 = vmatmul.mubr.bf16.gmra.mrb[0].mxu0 %v1012
    %v1079 = vpop.f32.mrb[0].mxu0
    %v1080 = vadd.f32 0.0, %v1079
    %v1081 = vpop.f32.mrb[0].mxu0
    %v1082 = vpop.f32.mrb[0].mxu0
    %v1083 = vadd.f32 0.0, %v1082
    %v1084 = vpop.f32.mrb[0].mxu0
    %1085 = vmatprep.mubr.bf16.mxu0 0
    %1086 = vmatmul.mubr.bf16.gmra.mrb[0].mxu0 %v1015
    %v1087 = vpop.f32.mrb[0].mxu0
    %v1088 = vadd.f32 0.0, %v1087
    %v1089 = vpop.f32.mrb[0].mxu0
    %v1090 = vpop.f32.mrb[0].mxu0
    %v1091 = vadd.f32 0.0, %v1090
    %v1092 = vpop.f32.mrb[0].mxu0
    %1093 = vmatprep.mubr.bf16.mxu0 0
    %1094 = vmatmul.mubr.bf16.gmra.mrb[0].mxu0 %v1018
    %v1095 = vpop.f32.mrb[0].mxu0
    %v1096 = vadd.f32 0.0, %v1095
    %v1097 = vpop.f32.mrb[0].mxu0
    %v1098 = vpop.f32.mrb[0].mxu0
    %v1099 = vadd.f32 0.0, %v1098
    %v1100 = vpop.f32.mrb[0].mxu0
    %1101 = vmatprep.mubr.bf16.mxu0 0
    %1102 = vmatmul.mubr.bf16.gmra.mrb[0].mxu0 %v1021
    %v1103 = vpop.f32.mrb[0].mxu0
    %v1104 = vadd.f32 0.0, %v1103
    %v1105 = vpop.f32.mrb[0].mxu0
    %v1106 = vpop.f32.mrb[0].mxu0
    %v1107 = vadd.f32 0.0, %v1106
    %v1108 = vpop.f32.mrb[0].mxu0
    %1109 = vmatprep.mubr.bf16.mxu0 0
    %1110 = vmatmul.mubr.bf16.gmra.mrb[0].mxu0 %v1024
    %v1111 = vpop.f32.mrb[0].mxu0
    %v1112 = vadd.f32 0.0, %v1111
    %v1113 = vpop.f32.mrb[0].mxu0
    %v1114 = vpop.f32.mrb[0].mxu0
    %v1115 = vadd.f32 0.0, %v1114
    %v1116 = vpop.f32.mrb[0].mxu0
    %1117 = vmatprep.mubr.bf16.mxu0 0
    %1118 = vmatmul.mubr.bf16.gmra.mrb[0].mxu0 %v1027
    %v1119 = vpop.f32.mrb[0].mxu0
    %v1120 = vadd.f32 0.0, %v1119
    %v1121 = vpop.f32.mrb[0].mxu0
    %v1122 = vpop.f32.mrb[0].mxu0
    %v1123 = vadd.f32 0.0, %v1122
    %v1124 = vpop.f32.mrb[0].mxu0
    %1125 = vdwg.mxu0
    %v1126 = vadd.f32 %v956, %v1064
    %v1127 = vadd.f32 %v957, %v1067
    %v1128 = vadd.f32 %v958, %v1072
    %v1129 = vadd.f32 %v959, %v1075
    %v1130 = vadd.f32 %v960, %v1080
    %v1131 = vadd.f32 %v961, %v1083
    %v1132 = vadd.f32 %v962, %v1088
    %v1133 = vadd.f32 %v963, %v1091
    %v1134 = vadd.f32 %v964, %v1096
    %v1135 = vadd.f32 %v965, %v1099
    %v1136 = vadd.f32 %v966, %v1104
    %v1137 = vadd.f32 %v967, %v1107
    %v1138 = vadd.f32 %v968, %v1112
    %v1139 = vadd.f32 %v969, %v1115
    %v1140 = vadd.f32 %v970, %v1120
    %v1141 = vadd.f32 %v971, %v1123
    %s1142 = scalar_lea.vmem %s0, 32
    %v1143 = vld [vmem:[%s1142] sm:$0xff]
    %v1144 = vld [vmem:[%s1142 + $0x10] sm:$0xff]
    %v1145 = vld [vmem:[%s1142 + $0x20] sm:$0xff]
    %v1146 = vld [vmem:[%s1142 + $0x30] sm:$0xff]
    %v1147 = vld [vmem:[%s1142 + $0x40] sm:$0xff]
    %v1148 = vld [vmem:[%s1142 + $0x50] sm:$0xff]
    %v1149 = vld [vmem:[%s1142 + $0x60] sm:$0xff]
    %v1150 = vld [vmem:[%s1142 + $0x70] sm:$0xff]
    %v1151 = vld [vmem:[%s1142 + $0xa0] sm:$0xff]
    %v1152 = vld [vmem:[%s1142 + $0xb0] sm:$0xff]
    %v1153 = vld [vmem:[%s1142 + $0xc0] sm:$0xff]
    %v1154 = vld [vmem:[%s1142 + $0xd0] sm:$0xff]
    %v1155 = vld [vmem:[%s1142 + $0xe0] sm:$0xff]
    %v1156 = vld [vmem:[%s1142 + $0xf0] sm:$0xff]
    %v1157 = vld [vmem:[%s1142 + $0x100] sm:$0xff]
    %v1158 = vld [vmem:[%s1142 + $0x110] sm:$0xff]
    %v1159 = vpack.c.bf16 %v1144, %v1143
    %v1160 = vpack.c.bf16 %v1146, %v1145
    %v1161 = vpack.c.bf16 %v1148, %v1147
    %v1162 = vpack.c.bf16 %v1150, %v1149
    %v1163 = vpack.c.bf16 %v1152, %v1151
    %v1164 = vpack.c.bf16 %v1154, %v1153
    %v1165 = vpack.c.bf16 %v1156, %v1155
    %v1166 = vpack.c.bf16 %v1158, %v1157
    %s1167 = scalar_lea.vmem [#allocation5], 48
    %v1168 = vld [vmem:[%s1167] sm:$0xf]
    %v1169 = vld [vmem:[%s1167 + $0x4] sm:$0xf]
    %v1172 = vunpack.c.l.b16 %v1168
    %v1173 = vunpack.c.l.b16 %v1169
    %v1174 = vpack.c.b16 %v1173, %v1172
    %v1177 = vsel %vm212, %v1159, 0
    %v1180 = vsel %vm212, %v1160, 0
    %v1183 = vsel %vm212, %v1161, 0
    %v1186 = vsel %vm212, %v1162, 0
    %v1189 = vsel %vm212, %v1163, 0
    %v1192 = vsel %vm212, %v1164, 0
    %v1195 = vsel %vm212, %v1165, 0
    %v1198 = vsel %vm212, %v1166, 0
    %1200 = vmatprep.subr.bf16.mxu0 0
    %1201 = vmatpush1.bf16.msra.mxu0 %v1174
    %1202 = vmatprep.subr.bf16.mxu0 0
    %1203 = vmatpush1.bf16.msra.mxu0 0
    %1204 = vmatprep.subr.bf16.mxu0 0
    %1205 = vmatpush1.bf16.msra.mxu0 0
    %1206 = vmatprep.subr.bf16.mxu0 0
    %1207 = vmatpush1.bf16.msra.mxu0 0
    %1208 = vmatprep.subr.bf16.mxu0 0
    %1209 = vmatpush1.bf16.msra.mxu0 0
    %1210 = vmatprep.subr.bf16.mxu0 0
    %1211 = vmatpush1.bf16.msra.mxu0 0
    %1212 = vmatprep.subr.bf16.mxu0 0
    %1213 = vmatpush1.bf16.msra.mxu0 0
    %1214 = vmatprep.subr.bf16.mxu0 0
    %1215 = vmatpush1.bf16.msra.mxu0 0
    %1216 = vmatprep.subr.bf16.mxu0 0
    %1217 = vmatpush1.bf16.msra.mxu0 0
    %1218 = vmatprep.subr.bf16.mxu0 0
    %1219 = vmatpush1.bf16.msra.mxu0 0
    %1220 = vmatprep.subr.bf16.mxu0 0
    %1221 = vmatpush1.bf16.msra.mxu0 0
    %1222 = vmatprep.subr.bf16.mxu0 0
    %1223 = vmatpush1.bf16.msra.mxu0 0
    %1224 = vmatprep.subr.bf16.mxu0 0
    %1225 = vmatpush1.bf16.msra.mxu0 0
    %1226 = vmatprep.subr.bf16.mxu0 0
    %1227 = vmatpush1.bf16.msra.mxu0 0
    %1228 = vmatprep.subr.bf16.mxu0 0
    %1229 = vmatpush1.bf16.msra.mxu0 0
    %1230 = vmatprep.subr.bf16.mxu0 0
    %1231 = vmatpush1.bf16.msra.mxu0 0
    %1232 = vmatprep.mubr.bf16.mxu0 0
    %1233 = vmatmul.mubr.bf16.gmra.mrb[0].mxu0 %v1177
    %v1234 = vpop.f32.mrb[0].mxu0
    %v1235 = vadd.f32 0.0, %v1234
    %v1236 = vpop.f32.mrb[0].mxu0
    %v1237 = vpop.f32.mrb[0].mxu0
    %v1238 = vadd.f32 0.0, %v1237
    %v1239 = vpop.f32.mrb[0].mxu0
    %1240 = vmatprep.mubr.bf16.mxu0 0
    %1241 = vmatmul.mubr.bf16.gmra.mrb[0].mxu0 %v1180
    %v1242 = vpop.f32.mrb[0].mxu0
    %v1243 = vadd.f32 0.0, %v1242
    %v1244 = vpop.f32.mrb[0].mxu0
    %v1245 = vpop.f32.mrb[0].mxu0
    %v1246 = vadd.f32 0.0, %v1245
    %v1247 = vpop.f32.mrb[0].mxu0
    %1248 = vmatprep.mubr.bf16.mxu0 0
    %1249 = vmatmul.mubr.bf16.gmra.mrb[0].mxu0 %v1183
    %v1250 = vpop.f32.mrb[0].mxu0
    %v1251 = vadd.f32 0.0, %v1250
    %v1252 = vpop.f32.mrb[0].mxu0
    %v1253 = vpop.f32.mrb[0].mxu0
    %v1254 = vadd.f32 0.0, %v1253
    %v1255 = vpop.f32.mrb[0].mxu0
    %1256 = vmatprep.mubr.bf16.mxu0 0
    %1257 = vmatmul.mubr.bf16.gmra.mrb[0].mxu0 %v1186
    %v1258 = vpop.f32.mrb[0].mxu0
    %v1259 = vadd.f32 0.0, %v1258
    %v1260 = vpop.f32.mrb[0].mxu0
    %v1261 = vpop.f32.mrb[0].mxu0
    %v1262 = vadd.f32 0.0, %v1261
    %v1263 = vpop.f32.mrb[0].mxu0
    %1264 = vmatprep.mubr.bf16.mxu0 0
    %1265 = vmatmul.mubr.bf16.gmra.mrb[0].mxu0 %v1189
    %v1266 = vpop.f32.mrb[0].mxu0
    %v1267 = vadd.f32 0.0, %v1266
    %v1268 = vpop.f32.mrb[0].mxu0
    %v1269 = vpop.f32.mrb[0].mxu0
    %v1270 = vadd.f32 0.0, %v1269
    %v1271 = vpop.f32.mrb[0].mxu0
    %1272 = vmatprep.mubr.bf16.mxu0 0
    %1273 = vmatmul.mubr.bf16.gmra.mrb[0].mxu0 %v1192
    %v1274 = vpop.f32.mrb[0].mxu0
    %v1275 = vadd.f32 0.0, %v1274
    %v1276 = vpop.f32.mrb[0].mxu0
    %v1277 = vpop.f32.mrb[0].mxu0
    %v1278 = vadd.f32 0.0, %v1277
    %v1279 = vpop.f32.mrb[0].mxu0
    %1280 = vmatprep.mubr.bf16.mxu0 0
    %1281 = vmatmul.mubr.bf16.gmra.mrb[0].mxu0 %v1195
    %v1282 = vpop.f32.mrb[0].mxu0
    %v1283 = vadd.f32 0.0, %v1282
    %v1284 = vpop.f32.mrb[0].mxu0
    %v1285 = vpop.f32.mrb[0].mxu0
    %v1286 = vadd.f32 0.0, %v1285
    %v1287 = vpop.f32.mrb[0].mxu0
    %1288 = vmatprep.mubr.bf16.mxu0 0
    %1289 = vmatmul.mubr.bf16.gmra.mrb[0].mxu0 %v1198
    %v1290 = vpop.f32.mrb[0].mxu0
    %v1291 = vadd.f32 0.0, %v1290
    %v1292 = vpop.f32.mrb[0].mxu0
    %v1293 = vpop.f32.mrb[0].mxu0
    %v1294 = vadd.f32 0.0, %v1293
    %v1295 = vpop.f32.mrb[0].mxu0
    %1296 = vdwg.mxu0
    %v1297 = vadd.f32 %v1126, %v1235
    %v1298 = vadd.f32 %v1127, %v1238
    %v1299 = vadd.f32 %v1128, %v1243
    %v1300 = vadd.f32 %v1129, %v1246
    %v1301 = vadd.f32 %v1130, %v1251
    %v1302 = vadd.f32 %v1131, %v1254
    %v1303 = vadd.f32 %v1132, %v1259
    %v1304 = vadd.f32 %v1133, %v1262
    %v1305 = vadd.f32 %v1134, %v1267
    %v1306 = vadd.f32 %v1135, %v1270
    %v1307 = vadd.f32 %v1136, %v1275
    %v1308 = vadd.f32 %v1137, %v1278
    %v1309 = vadd.f32 %v1138, %v1283
    %v1310 = vadd.f32 %v1139, %v1286
    %v1311 = vadd.f32 %v1140, %v1291
    %v1312 = vadd.f32 %v1141, %v1294
    %v1313 = vld [vmem:[%s1142 + $0x1] sm:$0xff]
    %v1314 = vld [vmem:[%s1142 + $0x11] sm:$0xff]
    %v1315 = vld [vmem:[%s1142 + $0x21] sm:$0xff]
    %v1316 = vld [vmem:[%s1142 + $0x31] sm:$0xff]
    %v1317 = vld [vmem:[%s1142 + $0x41] sm:$0xff]
    %v1318 = vld [vmem:[%s1142 + $0x51] sm:$0xff]
    %v1319 = vld [vmem:[%s1142 + $0x61] sm:$0xff]
    %v1320 = vld [vmem:[%s1142 + $0x71] sm:$0xff]
    %v1321 = vld [vmem:[%s1142 + $0xa1] sm:$0xff]
    %v1322 = vld [vmem:[%s1142 + $0xb1] sm:$0xff]
    %v1323 = vld [vmem:[%s1142 + $0xc1] sm:$0xff]
    %v1324 = vld [vmem:[%s1142 + $0xd1] sm:$0xff]
    %v1325 = vld [vmem:[%s1142 + $0xe1] sm:$0xff]
    %v1326 = vld [vmem:[%s1142 + $0xf1] sm:$0xff]
    %v1327 = vld [vmem:[%s1142 + $0x101] sm:$0xff]
    %v1328 = vld [vmem:[%s1142 + $0x111] sm:$0xff]
    %v1329 = vpack.c.bf16 %v1314, %v1313
    %v1330 = vpack.c.bf16 %v1316, %v1315
    %v1331 = vpack.c.bf16 %v1318, %v1317
    %v1332 = vpack.c.bf16 %v1320, %v1319
    %v1333 = vpack.c.bf16 %v1322, %v1321
    %v1334 = vpack.c.bf16 %v1324, %v1323
    %v1335 = vpack.c.bf16 %v1326, %v1325
    %v1336 = vpack.c.bf16 %v1328, %v1327
    %s1337 = scalar_lea.vmem [#allocation5], 56
    %v1338 = vld [vmem:[%s1337] sm:$0xf]
    %v1339 = vld [vmem:[%s1337 + $0x4] sm:$0xf]
    %v1342 = vunpack.c.l.b16 %v1338
    %v1343 = vunpack.c.l.b16 %v1339
    %v1344 = vpack.c.b16 %v1343, %v1342
    %v1347 = vsel %vm212, %v1329, 0
    %v1350 = vsel %vm212, %v1330, 0
    %v1353 = vsel %vm212, %v1331, 0
    %v1356 = vsel %vm212, %v1332, 0
    %v1359 = vsel %vm212, %v1333, 0
    %v1362 = vsel %vm212, %v1334, 0
    %v1365 = vsel %vm212, %v1335, 0
    %v1368 = vsel %vm212, %v1336, 0
    %1370 = vmatprep.subr.bf16.mxu0 0
    %1371 = vmatpush1.bf16.msra.mxu0 %v1344
    %1372 = vmatprep.subr.bf16.mxu0 0
    %1373 = vmatpush1.bf16.msra.mxu0 0
    %1374 = vmatprep.subr.bf16.mxu0 0
    %1375 = vmatpush1.bf16.msra.mxu0 0
    %1376 = vmatprep.subr.bf16.mxu0 0
    %1377 = vmatpush1.bf16.msra.mxu0 0
    %1378 = vmatprep.subr.bf16.mxu0 0
    %1379 = vmatpush1.bf16.msra.mxu0 0
    %1380 = vmatprep.subr.bf16.mxu0 0
    %1381 = vmatpush1.bf16.msra.mxu0 0
    %1382 = vmatprep.subr.bf16.mxu0 0
    %1383 = vmatpush1.bf16.msra.mxu0 0
    %1384 = vmatprep.subr.bf16.mxu0 0
    %1385 = vmatpush1.bf16.msra.mxu0 0
    %1386 = vmatprep.subr.bf16.mxu0 0
    %1387 = vmatpush1.bf16.msra.mxu0 0
    %1388 = vmatprep.subr.bf16.mxu0 0
    %1389 = vmatpush1.bf16.msra.mxu0 0
    %1390 = vmatprep.subr.bf16.mxu0 0
    %1391 = vmatpush1.bf16.msra.mxu0 0
    %1392 = vmatprep.subr.bf16.mxu0 0
    %1393 = vmatpush1.bf16.msra.mxu0 0
    %1394 = vmatprep.subr.bf16.mxu0 0
    %1395 = vmatpush1.bf16.msra.mxu0 0
    %1396 = vmatprep.subr.bf16.mxu0 0
    %1397 = vmatpush1.bf16.msra.mxu0 0
    %1398 = vmatprep.subr.bf16.mxu0 0
    %1399 = vmatpush1.bf16.msra.mxu0 0
    %1400 = vmatprep.subr.bf16.mxu0 0
    %1401 = vmatpush1.bf16.msra.mxu0 0
    %1402 = vmatprep.mubr.bf16.mxu0 0
    %1403 = vmatmul.mubr.bf16.gmra.mrb[0].mxu0 %v1347
    %v1404 = vpop.f32.mrb[0].mxu0
    %v1405 = vadd.f32 0.0, %v1404
    %v1406 = vpop.f32.mrb[0].mxu0
    %v1407 = vpop.f32.mrb[0].mxu0
    %v1408 = vadd.f32 0.0, %v1407
    %v1409 = vpop.f32.mrb[0].mxu0
    %1410 = vmatprep.mubr.bf16.mxu0 0
    %1411 = vmatmul.mubr.bf16.gmra.mrb[0].mxu0 %v1350
    %v1412 = vpop.f32.mrb[0].mxu0
    %v1413 = vadd.f32 0.0, %v1412
    %v1414 = vpop.f32.mrb[0].mxu0
    %v1415 = vpop.f32.mrb[0].mxu0
    %v1416 = vadd.f32 0.0, %v1415
    %v1417 = vpop.f32.mrb[0].mxu0
    %1418 = vmatprep.mubr.bf16.mxu0 0
    %1419 = vmatmul.mubr.bf16.gmra.mrb[0].mxu0 %v1353
    %v1420 = vpop.f32.mrb[0].mxu0
    %v1421 = vadd.f32 0.0, %v1420
    %v1422 = vpop.f32.mrb[0].mxu0
    %v1423 = vpop.f32.mrb[0].mxu0
    %v1424 = vadd.f32 0.0, %v1423
    %v1425 = vpop.f32.mrb[0].mxu0
    %1426 = vmatprep.mubr.bf16.mxu0 0
    %1427 = vmatmul.mubr.bf16.gmra.mrb[0].mxu0 %v1356
    %v1428 = vpop.f32.mrb[0].mxu0
    %v1429 = vadd.f32 0.0, %v1428
    %v1430 = vpop.f32.mrb[0].mxu0
    %v1431 = vpop.f32.mrb[0].mxu0
    %v1432 = vadd.f32 0.0, %v1431
    %v1433 = vpop.f32.mrb[0].mxu0
    %1434 = vmatprep.mubr.bf16.mxu0 0
    %1435 = vmatmul.mubr.bf16.gmra.mrb[0].mxu0 %v1359
    %v1436 = vpop.f32.mrb[0].mxu0
    %v1437 = vadd.f32 0.0, %v1436
    %v1438 = vpop.f32.mrb[0].mxu0
    %v1439 = vpop.f32.mrb[0].mxu0
    %v1440 = vadd.f32 0.0, %v1439
    %v1441 = vpop.f32.mrb[0].mxu0
    %1442 = vmatprep.mubr.bf16.mxu0 0
    %1443 = vmatmul.mubr.bf16.gmra.mrb[0].mxu0 %v1362
    %v1444 = vpop.f32.mrb[0].mxu0
    %v1445 = vadd.f32 0.0, %v1444
    %v1446 = vpop.f32.mrb[0].mxu0
    %v1447 = vpop.f32.mrb[0].mxu0
    %v1448 = vadd.f32 0.0, %v1447
    %v1449 = vpop.f32.mrb[0].mxu0
    %1450 = vmatprep.mubr.bf16.mxu0 0
    %1451 = vmatmul.mubr.bf16.gmra.mrb[0].mxu0 %v1365
    %v1452 = vpop.f32.mrb[0].mxu0
    %v1453 = vadd.f32 0.0, %v1452
    %v1454 = vpop.f32.mrb[0].mxu0
    %v1455 = vpop.f32.mrb[0].mxu0
    %v1456 = vadd.f32 0.0, %v1455
    %v1457 = vpop.f32.mrb[0].mxu0
    %1458 = vmatprep.mubr.bf16.mxu0 0
    %1459 = vmatmul.mubr.bf16.gmra.mrb[0].mxu0 %v1368
    %v1460 = vpop.f32.mrb[0].mxu0
    %v1461 = vadd.f32 0.0, %v1460
    %v1462 = vpop.f32.mrb[0].mxu0
    %v1463 = vpop.f32.mrb[0].mxu0
    %v1464 = vadd.f32 0.0, %v1463
    %v1465 = vpop.f32.mrb[0].mxu0
    %1466 = vdwg.mxu0
    %v1467 = vadd.f32 %v1297, %v1405
    %v1468 = vadd.f32 %v1298, %v1408
    %v1469 = vadd.f32 %v1299, %v1413
    %v1470 = vadd.f32 %v1300, %v1416
    %v1471 = vadd.f32 %v1301, %v1421
    %v1472 = vadd.f32 %v1302, %v1424
    %v1473 = vadd.f32 %v1303, %v1429
    %v1474 = vadd.f32 %v1304, %v1432
    %v1475 = vadd.f32 %v1305, %v1437
    %v1476 = vadd.f32 %v1306, %v1440
    %v1477 = vadd.f32 %v1307, %v1445
    %v1478 = vadd.f32 %v1308, %v1448
    %v1479 = vadd.f32 %v1309, %v1453
    %v1480 = vadd.f32 %v1310, %v1456
    %v1481 = vadd.f32 %v1311, %v1461
    %v1482 = vadd.f32 %v1312, %v1464
    %v1483 = vld [vmem:[%s1142 + $0x2] sm:$0xff]
    %v1484 = vld [vmem:[%s1142 + $0x12] sm:$0xff]
    %v1485 = vld [vmem:[%s1142 + $0x22] sm:$0xff]
    %v1486 = vld [vmem:[%s1142 + $0x32] sm:$0xff]
    %v1487 = vld [vmem:[%s1142 + $0x42] sm:$0xff]
    %v1488 = vld [vmem:[%s1142 + $0x52] sm:$0xff]
    %v1489 = vld [vmem:[%s1142 + $0x62] sm:$0xff]
    %v1490 = vld [vmem:[%s1142 + $0x72] sm:$0xff]
    %v1491 = vld [vmem:[%s1142 + $0xa2] sm:$0xff]
    %v1492 = vld [vmem:[%s1142 + $0xb2] sm:$0xff]
    %v1493 = vld [vmem:[%s1142 + $0xc2] sm:$0xff]
    %v1494 = vld [vmem:[%s1142 + $0xd2] sm:$0xff]
    %v1495 = vld [vmem:[%s1142 + $0xe2] sm:$0xff]
    %v1496 = vld [vmem:[%s1142 + $0xf2] sm:$0xff]
    %v1497 = vld [vmem:[%s1142 + $0x102] sm:$0xff]
    %v1498 = vld [vmem:[%s1142 + $0x112] sm:$0xff]
    %v1499 = vpack.c.bf16 %v1484, %v1483
    %v1500 = vpack.c.bf16 %v1486, %v1485
    %v1501 = vpack.c.bf16 %v1488, %v1487
    %v1502 = vpack.c.bf16 %v1490, %v1489
    %v1503 = vpack.c.bf16 %v1492, %v1491
    %v1504 = vpack.c.bf16 %v1494, %v1493
    %v1505 = vpack.c.bf16 %v1496, %v1495
    %v1506 = vpack.c.bf16 %v1498, %v1497
    %s1507 = scalar_lea.vmem [#allocation5], 64
    %v1508 = vld [vmem:[%s1507] sm:$0xf]
    %v1509 = vld [vmem:[%s1507 + $0x4] sm:$0xf]
    %v1512 = vunpack.c.l.b16 %v1508
    %v1513 = vunpack.c.l.b16 %v1509
    %v1514 = vpack.c.b16 %v1513, %v1512
    %v1517 = vsel %vm212, %v1499, 0
    %v1520 = vsel %vm212, %v1500, 0
    %v1523 = vsel %vm212, %v1501, 0
    %v1526 = vsel %vm212, %v1502, 0
    %v1529 = vsel %vm212, %v1503, 0
    %v1532 = vsel %vm212, %v1504, 0
    %v1535 = vsel %vm212, %v1505, 0
    %v1538 = vsel %vm212, %v1506, 0
    %1540 = vmatprep.subr.bf16.mxu0 0
    %1541 = vmatpush1.bf16.msra.mxu0 %v1514
    %1542 = vmatprep.subr.bf16.mxu0 0
    %1543 = vmatpush1.bf16.msra.mxu0 0
    %1544 = vmatprep.subr.bf16.mxu0 0
    %1545 = vmatpush1.bf16.msra.mxu0 0
    %1546 = vmatprep.subr.bf16.mxu0 0
    %1547 = vmatpush1.bf16.msra.mxu0 0
    %1548 = vmatprep.subr.bf16.mxu0 0
    %1549 = vmatpush1.bf16.msra.mxu0 0
    %1550 = vmatprep.subr.bf16.mxu0 0
    %1551 = vmatpush1.bf16.msra.mxu0 0
    %1552 = vmatprep.subr.bf16.mxu0 0
    %1553 = vmatpush1.bf16.msra.mxu0 0
    %1554 = vmatprep.subr.bf16.mxu0 0
    %1555 = vmatpush1.bf16.msra.mxu0 0
    %1556 = vmatprep.subr.bf16.mxu0 0
    %1557 = vmatpush1.bf16.msra.mxu0 0
    %1558 = vmatprep.subr.bf16.mxu0 0
    %1559 = vmatpush1.bf16.msra.mxu0 0
    %1560 = vmatprep.subr.bf16.mxu0 0
    %1561 = vmatpush1.bf16.msra.mxu0 0
    %1562 = vmatprep.subr.bf16.mxu0 0
    %1563 = vmatpush1.bf16.msra.mxu0 0
    %1564 = vmatprep.subr.bf16.mxu0 0
    %1565 = vmatpush1.bf16.msra.mxu0 0
    %1566 = vmatprep.subr.bf16.mxu0 0
    %1567 = vmatpush1.bf16.msra.mxu0 0
    %1568 = vmatprep.subr.bf16.mxu0 0
    %1569 = vmatpush1.bf16.msra.mxu0 0
    %1570 = vmatprep.subr.bf16.mxu0 0
    %1571 = vmatpush1.bf16.msra.mxu0 0
    %1572 = vmatprep.mubr.bf16.mxu0 0
    %1573 = vmatmul.mubr.bf16.gmra.mrb[0].mxu0 %v1517
    %v1574 = vpop.f32.mrb[0].mxu0
    %v1575 = vadd.f32 0.0, %v1574
    %v1576 = vpop.f32.mrb[0].mxu0
    %v1577 = vpop.f32.mrb[0].mxu0
    %v1578 = vadd.f32 0.0, %v1577
    %v1579 = vpop.f32.mrb[0].mxu0
    %1580 = vmatprep.mubr.bf16.mxu0 0
    %1581 = vmatmul.mubr.bf16.gmra.mrb[0].mxu0 %v1520
    %v1582 = vpop.f32.mrb[0].mxu0
    %v1583 = vadd.f32 0.0, %v1582
    %v1584 = vpop.f32.mrb[0].mxu0
    %v1585 = vpop.f32.mrb[0].mxu0
    %v1586 = vadd.f32 0.0, %v1585
    %v1587 = vpop.f32.mrb[0].mxu0
    %1588 = vmatprep.mubr.bf16.mxu0 0
    %1589 = vmatmul.mubr.bf16.gmra.mrb[0].mxu0 %v1523
    %v1590 = vpop.f32.mrb[0].mxu0
    %v1591 = vadd.f32 0.0, %v1590
    %v1592 = vpop.f32.mrb[0].mxu0
    %v1593 = vpop.f32.mrb[0].mxu0
    %v1594 = vadd.f32 0.0, %v1593
    %v1595 = vpop.f32.mrb[0].mxu0
    %1596 = vmatprep.mubr.bf16.mxu0 0
    %1597 = vmatmul.mubr.bf16.gmra.mrb[0].mxu0 %v1526
    %v1598 = vpop.f32.mrb[0].mxu0
    %v1599 = vadd.f32 0.0, %v1598
    %v1600 = vpop.f32.mrb[0].mxu0
    %v1601 = vpop.f32.mrb[0].mxu0
    %v1602 = vadd.f32 0.0, %v1601
    %v1603 = vpop.f32.mrb[0].mxu0
    %1604 = vmatprep.mubr.bf16.mxu0 0
    %1605 = vmatmul.mubr.bf16.gmra.mrb[0].mxu0 %v1529
    %v1606 = vpop.f32.mrb[0].mxu0
    %v1607 = vadd.f32 0.0, %v1606
    %v1608 = vpop.f32.mrb[0].mxu0
    %v1609 = vpop.f32.mrb[0].mxu0
    %v1610 = vadd.f32 0.0, %v1609
    %v1611 = vpop.f32.mrb[0].mxu0
    %1612 = vmatprep.mubr.bf16.mxu0 0
    %1613 = vmatmul.mubr.bf16.gmra.mrb[0].mxu0 %v1532
    %v1614 = vpop.f32.mrb[0].mxu0
    %v1615 = vadd.f32 0.0, %v1614
    %v1616 = vpop.f32.mrb[0].mxu0
    %v1617 = vpop.f32.mrb[0].mxu0
    %v1618 = vadd.f32 0.0, %v1617
    %v1619 = vpop.f32.mrb[0].mxu0
    %1620 = vmatprep.mubr.bf16.mxu0 0
    %1621 = vmatmul.mubr.bf16.gmra.mrb[0].mxu0 %v1535
    %v1622 = vpop.f32.mrb[0].mxu0
    %v1623 = vadd.f32 0.0, %v1622
    %v1624 = vpop.f32.mrb[0].mxu0
    %v1625 = vpop.f32.mrb[0].mxu0
    %v1626 = vadd.f32 0.0, %v1625
    %v1627 = vpop.f32.mrb[0].mxu0
    %1628 = vmatprep.mubr.bf16.mxu0 0
    %1629 = vmatmul.mubr.bf16.gmra.mrb[0].mxu0 %v1538
    %v1630 = vpop.f32.mrb[0].mxu0
    %v1631 = vadd.f32 0.0, %v1630
    %v1632 = vpop.f32.mrb[0].mxu0
    %v1633 = vpop.f32.mrb[0].mxu0
    %v1634 = vadd.f32 0.0, %v1633
    %v1635 = vpop.f32.mrb[0].mxu0
    %1636 = vdwg.mxu0
    %v1637 = vadd.f32 %v1467, %v1575
    %v1638 = vadd.f32 %v1468, %v1578
    %v1639 = vadd.f32 %v1469, %v1583
    %v1640 = vadd.f32 %v1470, %v1586
    %v1641 = vadd.f32 %v1471, %v1591
    %v1642 = vadd.f32 %v1472, %v1594
    %v1643 = vadd.f32 %v1473, %v1599
    %v1644 = vadd.f32 %v1474, %v1602
    %v1645 = vadd.f32 %v1475, %v1607
    %v1646 = vadd.f32 %v1476, %v1610
    %v1647 = vadd.f32 %v1477, %v1615
    %v1648 = vadd.f32 %v1478, %v1618
    %v1649 = vadd.f32 %v1479, %v1623
    %v1650 = vadd.f32 %v1480, %v1626
    %v1651 = vadd.f32 %v1481, %v1631
    %v1652 = vadd.f32 %v1482, %v1634
    %v1653 = vld [vmem:[#allocation7] sm:$0x1]
    %v1655 = vlaneseq
    %v1656 = vshrl.u32 %v1655, 7
    %v1657 = vsub.s32 0, %v1656
    %v1658 = vrot.slane %v1653, %v1657
    %v1660 = vadd.f32 %v1637, %v1658
    %v1661 = vadd.f32 %v1638, %v1658
    %v1662 = vadd.f32 %v1639, %v1658
    %v1663 = vadd.f32 %v1640, %v1658
    %v1664 = vadd.f32 %v1641, %v1658
    %v1665 = vadd.f32 %v1642, %v1658
    %v1666 = vadd.f32 %v1643, %v1658
    %v1667 = vadd.f32 %v1644, %v1658
    %v1668 = vadd.f32 %v1645, %v1658
    %v1669 = vadd.f32 %v1646, %v1658
    %v1670 = vadd.f32 %v1647, %v1658
    %v1671 = vadd.f32 %v1648, %v1658
    %v1672 = vadd.f32 %v1649, %v1658
    %v1673 = vadd.f32 %v1650, %v1658
    %v1674 = vadd.f32 %v1651, %v1658
    %v1675 = vadd.f32 %v1652, %v1658
    %v1676 = vmax.f32 %v1660, 0.0
    %v1677 = vmax.f32 %v1661, 0.0
    %v1678 = vmax.f32 %v1662, 0.0
    %v1679 = vmax.f32 %v1663, 0.0
    %v1680 = vmax.f32 %v1664, 0.0
    %v1681 = vmax.f32 %v1665, 0.0
    %v1682 = vmax.f32 %v1666, 0.0
    %v1683 = vmax.f32 %v1667, 0.0
    %v1684 = vmax.f32 %v1668, 0.0
    %v1685 = vmax.f32 %v1669, 0.0
    %v1686 = vmax.f32 %v1670, 0.0
    %v1687 = vmax.f32 %v1671, 0.0
    %v1688 = vmax.f32 %v1672, 0.0
    %v1689 = vmax.f32 %v1673, 0.0
    %v1690 = vmax.f32 %v1674, 0.0
    %v1691 = vmax.f32 %v1675, 0.0
    %vm1692 = vcmask 261120
    %1693 = vst.msk [vmem:[#allocation2] sm:$0xff] %vm1692, 0.0
    %vm1694 = vcmask 254976
    %1695 = vst.msk [vmem:[#allocation2 + $0x8] sm:$0x3] %vm1694, 0.0
    %1696 = vst.msk [vmem:[#allocation2 + $0x10] sm:$0xff] %vm1692, 0.0
    %1697 = vst.msk [vmem:[#allocation2 + $0x18] sm:$0x3] %vm1694, 0.0
    %1698 = vst.msk [vmem:[#allocation2 + $0x20] sm:$0xff] %vm1692, 0.0
    %1699 = vst.msk [vmem:[#allocation2 + $0x28] sm:$0x3] %vm1694, 0.0
    %1700 = vst.msk [vmem:[#allocation2 + $0x30] sm:$0xff] %vm1692, 0.0
    %1701 = vst.msk [vmem:[#allocation2 + $0x38] sm:$0x3] %vm1694, 0.0
    %1702 = vst.msk [vmem:[#allocation2 + $0x40] sm:$0xff] %vm1692, 0.0
    %1703 = vst.msk [vmem:[#allocation2 + $0x48] sm:$0x3] %vm1694, 0.0
    %1704 = vst.msk [vmem:[#allocation2 + $0x50] sm:$0xff] %vm1692, 0.0
    %1705 = vst.msk [vmem:[#allocation2 + $0x58] sm:$0x3] %vm1694, 0.0
    %1706 = vst.msk [vmem:[#allocation2 + $0x60] sm:$0xff] %vm1692, 0.0
    %1707 = vst.msk [vmem:[#allocation2 + $0x68] sm:$0x3] %vm1694, 0.0
    %1708 = vst.msk [vmem:[#allocation2 + $0x70] sm:$0xff] %vm1692, 0.0
    %1709 = vst.msk [vmem:[#allocation2 + $0x78] sm:$0x3] %vm1694, 0.0
    %1710 = vst.msk [vmem:[#allocation2 + $0x80] sm:$0xff] %vm1692, 0.0
    %1711 = vst.msk [vmem:[#allocation2 + $0x88] sm:$0x3] %vm1694, 0.0
    %1712 = vst.msk [vmem:[#allocation2 + $0x90] sm:$0xff] %vm1692, 0.0
    %1713 = vst.msk [vmem:[#allocation2 + $0x98] sm:$0x3] %vm1694, 0.0
    %1714 = vst.msk [vmem:[#allocation2 + $0xa0] sm:$0xff] %vm1692, 0.0
    %1715 = vst.msk [vmem:[#allocation2 + $0xa8] sm:$0x3] %vm1694, 0.0
    %1716 = vst.msk [vmem:[#allocation2 + $0xb0] sm:$0xff] %vm1692, 0.0
    %1717 = vst.msk [vmem:[#allocation2 + $0xb8] sm:$0x3] %vm1694, 0.0
    %1718 = vst.msk [vmem:[#allocation2 + $0xc0] sm:$0xff] %vm1692, 0.0
    %1719 = vst.msk [vmem:[#allocation2 + $0xc8] sm:$0x3] %vm1694, 0.0
    %1720 = vst.msk [vmem:[#allocation2 + $0xd0] sm:$0xff] %vm1692, 0.0
    %1721 = vst.msk [vmem:[#allocation2 + $0xd8] sm:$0x3] %vm1694, 0.0
    %1722 = vst.msk [vmem:[#allocation2 + $0xe0] sm:$0xff] %vm1692, 0.0
    %1723 = vst.msk [vmem:[#allocation2 + $0xe8] sm:$0x3] %vm1694, 0.0
    %1724 = vst.msk [vmem:[#allocation2 + $0xf0] sm:$0xff] %vm1692, 0.0
    %1725 = vst.msk [vmem:[#allocation2 + $0xf8] sm:$0x3] %vm1694, 0.0
    %1726 = vst.msk [vmem:[#allocation2 + $0x100] sm:$0xff] %vm1692, 0.0
    %1727 = vst.msk [vmem:[#allocation2 + $0x108] sm:$0x3] %vm1694, 0.0
    %1728 = vst.msk [vmem:[#allocation2 + $0x110] sm:$0xff] %vm1692, 0.0
    %1729 = vst.msk [vmem:[#allocation2 + $0x118] sm:$0x3] %vm1694, 0.0
    %1730 = vst.msk [vmem:[#allocation2 + $0x120] sm:$0xff] %vm1692, 0.0
    %1731 = vst.msk [vmem:[#allocation2 + $0x128] sm:$0x3] %vm1694, 0.0
    %1732 = vst.msk [vmem:[#allocation2 + $0x130] sm:$0xff] %vm1692, 0.0
    %1733 = vst.msk [vmem:[#allocation2 + $0x138] sm:$0x3] %vm1694, 0.0
    %s1734 = scalar_lea.vmem [#allocation2], 16
    %1735 = vst.msk [vmem:[%s1734 + $0x1] sm:$0xff] %vm1692, %v1676
    %1736 = vst.msk [vmem:[%s1734 + $0x11] sm:$0xff] %vm1692, %v1677
    %1737 = vst.msk [vmem:[%s1734 + $0x21] sm:$0xff] %vm1692, %v1678
    %1738 = vst.msk [vmem:[%s1734 + $0x31] sm:$0xff] %vm1692, %v1679
    %1739 = vst.msk [vmem:[%s1734 + $0x41] sm:$0xff] %vm1692, %v1680
    %1740 = vst.msk [vmem:[%s1734 + $0x51] sm:$0xff] %vm1692, %v1681
    %1741 = vst.msk [vmem:[%s1734 + $0x61] sm:$0xff] %vm1692, %v1682
    %1742 = vst.msk [vmem:[%s1734 + $0x71] sm:$0xff] %vm1692, %v1683
    %1743 = vst.msk [vmem:[%s1734 + $0xa1] sm:$0xff] %vm1692, %v1684
    %1744 = vst.msk [vmem:[%s1734 + $0xb1] sm:$0xff] %vm1692, %v1685
    %1745 = vst.msk [vmem:[%s1734 + $0xc1] sm:$0xff] %vm1692, %v1686
    %1746 = vst.msk [vmem:[%s1734 + $0xd1] sm:$0xff] %vm1692, %v1687
    %1747 = vst.msk [vmem:[%s1734 + $0xe1] sm:$0xff] %vm1692, %v1688
    %1748 = vst.msk [vmem:[%s1734 + $0xf1] sm:$0xff] %vm1692, %v1689
    %1749 = vst.msk [vmem:[%s1734 + $0x101] sm:$0xff] %vm1692, %v1690
    %1750 = vst.msk [vmem:[%s1734 + $0x111] sm:$0xff] %vm1692, %v1691
    %v1751 = vld [vmem:[#allocation2] sm:$0xff]
    %v1752 = vld [vmem:[#allocation2 + $0x10] sm:$0xff]
    %v1753 = vld [vmem:[#allocation2 + $0x20] sm:$0xff]
    %v1754 = vld [vmem:[#allocation2 + $0x30] sm:$0xff]
    %v1755 = vld [vmem:[#allocation2 + $0x40] sm:$0xff]
    %v1756 = vld [vmem:[#allocation2 + $0x50] sm:$0xff]
    %v1757 = vld [vmem:[#allocation2 + $0x60] sm:$0xff]
    %v1758 = vld [vmem:[#allocation2 + $0x70] sm:$0xff]
    %v1759 = vld [vmem:[#allocation2 + $0xa0] sm:$0xff]
    %v1760 = vld [vmem:[#allocation2 + $0xb0] sm:$0xff]
    %v1761 = vld [vmem:[#allocation2 + $0xc0] sm:$0xff]
    %v1762 = vld [vmem:[#allocation2 + $0xd0] sm:$0xff]
    %v1763 = vld [vmem:[#allocation2 + $0xe0] sm:$0xff]
    %v1764 = vld [vmem:[#allocation2 + $0xf0] sm:$0xff]
    %v1765 = vld [vmem:[#allocation2 + $0x100] sm:$0xff]
    %v1766 = vld [vmem:[#allocation2 + $0x110] sm:$0xff]
    %v1767 = vpack.c.bf16 %v1752, %v1751
    %v1768 = vpack.c.bf16 %v1754, %v1753
    %v1769 = vpack.c.bf16 %v1756, %v1755
    %v1770 = vpack.c.bf16 %v1758, %v1757
    %v1771 = vpack.c.bf16 %v1760, %v1759
    %v1772 = vpack.c.bf16 %v1762, %v1761
    %v1773 = vpack.c.bf16 %v1764, %v1763
    %v1774 = vpack.c.bf16 %v1766, %v1765
    %v1775 = vld [vmem:[#allocation9] sm:$0xf]
    %v1776 = vld [vmem:[#allocation9 + $0x4] sm:$0xf]
    %v1777 = vld [vmem:[#allocation9 + $0x8] sm:$0xf]
    %v1778 = vld [vmem:[#allocation9 + $0xc] sm:$0xf]
    %v1779 = vld [vmem:[#allocation2 + $0x1] sm:$0xff]
    %v1780 = vld [vmem:[#allocation2 + $0x11] sm:$0xff]
    %v1781 = vld [vmem:[#allocation2 + $0x21] sm:$0xff]
    %v1782 = vld [vmem:[#allocation2 + $0x31] sm:$0xff]
    %v1783 = vld [vmem:[#allocation2 + $0x41] sm:$0xff]
    %v1784 = vld [vmem:[#allocation2 + $0x51] sm:$0xff]
    %v1785 = vld [vmem:[#allocation2 + $0x61] sm:$0xff]
    %v1786 = vld [vmem:[#allocation2 + $0x71] sm:$0xff]
    %v1787 = vld [vmem:[#allocation2 + $0xa1] sm:$0xff]
    %v1788 = vld [vmem:[#allocation2 + $0xb1] sm:$0xff]
    %v1789 = vld [vmem:[#allocation2 + $0xc1] sm:$0xff]
    %v1790 = vld [vmem:[#allocation2 + $0xd1] sm:$0xff]
    %v1791 = vld [vmem:[#allocation2 + $0xe1] sm:$0xff]
    %v1792 = vld [vmem:[#allocation2 + $0xf1] sm:$0xff]
    %v1793 = vld [vmem:[#allocation2 + $0x101] sm:$0xff]
    %v1794 = vld [vmem:[#allocation2 + $0x111] sm:$0xff]
    %v1795 = vpack.c.bf16 %v1780, %v1779
    %v1796 = vpack.c.bf16 %v1782, %v1781
    %v1797 = vpack.c.bf16 %v1784, %v1783
    %v1798 = vpack.c.bf16 %v1786, %v1785
    %v1799 = vpack.c.bf16 %v1788, %v1787
    %v1800 = vpack.c.bf16 %v1790, %v1789
    %v1801 = vpack.c.bf16 %v1792, %v1791
    %v1802 = vpack.c.bf16 %v1794, %v1793
    %s1803 = scalar_lea.vmem [#allocation9], 16
    %v1804 = vld [vmem:[%s1803] sm:$0xf]
    %v1805 = vld [vmem:[%s1803 + $0x4] sm:$0xf]
    %v1806 = vld [vmem:[%s1803 + $0x8] sm:$0xf]
    %v1807 = vld [vmem:[%s1803 + $0xc] sm:$0xf]
    %v1812 = vunpack.c.l.b16 %v1804
    %v1813 = vunpack.c.l.b16 %v1805
    %v1814 = vunpack.c.l.b16 %v1806
    %v1815 = vunpack.c.l.b16 %v1807
    %v1816 = vpack.c.b16 %v1813, %v1812
    %v1817 = vpack.c.b16 %v1815, %v1814
    %v1821 = vsel %vm1692, %v1795, 0
    %v1824 = vsel %vm1692, %v1796, 0
    %v1827 = vsel %vm1692, %v1797, 0
    %v1830 = vsel %vm1692, %v1798, 0
    %v1833 = vsel %vm1692, %v1799, 0
    %v1836 = vsel %vm1692, %v1800, 0
    %v1839 = vsel %vm1692, %v1801, 0
    %v1842 = vsel %vm1692, %v1802, 0
    %1844 = vmatprep.subr.bf16.mxu0 0
    %1845 = vmatpush1.bf16.msra.mxu0 %v1816
    %1846 = vmatprep.subr.bf16.mxu0 0
    %1847 = vmatpush1.bf16.msra.mxu0 %v1817
    %1848 = vmatprep.subr.bf16.mxu0 0
    %1849 = vmatpush1.bf16.msra.mxu0 0
    %1850 = vmatprep.subr.bf16.mxu0 0
    %1851 = vmatpush1.bf16.msra.mxu0 0
    %1852 = vmatprep.subr.bf16.mxu0 0
    %1853 = vmatpush1.bf16.msra.mxu0 0
    %1854 = vmatprep.subr.bf16.mxu0 0
    %1855 = vmatpush1.bf16.msra.mxu0 0
    %1856 = vmatprep.subr.bf16.mxu0 0
    %1857 = vmatpush1.bf16.msra.mxu0 0
    %1858 = vmatprep.subr.bf16.mxu0 0
    %1859 = vmatpush1.bf16.msra.mxu0 0
    %1860 = vmatprep.subr.bf16.mxu0 0
    %1861 = vmatpush1.bf16.msra.mxu0 0
    %1862 = vmatprep.subr.bf16.mxu0 0
    %1863 = vmatpush1.bf16.msra.mxu0 0
    %1864 = vmatprep.subr.bf16.mxu0 0
    %1865 = vmatpush1.bf16.msra.mxu0 0
    %1866 = vmatprep.subr.bf16.mxu0 0
    %1867 = vmatpush1.bf16.msra.mxu0 0
    %1868 = vmatprep.subr.bf16.mxu0 0
    %1869 = vmatpush1.bf16.msra.mxu0 0
    %1870 = vmatprep.subr.bf16.mxu0 0
    %1871 = vmatpush1.bf16.msra.mxu0 0
    %1872 = vmatprep.subr.bf16.mxu0 0
    %1873 = vmatpush1.bf16.msra.mxu0 0
    %1874 = vmatprep.subr.bf16.mxu0 0
    %1875 = vmatpush1.bf16.msra.mxu0 0
    %1876 = vmatprep.mubr.bf16.mxu0 0
    %1877 = vmatmul.mubr.bf16.gmra.mrb[0].mxu0 %v1821
    %v1878 = vpop.f32.mrb[0].mxu0
    %v1879 = vadd.f32 0.0, %v1878
    %v1880 = vpop.f32.mrb[0].mxu0
    %v1881 = vpop.f32.mrb[0].mxu0
    %v1882 = vadd.f32 0.0, %v1881
    %v1883 = vpop.f32.mrb[0].mxu0
    %1884 = vmatprep.mubr.bf16.mxu0 0
    %1885 = vmatmul.mubr.bf16.gmra.mrb[0].mxu0 %v1824
    %v1886 = vpop.f32.mrb[0].mxu0
    %v1887 = vadd.f32 0.0, %v1886
    %v1888 = vpop.f32.mrb[0].mxu0
    %v1889 = vpop.f32.mrb[0].mxu0
    %v1890 = vadd.f32 0.0, %v1889
    %v1891 = vpop.f32.mrb[0].mxu0
    %1892 = vmatprep.mubr.bf16.mxu0 0
    %1893 = vmatmul.mubr.bf16.gmra.mrb[0].mxu0 %v1827
    %v1894 = vpop.f32.mrb[0].mxu0
    %v1895 = vadd.f32 0.0, %v1894
    %v1896 = vpop.f32.mrb[0].mxu0
    %v1897 = vpop.f32.mrb[0].mxu0
    %v1898 = vadd.f32 0.0, %v1897
    %v1899 = vpop.f32.mrb[0].mxu0
    %1900 = vmatprep.mubr.bf16.mxu0 0
    %1901 = vmatmul.mubr.bf16.gmra.mrb[0].mxu0 %v1830
    %v1902 = vpop.f32.mrb[0].mxu0
    %v1903 = vadd.f32 0.0, %v1902
    %v1904 = vpop.f32.mrb[0].mxu0
    %v1905 = vpop.f32.mrb[0].mxu0
    %v1906 = vadd.f32 0.0, %v1905
    %v1907 = vpop.f32.mrb[0].mxu0
    %1908 = vmatprep.mubr.bf16.mxu0 0
    %1909 = vmatmul.mubr.bf16.gmra.mrb[0].mxu0 %v1833
    %v1910 = vpop.f32.mrb[0].mxu0
    %v1911 = vadd.f32 0.0, %v1910
    %v1912 = vpop.f32.mrb[0].mxu0
    %v1913 = vpop.f32.mrb[0].mxu0
    %v1914 = vadd.f32 0.0, %v1913
    %v1915 = vpop.f32.mrb[0].mxu0
    %1916 = vmatprep.mubr.bf16.mxu0 0
    %1917 = vmatmul.mubr.bf16.gmra.mrb[0].mxu0 %v1836
    %v1918 = vpop.f32.mrb[0].mxu0
    %v1919 = vadd.f32 0.0, %v1918
    %v1920 = vpop.f32.mrb[0].mxu0
    %v1921 = vpop.f32.mrb[0].mxu0
    %v1922 = vadd.f32 0.0, %v1921
    %v1923 = vpop.f32.mrb[0].mxu0
    %1924 = vmatprep.mubr.bf16.mxu0 0
    %1925 = vmatmul.mubr.bf16.gmra.mrb[0].mxu0 %v1839
    %v1926 = vpop.f32.mrb[0].mxu0
    %v1927 = vadd.f32 0.0, %v1926
    %v1928 = vpop.f32.mrb[0].mxu0
    %v1929 = vpop.f32.mrb[0].mxu0
    %v1930 = vadd.f32 0.0, %v1929
    %v1931 = vpop.f32.mrb[0].mxu0
    %1932 = vmatprep.mubr.bf16.mxu0 0
    %1933 = vmatmul.mubr.bf16.gmra.mrb[0].mxu0 %v1842
    %v1934 = vpop.f32.mrb[0].mxu0
    %v1935 = vadd.f32 0.0, %v1934
    %v1936 = vpop.f32.mrb[0].mxu0
    %v1937 = vpop.f32.mrb[0].mxu0
    %v1938 = vadd.f32 0.0, %v1937
    %v1939 = vpop.f32.mrb[0].mxu0
    %1940 = vdwg.mxu0
    %v1945 = vunpack.c.l.b16 %v1775
    %v1946 = vunpack.c.l.b16 %v1776
    %v1947 = vunpack.c.l.b16 %v1777
    %v1948 = vunpack.c.l.b16 %v1778
    %v1949 = vpack.c.b16 %v1946, %v1945
    %v1950 = vpack.c.b16 %v1948, %v1947
    %v1954 = vsel %vm1692, %v1767, 0
    %v1957 = vsel %vm1692, %v1768, 0
    %v1960 = vsel %vm1692, %v1769, 0
    %v1963 = vsel %vm1692, %v1770, 0
    %v1966 = vsel %vm1692, %v1771, 0
    %v1969 = vsel %vm1692, %v1772, 0
    %v1972 = vsel %vm1692, %v1773, 0
    %v1975 = vsel %vm1692, %v1774, 0
    %1977 = vmatprep.subr.bf16.mxu0 0
    %1978 = vmatpush1.bf16.msra.mxu0 %v1949
    %1979 = vmatprep.subr.bf16.mxu0 0
    %1980 = vmatpush1.bf16.msra.mxu0 %v1950
    %1981 = vmatprep.subr.bf16.mxu0 0
    %1982 = vmatpush1.bf16.msra.mxu0 0
    %1983 = vmatprep.subr.bf16.mxu0 0
    %1984 = vmatpush1.bf16.msra.mxu0 0
    %1985 = vmatprep.subr.bf16.mxu0 0
    %1986 = vmatpush1.bf16.msra.mxu0 0
    %1987 = vmatprep.subr.bf16.mxu0 0
    %1988 = vmatpush1.bf16.msra.mxu0 0
    %1989 = vmatprep.subr.bf16.mxu0 0
    %1990 = vmatpush1.bf16.msra.mxu0 0
    %1991 = vmatprep.subr.bf16.mxu0 0
    %1992 = vmatpush1.bf16.msra.mxu0 0
    %1993 = vmatprep.subr.bf16.mxu0 0
    %1994 = vmatpush1.bf16.msra.mxu0 0
    %1995 = vmatprep.subr.bf16.mxu0 0
    %1996 = vmatpush1.bf16.msra.mxu0 0
    %1997 = vmatprep.subr.bf16.mxu0 0
    %1998 = vmatpush1.bf16.msra.mxu0 0
    %1999 = vmatprep.subr.bf16.mxu0 0
    %2000 = vmatpush1.bf16.msra.mxu0 0
    %2001 = vmatprep.subr.bf16.mxu0 0
    %2002 = vmatpush1.bf16.msra.mxu0 0
    %2003 = vmatprep.subr.bf16.mxu0 0
    %2004 = vmatpush1.bf16.msra.mxu0 0
    %2005 = vmatprep.subr.bf16.mxu0 0
    %2006 = vmatpush1.bf16.msra.mxu0 0
    %2007 = vmatprep.subr.bf16.mxu0 0
    %2008 = vmatpush1.bf16.msra.mxu0 0
    %2009 = vmatprep.mubr.bf16.mxu0 0
    %2010 = vmatmul.mubr.bf16.gmra.mrb[0].mxu0 %v1954
    %v2011 = vpop.f32.mrb[0].mxu0
    %v2012 = vadd.f32 %v1879, %v2011
    %v2013 = vpop.f32.mrb[0].mxu0
    %v2014 = vpop.f32.mrb[0].mxu0
    %v2015 = vadd.f32 %v1882, %v2014
    %v2016 = vpop.f32.mrb[0].mxu0
    %2017 = vmatprep.mubr.bf16.mxu0 0
    %2018 = vmatmul.mubr.bf16.gmra.mrb[0].mxu0 %v1957
    %v2019 = vpop.f32.mrb[0].mxu0
    %v2020 = vadd.f32 %v1887, %v2019
    %v2021 = vpop.f32.mrb[0].mxu0
    %v2022 = vpop.f32.mrb[0].mxu0
    %v2023 = vadd.f32 %v1890, %v2022
    %v2024 = vpop.f32.mrb[0].mxu0
    %2025 = vmatprep.mubr.bf16.mxu0 0
    %2026 = vmatmul.mubr.bf16.gmra.mrb[0].mxu0 %v1960
    %v2027 = vpop.f32.mrb[0].mxu0
    %v2028 = vadd.f32 %v1895, %v2027
    %v2029 = vpop.f32.mrb[0].mxu0
    %v2030 = vpop.f32.mrb[0].mxu0
    %v2031 = vadd.f32 %v1898, %v2030
    %v2032 = vpop.f32.mrb[0].mxu0
    %2033 = vmatprep.mubr.bf16.mxu0 0
    %2034 = vmatmul.mubr.bf16.gmra.mrb[0].mxu0 %v1963
    %v2035 = vpop.f32.mrb[0].mxu0
    %v2036 = vadd.f32 %v1903, %v2035
    %v2037 = vpop.f32.mrb[0].mxu0
    %v2038 = vpop.f32.mrb[0].mxu0
    %v2039 = vadd.f32 %v1906, %v2038
    %v2040 = vpop.f32.mrb[0].mxu0
    %2041 = vmatprep.mubr.bf16.mxu0 0
    %2042 = vmatmul.mubr.bf16.gmra.mrb[0].mxu0 %v1966
    %v2043 = vpop.f32.mrb[0].mxu0
    %v2044 = vadd.f32 %v1911, %v2043
    %v2045 = vpop.f32.mrb[0].mxu0
    %v2046 = vpop.f32.mrb[0].mxu0
    %v2047 = vadd.f32 %v1914, %v2046
    %v2048 = vpop.f32.mrb[0].mxu0
    %2049 = vmatprep.mubr.bf16.mxu0 0
    %2050 = vmatmul.mubr.bf16.gmra.mrb[0].mxu0 %v1969
    %v2051 = vpop.f32.mrb[0].mxu0
    %v2052 = vadd.f32 %v1919, %v2051
    %v2053 = vpop.f32.mrb[0].mxu0
    %v2054 = vpop.f32.mrb[0].mxu0
    %v2055 = vadd.f32 %v1922, %v2054
    %v2056 = vpop.f32.mrb[0].mxu0
    %2057 = vmatprep.mubr.bf16.mxu0 0
    %2058 = vmatmul.mubr.bf16.gmra.mrb[0].mxu0 %v1972
    %v2059 = vpop.f32.mrb[0].mxu0
    %v2060 = vadd.f32 %v1927, %v2059
    %v2061 = vpop.f32.mrb[0].mxu0
    %v2062 = vpop.f32.mrb[0].mxu0
    %v2063 = vadd.f32 %v1930, %v2062
    %v2064 = vpop.f32.mrb[0].mxu0
    %2065 = vmatprep.mubr.bf16.mxu0 0
    %2066 = vmatmul.mubr.bf16.gmra.mrb[0].mxu0 %v1975
    %v2067 = vpop.f32.mrb[0].mxu0
    %v2068 = vadd.f32 %v1935, %v2067
    %v2069 = vpop.f32.mrb[0].mxu0
    %v2070 = vpop.f32.mrb[0].mxu0
    %v2071 = vadd.f32 %v1938, %v2070
    %v2072 = vpop.f32.mrb[0].mxu0
    %2073 = vdwg.mxu0
    %v2074 = vld [vmem:[#allocation2 + $0x2] sm:$0xff]
    %v2075 = vld [vmem:[#allocation2 + $0x12] sm:$0xff]
    %v2076 = vld [vmem:[#allocation2 + $0x22] sm:$0xff]
    %v2077 = vld [vmem:[#allocation2 + $0x32] sm:$0xff]
    %v2078 = vld [vmem:[#allocation2 + $0x42] sm:$0xff]
    %v2079 = vld [vmem:[#allocation2 + $0x52] sm:$0xff]
    %v2080 = vld [vmem:[#allocation2 + $0x62] sm:$0xff]
    %v2081 = vld [vmem:[#allocation2 + $0x72] sm:$0xff]
    %v2082 = vld [vmem:[#allocation2 + $0xa2] sm:$0xff]
    %v2083 = vld [vmem:[#allocation2 + $0xb2] sm:$0xff]
    %v2084 = vld [vmem:[#allocation2 + $0xc2] sm:$0xff]
    %v2085 = vld [vmem:[#allocation2 + $0xd2] sm:$0xff]
    %v2086 = vld [vmem:[#allocation2 + $0xe2] sm:$0xff]
    %v2087 = vld [vmem:[#allocation2 + $0xf2] sm:$0xff]
    %v2088 = vld [vmem:[#allocation2 + $0x102] sm:$0xff]
    %v2089 = vld [vmem:[#allocation2 + $0x112] sm:$0xff]
    %v2090 = vpack.c.bf16 %v2075, %v2074
    %v2091 = vpack.c.bf16 %v2077, %v2076
    %v2092 = vpack.c.bf16 %v2079, %v2078
    %v2093 = vpack.c.bf16 %v2081, %v2080
    %v2094 = vpack.c.bf16 %v2083, %v2082
    %v2095 = vpack.c.bf16 %v2085, %v2084
    %v2096 = vpack.c.bf16 %v2087, %v2086
    %v2097 = vpack.c.bf16 %v2089, %v2088
    %s2098 = scalar_lea.vmem [#allocation9], 32
    %v2099 = vld [vmem:[%s2098] sm:$0xf]
    %v2100 = vld [vmem:[%s2098 + $0x4] sm:$0xf]
    %v2101 = vld [vmem:[%s2098 + $0x8] sm:$0xf]
    %v2102 = vld [vmem:[%s2098 + $0xc] sm:$0xf]
    %v2107 = vunpack.c.l.b16 %v2099
    %v2108 = vunpack.c.l.b16 %v2100
    %v2109 = vunpack.c.l.b16 %v2101
    %v2110 = vunpack.c.l.b16 %v2102
    %v2111 = vpack.c.b16 %v2108, %v2107
    %v2112 = vpack.c.b16 %v2110, %v2109
    %v2116 = vsel %vm1692, %v2090, 0
    %v2119 = vsel %vm1692, %v2091, 0
    %v2122 = vsel %vm1692, %v2092, 0
    %v2125 = vsel %vm1692, %v2093, 0
    %v2128 = vsel %vm1692, %v2094, 0
    %v2131 = vsel %vm1692, %v2095, 0
    %v2134 = vsel %vm1692, %v2096, 0
    %v2137 = vsel %vm1692, %v2097, 0
    %2139 = vmatprep.subr.bf16.mxu0 0
    %2140 = vmatpush1.bf16.msra.mxu0 %v2111
    %2141 = vmatprep.subr.bf16.mxu0 0
    %2142 = vmatpush1.bf16.msra.mxu0 %v2112
    %2143 = vmatprep.subr.bf16.mxu0 0
    %2144 = vmatpush1.bf16.msra.mxu0 0
    %2145 = vmatprep.subr.bf16.mxu0 0
    %2146 = vmatpush1.bf16.msra.mxu0 0
    %2147 = vmatprep.subr.bf16.mxu0 0
    %2148 = vmatpush1.bf16.msra.mxu0 0
    %2149 = vmatprep.subr.bf16.mxu0 0
    %2150 = vmatpush1.bf16.msra.mxu0 0
    %2151 = vmatprep.subr.bf16.mxu0 0
    %2152 = vmatpush1.bf16.msra.mxu0 0
    %2153 = vmatprep.subr.bf16.mxu0 0
    %2154 = vmatpush1.bf16.msra.mxu0 0
    %2155 = vmatprep.subr.bf16.mxu0 0
    %2156 = vmatpush1.bf16.msra.mxu0 0
    %2157 = vmatprep.subr.bf16.mxu0 0
    %2158 = vmatpush1.bf16.msra.mxu0 0
    %2159 = vmatprep.subr.bf16.mxu0 0
    %2160 = vmatpush1.bf16.msra.mxu0 0
    %2161 = vmatprep.subr.bf16.mxu0 0
    %2162 = vmatpush1.bf16.msra.mxu0 0
    %2163 = vmatprep.subr.bf16.mxu0 0
    %2164 = vmatpush1.bf16.msra.mxu0 0
    %2165 = vmatprep.subr.bf16.mxu0 0
    %2166 = vmatpush1.bf16.msra.mxu0 0
    %2167 = vmatprep.subr.bf16.mxu0 0
    %2168 = vmatpush1.bf16.msra.mxu0 0
    %2169 = vmatprep.subr.bf16.mxu0 0
    %2170 = vmatpush1.bf16.msra.mxu0 0
    %2171 = vmatprep.mubr.bf16.mxu0 0
    %2172 = vmatmul.mubr.bf16.gmra.mrb[0].mxu0 %v2116
    %v2173 = vpop.f32.mrb[0].mxu0
    %v2174 = vadd.f32 0.0, %v2173
    %v2175 = vpop.f32.mrb[0].mxu0
    %v2176 = vpop.f32.mrb[0].mxu0
    %v2177 = vadd.f32 0.0, %v2176
    %v2178 = vpop.f32.mrb[0].mxu0
    %2179 = vmatprep.mubr.bf16.mxu0 0
    %2180 = vmatmul.mubr.bf16.gmra.mrb[0].mxu0 %v2119
    %v2181 = vpop.f32.mrb[0].mxu0
    %v2182 = vadd.f32 0.0, %v2181
    %v2183 = vpop.f32.mrb[0].mxu0
    %v2184 = vpop.f32.mrb[0].mxu0
    %v2185 = vadd.f32 0.0, %v2184
    %v2186 = vpop.f32.mrb[0].mxu0
    %2187 = vmatprep.mubr.bf16.mxu0 0
    %2188 = vmatmul.mubr.bf16.gmra.mrb[0].mxu0 %v2122
    %v2189 = vpop.f32.mrb[0].mxu0
    %v2190 = vadd.f32 0.0, %v2189
    %v2191 = vpop.f32.mrb[0].mxu0
    %v2192 = vpop.f32.mrb[0].mxu0
    %v2193 = vadd.f32 0.0, %v2192
    %v2194 = vpop.f32.mrb[0].mxu0
    %2195 = vmatprep.mubr.bf16.mxu0 0
    %2196 = vmatmul.mubr.bf16.gmra.mrb[0].mxu0 %v2125
    %v2197 = vpop.f32.mrb[0].mxu0
    %v2198 = vadd.f32 0.0, %v2197
    %v2199 = vpop.f32.mrb[0].mxu0
    %v2200 = vpop.f32.mrb[0].mxu0
    %v2201 = vadd.f32 0.0, %v2200
    %v2202 = vpop.f32.mrb[0].mxu0
    %2203 = vmatprep.mubr.bf16.mxu0 0
    %2204 = vmatmul.mubr.bf16.gmra.mrb[0].mxu0 %v2128
    %v2205 = vpop.f32.mrb[0].mxu0
    %v2206 = vadd.f32 0.0, %v2205
    %v2207 = vpop.f32.mrb[0].mxu0
    %v2208 = vpop.f32.mrb[0].mxu0
    %v2209 = vadd.f32 0.0, %v2208
    %v2210 = vpop.f32.mrb[0].mxu0
    %2211 = vmatprep.mubr.bf16.mxu0 0
    %2212 = vmatmul.mubr.bf16.gmra.mrb[0].mxu0 %v2131
    %v2213 = vpop.f32.mrb[0].mxu0
    %v2214 = vadd.f32 0.0, %v2213
    %v2215 = vpop.f32.mrb[0].mxu0
    %v2216 = vpop.f32.mrb[0].mxu0
    %v2217 = vadd.f32 0.0, %v2216
    %v2218 = vpop.f32.mrb[0].mxu0
    %2219 = vmatprep.mubr.bf16.mxu0 0
    %2220 = vmatmul.mubr.bf16.gmra.mrb[0].mxu0 %v2134
    %v2221 = vpop.f32.mrb[0].mxu0
    %v2222 = vadd.f32 0.0, %v2221
    %v2223 = vpop.f32.mrb[0].mxu0
    %v2224 = vpop.f32.mrb[0].mxu0
    %v2225 = vadd.f32 0.0, %v2224
    %v2226 = vpop.f32.mrb[0].mxu0
    %2227 = vmatprep.mubr.bf16.mxu0 0
    %2228 = vmatmul.mubr.bf16.gmra.mrb[0].mxu0 %v2137
    %v2229 = vpop.f32.mrb[0].mxu0
    %v2230 = vadd.f32 0.0, %v2229
    %v2231 = vpop.f32.mrb[0].mxu0
    %v2232 = vpop.f32.mrb[0].mxu0
    %v2233 = vadd.f32 0.0, %v2232
    %v2234 = vpop.f32.mrb[0].mxu0
    %2235 = vdwg.mxu0
    %v2236 = vadd.f32 %v2012, %v2174
    %v2237 = vadd.f32 %v2015, %v2177
    %v2238 = vadd.f32 %v2020, %v2182
    %v2239 = vadd.f32 %v2023, %v2185
    %v2240 = vadd.f32 %v2028, %v2190
    %v2241 = vadd.f32 %v2031, %v2193
    %v2242 = vadd.f32 %v2036, %v2198
    %v2243 = vadd.f32 %v2039, %v2201
    %v2244 = vadd.f32 %v2044, %v2206
    %v2245 = vadd.f32 %v2047, %v2209
    %v2246 = vadd.f32 %v2052, %v2214
    %v2247 = vadd.f32 %v2055, %v2217
    %v2248 = vadd.f32 %v2060, %v2222
    %v2249 = vadd.f32 %v2063, %v2225
    %v2250 = vadd.f32 %v2068, %v2230
    %v2251 = vadd.f32 %v2071, %v2233
    %v2252 = vld [vmem:[%s1734] sm:$0xff]
    %v2253 = vld [vmem:[%s1734 + $0x10] sm:$0xff]
    %v2254 = vld [vmem:[%s1734 + $0x20] sm:$0xff]
    %v2255 = vld [vmem:[%s1734 + $0x30] sm:$0xff]
    %v2256 = vld [vmem:[%s1734 + $0x40] sm:$0xff]
    %v2257 = vld [vmem:[%s1734 + $0x50] sm:$0xff]
    %v2258 = vld [vmem:[%s1734 + $0x60] sm:$0xff]
    %v2259 = vld [vmem:[%s1734 + $0x70] sm:$0xff]
    %v2260 = vld [vmem:[%s1734 + $0xa0] sm:$0xff]
    %v2261 = vld [vmem:[%s1734 + $0xb0] sm:$0xff]
    %v2262 = vld [vmem:[%s1734 + $0xc0] sm:$0xff]
    %v2263 = vld [vmem:[%s1734 + $0xd0] sm:$0xff]
    %v2264 = vld [vmem:[%s1734 + $0xe0] sm:$0xff]
    %v2265 = vld [vmem:[%s1734 + $0xf0] sm:$0xff]
    %v2266 = vld [vmem:[%s1734 + $0x100] sm:$0xff]
    %v2267 = vld [vmem:[%s1734 + $0x110] sm:$0xff]
    %v2268 = vpack.c.bf16 %v2253, %v2252
    %v2269 = vpack.c.bf16 %v2255, %v2254
    %v2270 = vpack.c.bf16 %v2257, %v2256
    %v2271 = vpack.c.bf16 %v2259, %v2258
    %v2272 = vpack.c.bf16 %v2261, %v2260
    %v2273 = vpack.c.bf16 %v2263, %v2262
    %v2274 = vpack.c.bf16 %v2265, %v2264
    %v2275 = vpack.c.bf16 %v2267, %v2266
    %s2276 = scalar_lea.vmem [#allocation9], 48
    %v2277 = vld [vmem:[%s2276] sm:$0xf]
    %v2278 = vld [vmem:[%s2276 + $0x4] sm:$0xf]
    %v2279 = vld [vmem:[%s2276 + $0x8] sm:$0xf]
    %v2280 = vld [vmem:[%s2276 + $0xc] sm:$0xf]
    %v2285 = vunpack.c.l.b16 %v2277
    %v2286 = vunpack.c.l.b16 %v2278
    %v2287 = vunpack.c.l.b16 %v2279
    %v2288 = vunpack.c.l.b16 %v2280
    %v2289 = vpack.c.b16 %v2286, %v2285
    %v2290 = vpack.c.b16 %v2288, %v2287
    %v2294 = vsel %vm1692, %v2268, 0
    %v2297 = vsel %vm1692, %v2269, 0
    %v2300 = vsel %vm1692, %v2270, 0
    %v2303 = vsel %vm1692, %v2271, 0
    %v2306 = vsel %vm1692, %v2272, 0
    %v2309 = vsel %vm1692, %v2273, 0
    %v2312 = vsel %vm1692, %v2274, 0
    %v2315 = vsel %vm1692, %v2275, 0
    %2317 = vmatprep.subr.bf16.mxu0 0
    %2318 = vmatpush1.bf16.msra.mxu0 %v2289
    %2319 = vmatprep.subr.bf16.mxu0 0
    %2320 = vmatpush1.bf16.msra.mxu0 %v2290
    %2321 = vmatprep.subr.bf16.mxu0 0
    %2322 = vmatpush1.bf16.msra.mxu0 0
    %2323 = vmatprep.subr.bf16.mxu0 0
    %2324 = vmatpush1.bf16.msra.mxu0 0
    %2325 = vmatprep.subr.bf16.mxu0 0
    %2326 = vmatpush1.bf16.msra.mxu0 0
    %2327 = vmatprep.subr.bf16.mxu0 0
    %2328 = vmatpush1.bf16.msra.mxu0 0
    %2329 = vmatprep.subr.bf16.mxu0 0
    %2330 = vmatpush1.bf16.msra.mxu0 0
    %2331 = vmatprep.subr.bf16.mxu0 0
    %2332 = vmatpush1.bf16.msra.mxu0 0
    %2333 = vmatprep.subr.bf16.mxu0 0
    %2334 = vmatpush1.bf16.msra.mxu0 0
    %2335 = vmatprep.subr.bf16.mxu0 0
    %2336 = vmatpush1.bf16.msra.mxu0 0
    %2337 = vmatprep.subr.bf16.mxu0 0
    %2338 = vmatpush1.bf16.msra.mxu0 0
    %2339 = vmatprep.subr.bf16.mxu0 0
    %2340 = vmatpush1.bf16.msra.mxu0 0
    %2341 = vmatprep.subr.bf16.mxu0 0
    %2342 = vmatpush1.bf16.msra.mxu0 0
    %2343 = vmatprep.subr.bf16.mxu0 0
    %2344 = vmatpush1.bf16.msra.mxu0 0
    %2345 = vmatprep.subr.bf16.mxu0 0
    %2346 = vmatpush1.bf16.msra.mxu0 0
    %2347 = vmatprep.subr.bf16.mxu0 0
    %2348 = vmatpush1.bf16.msra.mxu0 0
    %2349 = vmatprep.mubr.bf16.mxu0 0
    %2350 = vmatmul.mubr.bf16.gmra.mrb[0].mxu0 %v2294
    %v2351 = vpop.f32.mrb[0].mxu0
    %v2352 = vadd.f32 0.0, %v2351
    %v2353 = vpop.f32.mrb[0].mxu0
    %v2354 = vpop.f32.mrb[0].mxu0
    %v2355 = vadd.f32 0.0, %v2354
    %v2356 = vpop.f32.mrb[0].mxu0
    %2357 = vmatprep.mubr.bf16.mxu0 0
    %2358 = vmatmul.mubr.bf16.gmra.mrb[0].mxu0 %v2297
    %v2359 = vpop.f32.mrb[0].mxu0
    %v2360 = vadd.f32 0.0, %v2359
    %v2361 = vpop.f32.mrb[0].mxu0
    %v2362 = vpop.f32.mrb[0].mxu0
    %v2363 = vadd.f32 0.0, %v2362
    %v2364 = vpop.f32.mrb[0].mxu0
    %2365 = vmatprep.mubr.bf16.mxu0 0
    %2366 = vmatmul.mubr.bf16.gmra.mrb[0].mxu0 %v2300
    %v2367 = vpop.f32.mrb[0].mxu0
    %v2368 = vadd.f32 0.0, %v2367
    %v2369 = vpop.f32.mrb[0].mxu0
    %v2370 = vpop.f32.mrb[0].mxu0
    %v2371 = vadd.f32 0.0, %v2370
    %v2372 = vpop.f32.mrb[0].mxu0
    %2373 = vmatprep.mubr.bf16.mxu0 0
    %2374 = vmatmul.mubr.bf16.gmra.mrb[0].mxu0 %v2303
    %v2375 = vpop.f32.mrb[0].mxu0
    %v2376 = vadd.f32 0.0, %v2375
    %v2377 = vpop.f32.mrb[0].mxu0
    %v2378 = vpop.f32.mrb[0].mxu0
    %v2379 = vadd.f32 0.0, %v2378
    %v2380 = vpop.f32.mrb[0].mxu0
    %2381 = vmatprep.mubr.bf16.mxu0 0
    %2382 = vmatmul.mubr.bf16.gmra.mrb[0].mxu0 %v2306
    %v2383 = vpop.f32.mrb[0].mxu0
    %v2384 = vadd.f32 0.0, %v2383
    %v2385 = vpop.f32.mrb[0].mxu0
    %v2386 = vpop.f32.mrb[0].mxu0
    %v2387 = vadd.f32 0.0, %v2386
    %v2388 = vpop.f32.mrb[0].mxu0
    %2389 = vmatprep.mubr.bf16.mxu0 0
    %2390 = vmatmul.mubr.bf16.gmra.mrb[0].mxu0 %v2309
    %v2391 = vpop.f32.mrb[0].mxu0
    %v2392 = vadd.f32 0.0, %v2391
    %v2393 = vpop.f32.mrb[0].mxu0
    %v2394 = vpop.f32.mrb[0].mxu0
    %v2395 = vadd.f32 0.0, %v2394
    %v2396 = vpop.f32.mrb[0].mxu0
    %2397 = vmatprep.mubr.bf16.mxu0 0
    %2398 = vmatmul.mubr.bf16.gmra.mrb[0].mxu0 %v2312
    %v2399 = vpop.f32.mrb[0].mxu0
    %v2400 = vadd.f32 0.0, %v2399
    %v2401 = vpop.f32.mrb[0].mxu0
    %v2402 = vpop.f32.mrb[0].mxu0
    %v2403 = vadd.f32 0.0, %v2402
    %v2404 = vpop.f32.mrb[0].mxu0
    %2405 = vmatprep.mubr.bf16.mxu0 0
    %2406 = vmatmul.mubr.bf16.gmra.mrb[0].mxu0 %v2315
    %v2407 = vpop.f32.mrb[0].mxu0
    %v2408 = vadd.f32 0.0, %v2407
    %v2409 = vpop.f32.mrb[0].mxu0
    %v2410 = vpop.f32.mrb[0].mxu0
    %v2411 = vadd.f32 0.0, %v2410
    %v2412 = vpop.f32.mrb[0].mxu0
    %2413 = vdwg.mxu0
    %v2414 = vadd.f32 %v2236, %v2352
    %v2415 = vadd.f32 %v2237, %v2355
    %v2416 = vadd.f32 %v2238, %v2360
    %v2417 = vadd.f32 %v2239, %v2363
    %v2418 = vadd.f32 %v2240, %v2368
    %v2419 = vadd.f32 %v2241, %v2371
    %v2420 = vadd.f32 %v2242, %v2376
    %v2421 = vadd.f32 %v2243, %v2379
    %v2422 = vadd.f32 %v2244, %v2384
    %v2423 = vadd.f32 %v2245, %v2387
    %v2424 = vadd.f32 %v2246, %v2392
    %v2425 = vadd.f32 %v2247, %v2395
    %v2426 = vadd.f32 %v2248, %v2400
    %v2427 = vadd.f32 %v2249, %v2403
    %v2428 = vadd.f32 %v2250, %v2408
    %v2429 = vadd.f32 %v2251, %v2411
    %v2430 = vld [vmem:[%s1734 + $0x1] sm:$0xff]
    %v2431 = vld [vmem:[%s1734 + $0x11] sm:$0xff]
    %v2432 = vld [vmem:[%s1734 + $0x21] sm:$0xff]
    %v2433 = vld [vmem:[%s1734 + $0x31] sm:$0xff]
    %v2434 = vld [vmem:[%s1734 + $0x41] sm:$0xff]
    %v2435 = vld [vmem:[%s1734 + $0x51] sm:$0xff]
    %v2436 = vld [vmem:[%s1734 + $0x61] sm:$0xff]
    %v2437 = vld [vmem:[%s1734 + $0x71] sm:$0xff]
    %v2438 = vld [vmem:[%s1734 + $0xa1] sm:$0xff]
    %v2439 = vld [vmem:[%s1734 + $0xb1] sm:$0xff]
    %v2440 = vld [vmem:[%s1734 + $0xc1] sm:$0xff]
    %v2441 = vld [vmem:[%s1734 + $0xd1] sm:$0xff]
    %v2442 = vld [vmem:[%s1734 + $0xe1] sm:$0xff]
    %v2443 = vld [vmem:[%s1734 + $0xf1] sm:$0xff]
    %v2444 = vld [vmem:[%s1734 + $0x101] sm:$0xff]
    %v2445 = vld [vmem:[%s1734 + $0x111] sm:$0xff]
    %v2446 = vpack.c.bf16 %v2431, %v2430
    %v2447 = vpack.c.bf16 %v2433, %v2432
    %v2448 = vpack.c.bf16 %v2435, %v2434
    %v2449 = vpack.c.bf16 %v2437, %v2436
    %v2450 = vpack.c.bf16 %v2439, %v2438
    %v2451 = vpack.c.bf16 %v2441, %v2440
    %v2452 = vpack.c.bf16 %v2443, %v2442
    %v2453 = vpack.c.bf16 %v2445, %v2444
    %s2454 = scalar_lea.vmem [#allocation9], 64
    %v2455 = vld [vmem:[%s2454] sm:$0xf]
    %v2456 = vld [vmem:[%s2454 + $0x4] sm:$0xf]
    %v2457 = vld [vmem:[%s2454 + $0x8] sm:$0xf]
    %v2458 = vld [vmem:[%s2454 + $0xc] sm:$0xf]
    %v2463 = vunpack.c.l.b16 %v2455
    %v2464 = vunpack.c.l.b16 %v2456
    %v2465 = vunpack.c.l.b16 %v2457
    %v2466 = vunpack.c.l.b16 %v2458
    %v2467 = vpack.c.b16 %v2464, %v2463
    %v2468 = vpack.c.b16 %v2466, %v2465
    %v2472 = vsel %vm1692, %v2446, 0
    %v2475 = vsel %vm1692, %v2447, 0
    %v2478 = vsel %vm1692, %v2448, 0
    %v2481 = vsel %vm1692, %v2449, 0
    %v2484 = vsel %vm1692, %v2450, 0
    %v2487 = vsel %vm1692, %v2451, 0
    %v2490 = vsel %vm1692, %v2452, 0
    %v2493 = vsel %vm1692, %v2453, 0
    %2495 = vmatprep.subr.bf16.mxu0 0
    %2496 = vmatpush1.bf16.msra.mxu0 %v2467
    %2497 = vmatprep.subr.bf16.mxu0 0
    %2498 = vmatpush1.bf16.msra.mxu0 %v2468
    %2499 = vmatprep.subr.bf16.mxu0 0
    %2500 = vmatpush1.bf16.msra.mxu0 0
    %2501 = vmatprep.subr.bf16.mxu0 0
    %2502 = vmatpush1.bf16.msra.mxu0 0
    %2503 = vmatprep.subr.bf16.mxu0 0
    %2504 = vmatpush1.bf16.msra.mxu0 0
    %2505 = vmatprep.subr.bf16.mxu0 0
    %2506 = vmatpush1.bf16.msra.mxu0 0
    %2507 = vmatprep.subr.bf16.mxu0 0
    %2508 = vmatpush1.bf16.msra.mxu0 0
    %2509 = vmatprep.subr.bf16.mxu0 0
    %2510 = vmatpush1.bf16.msra.mxu0 0
    %2511 = vmatprep.subr.bf16.mxu0 0
    %2512 = vmatpush1.bf16.msra.mxu0 0
    %2513 = vmatprep.subr.bf16.mxu0 0
    %2514 = vmatpush1.bf16.msra.mxu0 0
    %2515 = vmatprep.subr.bf16.mxu0 0
    %2516 = vmatpush1.bf16.msra.mxu0 0
    %2517 = vmatprep.subr.bf16.mxu0 0
    %2518 = vmatpush1.bf16.msra.mxu0 0
    %2519 = vmatprep.subr.bf16.mxu0 0
    %2520 = vmatpush1.bf16.msra.mxu0 0
    %2521 = vmatprep.subr.bf16.mxu0 0
    %2522 = vmatpush1.bf16.msra.mxu0 0
    %2523 = vmatprep.subr.bf16.mxu0 0
    %2524 = vmatpush1.bf16.msra.mxu0 0
    %2525 = vmatprep.subr.bf16.mxu0 0
    %2526 = vmatpush1.bf16.msra.mxu0 0
    %2527 = vmatprep.mubr.bf16.mxu0 0
    %2528 = vmatmul.mubr.bf16.gmra.mrb[0].mxu0 %v2472
    %v2529 = vpop.f32.mrb[0].mxu0
    %v2530 = vadd.f32 0.0, %v2529
    %v2531 = vpop.f32.mrb[0].mxu0
    %v2532 = vpop.f32.mrb[0].mxu0
    %v2533 = vadd.f32 0.0, %v2532
    %v2534 = vpop.f32.mrb[0].mxu0
    %2535 = vmatprep.mubr.bf16.mxu0 0
    %2536 = vmatmul.mubr.bf16.gmra.mrb[0].mxu0 %v2475
    %v2537 = vpop.f32.mrb[0].mxu0
    %v2538 = vadd.f32 0.0, %v2537
    %v2539 = vpop.f32.mrb[0].mxu0
    %v2540 = vpop.f32.mrb[0].mxu0
    %v2541 = vadd.f32 0.0, %v2540
    %v2542 = vpop.f32.mrb[0].mxu0
    %2543 = vmatprep.mubr.bf16.mxu0 0
    %2544 = vmatmul.mubr.bf16.gmra.mrb[0].mxu0 %v2478
    %v2545 = vpop.f32.mrb[0].mxu0
    %v2546 = vadd.f32 0.0, %v2545
    %v2547 = vpop.f32.mrb[0].mxu0
    %v2548 = vpop.f32.mrb[0].mxu0
    %v2549 = vadd.f32 0.0, %v2548
    %v2550 = vpop.f32.mrb[0].mxu0
    %2551 = vmatprep.mubr.bf16.mxu0 0
    %2552 = vmatmul.mubr.bf16.gmra.mrb[0].mxu0 %v2481
    %v2553 = vpop.f32.mrb[0].mxu0
    %v2554 = vadd.f32 0.0, %v2553
    %v2555 = vpop.f32.mrb[0].mxu0
    %v2556 = vpop.f32.mrb[0].mxu0
    %v2557 = vadd.f32 0.0, %v2556
    %v2558 = vpop.f32.mrb[0].mxu0
    %2559 = vmatprep.mubr.bf16.mxu0 0
    %2560 = vmatmul.mubr.bf16.gmra.mrb[0].mxu0 %v2484
    %v2561 = vpop.f32.mrb[0].mxu0
    %v2562 = vadd.f32 0.0, %v2561
    %v2563 = vpop.f32.mrb[0].mxu0
    %v2564 = vpop.f32.mrb[0].mxu0
    %v2565 = vadd.f32 0.0, %v2564
    %v2566 = vpop.f32.mrb[0].mxu0
    %2567 = vmatprep.mubr.bf16.mxu0 0
    %2568 = vmatmul.mubr.bf16.gmra.mrb[0].mxu0 %v2487
    %v2569 = vpop.f32.mrb[0].mxu0
    %v2570 = vadd.f32 0.0, %v2569
    %v2571 = vpop.f32.mrb[0].mxu0
    %v2572 = vpop.f32.mrb[0].mxu0
    %v2573 = vadd.f32 0.0, %v2572
    %v2574 = vpop.f32.mrb[0].mxu0
    %2575 = vmatprep.mubr.bf16.mxu0 0
    %2576 = vmatmul.mubr.bf16.gmra.mrb[0].mxu0 %v2490
    %v2577 = vpop.f32.mrb[0].mxu0
    %v2578 = vadd.f32 0.0, %v2577
    %v2579 = vpop.f32.mrb[0].mxu0
    %v2580 = vpop.f32.mrb[0].mxu0
    %v2581 = vadd.f32 0.0, %v2580
    %v2582 = vpop.f32.mrb[0].mxu0
    %2583 = vmatprep.mubr.bf16.mxu0 0
    %2584 = vmatmul.mubr.bf16.gmra.mrb[0].mxu0 %v2493
    %v2585 = vpop.f32.mrb[0].mxu0
    %v2586 = vadd.f32 0.0, %v2585
    %v2587 = vpop.f32.mrb[0].mxu0
    %v2588 = vpop.f32.mrb[0].mxu0
    %v2589 = vadd.f32 0.0, %v2588
    %v2590 = vpop.f32.mrb[0].mxu0
    %2591 = vdwg.mxu0
    %v2592 = vadd.f32 %v2414, %v2530
    %v2593 = vadd.f32 %v2415, %v2533
    %v2594 = vadd.f32 %v2416, %v2538
    %v2595 = vadd.f32 %v2417, %v2541
    %v2596 = vadd.f32 %v2418, %v2546
    %v2597 = vadd.f32 %v2419, %v2549
    %v2598 = vadd.f32 %v2420, %v2554
    %v2599 = vadd.f32 %v2421, %v2557
    %v2600 = vadd.f32 %v2422, %v2562
    %v2601 = vadd.f32 %v2423, %v2565
    %v2602 = vadd.f32 %v2424, %v2570
    %v2603 = vadd.f32 %v2425, %v2573
    %v2604 = vadd.f32 %v2426, %v2578
    %v2605 = vadd.f32 %v2427, %v2581
    %v2606 = vadd.f32 %v2428, %v2586
    %v2607 = vadd.f32 %v2429, %v2589
    %v2608 = vld [vmem:[%s1734 + $0x2] sm:$0xff]
    %v2609 = vld [vmem:[%s1734 + $0x12] sm:$0xff]
    %v2610 = vld [vmem:[%s1734 + $0x22] sm:$0xff]
    %v2611 = vld [vmem:[%s1734 + $0x32] sm:$0xff]
    %v2612 = vld [vmem:[%s1734 + $0x42] sm:$0xff]
    %v2613 = vld [vmem:[%s1734 + $0x52] sm:$0xff]
    %v2614 = vld [vmem:[%s1734 + $0x62] sm:$0xff]
    %v2615 = vld [vmem:[%s1734 + $0x72] sm:$0xff]
    %v2616 = vld [vmem:[%s1734 + $0xa2] sm:$0xff]
    %v2617 = vld [vmem:[%s1734 + $0xb2] sm:$0xff]
    %v2618 = vld [vmem:[%s1734 + $0xc2] sm:$0xff]
    %v2619 = vld [vmem:[%s1734 + $0xd2] sm:$0xff]
    %v2620 = vld [vmem:[%s1734 + $0xe2] sm:$0xff]
    %v2621 = vld [vmem:[%s1734 + $0xf2] sm:$0xff]
    %v2622 = vld [vmem:[%s1734 + $0x102] sm:$0xff]
    %v2623 = vld [vmem:[%s1734 + $0x112] sm:$0xff]
    %v2624 = vpack.c.bf16 %v2609, %v2608
    %v2625 = vpack.c.bf16 %v2611, %v2610
    %v2626 = vpack.c.bf16 %v2613, %v2612
    %v2627 = vpack.c.bf16 %v2615, %v2614
    %v2628 = vpack.c.bf16 %v2617, %v2616
    %v2629 = vpack.c.bf16 %v2619, %v2618
    %v2630 = vpack.c.bf16 %v2621, %v2620
    %v2631 = vpack.c.bf16 %v2623, %v2622
    %s2632 = scalar_lea.vmem [#allocation9], 80
    %v2633 = vld [vmem:[%s2632] sm:$0xf]
    %v2634 = vld [vmem:[%s2632 + $0x4] sm:$0xf]
    %v2635 = vld [vmem:[%s2632 + $0x8] sm:$0xf]
    %v2636 = vld [vmem:[%s2632 + $0xc] sm:$0xf]
    %v2641 = vunpack.c.l.b16 %v2633
    %v2642 = vunpack.c.l.b16 %v2634
    %v2643 = vunpack.c.l.b16 %v2635
    %v2644 = vunpack.c.l.b16 %v2636
    %v2645 = vpack.c.b16 %v2642, %v2641
    %v2646 = vpack.c.b16 %v2644, %v2643
    %v2650 = vsel %vm1692, %v2624, 0
    %v2653 = vsel %vm1692, %v2625, 0
    %v2656 = vsel %vm1692, %v2626, 0
    %v2659 = vsel %vm1692, %v2627, 0
    %v2662 = vsel %vm1692, %v2628, 0
    %v2665 = vsel %vm1692, %v2629, 0
    %v2668 = vsel %vm1692, %v2630, 0
    %v2671 = vsel %vm1692, %v2631, 0
    %2673 = vmatprep.subr.bf16.mxu0 0
    %2674 = vmatpush1.bf16.msra.mxu0 %v2645
    %2675 = vmatprep.subr.bf16.mxu0 0
    %2676 = vmatpush1.bf16.msra.mxu0 %v2646
    %2677 = vmatprep.subr.bf16.mxu0 0
    %2678 = vmatpush1.bf16.msra.mxu0 0
    %2679 = vmatprep.subr.bf16.mxu0 0
    %2680 = vmatpush1.bf16.msra.mxu0 0
    %2681 = vmatprep.subr.bf16.mxu0 0
    %2682 = vmatpush1.bf16.msra.mxu0 0
    %2683 = vmatprep.subr.bf16.mxu0 0
    %2684 = vmatpush1.bf16.msra.mxu0 0
    %2685 = vmatprep.subr.bf16.mxu0 0
    %2686 = vmatpush1.bf16.msra.mxu0 0
    %2687 = vmatprep.subr.bf16.mxu0 0
    %2688 = vmatpush1.bf16.msra.mxu0 0
    %2689 = vmatprep.subr.bf16.mxu0 0
    %2690 = vmatpush1.bf16.msra.mxu0 0
    %2691 = vmatprep.subr.bf16.mxu0 0
    %2692 = vmatpush1.bf16.msra.mxu0 0
    %2693 = vmatprep.subr.bf16.mxu0 0
    %2694 = vmatpush1.bf16.msra.mxu0 0
    %2695 = vmatprep.subr.bf16.mxu0 0
    %2696 = vmatpush1.bf16.msra.mxu0 0
    %2697 = vmatprep.subr.bf16.mxu0 0
    %2698 = vmatpush1.bf16.msra.mxu0 0
    %2699 = vmatprep.subr.bf16.mxu0 0
    %2700 = vmatpush1.bf16.msra.mxu0 0
    %2701 = vmatprep.subr.bf16.mxu0 0
    %2702 = vmatpush1.bf16.msra.mxu0 0
    %2703 = vmatprep.subr.bf16.mxu0 0
    %2704 = vmatpush1.bf16.msra.mxu0 0
    %2705 = vmatprep.mubr.bf16.mxu0 0
    %2706 = vmatmul.mubr.bf16.gmra.mrb[0].mxu0 %v2650
    %v2707 = vpop.f32.mrb[0].mxu0
    %v2708 = vadd.f32 0.0, %v2707
    %v2709 = vpop.f32.mrb[0].mxu0
    %v2710 = vpop.f32.mrb[0].mxu0
    %v2711 = vadd.f32 0.0, %v2710
    %v2712 = vpop.f32.mrb[0].mxu0
    %2713 = vmatprep.mubr.bf16.mxu0 0
    %2714 = vmatmul.mubr.bf16.gmra.mrb[0].mxu0 %v2653
    %v2715 = vpop.f32.mrb[0].mxu0
    %v2716 = vadd.f32 0.0, %v2715
    %v2717 = vpop.f32.mrb[0].mxu0
    %v2718 = vpop.f32.mrb[0].mxu0
    %v2719 = vadd.f32 0.0, %v2718
    %v2720 = vpop.f32.mrb[0].mxu0
    %2721 = vmatprep.mubr.bf16.mxu0 0
    %2722 = vmatmul.mubr.bf16.gmra.mrb[0].mxu0 %v2656
    %v2723 = vpop.f32.mrb[0].mxu0
    %v2724 = vadd.f32 0.0, %v2723
    %v2725 = vpop.f32.mrb[0].mxu0
    %v2726 = vpop.f32.mrb[0].mxu0
    %v2727 = vadd.f32 0.0, %v2726
    %v2728 = vpop.f32.mrb[0].mxu0
    %2729 = vmatprep.mubr.bf16.mxu0 0
    %2730 = vmatmul.mubr.bf16.gmra.mrb[0].mxu0 %v2659
    %v2731 = vpop.f32.mrb[0].mxu0
    %v2732 = vadd.f32 0.0, %v2731
    %v2733 = vpop.f32.mrb[0].mxu0
    %v2734 = vpop.f32.mrb[0].mxu0
    %v2735 = vadd.f32 0.0, %v2734
    %v2736 = vpop.f32.mrb[0].mxu0
    %2737 = vmatprep.mubr.bf16.mxu0 0
    %2738 = vmatmul.mubr.bf16.gmra.mrb[0].mxu0 %v2662
    %v2739 = vpop.f32.mrb[0].mxu0
    %v2740 = vadd.f32 0.0, %v2739
    %v2741 = vpop.f32.mrb[0].mxu0
    %v2742 = vpop.f32.mrb[0].mxu0
    %v2743 = vadd.f32 0.0, %v2742
    %v2744 = vpop.f32.mrb[0].mxu0
    %2745 = vmatprep.mubr.bf16.mxu0 0
    %2746 = vmatmul.mubr.bf16.gmra.mrb[0].mxu0 %v2665
    %v2747 = vpop.f32.mrb[0].mxu0
    %v2748 = vadd.f32 0.0, %v2747
    %v2749 = vpop.f32.mrb[0].mxu0
    %v2750 = vpop.f32.mrb[0].mxu0
    %v2751 = vadd.f32 0.0, %v2750
    %v2752 = vpop.f32.mrb[0].mxu0
    %2753 = vmatprep.mubr.bf16.mxu0 0
    %2754 = vmatmul.mubr.bf16.gmra.mrb[0].mxu0 %v2668
    %v2755 = vpop.f32.mrb[0].mxu0
    %v2756 = vadd.f32 0.0, %v2755
    %v2757 = vpop.f32.mrb[0].mxu0
    %v2758 = vpop.f32.mrb[0].mxu0
    %v2759 = vadd.f32 0.0, %v2758
    %v2760 = vpop.f32.mrb[0].mxu0
    %2761 = vmatprep.mubr.bf16.mxu0 0
    %2762 = vmatmul.mubr.bf16.gmra.mrb[0].mxu0 %v2671
    %v2763 = vpop.f32.mrb[0].mxu0
    %v2764 = vadd.f32 0.0, %v2763
    %v2765 = vpop.f32.mrb[0].mxu0
    %v2766 = vpop.f32.mrb[0].mxu0
    %v2767 = vadd.f32 0.0, %v2766
    %v2768 = vpop.f32.mrb[0].mxu0
    %2769 = vdwg.mxu0
    %v2770 = vadd.f32 %v2592, %v2708
    %v2771 = vadd.f32 %v2593, %v2711
    %v2772 = vadd.f32 %v2594, %v2716
    %v2773 = vadd.f32 %v2595, %v2719
    %v2774 = vadd.f32 %v2596, %v2724
    %v2775 = vadd.f32 %v2597, %v2727
    %v2776 = vadd.f32 %v2598, %v2732
    %v2777 = vadd.f32 %v2599, %v2735
    %v2778 = vadd.f32 %v2600, %v2740
    %v2779 = vadd.f32 %v2601, %v2743
    %v2780 = vadd.f32 %v2602, %v2748
    %v2781 = vadd.f32 %v2603, %v2751
    %v2782 = vadd.f32 %v2604, %v2756
    %v2783 = vadd.f32 %v2605, %v2759
    %v2784 = vadd.f32 %v2606, %v2764
    %v2785 = vadd.f32 %v2607, %v2767
    %s2786 = scalar_lea.vmem [#allocation2], 32
    %v2787 = vld [vmem:[%s2786] sm:$0xff]
    %v2788 = vld [vmem:[%s2786 + $0x10] sm:$0xff]
    %v2789 = vld [vmem:[%s2786 + $0x20] sm:$0xff]
    %v2790 = vld [vmem:[%s2786 + $0x30] sm:$0xff]
    %v2791 = vld [vmem:[%s2786 + $0x40] sm:$0xff]
    %v2792 = vld [vmem:[%s2786 + $0x50] sm:$0xff]
    %v2793 = vld [vmem:[%s2786 + $0x60] sm:$0xff]
    %v2794 = vld [vmem:[%s2786 + $0x70] sm:$0xff]
    %v2795 = vld [vmem:[%s2786 + $0xa0] sm:$0xff]
    %v2796 = vld [vmem:[%s2786 + $0xb0] sm:$0xff]
    %v2797 = vld [vmem:[%s2786 + $0xc0] sm:$0xff]
    %v2798 = vld [vmem:[%s2786 + $0xd0] sm:$0xff]
    %v2799 = vld [vmem:[%s2786 + $0xe0] sm:$0xff]
    %v2800 = vld [vmem:[%s2786 + $0xf0] sm:$0xff]
    %v2801 = vld [vmem:[%s2786 + $0x100] sm:$0xff]
    %v2802 = vld [vmem:[%s2786 + $0x110] sm:$0xff]
    %v2803 = vpack.c.bf16 %v2788, %v2787
    %v2804 = vpack.c.bf16 %v2790, %v2789
    %v2805 = vpack.c.bf16 %v2792, %v2791
    %v2806 = vpack.c.bf16 %v2794, %v2793
    %v2807 = vpack.c.bf16 %v2796, %v2795
    %v2808 = vpack.c.bf16 %v2798, %v2797
    %v2809 = vpack.c.bf16 %v2800, %v2799
    %v2810 = vpack.c.bf16 %v2802, %v2801
    %s2811 = scalar_lea.vmem [#allocation9], 96
    %v2812 = vld [vmem:[%s2811] sm:$0xf]
    %v2813 = vld [vmem:[%s2811 + $0x4] sm:$0xf]
    %v2814 = vld [vmem:[%s2811 + $0x8] sm:$0xf]
    %v2815 = vld [vmem:[%s2811 + $0xc] sm:$0xf]
    %v2820 = vunpack.c.l.b16 %v2812
    %v2821 = vunpack.c.l.b16 %v2813
    %v2822 = vunpack.c.l.b16 %v2814
    %v2823 = vunpack.c.l.b16 %v2815
    %v2824 = vpack.c.b16 %v2821, %v2820
    %v2825 = vpack.c.b16 %v2823, %v2822
    %v2829 = vsel %vm1692, %v2803, 0
    %v2832 = vsel %vm1692, %v2804, 0
    %v2835 = vsel %vm1692, %v2805, 0
    %v2838 = vsel %vm1692, %v2806, 0
    %v2841 = vsel %vm1692, %v2807, 0
    %v2844 = vsel %vm1692, %v2808, 0
    %v2847 = vsel %vm1692, %v2809, 0
    %v2850 = vsel %vm1692, %v2810, 0
    %2852 = vmatprep.subr.bf16.mxu0 0
    %2853 = vmatpush1.bf16.msra.mxu0 %v2824
    %2854 = vmatprep.subr.bf16.mxu0 0
    %2855 = vmatpush1.bf16.msra.mxu0 %v2825
    %2856 = vmatprep.subr.bf16.mxu0 0
    %2857 = vmatpush1.bf16.msra.mxu0 0
    %2858 = vmatprep.subr.bf16.mxu0 0
    %2859 = vmatpush1.bf16.msra.mxu0 0
    %2860 = vmatprep.subr.bf16.mxu0 0
    %2861 = vmatpush1.bf16.msra.mxu0 0
    %2862 = vmatprep.subr.bf16.mxu0 0
    %2863 = vmatpush1.bf16.msra.mxu0 0
    %2864 = vmatprep.subr.bf16.mxu0 0
    %2865 = vmatpush1.bf16.msra.mxu0 0
    %2866 = vmatprep.subr.bf16.mxu0 0
    %2867 = vmatpush1.bf16.msra.mxu0 0
    %2868 = vmatprep.subr.bf16.mxu0 0
    %2869 = vmatpush1.bf16.msra.mxu0 0
    %2870 = vmatprep.subr.bf16.mxu0 0
    %2871 = vmatpush1.bf16.msra.mxu0 0
    %2872 = vmatprep.subr.bf16.mxu0 0
    %2873 = vmatpush1.bf16.msra.mxu0 0
    %2874 = vmatprep.subr.bf16.mxu0 0
    %2875 = vmatpush1.bf16.msra.mxu0 0
    %2876 = vmatprep.subr.bf16.mxu0 0
    %2877 = vmatpush1.bf16.msra.mxu0 0
    %2878 = vmatprep.subr.bf16.mxu0 0
    %2879 = vmatpush1.bf16.msra.mxu0 0
    %2880 = vmatprep.subr.bf16.mxu0 0
    %2881 = vmatpush1.bf16.msra.mxu0 0
    %2882 = vmatprep.subr.bf16.mxu0 0
    %2883 = vmatpush1.bf16.msra.mxu0 0
    %2884 = vmatprep.mubr.bf16.mxu0 0
    %2885 = vmatmul.mubr.bf16.gmra.mrb[0].mxu0 %v2829
    %v2886 = vpop.f32.mrb[0].mxu0
    %v2887 = vadd.f32 0.0, %v2886
    %v2888 = vpop.f32.mrb[0].mxu0
    %v2889 = vpop.f32.mrb[0].mxu0
    %v2890 = vadd.f32 0.0, %v2889
    %v2891 = vpop.f32.mrb[0].mxu0
    %2892 = vmatprep.mubr.bf16.mxu0 0
    %2893 = vmatmul.mubr.bf16.gmra.mrb[0].mxu0 %v2832
    %v2894 = vpop.f32.mrb[0].mxu0
    %v2895 = vadd.f32 0.0, %v2894
    %v2896 = vpop.f32.mrb[0].mxu0
    %v2897 = vpop.f32.mrb[0].mxu0
    %v2898 = vadd.f32 0.0, %v2897
    %v2899 = vpop.f32.mrb[0].mxu0
    %2900 = vmatprep.mubr.bf16.mxu0 0
    %2901 = vmatmul.mubr.bf16.gmra.mrb[0].mxu0 %v2835
    %v2902 = vpop.f32.mrb[0].mxu0
    %v2903 = vadd.f32 0.0, %v2902
    %v2904 = vpop.f32.mrb[0].mxu0
    %v2905 = vpop.f32.mrb[0].mxu0
    %v2906 = vadd.f32 0.0, %v2905
    %v2907 = vpop.f32.mrb[0].mxu0
    %2908 = vmatprep.mubr.bf16.mxu0 0
    %2909 = vmatmul.mubr.bf16.gmra.mrb[0].mxu0 %v2838
    %v2910 = vpop.f32.mrb[0].mxu0
    %v2911 = vadd.f32 0.0, %v2910
    %v2912 = vpop.f32.mrb[0].mxu0
    %v2913 = vpop.f32.mrb[0].mxu0
    %v2914 = vadd.f32 0.0, %v2913
    %v2915 = vpop.f32.mrb[0].mxu0
    %2916 = vmatprep.mubr.bf16.mxu0 0
    %2917 = vmatmul.mubr.bf16.gmra.mrb[0].mxu0 %v2841
    %v2918 = vpop.f32.mrb[0].mxu0
    %v2919 = vadd.f32 0.0, %v2918
    %v2920 = vpop.f32.mrb[0].mxu0
    %v2921 = vpop.f32.mrb[0].mxu0
    %v2922 = vadd.f32 0.0, %v2921
    %v2923 = vpop.f32.mrb[0].mxu0
    %2924 = vmatprep.mubr.bf16.mxu0 0
    %2925 = vmatmul.mubr.bf16.gmra.mrb[0].mxu0 %v2844
    %v2926 = vpop.f32.mrb[0].mxu0
    %v2927 = vadd.f32 0.0, %v2926
    %v2928 = vpop.f32.mrb[0].mxu0
    %v2929 = vpop.f32.mrb[0].mxu0
    %v2930 = vadd.f32 0.0, %v2929
    %v2931 = vpop.f32.mrb[0].mxu0
    %2932 = vmatprep.mubr.bf16.mxu0 0
    %2933 = vmatmul.mubr.bf16.gmra.mrb[0].mxu0 %v2847
    %v2934 = vpop.f32.mrb[0].mxu0
    %v2935 = vadd.f32 0.0, %v2934
    %v2936 = vpop.f32.mrb[0].mxu0
    %v2937 = vpop.f32.mrb[0].mxu0
    %v2938 = vadd.f32 0.0, %v2937
    %v2939 = vpop.f32.mrb[0].mxu0
    %2940 = vmatprep.mubr.bf16.mxu0 0
    %2941 = vmatmul.mubr.bf16.gmra.mrb[0].mxu0 %v2850
    %v2942 = vpop.f32.mrb[0].mxu0
    %v2943 = vadd.f32 0.0, %v2942
    %v2944 = vpop.f32.mrb[0].mxu0
    %v2945 = vpop.f32.mrb[0].mxu0
    %v2946 = vadd.f32 0.0, %v2945
    %v2947 = vpop.f32.mrb[0].mxu0
    %2948 = vdwg.mxu0
    %v2949 = vadd.f32 %v2770, %v2887
    %v2950 = vadd.f32 %v2771, %v2890
    %v2951 = vadd.f32 %v2772, %v2895
    %v2952 = vadd.f32 %v2773, %v2898
    %v2953 = vadd.f32 %v2774, %v2903
    %v2954 = vadd.f32 %v2775, %v2906
    %v2955 = vadd.f32 %v2776, %v2911
    %v2956 = vadd.f32 %v2777, %v2914
    %v2957 = vadd.f32 %v2778, %v2919
    %v2958 = vadd.f32 %v2779, %v2922
    %v2959 = vadd.f32 %v2780, %v2927
    %v2960 = vadd.f32 %v2781, %v2930
    %v2961 = vadd.f32 %v2782, %v2935
    %v2962 = vadd.f32 %v2783, %v2938
    %v2963 = vadd.f32 %v2784, %v2943
    %v2964 = vadd.f32 %v2785, %v2946
    %v2965 = vld [vmem:[%s2786 + $0x1] sm:$0xff]
    %v2966 = vld [vmem:[%s2786 + $0x11] sm:$0xff]
    %v2967 = vld [vmem:[%s2786 + $0x21] sm:$0xff]
    %v2968 = vld [vmem:[%s2786 + $0x31] sm:$0xff]
    %v2969 = vld [vmem:[%s2786 + $0x41] sm:$0xff]
    %v2970 = vld [vmem:[%s2786 + $0x51] sm:$0xff]
    %v2971 = vld [vmem:[%s2786 + $0x61] sm:$0xff]
    %v2972 = vld [vmem:[%s2786 + $0x71] sm:$0xff]
    %v2973 = vld [vmem:[%s2786 + $0xa1] sm:$0xff]
    %v2974 = vld [vmem:[%s2786 + $0xb1] sm:$0xff]
    %v2975 = vld [vmem:[%s2786 + $0xc1] sm:$0xff]
    %v2976 = vld [vmem:[%s2786 + $0xd1] sm:$0xff]
    %v2977 = vld [vmem:[%s2786 + $0xe1] sm:$0xff]
    %v2978 = vld [vmem:[%s2786 + $0xf1] sm:$0xff]
    %v2979 = vld [vmem:[%s2786 + $0x101] sm:$0xff]
    %v2980 = vld [vmem:[%s2786 + $0x111] sm:$0xff]
    %v2981 = vpack.c.bf16 %v2966, %v2965
    %v2982 = vpack.c.bf16 %v2968, %v2967
    %v2983 = vpack.c.bf16 %v2970, %v2969
    %v2984 = vpack.c.bf16 %v2972, %v2971
    %v2985 = vpack.c.bf16 %v2974, %v2973
    %v2986 = vpack.c.bf16 %v2976, %v2975
    %v2987 = vpack.c.bf16 %v2978, %v2977
    %v2988 = vpack.c.bf16 %v2980, %v2979
    %s2989 = scalar_lea.vmem [#allocation9], 112
    %v2990 = vld [vmem:[%s2989] sm:$0xf]
    %v2991 = vld [vmem:[%s2989 + $0x4] sm:$0xf]
    %v2992 = vld [vmem:[%s2989 + $0x8] sm:$0xf]
    %v2993 = vld [vmem:[%s2989 + $0xc] sm:$0xf]
    %v2998 = vunpack.c.l.b16 %v2990
    %v2999 = vunpack.c.l.b16 %v2991
    %v3000 = vunpack.c.l.b16 %v2992
    %v3001 = vunpack.c.l.b16 %v2993
    %v3002 = vpack.c.b16 %v2999, %v2998
    %v3003 = vpack.c.b16 %v3001, %v3000
    %v3007 = vsel %vm1692, %v2981, 0
    %v3010 = vsel %vm1692, %v2982, 0
    %v3013 = vsel %vm1692, %v2983, 0
    %v3016 = vsel %vm1692, %v2984, 0
    %v3019 = vsel %vm1692, %v2985, 0
    %v3022 = vsel %vm1692, %v2986, 0
    %v3025 = vsel %vm1692, %v2987, 0
    %v3028 = vsel %vm1692, %v2988, 0
    %3030 = vmatprep.subr.bf16.mxu0 0
    %3031 = vmatpush1.bf16.msra.mxu0 %v3002
    %3032 = vmatprep.subr.bf16.mxu0 0
    %3033 = vmatpush1.bf16.msra.mxu0 %v3003
    %3034 = vmatprep.subr.bf16.mxu0 0
    %3035 = vmatpush1.bf16.msra.mxu0 0
    %3036 = vmatprep.subr.bf16.mxu0 0
    %3037 = vmatpush1.bf16.msra.mxu0 0
    %3038 = vmatprep.subr.bf16.mxu0 0
    %3039 = vmatpush1.bf16.msra.mxu0 0
    %3040 = vmatprep.subr.bf16.mxu0 0
    %3041 = vmatpush1.bf16.msra.mxu0 0
    %3042 = vmatprep.subr.bf16.mxu0 0
    %3043 = vmatpush1.bf16.msra.mxu0 0
    %3044 = vmatprep.subr.bf16.mxu0 0
    %3045 = vmatpush1.bf16.msra.mxu0 0
    %3046 = vmatprep.subr.bf16.mxu0 0
    %3047 = vmatpush1.bf16.msra.mxu0 0
    %3048 = vmatprep.subr.bf16.mxu0 0
    %3049 = vmatpush1.bf16.msra.mxu0 0
    %3050 = vmatprep.subr.bf16.mxu0 0
    %3051 = vmatpush1.bf16.msra.mxu0 0
    %3052 = vmatprep.subr.bf16.mxu0 0
    %3053 = vmatpush1.bf16.msra.mxu0 0
    %3054 = vmatprep.subr.bf16.mxu0 0
    %3055 = vmatpush1.bf16.msra.mxu0 0
    %3056 = vmatprep.subr.bf16.mxu0 0
    %3057 = vmatpush1.bf16.msra.mxu0 0
    %3058 = vmatprep.subr.bf16.mxu0 0
    %3059 = vmatpush1.bf16.msra.mxu0 0
    %3060 = vmatprep.subr.bf16.mxu0 0
    %3061 = vmatpush1.bf16.msra.mxu0 0
    %3062 = vmatprep.mubr.bf16.mxu0 0
    %3063 = vmatmul.mubr.bf16.gmra.mrb[0].mxu0 %v3007
    %v3064 = vpop.f32.mrb[0].mxu0
    %v3065 = vadd.f32 0.0, %v3064
    %v3066 = vpop.f32.mrb[0].mxu0
    %v3067 = vpop.f32.mrb[0].mxu0
    %v3068 = vadd.f32 0.0, %v3067
    %v3069 = vpop.f32.mrb[0].mxu0
    %3070 = vmatprep.mubr.bf16.mxu0 0
    %3071 = vmatmul.mubr.bf16.gmra.mrb[0].mxu0 %v3010
    %v3072 = vpop.f32.mrb[0].mxu0
    %v3073 = vadd.f32 0.0, %v3072
    %v3074 = vpop.f32.mrb[0].mxu0
    %v3075 = vpop.f32.mrb[0].mxu0
    %v3076 = vadd.f32 0.0, %v3075
    %v3077 = vpop.f32.mrb[0].mxu0
    %3078 = vmatprep.mubr.bf16.mxu0 0
    %3079 = vmatmul.mubr.bf16.gmra.mrb[0].mxu0 %v3013
    %v3080 = vpop.f32.mrb[0].mxu0
    %v3081 = vadd.f32 0.0, %v3080
    %v3082 = vpop.f32.mrb[0].mxu0
    %v3083 = vpop.f32.mrb[0].mxu0
    %v3084 = vadd.f32 0.0, %v3083
    %v3085 = vpop.f32.mrb[0].mxu0
    %3086 = vmatprep.mubr.bf16.mxu0 0
    %3087 = vmatmul.mubr.bf16.gmra.mrb[0].mxu0 %v3016
    %v3088 = vpop.f32.mrb[0].mxu0
    %v3089 = vadd.f32 0.0, %v3088
    %v3090 = vpop.f32.mrb[0].mxu0
    %v3091 = vpop.f32.mrb[0].mxu0
    %v3092 = vadd.f32 0.0, %v3091
    %v3093 = vpop.f32.mrb[0].mxu0
    %3094 = vmatprep.mubr.bf16.mxu0 0
    %3095 = vmatmul.mubr.bf16.gmra.mrb[0].mxu0 %v3019
    %v3096 = vpop.f32.mrb[0].mxu0
    %v3097 = vadd.f32 0.0, %v3096
    %v3098 = vpop.f32.mrb[0].mxu0
    %v3099 = vpop.f32.mrb[0].mxu0
    %v3100 = vadd.f32 0.0, %v3099
    %v3101 = vpop.f32.mrb[0].mxu0
    %3102 = vmatprep.mubr.bf16.mxu0 0
    %3103 = vmatmul.mubr.bf16.gmra.mrb[0].mxu0 %v3022
    %v3104 = vpop.f32.mrb[0].mxu0
    %v3105 = vadd.f32 0.0, %v3104
    %v3106 = vpop.f32.mrb[0].mxu0
    %v3107 = vpop.f32.mrb[0].mxu0
    %v3108 = vadd.f32 0.0, %v3107
    %v3109 = vpop.f32.mrb[0].mxu0
    %3110 = vmatprep.mubr.bf16.mxu0 0
    %3111 = vmatmul.mubr.bf16.gmra.mrb[0].mxu0 %v3025
    %v3112 = vpop.f32.mrb[0].mxu0
    %v3113 = vadd.f32 0.0, %v3112
    %v3114 = vpop.f32.mrb[0].mxu0
    %v3115 = vpop.f32.mrb[0].mxu0
    %v3116 = vadd.f32 0.0, %v3115
    %v3117 = vpop.f32.mrb[0].mxu0
    %3118 = vmatprep.mubr.bf16.mxu0 0
    %3119 = vmatmul.mubr.bf16.gmra.mrb[0].mxu0 %v3028
    %v3120 = vpop.f32.mrb[0].mxu0
    %v3121 = vadd.f32 0.0, %v3120
    %v3122 = vpop.f32.mrb[0].mxu0
    %v3123 = vpop.f32.mrb[0].mxu0
    %v3124 = vadd.f32 0.0, %v3123
    %v3125 = vpop.f32.mrb[0].mxu0
    %3126 = vdwg.mxu0
    %v3127 = vadd.f32 %v2949, %v3065
    %v3128 = vadd.f32 %v2950, %v3068
    %v3129 = vadd.f32 %v2951, %v3073
    %v3130 = vadd.f32 %v2952, %v3076
    %v3131 = vadd.f32 %v2953, %v3081
    %v3132 = vadd.f32 %v2954, %v3084
    %v3133 = vadd.f32 %v2955, %v3089
    %v3134 = vadd.f32 %v2956, %v3092
    %v3135 = vadd.f32 %v2957, %v3097
    %v3136 = vadd.f32 %v2958, %v3100
    %v3137 = vadd.f32 %v2959, %v3105
    %v3138 = vadd.f32 %v2960, %v3108
    %v3139 = vadd.f32 %v2961, %v3113
    %v3140 = vadd.f32 %v2962, %v3116
    %v3141 = vadd.f32 %v2963, %v3121
    %v3142 = vadd.f32 %v2964, %v3124
    %v3143 = vld [vmem:[%s2786 + $0x2] sm:$0xff]
    %v3144 = vld [vmem:[%s2786 + $0x12] sm:$0xff]
    %v3145 = vld [vmem:[%s2786 + $0x22] sm:$0xff]
    %v3146 = vld [vmem:[%s2786 + $0x32] sm:$0xff]
    %v3147 = vld [vmem:[%s2786 + $0x42] sm:$0xff]
    %v3148 = vld [vmem:[%s2786 + $0x52] sm:$0xff]
    %v3149 = vld [vmem:[%s2786 + $0x62] sm:$0xff]
    %v3150 = vld [vmem:[%s2786 + $0x72] sm:$0xff]
    %v3151 = vld [vmem:[%s2786 + $0xa2] sm:$0xff]
    %v3152 = vld [vmem:[%s2786 + $0xb2] sm:$0xff]
    %v3153 = vld [vmem:[%s2786 + $0xc2] sm:$0xff]
    %v3154 = vld [vmem:[%s2786 + $0xd2] sm:$0xff]
    %v3155 = vld [vmem:[%s2786 + $0xe2] sm:$0xff]
    %v3156 = vld [vmem:[%s2786 + $0xf2] sm:$0xff]
    %v3157 = vld [vmem:[%s2786 + $0x102] sm:$0xff]
    %v3158 = vld [vmem:[%s2786 + $0x112] sm:$0xff]
    %v3159 = vpack.c.bf16 %v3144, %v3143
    %v3160 = vpack.c.bf16 %v3146, %v3145
    %v3161 = vpack.c.bf16 %v3148, %v3147
    %v3162 = vpack.c.bf16 %v3150, %v3149
    %v3163 = vpack.c.bf16 %v3152, %v3151
    %v3164 = vpack.c.bf16 %v3154, %v3153
    %v3165 = vpack.c.bf16 %v3156, %v3155
    %v3166 = vpack.c.bf16 %v3158, %v3157
    %s3167 = scalar_lea.vmem [#allocation9], 128
    %v3168 = vld [vmem:[%s3167] sm:$0xf]
    %v3169 = vld [vmem:[%s3167 + $0x4] sm:$0xf]
    %v3170 = vld [vmem:[%s3167 + $0x8] sm:$0xf]
    %v3171 = vld [vmem:[%s3167 + $0xc] sm:$0xf]
    %v3176 = vunpack.c.l.b16 %v3168
    %v3177 = vunpack.c.l.b16 %v3169
    %v3178 = vunpack.c.l.b16 %v3170
    %v3179 = vunpack.c.l.b16 %v3171
    %v3180 = vpack.c.b16 %v3177, %v3176
    %v3181 = vpack.c.b16 %v3179, %v3178
    %v3185 = vsel %vm1692, %v3159, 0
    %v3188 = vsel %vm1692, %v3160, 0
    %v3191 = vsel %vm1692, %v3161, 0
    %v3194 = vsel %vm1692, %v3162, 0
    %v3197 = vsel %vm1692, %v3163, 0
    %v3200 = vsel %vm1692, %v3164, 0
    %v3203 = vsel %vm1692, %v3165, 0
    %v3206 = vsel %vm1692, %v3166, 0
    %3208 = vmatprep.subr.bf16.mxu0 0
    %3209 = vmatpush1.bf16.msra.mxu0 %v3180
    %3210 = vmatprep.subr.bf16.mxu0 0
    %3211 = vmatpush1.bf16.msra.mxu0 %v3181
    %3212 = vmatprep.subr.bf16.mxu0 0
    %3213 = vmatpush1.bf16.msra.mxu0 0
    %3214 = vmatprep.subr.bf16.mxu0 0
    %3215 = vmatpush1.bf16.msra.mxu0 0
    %3216 = vmatprep.subr.bf16.mxu0 0
    %3217 = vmatpush1.bf16.msra.mxu0 0
    %3218 = vmatprep.subr.bf16.mxu0 0
    %3219 = vmatpush1.bf16.msra.mxu0 0
    %3220 = vmatprep.subr.bf16.mxu0 0
    %3221 = vmatpush1.bf16.msra.mxu0 0
    %3222 = vmatprep.subr.bf16.mxu0 0
    %3223 = vmatpush1.bf16.msra.mxu0 0
    %3224 = vmatprep.subr.bf16.mxu0 0
    %3225 = vmatpush1.bf16.msra.mxu0 0
    %3226 = vmatprep.subr.bf16.mxu0 0
    %3227 = vmatpush1.bf16.msra.mxu0 0
    %3228 = vmatprep.subr.bf16.mxu0 0
    %3229 = vmatpush1.bf16.msra.mxu0 0
    %3230 = vmatprep.subr.bf16.mxu0 0
    %3231 = vmatpush1.bf16.msra.mxu0 0
    %3232 = vmatprep.subr.bf16.mxu0 0
    %3233 = vmatpush1.bf16.msra.mxu0 0
    %3234 = vmatprep.subr.bf16.mxu0 0
    %3235 = vmatpush1.bf16.msra.mxu0 0
    %3236 = vmatprep.subr.bf16.mxu0 0
    %3237 = vmatpush1.bf16.msra.mxu0 0
    %3238 = vmatprep.subr.bf16.mxu0 0
    %3239 = vmatpush1.bf16.msra.mxu0 0
    %3240 = vmatprep.mubr.bf16.mxu0 0
    %3241 = vmatmul.mubr.bf16.gmra.mrb[0].mxu0 %v3185
    %v3242 = vpop.f32.mrb[0].mxu0
    %v3243 = vadd.f32 0.0, %v3242
    %v3244 = vpop.f32.mrb[0].mxu0
    %v3245 = vpop.f32.mrb[0].mxu0
    %v3246 = vadd.f32 0.0, %v3245
    %v3247 = vpop.f32.mrb[0].mxu0
    %3248 = vmatprep.mubr.bf16.mxu0 0
    %3249 = vmatmul.mubr.bf16.gmra.mrb[0].mxu0 %v3188
    %v3250 = vpop.f32.mrb[0].mxu0
    %v3251 = vadd.f32 0.0, %v3250
    %v3252 = vpop.f32.mrb[0].mxu0
    %v3253 = vpop.f32.mrb[0].mxu0
    %v3254 = vadd.f32 0.0, %v3253
    %v3255 = vpop.f32.mrb[0].mxu0
    %3256 = vmatprep.mubr.bf16.mxu0 0
    %3257 = vmatmul.mubr.bf16.gmra.mrb[0].mxu0 %v3191
    %v3258 = vpop.f32.mrb[0].mxu0
    %v3259 = vadd.f32 0.0, %v3258
    %v3260 = vpop.f32.mrb[0].mxu0
    %v3261 = vpop.f32.mrb[0].mxu0
    %v3262 = vadd.f32 0.0, %v3261
    %v3263 = vpop.f32.mrb[0].mxu0
    %3264 = vmatprep.mubr.bf16.mxu0 0
    %3265 = vmatmul.mubr.bf16.gmra.mrb[0].mxu0 %v3194
    %v3266 = vpop.f32.mrb[0].mxu0
    %v3267 = vadd.f32 0.0, %v3266
    %v3268 = vpop.f32.mrb[0].mxu0
    %v3269 = vpop.f32.mrb[0].mxu0
    %v3270 = vadd.f32 0.0, %v3269
    %v3271 = vpop.f32.mrb[0].mxu0
    %3272 = vmatprep.mubr.bf16.mxu0 0
    %3273 = vmatmul.mubr.bf16.gmra.mrb[0].mxu0 %v3197
    %v3274 = vpop.f32.mrb[0].mxu0
    %v3275 = vadd.f32 0.0, %v3274
    %v3276 = vpop.f32.mrb[0].mxu0
    %v3277 = vpop.f32.mrb[0].mxu0
    %v3278 = vadd.f32 0.0, %v3277
    %v3279 = vpop.f32.mrb[0].mxu0
    %3280 = vmatprep.mubr.bf16.mxu0 0
    %3281 = vmatmul.mubr.bf16.gmra.mrb[0].mxu0 %v3200
    %v3282 = vpop.f32.mrb[0].mxu0
    %v3283 = vadd.f32 0.0, %v3282
    %v3284 = vpop.f32.mrb[0].mxu0
    %v3285 = vpop.f32.mrb[0].mxu0
    %v3286 = vadd.f32 0.0, %v3285
    %v3287 = vpop.f32.mrb[0].mxu0
    %3288 = vmatprep.mubr.bf16.mxu0 0
    %3289 = vmatmul.mubr.bf16.gmra.mrb[0].mxu0 %v3203
    %v3290 = vpop.f32.mrb[0].mxu0
    %v3291 = vadd.f32 0.0, %v3290
    %v3292 = vpop.f32.mrb[0].mxu0
    %v3293 = vpop.f32.mrb[0].mxu0
    %v3294 = vadd.f32 0.0, %v3293
    %v3295 = vpop.f32.mrb[0].mxu0
    %3296 = vmatprep.mubr.bf16.mxu0 0
    %3297 = vmatmul.mubr.bf16.gmra.mrb[0].mxu0 %v3206
    %v3298 = vpop.f32.mrb[0].mxu0
    %v3299 = vadd.f32 0.0, %v3298
    %v3300 = vpop.f32.mrb[0].mxu0
    %v3301 = vpop.f32.mrb[0].mxu0
    %v3302 = vadd.f32 0.0, %v3301
    %v3303 = vpop.f32.mrb[0].mxu0
    %3304 = vdwg.mxu0
    %v3305 = vadd.f32 %v3127, %v3243
    %v3306 = vadd.f32 %v3128, %v3246
    %v3307 = vadd.f32 %v3129, %v3251
    %v3308 = vadd.f32 %v3130, %v3254
    %v3309 = vadd.f32 %v3131, %v3259
    %v3310 = vadd.f32 %v3132, %v3262
    %v3311 = vadd.f32 %v3133, %v3267
    %v3312 = vadd.f32 %v3134, %v3270
    %v3313 = vadd.f32 %v3135, %v3275
    %v3314 = vadd.f32 %v3136, %v3278
    %v3315 = vadd.f32 %v3137, %v3283
    %v3316 = vadd.f32 %v3138, %v3286
    %v3317 = vadd.f32 %v3139, %v3291
    %v3318 = vadd.f32 %v3140, %v3294
    %v3319 = vadd.f32 %v3141, %v3299
    %v3320 = vadd.f32 %v3142, %v3302
    %v3321 = vld [vmem:[#allocation10] sm:$0x1]
    %v3323 = vlaneseq
    %v3324 = vshrl.u32 %v3323, 7
    %v3325 = vsub.s32 0, %v3324
    %v3326 = vrot.slane %v3321, %v3325
    %v3328 = vadd.f32 %v3305, %v3326
    %v3329 = vadd.f32 %v3306, %v3326
    %v3330 = vadd.f32 %v3307, %v3326
    %v3331 = vadd.f32 %v3308, %v3326
    %v3332 = vadd.f32 %v3309, %v3326
    %v3333 = vadd.f32 %v3310, %v3326
    %v3334 = vadd.f32 %v3311, %v3326
    %v3335 = vadd.f32 %v3312, %v3326
    %v3336 = vadd.f32 %v3313, %v3326
    %v3337 = vadd.f32 %v3314, %v3326
    %v3338 = vadd.f32 %v3315, %v3326
    %v3339 = vadd.f32 %v3316, %v3326
    %v3340 = vadd.f32 %v3317, %v3326
    %v3341 = vadd.f32 %v3318, %v3326
    %v3342 = vadd.f32 %v3319, %v3326
    %v3343 = vadd.f32 %v3320, %v3326
    %v3344 = vmax.f32 %v3328, 0.0
    %v3345 = vmax.f32 %v3329, 0.0
    %v3346 = vmax.f32 %v3330, 0.0
    %v3347 = vmax.f32 %v3331, 0.0
    %v3348 = vmax.f32 %v3332, 0.0
    %v3349 = vmax.f32 %v3333, 0.0
    %v3350 = vmax.f32 %v3334, 0.0
    %v3351 = vmax.f32 %v3335, 0.0
    %v3352 = vmax.f32 %v3336, 0.0
    %v3353 = vmax.f32 %v3337, 0.0
    %v3354 = vmax.f32 %v3338, 0.0
    %v3355 = vmax.f32 %v3339, 0.0
    %v3356 = vmax.f32 %v3340, 0.0
    %v3357 = vmax.f32 %v3341, 0.0
    %v3358 = vmax.f32 %v3342, 0.0
    %v3359 = vmax.f32 %v3343, 0.0
    %vm3360 = vcmask 523264
    %3361 = vst.msk [vmem:[#allocation3] sm:$0xff] %vm3360, 0.0
    %vm3362 = vcmask 517120
    %3363 = vst.msk [vmem:[#allocation3 + $0x8] sm:$0x3] %vm3362, 0.0
    %3364 = vst.msk [vmem:[#allocation3 + $0x10] sm:$0xff] %vm3360, 0.0
    %3365 = vst.msk [vmem:[#allocation3 + $0x18] sm:$0x3] %vm3362, 0.0
    %3366 = vst.msk [vmem:[#allocation3 + $0x20] sm:$0xff] %vm3360, 0.0
    %3367 = vst.msk [vmem:[#allocation3 + $0x28] sm:$0x3] %vm3362, 0.0
    %3368 = vst.msk [vmem:[#allocation3 + $0x30] sm:$0xff] %vm3360, 0.0
    %3369 = vst.msk [vmem:[#allocation3 + $0x38] sm:$0x3] %vm3362, 0.0
    %3370 = vst.msk [vmem:[#allocation3 + $0x40] sm:$0xff] %vm3360, 0.0
    %3371 = vst.msk [vmem:[#allocation3 + $0x48] sm:$0x3] %vm3362, 0.0
    %3372 = vst.msk [vmem:[#allocation3 + $0x50] sm:$0xff] %vm3360, 0.0
    %3373 = vst.msk [vmem:[#allocation3 + $0x58] sm:$0x3] %vm3362, 0.0
    %3374 = vst.msk [vmem:[#allocation3 + $0x60] sm:$0xff] %vm3360, 0.0
    %3375 = vst.msk [vmem:[#allocation3 + $0x68] sm:$0x3] %vm3362, 0.0
    %3376 = vst.msk [vmem:[#allocation3 + $0x70] sm:$0xff] %vm3360, 0.0
    %3377 = vst.msk [vmem:[#allocation3 + $0x78] sm:$0x3] %vm3362, 0.0
    %3378 = vst.msk [vmem:[#allocation3 + $0x80] sm:$0xff] %vm3360, 0.0
    %3379 = vst.msk [vmem:[#allocation3 + $0x88] sm:$0x3] %vm3362, 0.0
    %3380 = vst.msk [vmem:[#allocation3 + $0x90] sm:$0xff] %vm3360, 0.0
    %3381 = vst.msk [vmem:[#allocation3 + $0x98] sm:$0x3] %vm3362, 0.0
    %3382 = vst.msk [vmem:[#allocation3 + $0xa0] sm:$0xff] %vm3360, 0.0
    %3383 = vst.msk [vmem:[#allocation3 + $0xa8] sm:$0x3] %vm3362, 0.0
    %3384 = vst.msk [vmem:[#allocation3 + $0xb0] sm:$0xff] %vm3360, 0.0
    %3385 = vst.msk [vmem:[#allocation3 + $0xb8] sm:$0x3] %vm3362, 0.0
    %3386 = vst.msk [vmem:[#allocation3 + $0xc0] sm:$0xff] %vm3360, 0.0
    %3387 = vst.msk [vmem:[#allocation3 + $0xc8] sm:$0x3] %vm3362, 0.0
    %3388 = vst.msk [vmem:[#allocation3 + $0xd0] sm:$0xff] %vm3360, 0.0
    %3389 = vst.msk [vmem:[#allocation3 + $0xd8] sm:$0x3] %vm3362, 0.0
    %3390 = vst.msk [vmem:[#allocation3 + $0xe0] sm:$0xff] %vm3360, 0.0
    %3391 = vst.msk [vmem:[#allocation3 + $0xe8] sm:$0x3] %vm3362, 0.0
    %3392 = vst.msk [vmem:[#allocation3 + $0xf0] sm:$0xff] %vm3360, 0.0
    %3393 = vst.msk [vmem:[#allocation3 + $0xf8] sm:$0x3] %vm3362, 0.0
    %3394 = vst.msk [vmem:[#allocation3 + $0x100] sm:$0xff] %vm3360, 0.0
    %3395 = vst.msk [vmem:[#allocation3 + $0x108] sm:$0x3] %vm3362, 0.0
    %3396 = vst.msk [vmem:[#allocation3 + $0x110] sm:$0xff] %vm3360, 0.0
    %3397 = vst.msk [vmem:[#allocation3 + $0x118] sm:$0x3] %vm3362, 0.0
    %3398 = vst.msk [vmem:[#allocation3 + $0x120] sm:$0xff] %vm3360, 0.0
    %3399 = vst.msk [vmem:[#allocation3 + $0x128] sm:$0x3] %vm3362, 0.0
    %3400 = vst.msk [vmem:[#allocation3 + $0x130] sm:$0xff] %vm3360, 0.0
    %3401 = vst.msk [vmem:[#allocation3 + $0x138] sm:$0x3] %vm3362, 0.0
    %s3402 = scalar_lea.vmem [#allocation3], 16
    %3403 = vst.msk [vmem:[%s3402 + $0x1] sm:$0xff] %vm3360, %v3344
    %3404 = vst.msk [vmem:[%s3402 + $0x11] sm:$0xff] %vm3360, %v3345
    %3405 = vst.msk [vmem:[%s3402 + $0x21] sm:$0xff] %vm3360, %v3346
    %3406 = vst.msk [vmem:[%s3402 + $0x31] sm:$0xff] %vm3360, %v3347
    %3407 = vst.msk [vmem:[%s3402 + $0x41] sm:$0xff] %vm3360, %v3348
    %3408 = vst.msk [vmem:[%s3402 + $0x51] sm:$0xff] %vm3360, %v3349
    %3409 = vst.msk [vmem:[%s3402 + $0x61] sm:$0xff] %vm3360, %v3350
    %3410 = vst.msk [vmem:[%s3402 + $0x71] sm:$0xff] %vm3360, %v3351
    %3411 = vst.msk [vmem:[%s3402 + $0xa1] sm:$0xff] %vm3360, %v3352
    %3412 = vst.msk [vmem:[%s3402 + $0xb1] sm:$0xff] %vm3360, %v3353
    %3413 = vst.msk [vmem:[%s3402 + $0xc1] sm:$0xff] %vm3360, %v3354
    %3414 = vst.msk [vmem:[%s3402 + $0xd1] sm:$0xff] %vm3360, %v3355
    %3415 = vst.msk [vmem:[%s3402 + $0xe1] sm:$0xff] %vm3360, %v3356
    %3416 = vst.msk [vmem:[%s3402 + $0xf1] sm:$0xff] %vm3360, %v3357
    %3417 = vst.msk [vmem:[%s3402 + $0x101] sm:$0xff] %vm3360, %v3358
    %3418 = vst.msk [vmem:[%s3402 + $0x111] sm:$0xff] %vm3360, %v3359
    %v3419 = vld [vmem:[#allocation3] sm:$0xff]
    %v3420 = vld [vmem:[#allocation3 + $0x10] sm:$0xff]
    %v3421 = vld [vmem:[#allocation3 + $0x20] sm:$0xff]
    %v3422 = vld [vmem:[#allocation3 + $0x30] sm:$0xff]
    %v3423 = vld [vmem:[#allocation3 + $0x40] sm:$0xff]
    %v3424 = vld [vmem:[#allocation3 + $0x50] sm:$0xff]
    %v3425 = vld [vmem:[#allocation3 + $0x60] sm:$0xff]
    %v3426 = vld [vmem:[#allocation3 + $0x70] sm:$0xff]
    %v3427 = vld [vmem:[#allocation3 + $0xa0] sm:$0xff]
    %v3428 = vld [vmem:[#allocation3 + $0xb0] sm:$0xff]
    %v3429 = vld [vmem:[#allocation3 + $0xc0] sm:$0xff]
    %v3430 = vld [vmem:[#allocation3 + $0xd0] sm:$0xff]
    %v3431 = vld [vmem:[#allocation3 + $0xe0] sm:$0xff]
    %v3432 = vld [vmem:[#allocation3 + $0xf0] sm:$0xff]
    %v3433 = vld [vmem:[#allocation3 + $0x100] sm:$0xff]
    %v3434 = vld [vmem:[#allocation3 + $0x110] sm:$0xff]
    %v3435 = vpack.c.bf16 %v3420, %v3419
    %v3436 = vpack.c.bf16 %v3422, %v3421
    %v3437 = vpack.c.bf16 %v3424, %v3423
    %v3438 = vpack.c.bf16 %v3426, %v3425
    %v3439 = vpack.c.bf16 %v3428, %v3427
    %v3440 = vpack.c.bf16 %v3430, %v3429
    %v3441 = vpack.c.bf16 %v3432, %v3431
    %v3442 = vpack.c.bf16 %v3434, %v3433
    %v3443 = vld [vmem:[#allocation12] sm:$0xf]
    %v3444 = vld [vmem:[#allocation12 + $0x4] sm:$0xf]
    %v3445 = vld [vmem:[#allocation12 + $0x8] sm:$0xf]
    %v3446 = vld [vmem:[#allocation12 + $0xc] sm:$0xf]
    %v3447 = vld [vmem:[#allocation12 + $0x10] sm:$0xf]
    %v3448 = vld [vmem:[#allocation12 + $0x14] sm:$0xf]
    %v3449 = vld [vmem:[#allocation12 + $0x18] sm:$0xf]
    %v3450 = vld [vmem:[#allocation12 + $0x1c] sm:$0xf]
    %v3451 = vld [vmem:[#allocation3 + $0x1] sm:$0xff]
    %v3452 = vld [vmem:[#allocation3 + $0x11] sm:$0xff]
    %v3453 = vld [vmem:[#allocation3 + $0x21] sm:$0xff]
    %v3454 = vld [vmem:[#allocation3 + $0x31] sm:$0xff]
    %v3455 = vld [vmem:[#allocation3 + $0x41] sm:$0xff]
    %v3456 = vld [vmem:[#allocation3 + $0x51] sm:$0xff]
    %v3457 = vld [vmem:[#allocation3 + $0x61] sm:$0xff]
    %v3458 = vld [vmem:[#allocation3 + $0x71] sm:$0xff]
    %v3459 = vld [vmem:[#allocation3 + $0xa1] sm:$0xff]
    %v3460 = vld [vmem:[#allocation3 + $0xb1] sm:$0xff]
    %v3461 = vld [vmem:[#allocation3 + $0xc1] sm:$0xff]
    %v3462 = vld [vmem:[#allocation3 + $0xd1] sm:$0xff]
    %v3463 = vld [vmem:[#allocation3 + $0xe1] sm:$0xff]
    %v3464 = vld [vmem:[#allocation3 + $0xf1] sm:$0xff]
    %v3465 = vld [vmem:[#allocation3 + $0x101] sm:$0xff]
    %v3466 = vld [vmem:[#allocation3 + $0x111] sm:$0xff]
    %v3467 = vpack.c.bf16 %v3452, %v3451
    %v3468 = vpack.c.bf16 %v3454, %v3453
    %v3469 = vpack.c.bf16 %v3456, %v3455
    %v3470 = vpack.c.bf16 %v3458, %v3457
    %v3471 = vpack.c.bf16 %v3460, %v3459
    %v3472 = vpack.c.bf16 %v3462, %v3461
    %v3473 = vpack.c.bf16 %v3464, %v3463
    %v3474 = vpack.c.bf16 %v3466, %v3465
    %s3475 = scalar_lea.vmem [#allocation12], 32
    %v3476 = vld [vmem:[%s3475] sm:$0xf]
    %v3477 = vld [vmem:[%s3475 + $0x4] sm:$0xf]
    %v3478 = vld [vmem:[%s3475 + $0x8] sm:$0xf]
    %v3479 = vld [vmem:[%s3475 + $0xc] sm:$0xf]
    %v3480 = vld [vmem:[%s3475 + $0x10] sm:$0xf]
    %v3481 = vld [vmem:[%s3475 + $0x14] sm:$0xf]
    %v3482 = vld [vmem:[%s3475 + $0x18] sm:$0xf]
    %v3483 = vld [vmem:[%s3475 + $0x1c] sm:$0xf]
    %v3492 = vunpack.c.l.b16 %v3476
    %v3493 = vunpack.c.l.b16 %v3477
    %v3494 = vunpack.c.l.b16 %v3478
    %v3495 = vunpack.c.l.b16 %v3479
    %v3496 = vunpack.c.l.b16 %v3480
    %v3497 = vunpack.c.l.b16 %v3481
    %v3498 = vunpack.c.l.b16 %v3482
    %v3499 = vunpack.c.l.b16 %v3483
    %v3500 = vpack.c.b16 %v3493, %v3492
    %v3501 = vpack.c.b16 %v3495, %v3494
    %v3502 = vpack.c.b16 %v3497, %v3496
    %v3503 = vpack.c.b16 %v3499, %v3498
    %v3509 = vsel %vm3360, %v3467, 0
    %v3512 = vsel %vm3360, %v3468, 0
    %v3515 = vsel %vm3360, %v3469, 0
    %v3518 = vsel %vm3360, %v3470, 0
    %v3521 = vsel %vm3360, %v3471, 0
    %v3524 = vsel %vm3360, %v3472, 0
    %v3527 = vsel %vm3360, %v3473, 0
    %v3530 = vsel %vm3360, %v3474, 0
    %3532 = vmatprep.subr.bf16.mxu0 0
    %3533 = vmatpush1.bf16.msra.mxu0 %v3500
    %3534 = vmatprep.subr.bf16.mxu0 0
    %3535 = vmatpush1.bf16.msra.mxu0 %v3501
    %3536 = vmatprep.subr.bf16.mxu0 0
    %3537 = vmatpush1.bf16.msra.mxu0 %v3502
    %3538 = vmatprep.subr.bf16.mxu0 0
    %3539 = vmatpush1.bf16.msra.mxu0 %v3503
    %3540 = vmatprep.subr.bf16.mxu0 0
    %3541 = vmatpush1.bf16.msra.mxu0 0
    %3542 = vmatprep.subr.bf16.mxu0 0
    %3543 = vmatpush1.bf16.msra.mxu0 0
    %3544 = vmatprep.subr.bf16.mxu0 0
    %3545 = vmatpush1.bf16.msra.mxu0 0
    %3546 = vmatprep.subr.bf16.mxu0 0
    %3547 = vmatpush1.bf16.msra.mxu0 0
    %3548 = vmatprep.subr.bf16.mxu0 0
    %3549 = vmatpush1.bf16.msra.mxu0 0
    %3550 = vmatprep.subr.bf16.mxu0 0
    %3551 = vmatpush1.bf16.msra.mxu0 0
    %3552 = vmatprep.subr.bf16.mxu0 0
    %3553 = vmatpush1.bf16.msra.mxu0 0
    %3554 = vmatprep.subr.bf16.mxu0 0
    %3555 = vmatpush1.bf16.msra.mxu0 0
    %3556 = vmatprep.subr.bf16.mxu0 0
    %3557 = vmatpush1.bf16.msra.mxu0 0
    %3558 = vmatprep.subr.bf16.mxu0 0
    %3559 = vmatpush1.bf16.msra.mxu0 0
    %3560 = vmatprep.subr.bf16.mxu0 0
    %3561 = vmatpush1.bf16.msra.mxu0 0
    %3562 = vmatprep.subr.bf16.mxu0 0
    %3563 = vmatpush1.bf16.msra.mxu0 0
    %3564 = vmatprep.mubr.bf16.mxu0 0
    %3565 = vmatmul.mubr.bf16.gmra.mrb[0].mxu0 %v3509
    %v3566 = vpop.f32.mrb[0].mxu0
    %v3567 = vadd.f32 0.0, %v3566
    %v3568 = vpop.f32.mrb[0].mxu0
    %v3569 = vpop.f32.mrb[0].mxu0
    %v3570 = vadd.f32 0.0, %v3569
    %v3571 = vpop.f32.mrb[0].mxu0
    %3572 = vmatprep.mubr.bf16.mxu0 0
    %3573 = vmatmul.mubr.bf16.gmra.mrb[0].mxu0 %v3512
    %v3574 = vpop.f32.mrb[0].mxu0
    %v3575 = vadd.f32 0.0, %v3574
    %v3576 = vpop.f32.mrb[0].mxu0
    %v3577 = vpop.f32.mrb[0].mxu0
    %v3578 = vadd.f32 0.0, %v3577
    %v3579 = vpop.f32.mrb[0].mxu0
    %3580 = vmatprep.mubr.bf16.mxu0 0
    %3581 = vmatmul.mubr.bf16.gmra.mrb[0].mxu0 %v3515
    %v3582 = vpop.f32.mrb[0].mxu0
    %v3583 = vadd.f32 0.0, %v3582
    %v3584 = vpop.f32.mrb[0].mxu0
    %v3585 = vpop.f32.mrb[0].mxu0
    %v3586 = vadd.f32 0.0, %v3585
    %v3587 = vpop.f32.mrb[0].mxu0
    %3588 = vmatprep.mubr.bf16.mxu0 0
    %3589 = vmatmul.mubr.bf16.gmra.mrb[0].mxu0 %v3518
    %v3590 = vpop.f32.mrb[0].mxu0
    %v3591 = vadd.f32 0.0, %v3590
    %v3592 = vpop.f32.mrb[0].mxu0
    %v3593 = vpop.f32.mrb[0].mxu0
    %v3594 = vadd.f32 0.0, %v3593
    %v3595 = vpop.f32.mrb[0].mxu0
    %3596 = vmatprep.mubr.bf16.mxu0 0
    %3597 = vmatmul.mubr.bf16.gmra.mrb[0].mxu0 %v3521
    %v3598 = vpop.f32.mrb[0].mxu0
    %v3599 = vadd.f32 0.0, %v3598
    %v3600 = vpop.f32.mrb[0].mxu0
    %v3601 = vpop.f32.mrb[0].mxu0
    %v3602 = vadd.f32 0.0, %v3601
    %v3603 = vpop.f32.mrb[0].mxu0
    %3604 = vmatprep.mubr.bf16.mxu0 0
    %3605 = vmatmul.mubr.bf16.gmra.mrb[0].mxu0 %v3524
    %v3606 = vpop.f32.mrb[0].mxu0
    %v3607 = vadd.f32 0.0, %v3606
    %v3608 = vpop.f32.mrb[0].mxu0
    %v3609 = vpop.f32.mrb[0].mxu0
    %v3610 = vadd.f32 0.0, %v3609
    %v3611 = vpop.f32.mrb[0].mxu0
    %3612 = vmatprep.mubr.bf16.mxu0 0
    %3613 = vmatmul.mubr.bf16.gmra.mrb[0].mxu0 %v3527
    %v3614 = vpop.f32.mrb[0].mxu0
    %v3615 = vadd.f32 0.0, %v3614
    %v3616 = vpop.f32.mrb[0].mxu0
    %v3617 = vpop.f32.mrb[0].mxu0
    %v3618 = vadd.f32 0.0, %v3617
    %v3619 = vpop.f32.mrb[0].mxu0
    %3620 = vmatprep.mubr.bf16.mxu0 0
    %3621 = vmatmul.mubr.bf16.gmra.mrb[0].mxu0 %v3530
    %v3622 = vpop.f32.mrb[0].mxu0
    %v3623 = vadd.f32 0.0, %v3622
    %v3624 = vpop.f32.mrb[0].mxu0
    %v3625 = vpop.f32.mrb[0].mxu0
    %v3626 = vadd.f32 0.0, %v3625
    %v3627 = vpop.f32.mrb[0].mxu0
    %3628 = vdwg.mxu0
    %v3637 = vunpack.c.l.b16 %v3443
    %v3638 = vunpack.c.l.b16 %v3444
    %v3639 = vunpack.c.l.b16 %v3445
    %v3640 = vunpack.c.l.b16 %v3446
    %v3641 = vunpack.c.l.b16 %v3447
    %v3642 = vunpack.c.l.b16 %v3448
    %v3643 = vunpack.c.l.b16 %v3449
    %v3644 = vunpack.c.l.b16 %v3450
    %v3645 = vpack.c.b16 %v3638, %v3637
    %v3646 = vpack.c.b16 %v3640, %v3639
    %v3647 = vpack.c.b16 %v3642, %v3641
    %v3648 = vpack.c.b16 %v3644, %v3643
    %v3654 = vsel %vm3360, %v3435, 0
    %v3657 = vsel %vm3360, %v3436, 0
    %v3660 = vsel %vm3360, %v3437, 0
    %v3663 = vsel %vm3360, %v3438, 0
    %v3666 = vsel %vm3360, %v3439, 0
    %v3669 = vsel %vm3360, %v3440, 0
    %v3672 = vsel %vm3360, %v3441, 0
    %v3675 = vsel %vm3360, %v3442, 0
    %3677 = vmatprep.subr.bf16.mxu0 0
    %3678 = vmatpush1.bf16.msra.mxu0 %v3645
    %3679 = vmatprep.subr.bf16.mxu0 0
    %3680 = vmatpush1.bf16.msra.mxu0 %v3646
    %3681 = vmatprep.subr.bf16.mxu0 0
    %3682 = vmatpush1.bf16.msra.mxu0 %v3647
    %3683 = vmatprep.subr.bf16.mxu0 0
    %3684 = vmatpush1.bf16.msra.mxu0 %v3648
    %3685 = vmatprep.subr.bf16.mxu0 0
    %3686 = vmatpush1.bf16.msra.mxu0 0
    %3687 = vmatprep.subr.bf16.mxu0 0
    %3688 = vmatpush1.bf16.msra.mxu0 0
    %3689 = vmatprep.subr.bf16.mxu0 0
    %3690 = vmatpush1.bf16.msra.mxu0 0
    %3691 = vmatprep.subr.bf16.mxu0 0
    %3692 = vmatpush1.bf16.msra.mxu0 0
    %3693 = vmatprep.subr.bf16.mxu0 0
    %3694 = vmatpush1.bf16.msra.mxu0 0
    %3695 = vmatprep.subr.bf16.mxu0 0
    %3696 = vmatpush1.bf16.msra.mxu0 0
    %3697 = vmatprep.subr.bf16.mxu0 0
    %3698 = vmatpush1.bf16.msra.mxu0 0
    %3699 = vmatprep.subr.bf16.mxu0 0
    %3700 = vmatpush1.bf16.msra.mxu0 0
    %3701 = vmatprep.subr.bf16.mxu0 0
    %3702 = vmatpush1.bf16.msra.mxu0 0
    %3703 = vmatprep.subr.bf16.mxu0 0
    %3704 = vmatpush1.bf16.msra.mxu0 0
    %3705 = vmatprep.subr.bf16.mxu0 0
    %3706 = vmatpush1.bf16.msra.mxu0 0
    %3707 = vmatprep.subr.bf16.mxu0 0
    %3708 = vmatpush1.bf16.msra.mxu0 0
    %3709 = vmatprep.mubr.bf16.mxu0 0
    %3710 = vmatmul.mubr.bf16.gmra.mrb[0].mxu0 %v3654
    %v3711 = vpop.f32.mrb[0].mxu0
    %v3712 = vadd.f32 %v3567, %v3711
    %v3713 = vpop.f32.mrb[0].mxu0
    %v3714 = vpop.f32.mrb[0].mxu0
    %v3715 = vadd.f32 %v3570, %v3714
    %v3716 = vpop.f32.mrb[0].mxu0
    %3717 = vmatprep.mubr.bf16.mxu0 0
    %3718 = vmatmul.mubr.bf16.gmra.mrb[0].mxu0 %v3657
    %v3719 = vpop.f32.mrb[0].mxu0
    %v3720 = vadd.f32 %v3575, %v3719
    %v3721 = vpop.f32.mrb[0].mxu0
    %v3722 = vpop.f32.mrb[0].mxu0
    %v3723 = vadd.f32 %v3578, %v3722
    %v3724 = vpop.f32.mrb[0].mxu0
    %3725 = vmatprep.mubr.bf16.mxu0 0
    %3726 = vmatmul.mubr.bf16.gmra.mrb[0].mxu0 %v3660
    %v3727 = vpop.f32.mrb[0].mxu0
    %v3728 = vadd.f32 %v3583, %v3727
    %v3729 = vpop.f32.mrb[0].mxu0
    %v3730 = vpop.f32.mrb[0].mxu0
    %v3731 = vadd.f32 %v3586, %v3730
    %v3732 = vpop.f32.mrb[0].mxu0
    %3733 = vmatprep.mubr.bf16.mxu0 0
    %3734 = vmatmul.mubr.bf16.gmra.mrb[0].mxu0 %v3663
    %v3735 = vpop.f32.mrb[0].mxu0
    %v3736 = vadd.f32 %v3591, %v3735
    %v3737 = vpop.f32.mrb[0].mxu0
    %v3738 = vpop.f32.mrb[0].mxu0
    %v3739 = vadd.f32 %v3594, %v3738
    %v3740 = vpop.f32.mrb[0].mxu0
    %3741 = vmatprep.mubr.bf16.mxu0 0
    %3742 = vmatmul.mubr.bf16.gmra.mrb[0].mxu0 %v3666
    %v3743 = vpop.f32.mrb[0].mxu0
    %v3744 = vadd.f32 %v3599, %v3743
    %v3745 = vpop.f32.mrb[0].mxu0
    %v3746 = vpop.f32.mrb[0].mxu0
    %v3747 = vadd.f32 %v3602, %v3746
    %v3748 = vpop.f32.mrb[0].mxu0
    %3749 = vmatprep.mubr.bf16.mxu0 0
    %3750 = vmatmul.mubr.bf16.gmra.mrb[0].mxu0 %v3669
    %v3751 = vpop.f32.mrb[0].mxu0
    %v3752 = vadd.f32 %v3607, %v3751
    %v3753 = vpop.f32.mrb[0].mxu0
    %v3754 = vpop.f32.mrb[0].mxu0
    %v3755 = vadd.f32 %v3610, %v3754
    %v3756 = vpop.f32.mrb[0].mxu0
    %3757 = vmatprep.mubr.bf16.mxu0 0
    %3758 = vmatmul.mubr.bf16.gmra.mrb[0].mxu0 %v3672
    %v3759 = vpop.f32.mrb[0].mxu0
    %v3760 = vadd.f32 %v3615, %v3759
    %v3761 = vpop.f32.mrb[0].mxu0
    %v3762 = vpop.f32.mrb[0].mxu0
    %v3763 = vadd.f32 %v3618, %v3762
    %v3764 = vpop.f32.mrb[0].mxu0
    %3765 = vmatprep.mubr.bf16.mxu0 0
    %3766 = vmatmul.mubr.bf16.gmra.mrb[0].mxu0 %v3675
    %v3767 = vpop.f32.mrb[0].mxu0
    %v3768 = vadd.f32 %v3623, %v3767
    %v3769 = vpop.f32.mrb[0].mxu0
    %v3770 = vpop.f32.mrb[0].mxu0
    %v3771 = vadd.f32 %v3626, %v3770
    %v3772 = vpop.f32.mrb[0].mxu0
    %3773 = vdwg.mxu0
    %v3774 = vld [vmem:[#allocation3 + $0x2] sm:$0xff]
    %v3775 = vld [vmem:[#allocation3 + $0x12] sm:$0xff]
    %v3776 = vld [vmem:[#allocation3 + $0x22] sm:$0xff]
    %v3777 = vld [vmem:[#allocation3 + $0x32] sm:$0xff]
    %v3778 = vld [vmem:[#allocation3 + $0x42] sm:$0xff]
    %v3779 = vld [vmem:[#allocation3 + $0x52] sm:$0xff]
    %v3780 = vld [vmem:[#allocation3 + $0x62] sm:$0xff]
    %v3781 = vld [vmem:[#allocation3 + $0x72] sm:$0xff]
    %v3782 = vld [vmem:[#allocation3 + $0xa2] sm:$0xff]
    %v3783 = vld [vmem:[#allocation3 + $0xb2] sm:$0xff]
    %v3784 = vld [vmem:[#allocation3 + $0xc2] sm:$0xff]
    %v3785 = vld [vmem:[#allocation3 + $0xd2] sm:$0xff]
    %v3786 = vld [vmem:[#allocation3 + $0xe2] sm:$0xff]
    %v3787 = vld [vmem:[#allocation3 + $0xf2] sm:$0xff]
    %v3788 = vld [vmem:[#allocation3 + $0x102] sm:$0xff]
    %v3789 = vld [vmem:[#allocation3 + $0x112] sm:$0xff]
    %v3790 = vpack.c.bf16 %v3775, %v3774
    %v3791 = vpack.c.bf16 %v3777, %v3776
    %v3792 = vpack.c.bf16 %v3779, %v3778
    %v3793 = vpack.c.bf16 %v3781, %v3780
    %v3794 = vpack.c.bf16 %v3783, %v3782
    %v3795 = vpack.c.bf16 %v3785, %v3784
    %v3796 = vpack.c.bf16 %v3787, %v3786
    %v3797 = vpack.c.bf16 %v3789, %v3788
    %s3798 = scalar_lea.vmem [#allocation12], 64
    %v3799 = vld [vmem:[%s3798] sm:$0xf]
    %v3800 = vld [vmem:[%s3798 + $0x4] sm:$0xf]
    %v3801 = vld [vmem:[%s3798 + $0x8] sm:$0xf]
    %v3802 = vld [vmem:[%s3798 + $0xc] sm:$0xf]
    %v3803 = vld [vmem:[%s3798 + $0x10] sm:$0xf]
    %v3804 = vld [vmem:[%s3798 + $0x14] sm:$0xf]
    %v3805 = vld [vmem:[%s3798 + $0x18] sm:$0xf]
    %v3806 = vld [vmem:[%s3798 + $0x1c] sm:$0xf]
    %v3815 = vunpack.c.l.b16 %v3799
    %v3816 = vunpack.c.l.b16 %v3800
    %v3817 = vunpack.c.l.b16 %v3801
    %v3818 = vunpack.c.l.b16 %v3802
    %v3819 = vunpack.c.l.b16 %v3803
    %v3820 = vunpack.c.l.b16 %v3804
    %v3821 = vunpack.c.l.b16 %v3805
    %v3822 = vunpack.c.l.b16 %v3806
    %v3823 = vpack.c.b16 %v3816, %v3815
    %v3824 = vpack.c.b16 %v3818, %v3817
    %v3825 = vpack.c.b16 %v3820, %v3819
    %v3826 = vpack.c.b16 %v3822, %v3821
    %v3832 = vsel %vm3360, %v3790, 0
    %v3835 = vsel %vm3360, %v3791, 0
    %v3838 = vsel %vm3360, %v3792, 0
    %v3841 = vsel %vm3360, %v3793, 0
    %v3844 = vsel %vm3360, %v3794, 0
    %v3847 = vsel %vm3360, %v3795, 0
    %v3850 = vsel %vm3360, %v3796, 0
    %v3853 = vsel %vm3360, %v3797, 0
    %3855 = vmatprep.subr.bf16.mxu0 0
    %3856 = vmatpush1.bf16.msra.mxu0 %v3823
    %3857 = vmatprep.subr.bf16.mxu0 0
    %3858 = vmatpush1.bf16.msra.mxu0 %v3824
    %3859 = vmatprep.subr.bf16.mxu0 0
    %3860 = vmatpush1.bf16.msra.mxu0 %v3825
    %3861 = vmatprep.subr.bf16.mxu0 0
    %3862 = vmatpush1.bf16.msra.mxu0 %v3826
    %3863 = vmatprep.subr.bf16.mxu0 0
    %3864 = vmatpush1.bf16.msra.mxu0 0
    %3865 = vmatprep.subr.bf16.mxu0 0
    %3866 = vmatpush1.bf16.msra.mxu0 0
    %3867 = vmatprep.subr.bf16.mxu0 0
    %3868 = vmatpush1.bf16.msra.mxu0 0
    %3869 = vmatprep.subr.bf16.mxu0 0
    %3870 = vmatpush1.bf16.msra.mxu0 0
    %3871 = vmatprep.subr.bf16.mxu0 0
    %3872 = vmatpush1.bf16.msra.mxu0 0
    %3873 = vmatprep.subr.bf16.mxu0 0
    %3874 = vmatpush1.bf16.msra.mxu0 0
    %3875 = vmatprep.subr.bf16.mxu0 0
    %3876 = vmatpush1.bf16.msra.mxu0 0
    %3877 = vmatprep.subr.bf16.mxu0 0
    %3878 = vmatpush1.bf16.msra.mxu0 0
    %3879 = vmatprep.subr.bf16.mxu0 0
    %3880 = vmatpush1.bf16.msra.mxu0 0
    %3881 = vmatprep.subr.bf16.mxu0 0
    %3882 = vmatpush1.bf16.msra.mxu0 0
    %3883 = vmatprep.subr.bf16.mxu0 0
    %3884 = vmatpush1.bf16.msra.mxu0 0
    %3885 = vmatprep.subr.bf16.mxu0 0
    %3886 = vmatpush1.bf16.msra.mxu0 0
    %3887 = vmatprep.mubr.bf16.mxu0 0
    %3888 = vmatmul.mubr.bf16.gmra.mrb[0].mxu0 %v3832
    %v3889 = vpop.f32.mrb[0].mxu0
    %v3890 = vadd.f32 0.0, %v3889
    %v3891 = vpop.f32.mrb[0].mxu0
    %v3892 = vpop.f32.mrb[0].mxu0
    %v3893 = vadd.f32 0.0, %v3892
    %v3894 = vpop.f32.mrb[0].mxu0
    %3895 = vmatprep.mubr.bf16.mxu0 0
    %3896 = vmatmul.mubr.bf16.gmra.mrb[0].mxu0 %v3835
    %v3897 = vpop.f32.mrb[0].mxu0
    %v3898 = vadd.f32 0.0, %v3897
    %v3899 = vpop.f32.mrb[0].mxu0
    %v3900 = vpop.f32.mrb[0].mxu0
    %v3901 = vadd.f32 0.0, %v3900
    %v3902 = vpop.f32.mrb[0].mxu0
    %3903 = vmatprep.mubr.bf16.mxu0 0
    %3904 = vmatmul.mubr.bf16.gmra.mrb[0].mxu0 %v3838
    %v3905 = vpop.f32.mrb[0].mxu0
    %v3906 = vadd.f32 0.0, %v3905
    %v3907 = vpop.f32.mrb[0].mxu0
    %v3908 = vpop.f32.mrb[0].mxu0
    %v3909 = vadd.f32 0.0, %v3908
    %v3910 = vpop.f32.mrb[0].mxu0
    %3911 = vmatprep.mubr.bf16.mxu0 0
    %3912 = vmatmul.mubr.bf16.gmra.mrb[0].mxu0 %v3841
    %v3913 = vpop.f32.mrb[0].mxu0
    %v3914 = vadd.f32 0.0, %v3913
    %v3915 = vpop.f32.mrb[0].mxu0
    %v3916 = vpop.f32.mrb[0].mxu0
    %v3917 = vadd.f32 0.0, %v3916
    %v3918 = vpop.f32.mrb[0].mxu0
    %3919 = vmatprep.mubr.bf16.mxu0 0
    %3920 = vmatmul.mubr.bf16.gmra.mrb[0].mxu0 %v3844
    %v3921 = vpop.f32.mrb[0].mxu0
    %v3922 = vadd.f32 0.0, %v3921
    %v3923 = vpop.f32.mrb[0].mxu0
    %v3924 = vpop.f32.mrb[0].mxu0
    %v3925 = vadd.f32 0.0, %v3924
    %v3926 = vpop.f32.mrb[0].mxu0
    %3927 = vmatprep.mubr.bf16.mxu0 0
    %3928 = vmatmul.mubr.bf16.gmra.mrb[0].mxu0 %v3847
    %v3929 = vpop.f32.mrb[0].mxu0
    %v3930 = vadd.f32 0.0, %v3929
    %v3931 = vpop.f32.mrb[0].mxu0
    %v3932 = vpop.f32.mrb[0].mxu0
    %v3933 = vadd.f32 0.0, %v3932
    %v3934 = vpop.f32.mrb[0].mxu0
    %3935 = vmatprep.mubr.bf16.mxu0 0
    %3936 = vmatmul.mubr.bf16.gmra.mrb[0].mxu0 %v3850
    %v3937 = vpop.f32.mrb[0].mxu0
    %v3938 = vadd.f32 0.0, %v3937
    %v3939 = vpop.f32.mrb[0].mxu0
    %v3940 = vpop.f32.mrb[0].mxu0
    %v3941 = vadd.f32 0.0, %v3940
    %v3942 = vpop.f32.mrb[0].mxu0
    %3943 = vmatprep.mubr.bf16.mxu0 0
    %3944 = vmatmul.mubr.bf16.gmra.mrb[0].mxu0 %v3853
    %v3945 = vpop.f32.mrb[0].mxu0
    %v3946 = vadd.f32 0.0, %v3945
    %v3947 = vpop.f32.mrb[0].mxu0
    %v3948 = vpop.f32.mrb[0].mxu0
    %v3949 = vadd.f32 0.0, %v3948
    %v3950 = vpop.f32.mrb[0].mxu0
    %3951 = vdwg.mxu0
    %v3952 = vadd.f32 %v3712, %v3890
    %v3953 = vadd.f32 %v3715, %v3893
    %v3954 = vadd.f32 %v3720, %v3898
    %v3955 = vadd.f32 %v3723, %v3901
    %v3956 = vadd.f32 %v3728, %v3906
    %v3957 = vadd.f32 %v3731, %v3909
    %v3958 = vadd.f32 %v3736, %v3914
    %v3959 = vadd.f32 %v3739, %v3917
    %v3960 = vadd.f32 %v3744, %v3922
    %v3961 = vadd.f32 %v3747, %v3925
    %v3962 = vadd.f32 %v3752, %v3930
    %v3963 = vadd.f32 %v3755, %v3933
    %v3964 = vadd.f32 %v3760, %v3938
    %v3965 = vadd.f32 %v3763, %v3941
    %v3966 = vadd.f32 %v3768, %v3946
    %v3967 = vadd.f32 %v3771, %v3949
    %v3968 = vld [vmem:[%s3402] sm:$0xff]
    %v3969 = vld [vmem:[%s3402 + $0x10] sm:$0xff]
    %v3970 = vld [vmem:[%s3402 + $0x20] sm:$0xff]
    %v3971 = vld [vmem:[%s3402 + $0x30] sm:$0xff]
    %v3972 = vld [vmem:[%s3402 + $0x40] sm:$0xff]
    %v3973 = vld [vmem:[%s3402 + $0x50] sm:$0xff]
    %v3974 = vld [vmem:[%s3402 + $0x60] sm:$0xff]
    %v3975 = vld [vmem:[%s3402 + $0x70] sm:$0xff]
    %v3976 = vld [vmem:[%s3402 + $0xa0] sm:$0xff]
    %v3977 = vld [vmem:[%s3402 + $0xb0] sm:$0xff]
    %v3978 = vld [vmem:[%s3402 + $0xc0] sm:$0xff]
    %v3979 = vld [vmem:[%s3402 + $0xd0] sm:$0xff]
    %v3980 = vld [vmem:[%s3402 + $0xe0] sm:$0xff]
    %v3981 = vld [vmem:[%s3402 + $0xf0] sm:$0xff]
    %v3982 = vld [vmem:[%s3402 + $0x100] sm:$0xff]
    %v3983 = vld [vmem:[%s3402 + $0x110] sm:$0xff]
    %v3984 = vpack.c.bf16 %v3969, %v3968
    %v3985 = vpack.c.bf16 %v3971, %v3970
    %v3986 = vpack.c.bf16 %v3973, %v3972
    %v3987 = vpack.c.bf16 %v3975, %v3974
    %v3988 = vpack.c.bf16 %v3977, %v3976
    %v3989 = vpack.c.bf16 %v3979, %v3978
    %v3990 = vpack.c.bf16 %v3981, %v3980
    %v3991 = vpack.c.bf16 %v3983, %v3982
    %s3992 = scalar_lea.vmem [#allocation12], 96
    %v3993 = vld [vmem:[%s3992] sm:$0xf]
    %v3994 = vld [vmem:[%s3992 + $0x4] sm:$0xf]
    %v3995 = vld [vmem:[%s3992 + $0x8] sm:$0xf]
    %v3996 = vld [vmem:[%s3992 + $0xc] sm:$0xf]
    %v3997 = vld [vmem:[%s3992 + $0x10] sm:$0xf]
    %v3998 = vld [vmem:[%s3992 + $0x14] sm:$0xf]
    %v3999 = vld [vmem:[%s3992 + $0x18] sm:$0xf]
    %v4000 = vld [vmem:[%s3992 + $0x1c] sm:$0xf]
    %v4009 = vunpack.c.l.b16 %v3993
    %v4010 = vunpack.c.l.b16 %v3994
    %v4011 = vunpack.c.l.b16 %v3995
    %v4012 = vunpack.c.l.b16 %v3996
    %v4013 = vunpack.c.l.b16 %v3997
    %v4014 = vunpack.c.l.b16 %v3998
    %v4015 = vunpack.c.l.b16 %v3999
    %v4016 = vunpack.c.l.b16 %v4000
    %v4017 = vpack.c.b16 %v4010, %v4009
    %v4018 = vpack.c.b16 %v4012, %v4011
    %v4019 = vpack.c.b16 %v4014, %v4013
    %v4020 = vpack.c.b16 %v4016, %v4015
    %v4026 = vsel %vm3360, %v3984, 0
    %v4029 = vsel %vm3360, %v3985, 0
    %v4032 = vsel %vm3360, %v3986, 0
    %v4035 = vsel %vm3360, %v3987, 0
    %v4038 = vsel %vm3360, %v3988, 0
    %v4041 = vsel %vm3360, %v3989, 0
    %v4044 = vsel %vm3360, %v3990, 0
    %v4047 = vsel %vm3360, %v3991, 0
    %4049 = vmatprep.subr.bf16.mxu0 0
    %4050 = vmatpush1.bf16.msra.mxu0 %v4017
    %4051 = vmatprep.subr.bf16.mxu0 0
    %4052 = vmatpush1.bf16.msra.mxu0 %v4018
    %4053 = vmatprep.subr.bf16.mxu0 0
    %4054 = vmatpush1.bf16.msra.mxu0 %v4019
    %4055 = vmatprep.subr.bf16.mxu0 0
    %4056 = vmatpush1.bf16.msra.mxu0 %v4020
    %4057 = vmatprep.subr.bf16.mxu0 0
    %4058 = vmatpush1.bf16.msra.mxu0 0
    %4059 = vmatprep.subr.bf16.mxu0 0
    %4060 = vmatpush1.bf16.msra.mxu0 0
    %4061 = vmatprep.subr.bf16.mxu0 0
    %4062 = vmatpush1.bf16.msra.mxu0 0
    %4063 = vmatprep.subr.bf16.mxu0 0
    %4064 = vmatpush1.bf16.msra.mxu0 0
    %4065 = vmatprep.subr.bf16.mxu0 0
    %4066 = vmatpush1.bf16.msra.mxu0 0
    %4067 = vmatprep.subr.bf16.mxu0 0
    %4068 = vmatpush1.bf16.msra.mxu0 0
    %4069 = vmatprep.subr.bf16.mxu0 0
    %4070 = vmatpush1.bf16.msra.mxu0 0
    %4071 = vmatprep.subr.bf16.mxu0 0
    %4072 = vmatpush1.bf16.msra.mxu0 0
    %4073 = vmatprep.subr.bf16.mxu0 0
    %4074 = vmatpush1.bf16.msra.mxu0 0
    %4075 = vmatprep.subr.bf16.mxu0 0
    %4076 = vmatpush1.bf16.msra.mxu0 0
    %4077 = vmatprep.subr.bf16.mxu0 0
    %4078 = vmatpush1.bf16.msra.mxu0 0
    %4079 = vmatprep.subr.bf16.mxu0 0
    %4080 = vmatpush1.bf16.msra.mxu0 0
    %4081 = vmatprep.mubr.bf16.mxu0 0
    %4082 = vmatmul.mubr.bf16.gmra.mrb[0].mxu0 %v4026
    %v4083 = vpop.f32.mrb[0].mxu0
    %v4084 = vadd.f32 0.0, %v4083
    %v4085 = vpop.f32.mrb[0].mxu0
    %v4086 = vpop.f32.mrb[0].mxu0
    %v4087 = vadd.f32 0.0, %v4086
    %v4088 = vpop.f32.mrb[0].mxu0
    %4089 = vmatprep.mubr.bf16.mxu0 0
    %4090 = vmatmul.mubr.bf16.gmra.mrb[0].mxu0 %v4029
    %v4091 = vpop.f32.mrb[0].mxu0
    %v4092 = vadd.f32 0.0, %v4091
    %v4093 = vpop.f32.mrb[0].mxu0
    %v4094 = vpop.f32.mrb[0].mxu0
    %v4095 = vadd.f32 0.0, %v4094
    %v4096 = vpop.f32.mrb[0].mxu0
    %4097 = vmatprep.mubr.bf16.mxu0 0
    %4098 = vmatmul.mubr.bf16.gmra.mrb[0].mxu0 %v4032
    %v4099 = vpop.f32.mrb[0].mxu0
    %v4100 = vadd.f32 0.0, %v4099
    %v4101 = vpop.f32.mrb[0].mxu0
    %v4102 = vpop.f32.mrb[0].mxu0
    %v4103 = vadd.f32 0.0, %v4102
    %v4104 = vpop.f32.mrb[0].mxu0
    %4105 = vmatprep.mubr.bf16.mxu0 0
    %4106 = vmatmul.mubr.bf16.gmra.mrb[0].mxu0 %v4035
    %v4107 = vpop.f32.mrb[0].mxu0
    %v4108 = vadd.f32 0.0, %v4107
    %v4109 = vpop.f32.mrb[0].mxu0
    %v4110 = vpop.f32.mrb[0].mxu0
    %v4111 = vadd.f32 0.0, %v4110
    %v4112 = vpop.f32.mrb[0].mxu0
    %4113 = vmatprep.mubr.bf16.mxu0 0
    %4114 = vmatmul.mubr.bf16.gmra.mrb[0].mxu0 %v4038
    %v4115 = vpop.f32.mrb[0].mxu0
    %v4116 = vadd.f32 0.0, %v4115
    %v4117 = vpop.f32.mrb[0].mxu0
    %v4118 = vpop.f32.mrb[0].mxu0
    %v4119 = vadd.f32 0.0, %v4118
    %v4120 = vpop.f32.mrb[0].mxu0
    %4121 = vmatprep.mubr.bf16.mxu0 0
    %4122 = vmatmul.mubr.bf16.gmra.mrb[0].mxu0 %v4041
    %v4123 = vpop.f32.mrb[0].mxu0
    %v4124 = vadd.f32 0.0, %v4123
    %v4125 = vpop.f32.mrb[0].mxu0
    %v4126 = vpop.f32.mrb[0].mxu0
    %v4127 = vadd.f32 0.0, %v4126
    %v4128 = vpop.f32.mrb[0].mxu0
    %4129 = vmatprep.mubr.bf16.mxu0 0
    %4130 = vmatmul.mubr.bf16.gmra.mrb[0].mxu0 %v4044
    %v4131 = vpop.f32.mrb[0].mxu0
    %v4132 = vadd.f32 0.0, %v4131
    %v4133 = vpop.f32.mrb[0].mxu0
    %v4134 = vpop.f32.mrb[0].mxu0
    %v4135 = vadd.f32 0.0, %v4134
    %v4136 = vpop.f32.mrb[0].mxu0
    %4137 = vmatprep.mubr.bf16.mxu0 0
    %4138 = vmatmul.mubr.bf16.gmra.mrb[0].mxu0 %v4047
    %v4139 = vpop.f32.mrb[0].mxu0
    %v4140 = vadd.f32 0.0, %v4139
    %v4141 = vpop.f32.mrb[0].mxu0
    %v4142 = vpop.f32.mrb[0].mxu0
    %v4143 = vadd.f32 0.0, %v4142
    %v4144 = vpop.f32.mrb[0].mxu0
    %4145 = vdwg.mxu0
    %v4146 = vadd.f32 %v3952, %v4084
    %v4147 = vadd.f32 %v3953, %v4087
    %v4148 = vadd.f32 %v3954, %v4092
    %v4149 = vadd.f32 %v3955, %v4095
    %v4150 = vadd.f32 %v3956, %v4100
    %v4151 = vadd.f32 %v3957, %v4103
    %v4152 = vadd.f32 %v3958, %v4108
    %v4153 = vadd.f32 %v3959, %v4111
    %v4154 = vadd.f32 %v3960, %v4116
    %v4155 = vadd.f32 %v3961, %v4119
    %v4156 = vadd.f32 %v3962, %v4124
    %v4157 = vadd.f32 %v3963, %v4127
    %v4158 = vadd.f32 %v3964, %v4132
    %v4159 = vadd.f32 %v3965, %v4135
    %v4160 = vadd.f32 %v3966, %v4140
    %v4161 = vadd.f32 %v3967, %v4143
    %v4162 = vld [vmem:[%s3402 + $0x1] sm:$0xff]
    %v4163 = vld [vmem:[%s3402 + $0x11] sm:$0xff]
    %v4164 = vld [vmem:[%s3402 + $0x21] sm:$0xff]
    %v4165 = vld [vmem:[%s3402 + $0x31] sm:$0xff]
    %v4166 = vld [vmem:[%s3402 + $0x41] sm:$0xff]
    %v4167 = vld [vmem:[%s3402 + $0x51] sm:$0xff]
    %v4168 = vld [vmem:[%s3402 + $0x61] sm:$0xff]
    %v4169 = vld [vmem:[%s3402 + $0x71] sm:$0xff]
    %v4170 = vld [vmem:[%s3402 + $0xa1] sm:$0xff]
    %v4171 = vld [vmem:[%s3402 + $0xb1] sm:$0xff]
    %v4172 = vld [vmem:[%s3402 + $0xc1] sm:$0xff]
    %v4173 = vld [vmem:[%s3402 + $0xd1] sm:$0xff]
    %v4174 = vld [vmem:[%s3402 + $0xe1] sm:$0xff]
    %v4175 = vld [vmem:[%s3402 + $0xf1] sm:$0xff]
    %v4176 = vld [vmem:[%s3402 + $0x101] sm:$0xff]
    %v4177 = vld [vmem:[%s3402 + $0x111] sm:$0xff]
    %v4178 = vpack.c.bf16 %v4163, %v4162
    %v4179 = vpack.c.bf16 %v4165, %v4164
    %v4180 = vpack.c.bf16 %v4167, %v4166
    %v4181 = vpack.c.bf16 %v4169, %v4168
    %v4182 = vpack.c.bf16 %v4171, %v4170
    %v4183 = vpack.c.bf16 %v4173, %v4172
    %v4184 = vpack.c.bf16 %v4175, %v4174
    %v4185 = vpack.c.bf16 %v4177, %v4176
    %s4186 = scalar_lea.vmem [#allocation12], 128
    %v4187 = vld [vmem:[%s4186] sm:$0xf]
    %v4188 = vld [vmem:[%s4186 + $0x4] sm:$0xf]
    %v4189 = vld [vmem:[%s4186 + $0x8] sm:$0xf]
    %v4190 = vld [vmem:[%s4186 + $0xc] sm:$0xf]
    %v4191 = vld [vmem:[%s4186 + $0x10] sm:$0xf]
    %v4192 = vld [vmem:[%s4186 + $0x14] sm:$0xf]
    %v4193 = vld [vmem:[%s4186 + $0x18] sm:$0xf]
    %v4194 = vld [vmem:[%s4186 + $0x1c] sm:$0xf]
    %v4203 = vunpack.c.l.b16 %v4187
    %v4204 = vunpack.c.l.b16 %v4188
    %v4205 = vunpack.c.l.b16 %v4189
    %v4206 = vunpack.c.l.b16 %v4190
    %v4207 = vunpack.c.l.b16 %v4191
    %v4208 = vunpack.c.l.b16 %v4192
    %v4209 = vunpack.c.l.b16 %v4193
    %v4210 = vunpack.c.l.b16 %v4194
    %v4211 = vpack.c.b16 %v4204, %v4203
    %v4212 = vpack.c.b16 %v4206, %v4205
    %v4213 = vpack.c.b16 %v4208, %v4207
    %v4214 = vpack.c.b16 %v4210, %v4209
    %v4220 = vsel %vm3360, %v4178, 0
    %v4223 = vsel %vm3360, %v4179, 0
    %v4226 = vsel %vm3360, %v4180, 0
    %v4229 = vsel %vm3360, %v4181, 0
    %v4232 = vsel %vm3360, %v4182, 0
    %v4235 = vsel %vm3360, %v4183, 0
    %v4238 = vsel %vm3360, %v4184, 0
    %v4241 = vsel %vm3360, %v4185, 0
    %4243 = vmatprep.subr.bf16.mxu0 0
    %4244 = vmatpush1.bf16.msra.mxu0 %v4211
    %4245 = vmatprep.subr.bf16.mxu0 0
    %4246 = vmatpush1.bf16.msra.mxu0 %v4212
    %4247 = vmatprep.subr.bf16.mxu0 0
    %4248 = vmatpush1.bf16.msra.mxu0 %v4213
    %4249 = vmatprep.subr.bf16.mxu0 0
    %4250 = vmatpush1.bf16.msra.mxu0 %v4214
    %4251 = vmatprep.subr.bf16.mxu0 0
    %4252 = vmatpush1.bf16.msra.mxu0 0
    %4253 = vmatprep.subr.bf16.mxu0 0
    %4254 = vmatpush1.bf16.msra.mxu0 0
    %4255 = vmatprep.subr.bf16.mxu0 0
    %4256 = vmatpush1.bf16.msra.mxu0 0
    %4257 = vmatprep.subr.bf16.mxu0 0
    %4258 = vmatpush1.bf16.msra.mxu0 0
    %4259 = vmatprep.subr.bf16.mxu0 0
    %4260 = vmatpush1.bf16.msra.mxu0 0
    %4261 = vmatprep.subr.bf16.mxu0 0
    %4262 = vmatpush1.bf16.msra.mxu0 0
    %4263 = vmatprep.subr.bf16.mxu0 0
    %4264 = vmatpush1.bf16.msra.mxu0 0
    %4265 = vmatprep.subr.bf16.mxu0 0
    %4266 = vmatpush1.bf16.msra.mxu0 0
    %4267 = vmatprep.subr.bf16.mxu0 0
    %4268 = vmatpush1.bf16.msra.mxu0 0
    %4269 = vmatprep.subr.bf16.mxu0 0
    %4270 = vmatpush1.bf16.msra.mxu0 0
    %4271 = vmatprep.subr.bf16.mxu0 0
    %4272 = vmatpush1.bf16.msra.mxu0 0
    %4273 = vmatprep.subr.bf16.mxu0 0
    %4274 = vmatpush1.bf16.msra.mxu0 0
    %4275 = vmatprep.mubr.bf16.mxu0 0
    %4276 = vmatmul.mubr.bf16.gmra.mrb[0].mxu0 %v4220
    %v4277 = vpop.f32.mrb[0].mxu0
    %v4278 = vadd.f32 0.0, %v4277
    %v4279 = vpop.f32.mrb[0].mxu0
    %v4280 = vpop.f32.mrb[0].mxu0
    %v4281 = vadd.f32 0.0, %v4280
    %v4282 = vpop.f32.mrb[0].mxu0
    %4283 = vmatprep.mubr.bf16.mxu0 0
    %4284 = vmatmul.mubr.bf16.gmra.mrb[0].mxu0 %v4223
    %v4285 = vpop.f32.mrb[0].mxu0
    %v4286 = vadd.f32 0.0, %v4285
    %v4287 = vpop.f32.mrb[0].mxu0
    %v4288 = vpop.f32.mrb[0].mxu0
    %v4289 = vadd.f32 0.0, %v4288
    %v4290 = vpop.f32.mrb[0].mxu0
    %4291 = vmatprep.mubr.bf16.mxu0 0
    %4292 = vmatmul.mubr.bf16.gmra.mrb[0].mxu0 %v4226
    %v4293 = vpop.f32.mrb[0].mxu0
    %v4294 = vadd.f32 0.0, %v4293
    %v4295 = vpop.f32.mrb[0].mxu0
    %v4296 = vpop.f32.mrb[0].mxu0
    %v4297 = vadd.f32 0.0, %v4296
    %v4298 = vpop.f32.mrb[0].mxu0
    %4299 = vmatprep.mubr.bf16.mxu0 0
    %4300 = vmatmul.mubr.bf16.gmra.mrb[0].mxu0 %v4229
    %v4301 = vpop.f32.mrb[0].mxu0
    %v4302 = vadd.f32 0.0, %v4301
    %v4303 = vpop.f32.mrb[0].mxu0
    %v4304 = vpop.f32.mrb[0].mxu0
    %v4305 = vadd.f32 0.0, %v4304
    %v4306 = vpop.f32.mrb[0].mxu0
    %4307 = vmatprep.mubr.bf16.mxu0 0
    %4308 = vmatmul.mubr.bf16.gmra.mrb[0].mxu0 %v4232
    %v4309 = vpop.f32.mrb[0].mxu0
    %v4310 = vadd.f32 0.0, %v4309
    %v4311 = vpop.f32.mrb[0].mxu0
    %v4312 = vpop.f32.mrb[0].mxu0
    %v4313 = vadd.f32 0.0, %v4312
    %v4314 = vpop.f32.mrb[0].mxu0
    %4315 = vmatprep.mubr.bf16.mxu0 0
    %4316 = vmatmul.mubr.bf16.gmra.mrb[0].mxu0 %v4235
    %v4317 = vpop.f32.mrb[0].mxu0
    %v4318 = vadd.f32 0.0, %v4317
    %v4319 = vpop.f32.mrb[0].mxu0
    %v4320 = vpop.f32.mrb[0].mxu0
    %v4321 = vadd.f32 0.0, %v4320
    %v4322 = vpop.f32.mrb[0].mxu0
    %4323 = vmatprep.mubr.bf16.mxu0 0
    %4324 = vmatmul.mubr.bf16.gmra.mrb[0].mxu0 %v4238
    %v4325 = vpop.f32.mrb[0].mxu0
    %v4326 = vadd.f32 0.0, %v4325
    %v4327 = vpop.f32.mrb[0].mxu0
    %v4328 = vpop.f32.mrb[0].mxu0
    %v4329 = vadd.f32 0.0, %v4328
    %v4330 = vpop.f32.mrb[0].mxu0
    %4331 = vmatprep.mubr.bf16.mxu0 0
    %4332 = vmatmul.mubr.bf16.gmra.mrb[0].mxu0 %v4241
    %v4333 = vpop.f32.mrb[0].mxu0
    %v4334 = vadd.f32 0.0, %v4333
    %v4335 = vpop.f32.mrb[0].mxu0
    %v4336 = vpop.f32.mrb[0].mxu0
    %v4337 = vadd.f32 0.0, %v4336
    %v4338 = vpop.f32.mrb[0].mxu0
    %4339 = vdwg.mxu0
    %v4340 = vadd.f32 %v4146, %v4278
    %v4341 = vadd.f32 %v4147, %v4281
    %v4342 = vadd.f32 %v4148, %v4286
    %v4343 = vadd.f32 %v4149, %v4289
    %v4344 = vadd.f32 %v4150, %v4294
    %v4345 = vadd.f32 %v4151, %v4297
    %v4346 = vadd.f32 %v4152, %v4302
    %v4347 = vadd.f32 %v4153, %v4305
    %v4348 = vadd.f32 %v4154, %v4310
    %v4349 = vadd.f32 %v4155, %v4313
    %v4350 = vadd.f32 %v4156, %v4318
    %v4351 = vadd.f32 %v4157, %v4321
    %v4352 = vadd.f32 %v4158, %v4326
    %v4353 = vadd.f32 %v4159, %v4329
    %v4354 = vadd.f32 %v4160, %v4334
    %v4355 = vadd.f32 %v4161, %v4337
    %v4356 = vld [vmem:[%s3402 + $0x2] sm:$0xff]
    %v4357 = vld [vmem:[%s3402 + $0x12] sm:$0xff]
    %v4358 = vld [vmem:[%s3402 + $0x22] sm:$0xff]
    %v4359 = vld [vmem:[%s3402 + $0x32] sm:$0xff]
    %v4360 = vld [vmem:[%s3402 + $0x42] sm:$0xff]
    %v4361 = vld [vmem:[%s3402 + $0x52] sm:$0xff]
    %v4362 = vld [vmem:[%s3402 + $0x62] sm:$0xff]
    %v4363 = vld [vmem:[%s3402 + $0x72] sm:$0xff]
    %v4364 = vld [vmem:[%s3402 + $0xa2] sm:$0xff]
    %v4365 = vld [vmem:[%s3402 + $0xb2] sm:$0xff]
    %v4366 = vld [vmem:[%s3402 + $0xc2] sm:$0xff]
    %v4367 = vld [vmem:[%s3402 + $0xd2] sm:$0xff]
    %v4368 = vld [vmem:[%s3402 + $0xe2] sm:$0xff]
    %v4369 = vld [vmem:[%s3402 + $0xf2] sm:$0xff]
    %v4370 = vld [vmem:[%s3402 + $0x102] sm:$0xff]
    %v4371 = vld [vmem:[%s3402 + $0x112] sm:$0xff]
    %v4372 = vpack.c.bf16 %v4357, %v4356
    %v4373 = vpack.c.bf16 %v4359, %v4358
    %v4374 = vpack.c.bf16 %v4361, %v4360
    %v4375 = vpack.c.bf16 %v4363, %v4362
    %v4376 = vpack.c.bf16 %v4365, %v4364
    %v4377 = vpack.c.bf16 %v4367, %v4366
    %v4378 = vpack.c.bf16 %v4369, %v4368
    %v4379 = vpack.c.bf16 %v4371, %v4370
    %s4380 = scalar_lea.vmem [#allocation12], 160
    %v4381 = vld [vmem:[%s4380] sm:$0xf]
    %v4382 = vld [vmem:[%s4380 + $0x4] sm:$0xf]
    %v4383 = vld [vmem:[%s4380 + $0x8] sm:$0xf]
    %v4384 = vld [vmem:[%s4380 + $0xc] sm:$0xf]
    %v4385 = vld [vmem:[%s4380 + $0x10] sm:$0xf]
    %v4386 = vld [vmem:[%s4380 + $0x14] sm:$0xf]
    %v4387 = vld [vmem:[%s4380 + $0x18] sm:$0xf]
    %v4388 = vld [vmem:[%s4380 + $0x1c] sm:$0xf]
    %v4397 = vunpack.c.l.b16 %v4381
    %v4398 = vunpack.c.l.b16 %v4382
    %v4399 = vunpack.c.l.b16 %v4383
    %v4400 = vunpack.c.l.b16 %v4384
    %v4401 = vunpack.c.l.b16 %v4385
    %v4402 = vunpack.c.l.b16 %v4386
    %v4403 = vunpack.c.l.b16 %v4387
    %v4404 = vunpack.c.l.b16 %v4388
    %v4405 = vpack.c.b16 %v4398, %v4397
    %v4406 = vpack.c.b16 %v4400, %v4399
    %v4407 = vpack.c.b16 %v4402, %v4401
    %v4408 = vpack.c.b16 %v4404, %v4403
    %v4414 = vsel %vm3360, %v4372, 0
    %v4417 = vsel %vm3360, %v4373, 0
    %v4420 = vsel %vm3360, %v4374, 0
    %v4423 = vsel %vm3360, %v4375, 0
    %v4426 = vsel %vm3360, %v4376, 0
    %v4429 = vsel %vm3360, %v4377, 0
    %v4432 = vsel %vm3360, %v4378, 0
    %v4435 = vsel %vm3360, %v4379, 0
    %4437 = vmatprep.subr.bf16.mxu0 0
    %4438 = vmatpush1.bf16.msra.mxu0 %v4405
    %4439 = vmatprep.subr.bf16.mxu0 0
    %4440 = vmatpush1.bf16.msra.mxu0 %v4406
    %4441 = vmatprep.subr.bf16.mxu0 0
    %4442 = vmatpush1.bf16.msra.mxu0 %v4407
    %4443 = vmatprep.subr.bf16.mxu0 0
    %4444 = vmatpush1.bf16.msra.mxu0 %v4408
    %4445 = vmatprep.subr.bf16.mxu0 0
    %4446 = vmatpush1.bf16.msra.mxu0 0
    %4447 = vmatprep.subr.bf16.mxu0 0
    %4448 = vmatpush1.bf16.msra.mxu0 0
    %4449 = vmatprep.subr.bf16.mxu0 0
    %4450 = vmatpush1.bf16.msra.mxu0 0
    %4451 = vmatprep.subr.bf16.mxu0 0
    %4452 = vmatpush1.bf16.msra.mxu0 0
    %4453 = vmatprep.subr.bf16.mxu0 0
    %4454 = vmatpush1.bf16.msra.mxu0 0
    %4455 = vmatprep.subr.bf16.mxu0 0
    %4456 = vmatpush1.bf16.msra.mxu0 0
    %4457 = vmatprep.subr.bf16.mxu0 0
    %4458 = vmatpush1.bf16.msra.mxu0 0
    %4459 = vmatprep.subr.bf16.mxu0 0
    %4460 = vmatpush1.bf16.msra.mxu0 0
    %4461 = vmatprep.subr.bf16.mxu0 0
    %4462 = vmatpush1.bf16.msra.mxu0 0
    %4463 = vmatprep.subr.bf16.mxu0 0
    %4464 = vmatpush1.bf16.msra.mxu0 0
    %4465 = vmatprep.subr.bf16.mxu0 0
    %4466 = vmatpush1.bf16.msra.mxu0 0
    %4467 = vmatprep.subr.bf16.mxu0 0
    %4468 = vmatpush1.bf16.msra.mxu0 0
    %4469 = vmatprep.mubr.bf16.mxu0 0
    %4470 = vmatmul.mubr.bf16.gmra.mrb[0].mxu0 %v4414
    %v4471 = vpop.f32.mrb[0].mxu0
    %v4472 = vadd.f32 0.0, %v4471
    %v4473 = vpop.f32.mrb[0].mxu0
    %v4474 = vpop.f32.mrb[0].mxu0
    %v4475 = vadd.f32 0.0, %v4474
    %v4476 = vpop.f32.mrb[0].mxu0
    %4477 = vmatprep.mubr.bf16.mxu0 0
    %4478 = vmatmul.mubr.bf16.gmra.mrb[0].mxu0 %v4417
    %v4479 = vpop.f32.mrb[0].mxu0
    %v4480 = vadd.f32 0.0, %v4479
    %v4481 = vpop.f32.mrb[0].mxu0
    %v4482 = vpop.f32.mrb[0].mxu0
    %v4483 = vadd.f32 0.0, %v4482
    %v4484 = vpop.f32.mrb[0].mxu0
    %4485 = vmatprep.mubr.bf16.mxu0 0
    %4486 = vmatmul.mubr.bf16.gmra.mrb[0].mxu0 %v4420
    %v4487 = vpop.f32.mrb[0].mxu0
    %v4488 = vadd.f32 0.0, %v4487
    %v4489 = vpop.f32.mrb[0].mxu0
    %v4490 = vpop.f32.mrb[0].mxu0
    %v4491 = vadd.f32 0.0, %v4490
    %v4492 = vpop.f32.mrb[0].mxu0
    %4493 = vmatprep.mubr.bf16.mxu0 0
    %4494 = vmatmul.mubr.bf16.gmra.mrb[0].mxu0 %v4423
    %v4495 = vpop.f32.mrb[0].mxu0
    %v4496 = vadd.f32 0.0, %v4495
    %v4497 = vpop.f32.mrb[0].mxu0
    %v4498 = vpop.f32.mrb[0].mxu0
    %v4499 = vadd.f32 0.0, %v4498
    %v4500 = vpop.f32.mrb[0].mxu0
    %4501 = vmatprep.mubr.bf16.mxu0 0
    %4502 = vmatmul.mubr.bf16.gmra.mrb[0].mxu0 %v4426
    %v4503 = vpop.f32.mrb[0].mxu0
    %v4504 = vadd.f32 0.0, %v4503
    %v4505 = vpop.f32.mrb[0].mxu0
    %v4506 = vpop.f32.mrb[0].mxu0
    %v4507 = vadd.f32 0.0, %v4506
    %v4508 = vpop.f32.mrb[0].mxu0
    %4509 = vmatprep.mubr.bf16.mxu0 0
    %4510 = vmatmul.mubr.bf16.gmra.mrb[0].mxu0 %v4429
    %v4511 = vpop.f32.mrb[0].mxu0
    %v4512 = vadd.f32 0.0, %v4511
    %v4513 = vpop.f32.mrb[0].mxu0
    %v4514 = vpop.f32.mrb[0].mxu0
    %v4515 = vadd.f32 0.0, %v4514
    %v4516 = vpop.f32.mrb[0].mxu0
    %4517 = vmatprep.mubr.bf16.mxu0 0
    %4518 = vmatmul.mubr.bf16.gmra.mrb[0].mxu0 %v4432
    %v4519 = vpop.f32.mrb[0].mxu0
    %v4520 = vadd.f32 0.0, %v4519
    %v4521 = vpop.f32.mrb[0].mxu0
    %v4522 = vpop.f32.mrb[0].mxu0
    %v4523 = vadd.f32 0.0, %v4522
    %v4524 = vpop.f32.mrb[0].mxu0
    %4525 = vmatprep.mubr.bf16.mxu0 0
    %4526 = vmatmul.mubr.bf16.gmra.mrb[0].mxu0 %v4435
    %v4527 = vpop.f32.mrb[0].mxu0
    %v4528 = vadd.f32 0.0, %v4527
    %v4529 = vpop.f32.mrb[0].mxu0
    %v4530 = vpop.f32.mrb[0].mxu0
    %v4531 = vadd.f32 0.0, %v4530
    %v4532 = vpop.f32.mrb[0].mxu0
    %4533 = vdwg.mxu0
    %v4534 = vadd.f32 %v4340, %v4472
    %v4535 = vadd.f32 %v4341, %v4475
    %v4536 = vadd.f32 %v4342, %v4480
    %v4537 = vadd.f32 %v4343, %v4483
    %v4538 = vadd.f32 %v4344, %v4488
    %v4539 = vadd.f32 %v4345, %v4491
    %v4540 = vadd.f32 %v4346, %v4496
    %v4541 = vadd.f32 %v4347, %v4499
    %v4542 = vadd.f32 %v4348, %v4504
    %v4543 = vadd.f32 %v4349, %v4507
    %v4544 = vadd.f32 %v4350, %v4512
    %v4545 = vadd.f32 %v4351, %v4515
    %v4546 = vadd.f32 %v4352, %v4520
    %v4547 = vadd.f32 %v4353, %v4523
    %v4548 = vadd.f32 %v4354, %v4528
    %v4549 = vadd.f32 %v4355, %v4531
    %s4550 = scalar_lea.vmem [#allocation3], 32
    %v4551 = vld [vmem:[%s4550] sm:$0xff]
    %v4552 = vld [vmem:[%s4550 + $0x10] sm:$0xff]
    %v4553 = vld [vmem:[%s4550 + $0x20] sm:$0xff]
    %v4554 = vld [vmem:[%s4550 + $0x30] sm:$0xff]
    %v4555 = vld [vmem:[%s4550 + $0x40] sm:$0xff]
    %v4556 = vld [vmem:[%s4550 + $0x50] sm:$0xff]
    %v4557 = vld [vmem:[%s4550 + $0x60] sm:$0xff]
    %v4558 = vld [vmem:[%s4550 + $0x70] sm:$0xff]
    %v4559 = vld [vmem:[%s4550 + $0xa0] sm:$0xff]
    %v4560 = vld [vmem:[%s4550 + $0xb0] sm:$0xff]
    %v4561 = vld [vmem:[%s4550 + $0xc0] sm:$0xff]
    %v4562 = vld [vmem:[%s4550 + $0xd0] sm:$0xff]
    %v4563 = vld [vmem:[%s4550 + $0xe0] sm:$0xff]
    %v4564 = vld [vmem:[%s4550 + $0xf0] sm:$0xff]
    %v4565 = vld [vmem:[%s4550 + $0x100] sm:$0xff]
    %v4566 = vld [vmem:[%s4550 + $0x110] sm:$0xff]
    %v4567 = vpack.c.bf16 %v4552, %v4551
    %v4568 = vpack.c.bf16 %v4554, %v4553
    %v4569 = vpack.c.bf16 %v4556, %v4555
    %v4570 = vpack.c.bf16 %v4558, %v4557
    %v4571 = vpack.c.bf16 %v4560, %v4559
    %v4572 = vpack.c.bf16 %v4562, %v4561
    %v4573 = vpack.c.bf16 %v4564, %v4563
    %v4574 = vpack.c.bf16 %v4566, %v4565
    %s4575 = scalar_lea.vmem [#allocation12], 192
    %v4576 = vld [vmem:[%s4575] sm:$0xf]
    %v4577 = vld [vmem:[%s4575 + $0x4] sm:$0xf]
    %v4578 = vld [vmem:[%s4575 + $0x8] sm:$0xf]
    %v4579 = vld [vmem:[%s4575 + $0xc] sm:$0xf]
    %v4580 = vld [vmem:[%s4575 + $0x10] sm:$0xf]
    %v4581 = vld [vmem:[%s4575 + $0x14] sm:$0xf]
    %v4582 = vld [vmem:[%s4575 + $0x18] sm:$0xf]
    %v4583 = vld [vmem:[%s4575 + $0x1c] sm:$0xf]
    %v4592 = vunpack.c.l.b16 %v4576
    %v4593 = vunpack.c.l.b16 %v4577
    %v4594 = vunpack.c.l.b16 %v4578
    %v4595 = vunpack.c.l.b16 %v4579
    %v4596 = vunpack.c.l.b16 %v4580
    %v4597 = vunpack.c.l.b16 %v4581
    %v4598 = vunpack.c.l.b16 %v4582
    %v4599 = vunpack.c.l.b16 %v4583
    %v4600 = vpack.c.b16 %v4593, %v4592
    %v4601 = vpack.c.b16 %v4595, %v4594
    %v4602 = vpack.c.b16 %v4597, %v4596
    %v4603 = vpack.c.b16 %v4599, %v4598
    %v4609 = vsel %vm3360, %v4567, 0
    %v4612 = vsel %vm3360, %v4568, 0
    %v4615 = vsel %vm3360, %v4569, 0
    %v4618 = vsel %vm3360, %v4570, 0
    %v4621 = vsel %vm3360, %v4571, 0
    %v4624 = vsel %vm3360, %v4572, 0
    %v4627 = vsel %vm3360, %v4573, 0
    %v4630 = vsel %vm3360, %v4574, 0
    %4632 = vmatprep.subr.bf16.mxu0 0
    %4633 = vmatpush1.bf16.msra.mxu0 %v4600
    %4634 = vmatprep.subr.bf16.mxu0 0
    %4635 = vmatpush1.bf16.msra.mxu0 %v4601
    %4636 = vmatprep.subr.bf16.mxu0 0
    %4637 = vmatpush1.bf16.msra.mxu0 %v4602
    %4638 = vmatprep.subr.bf16.mxu0 0
    %4639 = vmatpush1.bf16.msra.mxu0 %v4603
    %4640 = vmatprep.subr.bf16.mxu0 0
    %4641 = vmatpush1.bf16.msra.mxu0 0
    %4642 = vmatprep.subr.bf16.mxu0 0
    %4643 = vmatpush1.bf16.msra.mxu0 0
    %4644 = vmatprep.subr.bf16.mxu0 0
    %4645 = vmatpush1.bf16.msra.mxu0 0
    %4646 = vmatprep.subr.bf16.mxu0 0
    %4647 = vmatpush1.bf16.msra.mxu0 0
    %4648 = vmatprep.subr.bf16.mxu0 0
    %4649 = vmatpush1.bf16.msra.mxu0 0
    %4650 = vmatprep.subr.bf16.mxu0 0
    %4651 = vmatpush1.bf16.msra.mxu0 0
    %4652 = vmatprep.subr.bf16.mxu0 0
    %4653 = vmatpush1.bf16.msra.mxu0 0
    %4654 = vmatprep.subr.bf16.mxu0 0
    %4655 = vmatpush1.bf16.msra.mxu0 0
    %4656 = vmatprep.subr.bf16.mxu0 0
    %4657 = vmatpush1.bf16.msra.mxu0 0
    %4658 = vmatprep.subr.bf16.mxu0 0
    %4659 = vmatpush1.bf16.msra.mxu0 0
    %4660 = vmatprep.subr.bf16.mxu0 0
    %4661 = vmatpush1.bf16.msra.mxu0 0
    %4662 = vmatprep.subr.bf16.mxu0 0
    %4663 = vmatpush1.bf16.msra.mxu0 0
    %4664 = vmatprep.mubr.bf16.mxu0 0
    %4665 = vmatmul.mubr.bf16.gmra.mrb[0].mxu0 %v4609
    %v4666 = vpop.f32.mrb[0].mxu0
    %v4667 = vadd.f32 0.0, %v4666
    %v4668 = vpop.f32.mrb[0].mxu0
    %v4669 = vpop.f32.mrb[0].mxu0
    %v4670 = vadd.f32 0.0, %v4669
    %v4671 = vpop.f32.mrb[0].mxu0
    %4672 = vmatprep.mubr.bf16.mxu0 0
    %4673 = vmatmul.mubr.bf16.gmra.mrb[0].mxu0 %v4612
    %v4674 = vpop.f32.mrb[0].mxu0
    %v4675 = vadd.f32 0.0, %v4674
    %v4676 = vpop.f32.mrb[0].mxu0
    %v4677 = vpop.f32.mrb[0].mxu0
    %v4678 = vadd.f32 0.0, %v4677
    %v4679 = vpop.f32.mrb[0].mxu0
    %4680 = vmatprep.mubr.bf16.mxu0 0
    %4681 = vmatmul.mubr.bf16.gmra.mrb[0].mxu0 %v4615
    %v4682 = vpop.f32.mrb[0].mxu0
    %v4683 = vadd.f32 0.0, %v4682
    %v4684 = vpop.f32.mrb[0].mxu0
    %v4685 = vpop.f32.mrb[0].mxu0
    %v4686 = vadd.f32 0.0, %v4685
    %v4687 = vpop.f32.mrb[0].mxu0
    %4688 = vmatprep.mubr.bf16.mxu0 0
    %4689 = vmatmul.mubr.bf16.gmra.mrb[0].mxu0 %v4618
    %v4690 = vpop.f32.mrb[0].mxu0
    %v4691 = vadd.f32 0.0, %v4690
    %v4692 = vpop.f32.mrb[0].mxu0
    %v4693 = vpop.f32.mrb[0].mxu0
    %v4694 = vadd.f32 0.0, %v4693
    %v4695 = vpop.f32.mrb[0].mxu0
    %4696 = vmatprep.mubr.bf16.mxu0 0
    %4697 = vmatmul.mubr.bf16.gmra.mrb[0].mxu0 %v4621
    %v4698 = vpop.f32.mrb[0].mxu0
    %v4699 = vadd.f32 0.0, %v4698
    %v4700 = vpop.f32.mrb[0].mxu0
    %v4701 = vpop.f32.mrb[0].mxu0
    %v4702 = vadd.f32 0.0, %v4701
    %v4703 = vpop.f32.mrb[0].mxu0
    %4704 = vmatprep.mubr.bf16.mxu0 0
    %4705 = vmatmul.mubr.bf16.gmra.mrb[0].mxu0 %v4624
    %v4706 = vpop.f32.mrb[0].mxu0
    %v4707 = vadd.f32 0.0, %v4706
    %v4708 = vpop.f32.mrb[0].mxu0
    %v4709 = vpop.f32.mrb[0].mxu0
    %v4710 = vadd.f32 0.0, %v4709
    %v4711 = vpop.f32.mrb[0].mxu0
    %4712 = vmatprep.mubr.bf16.mxu0 0
    %4713 = vmatmul.mubr.bf16.gmra.mrb[0].mxu0 %v4627
    %v4714 = vpop.f32.mrb[0].mxu0
    %v4715 = vadd.f32 0.0, %v4714
    %v4716 = vpop.f32.mrb[0].mxu0
    %v4717 = vpop.f32.mrb[0].mxu0
    %v4718 = vadd.f32 0.0, %v4717
    %v4719 = vpop.f32.mrb[0].mxu0
    %4720 = vmatprep.mubr.bf16.mxu0 0
    %4721 = vmatmul.mubr.bf16.gmra.mrb[0].mxu0 %v4630
    %v4722 = vpop.f32.mrb[0].mxu0
    %v4723 = vadd.f32 0.0, %v4722
    %v4724 = vpop.f32.mrb[0].mxu0
    %v4725 = vpop.f32.mrb[0].mxu0
    %v4726 = vadd.f32 0.0, %v4725
    %v4727 = vpop.f32.mrb[0].mxu0
    %4728 = vdwg.mxu0
    %v4729 = vadd.f32 %v4534, %v4667
    %v4730 = vadd.f32 %v4535, %v4670
    %v4731 = vadd.f32 %v4536, %v4675
    %v4732 = vadd.f32 %v4537, %v4678
    %v4733 = vadd.f32 %v4538, %v4683
    %v4734 = vadd.f32 %v4539, %v4686
    %v4735 = vadd.f32 %v4540, %v4691
    %v4736 = vadd.f32 %v4541, %v4694
    %v4737 = vadd.f32 %v4542, %v4699
    %v4738 = vadd.f32 %v4543, %v4702
    %v4739 = vadd.f32 %v4544, %v4707
    %v4740 = vadd.f32 %v4545, %v4710
    %v4741 = vadd.f32 %v4546, %v4715
    %v4742 = vadd.f32 %v4547, %v4718
    %v4743 = vadd.f32 %v4548, %v4723
    %v4744 = vadd.f32 %v4549, %v4726
    %v4745 = vld [vmem:[%s4550 + $0x1] sm:$0xff]
    %v4746 = vld [vmem:[%s4550 + $0x11] sm:$0xff]
    %v4747 = vld [vmem:[%s4550 + $0x21] sm:$0xff]
    %v4748 = vld [vmem:[%s4550 + $0x31] sm:$0xff]
    %v4749 = vld [vmem:[%s4550 + $0x41] sm:$0xff]
    %v4750 = vld [vmem:[%s4550 + $0x51] sm:$0xff]
    %v4751 = vld [vmem:[%s4550 + $0x61] sm:$0xff]
    %v4752 = vld [vmem:[%s4550 + $0x71] sm:$0xff]
    %v4753 = vld [vmem:[%s4550 + $0xa1] sm:$0xff]
    %v4754 = vld [vmem:[%s4550 + $0xb1] sm:$0xff]
    %v4755 = vld [vmem:[%s4550 + $0xc1] sm:$0xff]
    %v4756 = vld [vmem:[%s4550 + $0xd1] sm:$0xff]
    %v4757 = vld [vmem:[%s4550 + $0xe1] sm:$0xff]
    %v4758 = vld [vmem:[%s4550 + $0xf1] sm:$0xff]
    %v4759 = vld [vmem:[%s4550 + $0x101] sm:$0xff]
    %v4760 = vld [vmem:[%s4550 + $0x111] sm:$0xff]
    %v4761 = vpack.c.bf16 %v4746, %v4745
    %v4762 = vpack.c.bf16 %v4748, %v4747
    %v4763 = vpack.c.bf16 %v4750, %v4749
    %v4764 = vpack.c.bf16 %v4752, %v4751
    %v4765 = vpack.c.bf16 %v4754, %v4753
    %v4766 = vpack.c.bf16 %v4756, %v4755
    %v4767 = vpack.c.bf16 %v4758, %v4757
    %v4768 = vpack.c.bf16 %v4760, %v4759
    %s4769 = scalar_lea.vmem [#allocation12], 224
    %v4770 = vld [vmem:[%s4769] sm:$0xf]
    %v4771 = vld [vmem:[%s4769 + $0x4] sm:$0xf]
    %v4772 = vld [vmem:[%s4769 + $0x8] sm:$0xf]
    %v4773 = vld [vmem:[%s4769 + $0xc] sm:$0xf]
    %v4774 = vld [vmem:[%s4769 + $0x10] sm:$0xf]
    %v4775 = vld [vmem:[%s4769 + $0x14] sm:$0xf]
    %v4776 = vld [vmem:[%s4769 + $0x18] sm:$0xf]
    %v4777 = vld [vmem:[%s4769 + $0x1c] sm:$0xf]
    %v4786 = vunpack.c.l.b16 %v4770
    %v4787 = vunpack.c.l.b16 %v4771
    %v4788 = vunpack.c.l.b16 %v4772
    %v4789 = vunpack.c.l.b16 %v4773
    %v4790 = vunpack.c.l.b16 %v4774
    %v4791 = vunpack.c.l.b16 %v4775
    %v4792 = vunpack.c.l.b16 %v4776
    %v4793 = vunpack.c.l.b16 %v4777
    %v4794 = vpack.c.b16 %v4787, %v4786
    %v4795 = vpack.c.b16 %v4789, %v4788
    %v4796 = vpack.c.b16 %v4791, %v4790
    %v4797 = vpack.c.b16 %v4793, %v4792
    %v4803 = vsel %vm3360, %v4761, 0
    %v4806 = vsel %vm3360, %v4762, 0
    %v4809 = vsel %vm3360, %v4763, 0
    %v4812 = vsel %vm3360, %v4764, 0
    %v4815 = vsel %vm3360, %v4765, 0
    %v4818 = vsel %vm3360, %v4766, 0
    %v4821 = vsel %vm3360, %v4767, 0
    %v4824 = vsel %vm3360, %v4768, 0
    %4826 = vmatprep.subr.bf16.mxu0 0
    %4827 = vmatpush1.bf16.msra.mxu0 %v4794
    %4828 = vmatprep.subr.bf16.mxu0 0
    %4829 = vmatpush1.bf16.msra.mxu0 %v4795
    %4830 = vmatprep.subr.bf16.mxu0 0
    %4831 = vmatpush1.bf16.msra.mxu0 %v4796
    %4832 = vmatprep.subr.bf16.mxu0 0
    %4833 = vmatpush1.bf16.msra.mxu0 %v4797
    %4834 = vmatprep.subr.bf16.mxu0 0
    %4835 = vmatpush1.bf16.msra.mxu0 0
    %4836 = vmatprep.subr.bf16.mxu0 0
    %4837 = vmatpush1.bf16.msra.mxu0 0
    %4838 = vmatprep.subr.bf16.mxu0 0
    %4839 = vmatpush1.bf16.msra.mxu0 0
    %4840 = vmatprep.subr.bf16.mxu0 0
    %4841 = vmatpush1.bf16.msra.mxu0 0
    %4842 = vmatprep.subr.bf16.mxu0 0
    %4843 = vmatpush1.bf16.msra.mxu0 0
    %4844 = vmatprep.subr.bf16.mxu0 0
    %4845 = vmatpush1.bf16.msra.mxu0 0
    %4846 = vmatprep.subr.bf16.mxu0 0
    %4847 = vmatpush1.bf16.msra.mxu0 0
    %4848 = vmatprep.subr.bf16.mxu0 0
    %4849 = vmatpush1.bf16.msra.mxu0 0
    %4850 = vmatprep.subr.bf16.mxu0 0
    %4851 = vmatpush1.bf16.msra.mxu0 0
    %4852 = vmatprep.subr.bf16.mxu0 0
    %4853 = vmatpush1.bf16.msra.mxu0 0
    %4854 = vmatprep.subr.bf16.mxu0 0
    %4855 = vmatpush1.bf16.msra.mxu0 0
    %4856 = vmatprep.subr.bf16.mxu0 0
    %4857 = vmatpush1.bf16.msra.mxu0 0
    %4858 = vmatprep.mubr.bf16.mxu0 0
    %4859 = vmatmul.mubr.bf16.gmra.mrb[0].mxu0 %v4803
    %v4860 = vpop.f32.mrb[0].mxu0
    %v4861 = vadd.f32 0.0, %v4860
    %v4862 = vpop.f32.mrb[0].mxu0
    %v4863 = vpop.f32.mrb[0].mxu0
    %v4864 = vadd.f32 0.0, %v4863
    %v4865 = vpop.f32.mrb[0].mxu0
    %4866 = vmatprep.mubr.bf16.mxu0 0
    %4867 = vmatmul.mubr.bf16.gmra.mrb[0].mxu0 %v4806
    %v4868 = vpop.f32.mrb[0].mxu0
    %v4869 = vadd.f32 0.0, %v4868
    %v4870 = vpop.f32.mrb[0].mxu0
    %v4871 = vpop.f32.mrb[0].mxu0
    %v4872 = vadd.f32 0.0, %v4871
    %v4873 = vpop.f32.mrb[0].mxu0
    %4874 = vmatprep.mubr.bf16.mxu0 0
    %4875 = vmatmul.mubr.bf16.gmra.mrb[0].mxu0 %v4809
    %v4876 = vpop.f32.mrb[0].mxu0
    %v4877 = vadd.f32 0.0, %v4876
    %v4878 = vpop.f32.mrb[0].mxu0
    %v4879 = vpop.f32.mrb[0].mxu0
    %v4880 = vadd.f32 0.0, %v4879
    %v4881 = vpop.f32.mrb[0].mxu0
    %4882 = vmatprep.mubr.bf16.mxu0 0
    %4883 = vmatmul.mubr.bf16.gmra.mrb[0].mxu0 %v4812
    %v4884 = vpop.f32.mrb[0].mxu0
    %v4885 = vadd.f32 0.0, %v4884
    %v4886 = vpop.f32.mrb[0].mxu0
    %v4887 = vpop.f32.mrb[0].mxu0
    %v4888 = vadd.f32 0.0, %v4887
    %v4889 = vpop.f32.mrb[0].mxu0
    %4890 = vmatprep.mubr.bf16.mxu0 0
    %4891 = vmatmul.mubr.bf16.gmra.mrb[0].mxu0 %v4815
    %v4892 = vpop.f32.mrb[0].mxu0
    %v4893 = vadd.f32 0.0, %v4892
    %v4894 = vpop.f32.mrb[0].mxu0
    %v4895 = vpop.f32.mrb[0].mxu0
    %v4896 = vadd.f32 0.0, %v4895
    %v4897 = vpop.f32.mrb[0].mxu0
    %4898 = vmatprep.mubr.bf16.mxu0 0
    %4899 = vmatmul.mubr.bf16.gmra.mrb[0].mxu0 %v4818
    %v4900 = vpop.f32.mrb[0].mxu0
    %v4901 = vadd.f32 0.0, %v4900
    %v4902 = vpop.f32.mrb[0].mxu0
    %v4903 = vpop.f32.mrb[0].mxu0
    %v4904 = vadd.f32 0.0, %v4903
    %v4905 = vpop.f32.mrb[0].mxu0
    %4906 = vmatprep.mubr.bf16.mxu0 0
    %4907 = vmatmul.mubr.bf16.gmra.mrb[0].mxu0 %v4821
    %v4908 = vpop.f32.mrb[0].mxu0
    %v4909 = vadd.f32 0.0, %v4908
    %v4910 = vpop.f32.mrb[0].mxu0
    %v4911 = vpop.f32.mrb[0].mxu0
    %v4912 = vadd.f32 0.0, %v4911
    %v4913 = vpop.f32.mrb[0].mxu0
    %4914 = vmatprep.mubr.bf16.mxu0 0
    %4915 = vmatmul.mubr.bf16.gmra.mrb[0].mxu0 %v4824
    %v4916 = vpop.f32.mrb[0].mxu0
    %v4917 = vadd.f32 0.0, %v4916
    %v4918 = vpop.f32.mrb[0].mxu0
    %v4919 = vpop.f32.mrb[0].mxu0
    %v4920 = vadd.f32 0.0, %v4919
    %v4921 = vpop.f32.mrb[0].mxu0
    %4922 = vdwg.mxu0
    %v4923 = vadd.f32 %v4729, %v4861
    %v4924 = vadd.f32 %v4730, %v4864
    %v4925 = vadd.f32 %v4731, %v4869
    %v4926 = vadd.f32 %v4732, %v4872
    %v4927 = vadd.f32 %v4733, %v4877
    %v4928 = vadd.f32 %v4734, %v4880
    %v4929 = vadd.f32 %v4735, %v4885
    %v4930 = vadd.f32 %v4736, %v4888
    %v4931 = vadd.f32 %v4737, %v4893
    %v4932 = vadd.f32 %v4738, %v4896
    %v4933 = vadd.f32 %v4739, %v4901
    %v4934 = vadd.f32 %v4740, %v4904
    %v4935 = vadd.f32 %v4741, %v4909
    %v4936 = vadd.f32 %v4742, %v4912
    %v4937 = vadd.f32 %v4743, %v4917
    %v4938 = vadd.f32 %v4744, %v4920
    %v4939 = vld [vmem:[%s4550 + $0x2] sm:$0xff]
    %v4940 = vld [vmem:[%s4550 + $0x12] sm:$0xff]
    %v4941 = vld [vmem:[%s4550 + $0x22] sm:$0xff]
    %v4942 = vld [vmem:[%s4550 + $0x32] sm:$0xff]
    %v4943 = vld [vmem:[%s4550 + $0x42] sm:$0xff]
    %v4944 = vld [vmem:[%s4550 + $0x52] sm:$0xff]
    %v4945 = vld [vmem:[%s4550 + $0x62] sm:$0xff]
    %v4946 = vld [vmem:[%s4550 + $0x72] sm:$0xff]
    %v4947 = vld [vmem:[%s4550 + $0xa2] sm:$0xff]
    %v4948 = vld [vmem:[%s4550 + $0xb2] sm:$0xff]
    %v4949 = vld [vmem:[%s4550 + $0xc2] sm:$0xff]
    %v4950 = vld [vmem:[%s4550 + $0xd2] sm:$0xff]
    %v4951 = vld [vmem:[%s4550 + $0xe2] sm:$0xff]
    %v4952 = vld [vmem:[%s4550 + $0xf2] sm:$0xff]
    %v4953 = vld [vmem:[%s4550 + $0x102] sm:$0xff]
    %v4954 = vld [vmem:[%s4550 + $0x112] sm:$0xff]
    %v4955 = vpack.c.bf16 %v4940, %v4939
    %v4956 = vpack.c.bf16 %v4942, %v4941
    %v4957 = vpack.c.bf16 %v4944, %v4943
    %v4958 = vpack.c.bf16 %v4946, %v4945
    %v4959 = vpack.c.bf16 %v4948, %v4947
    %v4960 = vpack.c.bf16 %v4950, %v4949
    %v4961 = vpack.c.bf16 %v4952, %v4951
    %v4962 = vpack.c.bf16 %v4954, %v4953
    %s4963 = scalar_lea.vmem [#allocation12], 256
    %v4964 = vld [vmem:[%s4963] sm:$0xf]
    %v4965 = vld [vmem:[%s4963 + $0x4] sm:$0xf]
    %v4966 = vld [vmem:[%s4963 + $0x8] sm:$0xf]
    %v4967 = vld [vmem:[%s4963 + $0xc] sm:$0xf]
    %v4968 = vld [vmem:[%s4963 + $0x10] sm:$0xf]
    %v4969 = vld [vmem:[%s4963 + $0x14] sm:$0xf]
    %v4970 = vld [vmem:[%s4963 + $0x18] sm:$0xf]
    %v4971 = vld [vmem:[%s4963 + $0x1c] sm:$0xf]
    %v4980 = vunpack.c.l.b16 %v4964
    %v4981 = vunpack.c.l.b16 %v4965
    %v4982 = vunpack.c.l.b16 %v4966
    %v4983 = vunpack.c.l.b16 %v4967
    %v4984 = vunpack.c.l.b16 %v4968
    %v4985 = vunpack.c.l.b16 %v4969
    %v4986 = vunpack.c.l.b16 %v4970
    %v4987 = vunpack.c.l.b16 %v4971
    %v4988 = vpack.c.b16 %v4981, %v4980
    %v4989 = vpack.c.b16 %v4983, %v4982
    %v4990 = vpack.c.b16 %v4985, %v4984
    %v4991 = vpack.c.b16 %v4987, %v4986
    %v4997 = vsel %vm3360, %v4955, 0
    %v5000 = vsel %vm3360, %v4956, 0
    %v5003 = vsel %vm3360, %v4957, 0
    %v5006 = vsel %vm3360, %v4958, 0
    %v5009 = vsel %vm3360, %v4959, 0
    %v5012 = vsel %vm3360, %v4960, 0
    %v5015 = vsel %vm3360, %v4961, 0
    %v5018 = vsel %vm3360, %v4962, 0
    %5020 = vmatprep.subr.bf16.mxu0 0
    %5021 = vmatpush1.bf16.msra.mxu0 %v4988
    %5022 = vmatprep.subr.bf16.mxu0 0
    %5023 = vmatpush1.bf16.msra.mxu0 %v4989
    %5024 = vmatprep.subr.bf16.mxu0 0
    %5025 = vmatpush1.bf16.msra.mxu0 %v4990
    %5026 = vmatprep.subr.bf16.mxu0 0
    %5027 = vmatpush1.bf16.msra.mxu0 %v4991
    %5028 = vmatprep.subr.bf16.mxu0 0
    %5029 = vmatpush1.bf16.msra.mxu0 0
    %5030 = vmatprep.subr.bf16.mxu0 0
    %5031 = vmatpush1.bf16.msra.mxu0 0
    %5032 = vmatprep.subr.bf16.mxu0 0
    %5033 = vmatpush1.bf16.msra.mxu0 0
    %5034 = vmatprep.subr.bf16.mxu0 0
    %5035 = vmatpush1.bf16.msra.mxu0 0
    %5036 = vmatprep.subr.bf16.mxu0 0
    %5037 = vmatpush1.bf16.msra.mxu0 0
    %5038 = vmatprep.subr.bf16.mxu0 0
    %5039 = vmatpush1.bf16.msra.mxu0 0
    %5040 = vmatprep.subr.bf16.mxu0 0
    %5041 = vmatpush1.bf16.msra.mxu0 0
    %5042 = vmatprep.subr.bf16.mxu0 0
    %5043 = vmatpush1.bf16.msra.mxu0 0
    %5044 = vmatprep.subr.bf16.mxu0 0
    %5045 = vmatpush1.bf16.msra.mxu0 0
    %5046 = vmatprep.subr.bf16.mxu0 0
    %5047 = vmatpush1.bf16.msra.mxu0 0
    %5048 = vmatprep.subr.bf16.mxu0 0
    %5049 = vmatpush1.bf16.msra.mxu0 0
    %5050 = vmatprep.subr.bf16.mxu0 0
    %5051 = vmatpush1.bf16.msra.mxu0 0
    %5052 = vmatprep.mubr.bf16.mxu0 0
    %5053 = vmatmul.mubr.bf16.gmra.mrb[0].mxu0 %v4997
    %v5054 = vpop.f32.mrb[0].mxu0
    %v5055 = vadd.f32 0.0, %v5054
    %v5056 = vpop.f32.mrb[0].mxu0
    %v5057 = vpop.f32.mrb[0].mxu0
    %v5058 = vadd.f32 0.0, %v5057
    %v5059 = vpop.f32.mrb[0].mxu0
    %5060 = vmatprep.mubr.bf16.mxu0 0
    %5061 = vmatmul.mubr.bf16.gmra.mrb[0].mxu0 %v5000
    %v5062 = vpop.f32.mrb[0].mxu0
    %v5063 = vadd.f32 0.0, %v5062
    %v5064 = vpop.f32.mrb[0].mxu0
    %v5065 = vpop.f32.mrb[0].mxu0
    %v5066 = vadd.f32 0.0, %v5065
    %v5067 = vpop.f32.mrb[0].mxu0
    %5068 = vmatprep.mubr.bf16.mxu0 0
    %5069 = vmatmul.mubr.bf16.gmra.mrb[0].mxu0 %v5003
    %v5070 = vpop.f32.mrb[0].mxu0
    %v5071 = vadd.f32 0.0, %v5070
    %v5072 = vpop.f32.mrb[0].mxu0
    %v5073 = vpop.f32.mrb[0].mxu0
    %v5074 = vadd.f32 0.0, %v5073
    %v5075 = vpop.f32.mrb[0].mxu0
    %5076 = vmatprep.mubr.bf16.mxu0 0
    %5077 = vmatmul.mubr.bf16.gmra.mrb[0].mxu0 %v5006
    %v5078 = vpop.f32.mrb[0].mxu0
    %v5079 = vadd.f32 0.0, %v5078
    %v5080 = vpop.f32.mrb[0].mxu0
    %v5081 = vpop.f32.mrb[0].mxu0
    %v5082 = vadd.f32 0.0, %v5081
    %v5083 = vpop.f32.mrb[0].mxu0
    %5084 = vmatprep.mubr.bf16.mxu0 0
    %5085 = vmatmul.mubr.bf16.gmra.mrb[0].mxu0 %v5009
    %v5086 = vpop.f32.mrb[0].mxu0
    %v5087 = vadd.f32 0.0, %v5086
    %v5088 = vpop.f32.mrb[0].mxu0
    %v5089 = vpop.f32.mrb[0].mxu0
    %v5090 = vadd.f32 0.0, %v5089
    %v5091 = vpop.f32.mrb[0].mxu0
    %5092 = vmatprep.mubr.bf16.mxu0 0
    %5093 = vmatmul.mubr.bf16.gmra.mrb[0].mxu0 %v5012
    %v5094 = vpop.f32.mrb[0].mxu0
    %v5095 = vadd.f32 0.0, %v5094
    %v5096 = vpop.f32.mrb[0].mxu0
    %v5097 = vpop.f32.mrb[0].mxu0
    %v5098 = vadd.f32 0.0, %v5097
    %v5099 = vpop.f32.mrb[0].mxu0
    %5100 = vmatprep.mubr.bf16.mxu0 0
    %5101 = vmatmul.mubr.bf16.gmra.mrb[0].mxu0 %v5015
    %v5102 = vpop.f32.mrb[0].mxu0
    %v5103 = vadd.f32 0.0, %v5102
    %v5104 = vpop.f32.mrb[0].mxu0
    %v5105 = vpop.f32.mrb[0].mxu0
    %v5106 = vadd.f32 0.0, %v5105
    %v5107 = vpop.f32.mrb[0].mxu0
    %5108 = vmatprep.mubr.bf16.mxu0 0
    %5109 = vmatmul.mubr.bf16.gmra.mrb[0].mxu0 %v5018
    %v5110 = vpop.f32.mrb[0].mxu0
    %v5111 = vadd.f32 0.0, %v5110
    %v5112 = vpop.f32.mrb[0].mxu0
    %v5113 = vpop.f32.mrb[0].mxu0
    %v5114 = vadd.f32 0.0, %v5113
    %v5115 = vpop.f32.mrb[0].mxu0
    %5116 = vdwg.mxu0
    %v5117 = vadd.f32 %v4923, %v5055
    %v5118 = vadd.f32 %v4924, %v5058
    %v5119 = vadd.f32 %v4925, %v5063
    %v5120 = vadd.f32 %v4926, %v5066
    %v5121 = vadd.f32 %v4927, %v5071
    %v5122 = vadd.f32 %v4928, %v5074
    %v5123 = vadd.f32 %v4929, %v5079
    %v5124 = vadd.f32 %v4930, %v5082
    %v5125 = vadd.f32 %v4931, %v5087
    %v5126 = vadd.f32 %v4932, %v5090
    %v5127 = vadd.f32 %v4933, %v5095
    %v5128 = vadd.f32 %v4934, %v5098
    %v5129 = vadd.f32 %v4935, %v5103
    %v5130 = vadd.f32 %v4936, %v5106
    %v5131 = vadd.f32 %v4937, %v5111
    %v5132 = vadd.f32 %v4938, %v5114
    %v5133 = vld [vmem:[#allocation13] sm:$0x1]
    %v5135 = vlaneseq
    %v5136 = vshrl.u32 %v5135, 7
    %v5137 = vsub.s32 0, %v5136
    %v5138 = vrot.slane %v5133, %v5137
    %v5140 = vadd.f32 %v5117, %v5138
    %v5141 = vadd.f32 %v5118, %v5138
    %v5142 = vadd.f32 %v5119, %v5138
    %v5143 = vadd.f32 %v5120, %v5138
    %v5144 = vadd.f32 %v5121, %v5138
    %v5145 = vadd.f32 %v5122, %v5138
    %v5146 = vadd.f32 %v5123, %v5138
    %v5147 = vadd.f32 %v5124, %v5138
    %v5148 = vadd.f32 %v5125, %v5138
    %v5149 = vadd.f32 %v5126, %v5138
    %v5150 = vadd.f32 %v5127, %v5138
    %v5151 = vadd.f32 %v5128, %v5138
    %v5152 = vadd.f32 %v5129, %v5138
    %v5153 = vadd.f32 %v5130, %v5138
    %v5154 = vadd.f32 %v5131, %v5138
    %v5155 = vadd.f32 %v5132, %v5138
    %v5156 = vmax.f32 %v5140, 0.0
    %v5157 = vmax.f32 %v5141, 0.0
    %v5158 = vmax.f32 %v5142, 0.0
    %v5159 = vmax.f32 %v5143, 0.0
    %v5160 = vmax.f32 %v5144, 0.0
    %v5161 = vmax.f32 %v5145, 0.0
    %v5162 = vmax.f32 %v5146, 0.0
    %v5163 = vmax.f32 %v5147, 0.0
    %v5164 = vmax.f32 %v5148, 0.0
    %v5165 = vmax.f32 %v5149, 0.0
    %v5166 = vmax.f32 %v5150, 0.0
    %v5167 = vmax.f32 %v5151, 0.0
    %v5168 = vmax.f32 %v5152, 0.0
    %v5169 = vmax.f32 %v5153, 0.0
    %v5170 = vmax.f32 %v5154, 0.0
    %v5171 = vmax.f32 %v5155, 0.0
    %v5188 = vcombine.low %v5156, %v5164
    %v5189 = vcombine.high %v5156, %v5164
    %v5191 = vunpack.c.l.s4 1966171168
    %v5192 = vunpack.c.0.s8 %v5191
    %v5193 = vlaneseq
    %v5194 = vshrl.u32 %v5193, 7
    %v5195 = vsub.s32 %v5192, %v5194
    %v5196 = vrot.slane %v5188, %v5195
    %v5198 = vunpack.c.l.s4 1966171168
    %v5199 = vunpack.c.0.s8 %v5198
    %v5200 = vlaneseq
    %v5201 = vshrl.u32 %v5200, 7
    %v5202 = vsub.s32 %v5199, %v5201
    %v5203 = vrot.slane %v5189, %v5202
    %v5204 = vcombine.high %v5196, %v5196
    %v5205 = vcombine.high %v5203, %v5203
    %v5207 = vunpack.c.l.s4 1966171168
    %v5208 = vunpack.c.0.s8 %v5207
    %v5209 = vlaneseq
    %v5210 = vshrl.u32 %v5209, 7
    %v5211 = vsub.s32 %v5208, %v5210
    %v5212 = vrot.slane %v5196, %v5211
    %v5214 = vunpack.c.l.s4 1966171168
    %v5215 = vunpack.c.0.s8 %v5214
    %v5216 = vlaneseq
    %v5217 = vshrl.u32 %v5216, 7
    %v5218 = vsub.s32 %v5215, %v5217
    %v5219 = vrot.slane %v5203, %v5218
    %v5221 = vunpack.c.l.s4 1966171168
    %v5222 = vunpack.c.0.s8 %v5221
    %v5223 = vlaneseq
    %v5224 = vshrl.u32 %v5223, 7
    %v5225 = vsub.s32 %v5222, %v5224
    %v5226 = vrot.slane %v5204, %v5225
    %v5228 = vunpack.c.l.s4 1966171168
    %v5229 = vunpack.c.0.s8 %v5228
    %v5230 = vlaneseq
    %v5231 = vshrl.u32 %v5230, 7
    %v5232 = vsub.s32 %v5229, %v5231
    %v5233 = vrot.slane %v5205, %v5232
    %v5234 = vcombine.high %v5212, %v5212
    %v5235 = vcombine.high %v5219, %v5219
    %v5236 = vcombine.high %v5226, %v5226
    %v5237 = vcombine.high %v5233, %v5233
    %v5238 = vcombine.low %v5157, %v5165
    %v5239 = vcombine.high %v5157, %v5165
    %v5241 = vunpack.c.l.s4 1966171168
    %v5242 = vunpack.c.0.s8 %v5241
    %v5243 = vlaneseq
    %v5244 = vshrl.u32 %v5243, 7
    %v5245 = vsub.s32 %v5242, %v5244
    %v5246 = vrot.slane %v5238, %v5245
    %v5248 = vunpack.c.l.s4 1966171168
    %v5249 = vunpack.c.0.s8 %v5248
    %v5250 = vlaneseq
    %v5251 = vshrl.u32 %v5250, 7
    %v5252 = vsub.s32 %v5249, %v5251
    %v5253 = vrot.slane %v5239, %v5252
    %v5254 = vcombine.high %v5246, %v5246
    %v5255 = vcombine.high %v5253, %v5253
    %v5257 = vunpack.c.l.s4 1966171168
    %v5258 = vunpack.c.0.s8 %v5257
    %v5259 = vlaneseq
    %v5260 = vshrl.u32 %v5259, 7
    %v5261 = vsub.s32 %v5258, %v5260
    %v5262 = vrot.slane %v5246, %v5261
    %v5264 = vunpack.c.l.s4 1966171168
    %v5265 = vunpack.c.0.s8 %v5264
    %v5266 = vlaneseq
    %v5267 = vshrl.u32 %v5266, 7
    %v5268 = vsub.s32 %v5265, %v5267
    %v5269 = vrot.slane %v5253, %v5268
    %v5271 = vunpack.c.l.s4 1966171168
    %v5272 = vunpack.c.0.s8 %v5271
    %v5273 = vlaneseq
    %v5274 = vshrl.u32 %v5273, 7
    %v5275 = vsub.s32 %v5272, %v5274
    %v5276 = vrot.slane %v5254, %v5275
    %v5278 = vunpack.c.l.s4 1966171168
    %v5279 = vunpack.c.0.s8 %v5278
    %v5280 = vlaneseq
    %v5281 = vshrl.u32 %v5280, 7
    %v5282 = vsub.s32 %v5279, %v5281
    %v5283 = vrot.slane %v5255, %v5282
    %v5284 = vcombine.high %v5262, %v5262
    %v5285 = vcombine.high %v5269, %v5269
    %v5286 = vcombine.high %v5276, %v5276
    %v5287 = vcombine.high %v5283, %v5283
    %v5288 = vcombine.low %v5158, %v5166
    %v5289 = vcombine.high %v5158, %v5166
    %v5291 = vunpack.c.l.s4 1966171168
    %v5292 = vunpack.c.0.s8 %v5291
    %v5293 = vlaneseq
    %v5294 = vshrl.u32 %v5293, 7
    %v5295 = vsub.s32 %v5292, %v5294
    %v5296 = vrot.slane %v5288, %v5295
    %v5298 = vunpack.c.l.s4 1966171168
    %v5299 = vunpack.c.0.s8 %v5298
    %v5300 = vlaneseq
    %v5301 = vshrl.u32 %v5300, 7
    %v5302 = vsub.s32 %v5299, %v5301
    %v5303 = vrot.slane %v5289, %v5302
    %v5304 = vcombine.high %v5296, %v5296
    %v5305 = vcombine.high %v5303, %v5303
    %v5307 = vunpack.c.l.s4 1966171168
    %v5308 = vunpack.c.0.s8 %v5307
    %v5309 = vlaneseq
    %v5310 = vshrl.u32 %v5309, 7
    %v5311 = vsub.s32 %v5308, %v5310
    %v5312 = vrot.slane %v5296, %v5311
    %v5314 = vunpack.c.l.s4 1966171168
    %v5315 = vunpack.c.0.s8 %v5314
    %v5316 = vlaneseq
    %v5317 = vshrl.u32 %v5316, 7
    %v5318 = vsub.s32 %v5315, %v5317
    %v5319 = vrot.slane %v5303, %v5318
    %v5321 = vunpack.c.l.s4 1966171168
    %v5322 = vunpack.c.0.s8 %v5321
    %v5323 = vlaneseq
    %v5324 = vshrl.u32 %v5323, 7
    %v5325 = vsub.s32 %v5322, %v5324
    %v5326 = vrot.slane %v5304, %v5325
    %v5328 = vunpack.c.l.s4 1966171168
    %v5329 = vunpack.c.0.s8 %v5328
    %v5330 = vlaneseq
    %v5331 = vshrl.u32 %v5330, 7
    %v5332 = vsub.s32 %v5329, %v5331
    %v5333 = vrot.slane %v5305, %v5332
    %v5334 = vcombine.high %v5312, %v5312
    %v5335 = vcombine.high %v5319, %v5319
    %v5336 = vcombine.high %v5326, %v5326
    %v5337 = vcombine.high %v5333, %v5333
    %v5338 = vcombine.low %v5159, %v5167
    %v5339 = vcombine.high %v5159, %v5167
    %v5341 = vunpack.c.l.s4 1966171168
    %v5342 = vunpack.c.0.s8 %v5341
    %v5343 = vlaneseq
    %v5344 = vshrl.u32 %v5343, 7
    %v5345 = vsub.s32 %v5342, %v5344
    %v5346 = vrot.slane %v5338, %v5345
    %v5348 = vunpack.c.l.s4 1966171168
    %v5349 = vunpack.c.0.s8 %v5348
    %v5350 = vlaneseq
    %v5351 = vshrl.u32 %v5350, 7
    %v5352 = vsub.s32 %v5349, %v5351
    %v5353 = vrot.slane %v5339, %v5352
    %v5354 = vcombine.high %v5346, %v5346
    %v5355 = vcombine.high %v5353, %v5353
    %v5357 = vunpack.c.l.s4 1966171168
    %v5358 = vunpack.c.0.s8 %v5357
    %v5359 = vlaneseq
    %v5360 = vshrl.u32 %v5359, 7
    %v5361 = vsub.s32 %v5358, %v5360
    %v5362 = vrot.slane %v5346, %v5361
    %v5364 = vunpack.c.l.s4 1966171168
    %v5365 = vunpack.c.0.s8 %v5364
    %v5366 = vlaneseq
    %v5367 = vshrl.u32 %v5366, 7
    %v5368 = vsub.s32 %v5365, %v5367
    %v5369 = vrot.slane %v5353, %v5368
    %v5371 = vunpack.c.l.s4 1966171168
    %v5372 = vunpack.c.0.s8 %v5371
    %v5373 = vlaneseq
    %v5374 = vshrl.u32 %v5373, 7
    %v5375 = vsub.s32 %v5372, %v5374
    %v5376 = vrot.slane %v5354, %v5375
    %v5378 = vunpack.c.l.s4 1966171168
    %v5379 = vunpack.c.0.s8 %v5378
    %v5380 = vlaneseq
    %v5381 = vshrl.u32 %v5380, 7
    %v5382 = vsub.s32 %v5379, %v5381
    %v5383 = vrot.slane %v5355, %v5382
    %v5384 = vcombine.high %v5362, %v5362
    %v5385 = vcombine.high %v5369, %v5369
    %v5386 = vcombine.high %v5376, %v5376
    %v5387 = vcombine.high %v5383, %v5383
    %v5388 = vcombine.low %v5160, %v5168
    %v5389 = vcombine.high %v5160, %v5168
    %v5391 = vunpack.c.l.s4 1966171168
    %v5392 = vunpack.c.0.s8 %v5391
    %v5393 = vlaneseq
    %v5394 = vshrl.u32 %v5393, 7
    %v5395 = vsub.s32 %v5392, %v5394
    %v5396 = vrot.slane %v5388, %v5395
    %v5398 = vunpack.c.l.s4 1966171168
    %v5399 = vunpack.c.0.s8 %v5398
    %v5400 = vlaneseq
    %v5401 = vshrl.u32 %v5400, 7
    %v5402 = vsub.s32 %v5399, %v5401
    %v5403 = vrot.slane %v5389, %v5402
    %v5404 = vcombine.high %v5396, %v5396
    %v5405 = vcombine.high %v5403, %v5403
    %v5407 = vunpack.c.l.s4 1966171168
    %v5408 = vunpack.c.0.s8 %v5407
    %v5409 = vlaneseq
    %v5410 = vshrl.u32 %v5409, 7
    %v5411 = vsub.s32 %v5408, %v5410
    %v5412 = vrot.slane %v5396, %v5411
    %v5414 = vunpack.c.l.s4 1966171168
    %v5415 = vunpack.c.0.s8 %v5414
    %v5416 = vlaneseq
    %v5417 = vshrl.u32 %v5416, 7
    %v5418 = vsub.s32 %v5415, %v5417
    %v5419 = vrot.slane %v5403, %v5418
    %v5421 = vunpack.c.l.s4 1966171168
    %v5422 = vunpack.c.0.s8 %v5421
    %v5423 = vlaneseq
    %v5424 = vshrl.u32 %v5423, 7
    %v5425 = vsub.s32 %v5422, %v5424
    %v5426 = vrot.slane %v5404, %v5425
    %v5428 = vunpack.c.l.s4 1966171168
    %v5429 = vunpack.c.0.s8 %v5428
    %v5430 = vlaneseq
    %v5431 = vshrl.u32 %v5430, 7
    %v5432 = vsub.s32 %v5429, %v5431
    %v5433 = vrot.slane %v5405, %v5432
    %v5434 = vcombine.high %v5412, %v5412
    %v5435 = vcombine.high %v5419, %v5419
    %v5436 = vcombine.high %v5426, %v5426
    %v5437 = vcombine.high %v5433, %v5433
    %v5438 = vcombine.low %v5161, %v5169
    %v5439 = vcombine.high %v5161, %v5169
    %v5441 = vunpack.c.l.s4 1966171168
    %v5442 = vunpack.c.0.s8 %v5441
    %v5443 = vlaneseq
    %v5444 = vshrl.u32 %v5443, 7
    %v5445 = vsub.s32 %v5442, %v5444
    %v5446 = vrot.slane %v5438, %v5445
    %v5448 = vunpack.c.l.s4 1966171168
    %v5449 = vunpack.c.0.s8 %v5448
    %v5450 = vlaneseq
    %v5451 = vshrl.u32 %v5450, 7
    %v5452 = vsub.s32 %v5449, %v5451
    %v5453 = vrot.slane %v5439, %v5452
    %v5454 = vcombine.high %v5446, %v5446
    %v5455 = vcombine.high %v5453, %v5453
    %v5457 = vunpack.c.l.s4 1966171168
    %v5458 = vunpack.c.0.s8 %v5457
    %v5459 = vlaneseq
    %v5460 = vshrl.u32 %v5459, 7
    %v5461 = vsub.s32 %v5458, %v5460
    %v5462 = vrot.slane %v5446, %v5461
    %v5464 = vunpack.c.l.s4 1966171168
    %v5465 = vunpack.c.0.s8 %v5464
    %v5466 = vlaneseq
    %v5467 = vshrl.u32 %v5466, 7
    %v5468 = vsub.s32 %v5465, %v5467
    %v5469 = vrot.slane %v5453, %v5468
    %v5471 = vunpack.c.l.s4 1966171168
    %v5472 = vunpack.c.0.s8 %v5471
    %v5473 = vlaneseq
    %v5474 = vshrl.u32 %v5473, 7
    %v5475 = vsub.s32 %v5472, %v5474
    %v5476 = vrot.slane %v5454, %v5475
    %v5478 = vunpack.c.l.s4 1966171168
    %v5479 = vunpack.c.0.s8 %v5478
    %v5480 = vlaneseq
    %v5481 = vshrl.u32 %v5480, 7
    %v5482 = vsub.s32 %v5479, %v5481
    %v5483 = vrot.slane %v5455, %v5482
    %v5484 = vcombine.high %v5462, %v5462
    %v5485 = vcombine.high %v5469, %v5469
    %v5486 = vcombine.high %v5476, %v5476
    %v5487 = vcombine.high %v5483, %v5483
    %v5488 = vcombine.low %v5162, %v5170
    %v5489 = vcombine.high %v5162, %v5170
    %v5491 = vunpack.c.l.s4 1966171168
    %v5492 = vunpack.c.0.s8 %v5491
    %v5493 = vlaneseq
    %v5494 = vshrl.u32 %v5493, 7
    %v5495 = vsub.s32 %v5492, %v5494
    %v5496 = vrot.slane %v5488, %v5495
    %v5498 = vunpack.c.l.s4 1966171168
    %v5499 = vunpack.c.0.s8 %v5498
    %v5500 = vlaneseq
    %v5501 = vshrl.u32 %v5500, 7
    %v5502 = vsub.s32 %v5499, %v5501
    %v5503 = vrot.slane %v5489, %v5502
    %v5504 = vcombine.high %v5496, %v5496
    %v5505 = vcombine.high %v5503, %v5503
    %v5507 = vunpack.c.l.s4 1966171168
    %v5508 = vunpack.c.0.s8 %v5507
    %v5509 = vlaneseq
    %v5510 = vshrl.u32 %v5509, 7
    %v5511 = vsub.s32 %v5508, %v5510
    %v5512 = vrot.slane %v5496, %v5511
    %v5514 = vunpack.c.l.s4 1966171168
    %v5515 = vunpack.c.0.s8 %v5514
    %v5516 = vlaneseq
    %v5517 = vshrl.u32 %v5516, 7
    %v5518 = vsub.s32 %v5515, %v5517
    %v5519 = vrot.slane %v5503, %v5518
    %v5521 = vunpack.c.l.s4 1966171168
    %v5522 = vunpack.c.0.s8 %v5521
    %v5523 = vlaneseq
    %v5524 = vshrl.u32 %v5523, 7
    %v5525 = vsub.s32 %v5522, %v5524
    %v5526 = vrot.slane %v5504, %v5525
    %v5528 = vunpack.c.l.s4 1966171168
    %v5529 = vunpack.c.0.s8 %v5528
    %v5530 = vlaneseq
    %v5531 = vshrl.u32 %v5530, 7
    %v5532 = vsub.s32 %v5529, %v5531
    %v5533 = vrot.slane %v5505, %v5532
    %v5534 = vcombine.high %v5512, %v5512
    %v5535 = vcombine.high %v5519, %v5519
    %v5536 = vcombine.high %v5526, %v5526
    %v5537 = vcombine.high %v5533, %v5533
    %v5538 = vcombine.low %v5163, %v5171
    %v5539 = vcombine.high %v5163, %v5171
    %v5541 = vunpack.c.l.s4 1966171168
    %v5542 = vunpack.c.0.s8 %v5541
    %v5543 = vlaneseq
    %v5544 = vshrl.u32 %v5543, 7
    %v5545 = vsub.s32 %v5542, %v5544
    %v5546 = vrot.slane %v5538, %v5545
    %v5548 = vunpack.c.l.s4 1966171168
    %v5549 = vunpack.c.0.s8 %v5548
    %v5550 = vlaneseq
    %v5551 = vshrl.u32 %v5550, 7
    %v5552 = vsub.s32 %v5549, %v5551
    %v5553 = vrot.slane %v5539, %v5552
    %v5554 = vcombine.high %v5546, %v5546
    %v5555 = vcombine.high %v5553, %v5553
    %v5557 = vunpack.c.l.s4 1966171168
    %v5558 = vunpack.c.0.s8 %v5557
    %v5559 = vlaneseq
    %v5560 = vshrl.u32 %v5559, 7
    %v5561 = vsub.s32 %v5558, %v5560
    %v5562 = vrot.slane %v5546, %v5561
    %v5564 = vunpack.c.l.s4 1966171168
    %v5565 = vunpack.c.0.s8 %v5564
    %v5566 = vlaneseq
    %v5567 = vshrl.u32 %v5566, 7
    %v5568 = vsub.s32 %v5565, %v5567
    %v5569 = vrot.slane %v5553, %v5568
    %v5571 = vunpack.c.l.s4 1966171168
    %v5572 = vunpack.c.0.s8 %v5571
    %v5573 = vlaneseq
    %v5574 = vshrl.u32 %v5573, 7
    %v5575 = vsub.s32 %v5572, %v5574
    %v5576 = vrot.slane %v5554, %v5575
    %v5578 = vunpack.c.l.s4 1966171168
    %v5579 = vunpack.c.0.s8 %v5578
    %v5580 = vlaneseq
    %v5581 = vshrl.u32 %v5580, 7
    %v5582 = vsub.s32 %v5579, %v5581
    %v5583 = vrot.slane %v5555, %v5582
    %v5584 = vcombine.high %v5562, %v5562
    %v5585 = vcombine.high %v5569, %v5569
    %v5586 = vcombine.high %v5576, %v5576
    %v5587 = vcombine.high %v5583, %v5583
    %v5652 = vpack.c.bf16 %v5212, %v5212
    %v5653 = vpack.c.bf16 %v5226, %v5226
    %v5654 = vpack.c.bf16 %v5234, %v5234
    %v5655 = vpack.c.bf16 %v5236, %v5236
    %v5656 = vpack.c.bf16 %v5219, %v5219
    %v5657 = vpack.c.bf16 %v5233, %v5233
    %v5658 = vpack.c.bf16 %v5235, %v5235
    %v5659 = vpack.c.bf16 %v5237, %v5237
    %v5660 = vpack.c.bf16 %v5262, %v5262
    %v5661 = vpack.c.bf16 %v5276, %v5276
    %v5662 = vpack.c.bf16 %v5284, %v5284
    %v5663 = vpack.c.bf16 %v5286, %v5286
    %v5664 = vpack.c.bf16 %v5269, %v5269
    %v5665 = vpack.c.bf16 %v5283, %v5283
    %v5666 = vpack.c.bf16 %v5285, %v5285
    %v5667 = vpack.c.bf16 %v5287, %v5287
    %v5668 = vpack.c.bf16 %v5312, %v5312
    %v5669 = vpack.c.bf16 %v5326, %v5326
    %v5670 = vpack.c.bf16 %v5334, %v5334
    %v5671 = vpack.c.bf16 %v5336, %v5336
    %v5672 = vpack.c.bf16 %v5319, %v5319
    %v5673 = vpack.c.bf16 %v5333, %v5333
    %v5674 = vpack.c.bf16 %v5335, %v5335
    %v5675 = vpack.c.bf16 %v5337, %v5337
    %v5676 = vpack.c.bf16 %v5362, %v5362
    %v5677 = vpack.c.bf16 %v5376, %v5376
    %v5678 = vpack.c.bf16 %v5384, %v5384
    %v5679 = vpack.c.bf16 %v5386, %v5386
    %v5680 = vpack.c.bf16 %v5369, %v5369
    %v5681 = vpack.c.bf16 %v5383, %v5383
    %v5682 = vpack.c.bf16 %v5385, %v5385
    %v5683 = vpack.c.bf16 %v5387, %v5387
    %v5684 = vpack.c.bf16 %v5412, %v5412
    %v5685 = vpack.c.bf16 %v5426, %v5426
    %v5686 = vpack.c.bf16 %v5434, %v5434
    %v5687 = vpack.c.bf16 %v5436, %v5436
    %v5688 = vpack.c.bf16 %v5419, %v5419
    %v5689 = vpack.c.bf16 %v5433, %v5433
    %v5690 = vpack.c.bf16 %v5435, %v5435
    %v5691 = vpack.c.bf16 %v5437, %v5437
    %v5692 = vpack.c.bf16 %v5462, %v5462
    %v5693 = vpack.c.bf16 %v5476, %v5476
    %v5694 = vpack.c.bf16 %v5484, %v5484
    %v5695 = vpack.c.bf16 %v5486, %v5486
    %v5696 = vpack.c.bf16 %v5469, %v5469
    %v5697 = vpack.c.bf16 %v5483, %v5483
    %v5698 = vpack.c.bf16 %v5485, %v5485
    %v5699 = vpack.c.bf16 %v5487, %v5487
    %v5700 = vpack.c.bf16 %v5512, %v5512
    %v5701 = vpack.c.bf16 %v5526, %v5526
    %v5702 = vpack.c.bf16 %v5534, %v5534
    %v5703 = vpack.c.bf16 %v5536, %v5536
    %v5704 = vpack.c.bf16 %v5519, %v5519
    %v5705 = vpack.c.bf16 %v5533, %v5533
    %v5706 = vpack.c.bf16 %v5535, %v5535
    %v5707 = vpack.c.bf16 %v5537, %v5537
    %v5708 = vpack.c.bf16 %v5562, %v5562
    %v5709 = vpack.c.bf16 %v5576, %v5576
    %v5710 = vpack.c.bf16 %v5584, %v5584
    %v5711 = vpack.c.bf16 %v5586, %v5586
    %v5712 = vpack.c.bf16 %v5569, %v5569
    %v5713 = vpack.c.bf16 %v5583, %v5583
    %v5714 = vpack.c.bf16 %v5585, %v5585
    %v5715 = vpack.c.bf16 %v5587, %v5587
    %v5716 = vld [vmem:[#allocation15] sm:$0xff]
    %v5717 = vld [vmem:[#allocation15 + $0x8] sm:$0xff]
    %v5718 = vld [vmem:[#allocation15 + $0x10] sm:$0xff]
    %v5719 = vld [vmem:[#allocation15 + $0x18] sm:$0xff]
    %v5720 = vld [vmem:[#allocation15 + $0x20] sm:$0xff]
    %v5721 = vld [vmem:[#allocation15 + $0x28] sm:$0xff]
    %v5722 = vld [vmem:[#allocation15 + $0x30] sm:$0xff]
    %v5723 = vld [vmem:[#allocation15 + $0x38] sm:$0xff]
    %v5724 = vld [vmem:[#allocation15 + $0x40] sm:$0xff]
    %v5725 = vld [vmem:[#allocation15 + $0x48] sm:$0xff]
    %v5726 = vld [vmem:[#allocation15 + $0x50] sm:$0xff]
    %v5727 = vld [vmem:[#allocation15 + $0x58] sm:$0xff]
    %v5728 = vld [vmem:[#allocation15 + $0x60] sm:$0xff]
    %v5729 = vld [vmem:[#allocation15 + $0x68] sm:$0xff]
    %v5730 = vld [vmem:[#allocation15 + $0x70] sm:$0xff]
    %v5731 = vld [vmem:[#allocation15 + $0x78] sm:$0xff]
    %v5732 = vld [vmem:[#allocation15 + $0x80] sm:$0xff]
    %v5733 = vld [vmem:[#allocation15 + $0x88] sm:$0xff]
    %v5734 = vld [vmem:[#allocation15 + $0x90] sm:$0xff]
    %v5735 = vld [vmem:[#allocation15 + $0x98] sm:$0xff]
    %v5736 = vld [vmem:[#allocation15 + $0xa0] sm:$0xff]
    %v5737 = vld [vmem:[#allocation15 + $0xa8] sm:$0xff]
    %v5738 = vld [vmem:[#allocation15 + $0xb0] sm:$0xff]
    %v5739 = vld [vmem:[#allocation15 + $0xb8] sm:$0xff]
    %v5740 = vld [vmem:[#allocation15 + $0xc0] sm:$0xff]
    %v5741 = vld [vmem:[#allocation15 + $0xc8] sm:$0xff]
    %v5742 = vld [vmem:[#allocation15 + $0xd0] sm:$0xff]
    %v5743 = vld [vmem:[#allocation15 + $0xd8] sm:$0xff]
    %v5744 = vld [vmem:[#allocation15 + $0xe0] sm:$0xff]
    %v5745 = vld [vmem:[#allocation15 + $0xe8] sm:$0xff]
    %v5746 = vld [vmem:[#allocation15 + $0xf0] sm:$0xff]
    %v5747 = vld [vmem:[#allocation15 + $0xf8] sm:$0xff]
    %v5748 = vld [vmem:[#allocation15 + $0x100] sm:$0xff]
    %v5749 = vld [vmem:[#allocation15 + $0x108] sm:$0xff]
    %v5750 = vld [vmem:[#allocation15 + $0x110] sm:$0xff]
    %v5751 = vld [vmem:[#allocation15 + $0x118] sm:$0xff]
    %v5752 = vld [vmem:[#allocation15 + $0x120] sm:$0xff]
    %v5753 = vld [vmem:[#allocation15 + $0x128] sm:$0xff]
    %v5754 = vld [vmem:[#allocation15 + $0x130] sm:$0xff]
    %v5755 = vld [vmem:[#allocation15 + $0x138] sm:$0xff]
    %v5756 = vld [vmem:[#allocation15 + $0x140] sm:$0xff]
    %v5757 = vld [vmem:[#allocation15 + $0x148] sm:$0xff]
    %v5758 = vld [vmem:[#allocation15 + $0x150] sm:$0xff]
    %v5759 = vld [vmem:[#allocation15 + $0x158] sm:$0xff]
    %v5760 = vld [vmem:[#allocation15 + $0x160] sm:$0xff]
    %v5761 = vld [vmem:[#allocation15 + $0x168] sm:$0xff]
    %v5762 = vld [vmem:[#allocation15 + $0x170] sm:$0xff]
    %v5763 = vld [vmem:[#allocation15 + $0x178] sm:$0xff]
    %v5764 = vld [vmem:[#allocation15 + $0x180] sm:$0xff]
    %v5765 = vld [vmem:[#allocation15 + $0x188] sm:$0xff]
    %v5766 = vld [vmem:[#allocation15 + $0x190] sm:$0xff]
    %v5767 = vld [vmem:[#allocation15 + $0x198] sm:$0xff]
    %v5768 = vld [vmem:[#allocation15 + $0x1a0] sm:$0xff]
    %v5769 = vld [vmem:[#allocation15 + $0x1a8] sm:$0xff]
    %v5770 = vld [vmem:[#allocation15 + $0x1b0] sm:$0xff]
    %v5771 = vld [vmem:[#allocation15 + $0x1b8] sm:$0xff]
    %v5772 = vld [vmem:[#allocation15 + $0x1c0] sm:$0xff]
    %v5773 = vld [vmem:[#allocation15 + $0x1c8] sm:$0xff]
    %v5774 = vld [vmem:[#allocation15 + $0x1d0] sm:$0xff]
    %v5775 = vld [vmem:[#allocation15 + $0x1d8] sm:$0xff]
    %v5776 = vld [vmem:[#allocation15 + $0x1e0] sm:$0xff]
    %v5777 = vld [vmem:[#allocation15 + $0x1e8] sm:$0xff]
    %v5778 = vld [vmem:[#allocation15 + $0x1f0] sm:$0xff]
    %v5779 = vld [vmem:[#allocation15 + $0x1f8] sm:$0xff]
    %v5780 = vld [vmem:[#allocation15 + $0x200] sm:$0xff]
    %v5781 = vld [vmem:[#allocation15 + $0x208] sm:$0xff]
    %v5782 = vld [vmem:[#allocation15 + $0x210] sm:$0xff]
    %v5783 = vld [vmem:[#allocation15 + $0x218] sm:$0xff]
    %v5784 = vld [vmem:[#allocation15 + $0x220] sm:$0xff]
    %v5785 = vld [vmem:[#allocation15 + $0x228] sm:$0xff]
    %v5786 = vld [vmem:[#allocation15 + $0x230] sm:$0xff]
    %v5787 = vld [vmem:[#allocation15 + $0x238] sm:$0xff]
    %v5788 = vld [vmem:[#allocation15 + $0x240] sm:$0xff]
    %v5789 = vld [vmem:[#allocation15 + $0x248] sm:$0xff]
    %v5790 = vld [vmem:[#allocation15 + $0x250] sm:$0xff]
    %v5791 = vld [vmem:[#allocation15 + $0x258] sm:$0xff]
    %v5792 = vld [vmem:[#allocation15 + $0x260] sm:$0xff]
    %v5793 = vld [vmem:[#allocation15 + $0x268] sm:$0xff]
    %v5794 = vld [vmem:[#allocation15 + $0x270] sm:$0xff]
    %v5795 = vld [vmem:[#allocation15 + $0x278] sm:$0xff]
    %v5796 = vld [vmem:[#allocation15 + $0x280] sm:$0xff]
    %v5797 = vld [vmem:[#allocation15 + $0x288] sm:$0xff]
    %v5798 = vld [vmem:[#allocation15 + $0x290] sm:$0xff]
    %v5799 = vld [vmem:[#allocation15 + $0x298] sm:$0xff]
    %v5800 = vld [vmem:[#allocation15 + $0x2a0] sm:$0xff]
    %v5801 = vld [vmem:[#allocation15 + $0x2a8] sm:$0xff]
    %v5802 = vld [vmem:[#allocation15 + $0x2b0] sm:$0xff]
    %v5803 = vld [vmem:[#allocation15 + $0x2b8] sm:$0xff]
    %v5804 = vld [vmem:[#allocation15 + $0x2c0] sm:$0xff]
    %v5805 = vld [vmem:[#allocation15 + $0x2c8] sm:$0xff]
    %v5806 = vld [vmem:[#allocation15 + $0x2d0] sm:$0xff]
    %v5807 = vld [vmem:[#allocation15 + $0x2d8] sm:$0xff]
    %v5808 = vld [vmem:[#allocation15 + $0x2e0] sm:$0xff]
    %v5809 = vld [vmem:[#allocation15 + $0x2e8] sm:$0xff]
    %v5810 = vld [vmem:[#allocation15 + $0x2f0] sm:$0xff]
    %v5811 = vld [vmem:[#allocation15 + $0x2f8] sm:$0xff]
    %v5812 = vld [vmem:[#allocation15 + $0x300] sm:$0xff]
    %v5813 = vld [vmem:[#allocation15 + $0x308] sm:$0xff]
    %v5814 = vld [vmem:[#allocation15 + $0x310] sm:$0xff]
    %v5815 = vld [vmem:[#allocation15 + $0x318] sm:$0xff]
    %v5816 = vld [vmem:[#allocation15 + $0x320] sm:$0xff]
    %v5817 = vld [vmem:[#allocation15 + $0x328] sm:$0xff]
    %v5818 = vld [vmem:[#allocation15 + $0x330] sm:$0xff]
    %v5819 = vld [vmem:[#allocation15 + $0x338] sm:$0xff]
    %v5820 = vld [vmem:[#allocation15 + $0x340] sm:$0xff]
    %v5821 = vld [vmem:[#allocation15 + $0x348] sm:$0xff]
    %v5822 = vld [vmem:[#allocation15 + $0x350] sm:$0xff]
    %v5823 = vld [vmem:[#allocation15 + $0x358] sm:$0xff]
    %v5824 = vld [vmem:[#allocation15 + $0x360] sm:$0xff]
    %v5825 = vld [vmem:[#allocation15 + $0x368] sm:$0xff]
    %v5826 = vld [vmem:[#allocation15 + $0x370] sm:$0xff]
    %v5827 = vld [vmem:[#allocation15 + $0x378] sm:$0xff]
    %v5828 = vld [vmem:[#allocation15 + $0x380] sm:$0xff]
    %v5829 = vld [vmem:[#allocation15 + $0x388] sm:$0xff]
    %v5830 = vld [vmem:[#allocation15 + $0x390] sm:$0xff]
    %v5831 = vld [vmem:[#allocation15 + $0x398] sm:$0xff]
    %v5832 = vld [vmem:[#allocation15 + $0x3a0] sm:$0xff]
    %v5833 = vld [vmem:[#allocation15 + $0x3a8] sm:$0xff]
    %v5834 = vld [vmem:[#allocation15 + $0x3b0] sm:$0xff]
    %v5835 = vld [vmem:[#allocation15 + $0x3b8] sm:$0xff]
    %v5836 = vld [vmem:[#allocation15 + $0x3c0] sm:$0xff]
    %v5837 = vld [vmem:[#allocation15 + $0x3c8] sm:$0xff]
    %v5838 = vld [vmem:[#allocation15 + $0x3d0] sm:$0xff]
    %v5839 = vld [vmem:[#allocation15 + $0x3d8] sm:$0xff]
    %v5840 = vld [vmem:[#allocation15 + $0x3e0] sm:$0xff]
    %v5841 = vld [vmem:[#allocation15 + $0x3e8] sm:$0xff]
    %v5842 = vld [vmem:[#allocation15 + $0x3f0] sm:$0xff]
    %v5843 = vld [vmem:[#allocation15 + $0x3f8] sm:$0xff]
    %v5844 = vld [vmem:[#allocation15 + $0x400] sm:$0xff]
    %v5845 = vld [vmem:[#allocation15 + $0x408] sm:$0xff]
    %v5846 = vld [vmem:[#allocation15 + $0x410] sm:$0xff]
    %v5847 = vld [vmem:[#allocation15 + $0x418] sm:$0xff]
    %v5848 = vld [vmem:[#allocation15 + $0x420] sm:$0xff]
    %v5849 = vld [vmem:[#allocation15 + $0x428] sm:$0xff]
    %v5850 = vld [vmem:[#allocation15 + $0x430] sm:$0xff]
    %v5851 = vld [vmem:[#allocation15 + $0x438] sm:$0xff]
    %v5852 = vld [vmem:[#allocation15 + $0x440] sm:$0xff]
    %v5853 = vld [vmem:[#allocation15 + $0x448] sm:$0xff]
    %v5854 = vld [vmem:[#allocation15 + $0x450] sm:$0xff]
    %v5855 = vld [vmem:[#allocation15 + $0x458] sm:$0xff]
    %v5856 = vld [vmem:[#allocation15 + $0x460] sm:$0xff]
    %v5857 = vld [vmem:[#allocation15 + $0x468] sm:$0xff]
    %v5858 = vld [vmem:[#allocation15 + $0x470] sm:$0xff]
    %v5859 = vld [vmem:[#allocation15 + $0x478] sm:$0xff]
    %v5860 = vld [vmem:[#allocation15 + $0x480] sm:$0xff]
    %v5861 = vld [vmem:[#allocation15 + $0x488] sm:$0xff]
    %v5862 = vld [vmem:[#allocation15 + $0x490] sm:$0xff]
    %v5863 = vld [vmem:[#allocation15 + $0x498] sm:$0xff]
    %v5864 = vld [vmem:[#allocation15 + $0x4a0] sm:$0xff]
    %v5865 = vld [vmem:[#allocation15 + $0x4a8] sm:$0xff]
    %v5866 = vld [vmem:[#allocation15 + $0x4b0] sm:$0xff]
    %v5867 = vld [vmem:[#allocation15 + $0x4b8] sm:$0xff]
    %v5868 = vld [vmem:[#allocation15 + $0x4c0] sm:$0xff]
    %v5869 = vld [vmem:[#allocation15 + $0x4c8] sm:$0xff]
    %v5870 = vld [vmem:[#allocation15 + $0x4d0] sm:$0xff]
    %v5871 = vld [vmem:[#allocation15 + $0x4d8] sm:$0xff]
    %v5872 = vld [vmem:[#allocation15 + $0x4e0] sm:$0xff]
    %v5873 = vld [vmem:[#allocation15 + $0x4e8] sm:$0xff]
    %v5874 = vld [vmem:[#allocation15 + $0x4f0] sm:$0xff]
    %v5875 = vld [vmem:[#allocation15 + $0x4f8] sm:$0xff]
    %v5876 = vld [vmem:[#allocation15 + $0x500] sm:$0xff]
    %v5877 = vld [vmem:[#allocation15 + $0x508] sm:$0xff]
    %v5878 = vld [vmem:[#allocation15 + $0x510] sm:$0xff]
    %v5879 = vld [vmem:[#allocation15 + $0x518] sm:$0xff]
    %v5880 = vld [vmem:[#allocation15 + $0x520] sm:$0xff]
    %v5881 = vld [vmem:[#allocation15 + $0x528] sm:$0xff]
    %v5882 = vld [vmem:[#allocation15 + $0x530] sm:$0xff]
    %v5883 = vld [vmem:[#allocation15 + $0x538] sm:$0xff]
    %v5884 = vld [vmem:[#allocation15 + $0x540] sm:$0xff]
    %v5885 = vld [vmem:[#allocation15 + $0x548] sm:$0xff]
    %v5886 = vld [vmem:[#allocation15 + $0x550] sm:$0xff]
    %v5887 = vld [vmem:[#allocation15 + $0x558] sm:$0xff]
    %v5888 = vld [vmem:[#allocation15 + $0x560] sm:$0xff]
    %v5889 = vld [vmem:[#allocation15 + $0x568] sm:$0xff]
    %v5890 = vld [vmem:[#allocation15 + $0x570] sm:$0xff]
    %v5891 = vld [vmem:[#allocation15 + $0x578] sm:$0xff]
    %v5892 = vld [vmem:[#allocation15 + $0x580] sm:$0xff]
    %v5893 = vld [vmem:[#allocation15 + $0x588] sm:$0xff]
    %v5894 = vld [vmem:[#allocation15 + $0x590] sm:$0xff]
    %v5895 = vld [vmem:[#allocation15 + $0x598] sm:$0xff]
    %v5896 = vld [vmem:[#allocation15 + $0x5a0] sm:$0xff]
    %v5897 = vld [vmem:[#allocation15 + $0x5a8] sm:$0xff]
    %v5898 = vld [vmem:[#allocation15 + $0x5b0] sm:$0xff]
    %v5899 = vld [vmem:[#allocation15 + $0x5b8] sm:$0xff]
    %v5900 = vld [vmem:[#allocation15 + $0x5c0] sm:$0xff]
    %v5901 = vld [vmem:[#allocation15 + $0x5c8] sm:$0xff]
    %v5902 = vld [vmem:[#allocation15 + $0x5d0] sm:$0xff]
    %v5903 = vld [vmem:[#allocation15 + $0x5d8] sm:$0xff]
    %v5904 = vld [vmem:[#allocation15 + $0x5e0] sm:$0xff]
    %v5905 = vld [vmem:[#allocation15 + $0x5e8] sm:$0xff]
    %v5906 = vld [vmem:[#allocation15 + $0x5f0] sm:$0xff]
    %v5907 = vld [vmem:[#allocation15 + $0x5f8] sm:$0xff]
    %v5908 = vld [vmem:[#allocation15 + $0x600] sm:$0xff]
    %v5909 = vld [vmem:[#allocation15 + $0x608] sm:$0xff]
    %v5910 = vld [vmem:[#allocation15 + $0x610] sm:$0xff]
    %v5911 = vld [vmem:[#allocation15 + $0x618] sm:$0xff]
    %v5912 = vld [vmem:[#allocation15 + $0x620] sm:$0xff]
    %v5913 = vld [vmem:[#allocation15 + $0x628] sm:$0xff]
    %v5914 = vld [vmem:[#allocation15 + $0x630] sm:$0xff]
    %v5915 = vld [vmem:[#allocation15 + $0x638] sm:$0xff]
    %v5916 = vld [vmem:[#allocation15 + $0x640] sm:$0xff]
    %v5917 = vld [vmem:[#allocation15 + $0x648] sm:$0xff]
    %v5918 = vld [vmem:[#allocation15 + $0x650] sm:$0xff]
    %v5919 = vld [vmem:[#allocation15 + $0x658] sm:$0xff]
    %v5920 = vld [vmem:[#allocation15 + $0x660] sm:$0xff]
    %v5921 = vld [vmem:[#allocation15 + $0x668] sm:$0xff]
    %v5922 = vld [vmem:[#allocation15 + $0x670] sm:$0xff]
    %v5923 = vld [vmem:[#allocation15 + $0x678] sm:$0xff]
    %v5924 = vld [vmem:[#allocation15 + $0x680] sm:$0xff]
    %v5925 = vld [vmem:[#allocation15 + $0x688] sm:$0xff]
    %v5926 = vld [vmem:[#allocation15 + $0x690] sm:$0xff]
    %v5927 = vld [vmem:[#allocation15 + $0x698] sm:$0xff]
    %v5928 = vld [vmem:[#allocation15 + $0x6a0] sm:$0xff]
    %v5929 = vld [vmem:[#allocation15 + $0x6a8] sm:$0xff]
    %v5930 = vld [vmem:[#allocation15 + $0x6b0] sm:$0xff]
    %v5931 = vld [vmem:[#allocation15 + $0x6b8] sm:$0xff]
    %v5932 = vld [vmem:[#allocation15 + $0x6c0] sm:$0xff]
    %v5933 = vld [vmem:[#allocation15 + $0x6c8] sm:$0xff]
    %v5934 = vld [vmem:[#allocation15 + $0x6d0] sm:$0xff]
    %v5935 = vld [vmem:[#allocation15 + $0x6d8] sm:$0xff]
    %v5936 = vld [vmem:[#allocation15 + $0x6e0] sm:$0xff]
    %v5937 = vld [vmem:[#allocation15 + $0x6e8] sm:$0xff]
    %v5938 = vld [vmem:[#allocation15 + $0x6f0] sm:$0xff]
    %v5939 = vld [vmem:[#allocation15 + $0x6f8] sm:$0xff]
    %v5940 = vld [vmem:[#allocation15 + $0x700] sm:$0xff]
    %v5941 = vld [vmem:[#allocation15 + $0x708] sm:$0xff]
    %v5942 = vld [vmem:[#allocation15 + $0x710] sm:$0xff]
    %v5943 = vld [vmem:[#allocation15 + $0x718] sm:$0xff]
    %v5944 = vld [vmem:[#allocation15 + $0x720] sm:$0xff]
    %v5945 = vld [vmem:[#allocation15 + $0x728] sm:$0xff]
    %v5946 = vld [vmem:[#allocation15 + $0x730] sm:$0xff]
    %v5947 = vld [vmem:[#allocation15 + $0x738] sm:$0xff]
    %v5948 = vld [vmem:[#allocation15 + $0x740] sm:$0xff]
    %v5949 = vld [vmem:[#allocation15 + $0x748] sm:$0xff]
    %v5950 = vld [vmem:[#allocation15 + $0x750] sm:$0xff]
    %v5951 = vld [vmem:[#allocation15 + $0x758] sm:$0xff]
    %v5952 = vld [vmem:[#allocation15 + $0x760] sm:$0xff]
    %v5953 = vld [vmem:[#allocation15 + $0x768] sm:$0xff]
    %v5954 = vld [vmem:[#allocation15 + $0x770] sm:$0xff]
    %v5955 = vld [vmem:[#allocation15 + $0x778] sm:$0xff]
    %v5956 = vld [vmem:[#allocation15 + $0x780] sm:$0xff]
    %v5957 = vld [vmem:[#allocation15 + $0x788] sm:$0xff]
    %v5958 = vld [vmem:[#allocation15 + $0x790] sm:$0xff]
    %v5959 = vld [vmem:[#allocation15 + $0x798] sm:$0xff]
    %v5960 = vld [vmem:[#allocation15 + $0x7a0] sm:$0xff]
    %v5961 = vld [vmem:[#allocation15 + $0x7a8] sm:$0xff]
    %v5962 = vld [vmem:[#allocation15 + $0x7b0] sm:$0xff]
    %v5963 = vld [vmem:[#allocation15 + $0x7b8] sm:$0xff]
    %v5964 = vld [vmem:[#allocation15 + $0x7c0] sm:$0xff]
    %v5965 = vld [vmem:[#allocation15 + $0x7c8] sm:$0xff]
    %v5966 = vld [vmem:[#allocation15 + $0x7d0] sm:$0xff]
    %v5967 = vld [vmem:[#allocation15 + $0x7d8] sm:$0xff]
    %v5968 = vld [vmem:[#allocation15 + $0x7e0] sm:$0xff]
    %v5969 = vld [vmem:[#allocation15 + $0x7e8] sm:$0xff]
    %v5970 = vld [vmem:[#allocation15 + $0x7f0] sm:$0xff]
    %v5971 = vld [vmem:[#allocation15 + $0x7f8] sm:$0xff]
    %v5972 = vld [vmem:[#allocation15 + $0x800] sm:$0xff]
    %v5973 = vld [vmem:[#allocation15 + $0x808] sm:$0xff]
    %v5974 = vld [vmem:[#allocation15 + $0x810] sm:$0xff]
    %v5975 = vld [vmem:[#allocation15 + $0x818] sm:$0xff]
    %v5976 = vld [vmem:[#allocation15 + $0x820] sm:$0xff]
    %v5977 = vld [vmem:[#allocation15 + $0x828] sm:$0xff]
    %v5978 = vld [vmem:[#allocation15 + $0x830] sm:$0xff]
    %v5979 = vld [vmem:[#allocation15 + $0x838] sm:$0xff]
    %v5980 = vld [vmem:[#allocation15 + $0x840] sm:$0xff]
    %v5981 = vld [vmem:[#allocation15 + $0x848] sm:$0xff]
    %v5982 = vld [vmem:[#allocation15 + $0x850] sm:$0xff]
    %v5983 = vld [vmem:[#allocation15 + $0x858] sm:$0xff]
    %v5984 = vld [vmem:[#allocation15 + $0x860] sm:$0xff]
    %v5985 = vld [vmem:[#allocation15 + $0x868] sm:$0xff]
    %v5986 = vld [vmem:[#allocation15 + $0x870] sm:$0xff]
    %v5987 = vld [vmem:[#allocation15 + $0x878] sm:$0xff]
    %v5988 = vld [vmem:[#allocation15 + $0x880] sm:$0xff]
    %v5989 = vld [vmem:[#allocation15 + $0x888] sm:$0xff]
    %v5990 = vld [vmem:[#allocation15 + $0x890] sm:$0xff]
    %v5991 = vld [vmem:[#allocation15 + $0x898] sm:$0xff]
    %v5992 = vld [vmem:[#allocation15 + $0x8a0] sm:$0xff]
    %v5993 = vld [vmem:[#allocation15 + $0x8a8] sm:$0xff]
    %v5994 = vld [vmem:[#allocation15 + $0x8b0] sm:$0xff]
    %v5995 = vld [vmem:[#allocation15 + $0x8b8] sm:$0xff]
    %v5996 = vld [vmem:[#allocation15 + $0x8c0] sm:$0xff]
    %v5997 = vld [vmem:[#allocation15 + $0x8c8] sm:$0xff]
    %v5998 = vld [vmem:[#allocation15 + $0x8d0] sm:$0xff]
    %v5999 = vld [vmem:[#allocation15 + $0x8d8] sm:$0xff]
    %v6000 = vld [vmem:[#allocation15 + $0x8e0] sm:$0xff]
    %v6001 = vld [vmem:[#allocation15 + $0x8e8] sm:$0xff]
    %v6002 = vld [vmem:[#allocation15 + $0x8f0] sm:$0xff]
    %v6003 = vld [vmem:[#allocation15 + $0x8f8] sm:$0xff]
    %v6004 = vld [vmem:[#allocation15 + $0x900] sm:$0xff]
    %v6005 = vld [vmem:[#allocation15 + $0x908] sm:$0xff]
    %v6006 = vld [vmem:[#allocation15 + $0x910] sm:$0xff]
    %v6007 = vld [vmem:[#allocation15 + $0x918] sm:$0xff]
    %v6008 = vld [vmem:[#allocation15 + $0x920] sm:$0xff]
    %v6009 = vld [vmem:[#allocation15 + $0x928] sm:$0xff]
    %v6010 = vld [vmem:[#allocation15 + $0x930] sm:$0xff]
    %v6011 = vld [vmem:[#allocation15 + $0x938] sm:$0xff]
    %v6012 = vld [vmem:[#allocation15 + $0x940] sm:$0xff]
    %v6013 = vld [vmem:[#allocation15 + $0x948] sm:$0xff]
    %v6014 = vld [vmem:[#allocation15 + $0x950] sm:$0xff]
    %v6015 = vld [vmem:[#allocation15 + $0x958] sm:$0xff]
    %v6016 = vld [vmem:[#allocation15 + $0x960] sm:$0xff]
    %v6017 = vld [vmem:[#allocation15 + $0x968] sm:$0xff]
    %v6018 = vld [vmem:[#allocation15 + $0x970] sm:$0xff]
    %v6019 = vld [vmem:[#allocation15 + $0x978] sm:$0xff]
    %v6020 = vld [vmem:[#allocation15 + $0x980] sm:$0xff]
    %v6021 = vld [vmem:[#allocation15 + $0x988] sm:$0xff]
    %v6022 = vld [vmem:[#allocation15 + $0x990] sm:$0xff]
    %v6023 = vld [vmem:[#allocation15 + $0x998] sm:$0xff]
    %v6024 = vld [vmem:[#allocation15 + $0x9a0] sm:$0xff]
    %v6025 = vld [vmem:[#allocation15 + $0x9a8] sm:$0xff]
    %v6026 = vld [vmem:[#allocation15 + $0x9b0] sm:$0xff]
    %v6027 = vld [vmem:[#allocation15 + $0x9b8] sm:$0xff]
    %v6028 = vld [vmem:[#allocation15 + $0x9c0] sm:$0xff]
    %v6029 = vld [vmem:[#allocation15 + $0x9c8] sm:$0xff]
    %v6030 = vld [vmem:[#allocation15 + $0x9d0] sm:$0xff]
    %v6031 = vld [vmem:[#allocation15 + $0x9d8] sm:$0xff]
    %v6032 = vld [vmem:[#allocation15 + $0x9e0] sm:$0xff]
    %v6033 = vld [vmem:[#allocation15 + $0x9e8] sm:$0xff]
    %v6034 = vld [vmem:[#allocation15 + $0x9f0] sm:$0xff]
    %v6035 = vld [vmem:[#allocation15 + $0x9f8] sm:$0xff]
    %v6036 = vld [vmem:[#allocation15 + $0xa00] sm:$0xff]
    %v6037 = vld [vmem:[#allocation15 + $0xa08] sm:$0xff]
    %v6038 = vld [vmem:[#allocation15 + $0xa10] sm:$0xff]
    %v6039 = vld [vmem:[#allocation15 + $0xa18] sm:$0xff]
    %v6040 = vld [vmem:[#allocation15 + $0xa20] sm:$0xff]
    %v6041 = vld [vmem:[#allocation15 + $0xa28] sm:$0xff]
    %v6042 = vld [vmem:[#allocation15 + $0xa30] sm:$0xff]
    %v6043 = vld [vmem:[#allocation15 + $0xa38] sm:$0xff]
    %v6044 = vld [vmem:[#allocation15 + $0xa40] sm:$0xff]
    %v6045 = vld [vmem:[#allocation15 + $0xa48] sm:$0xff]
    %v6046 = vld [vmem:[#allocation15 + $0xa50] sm:$0xff]
    %v6047 = vld [vmem:[#allocation15 + $0xa58] sm:$0xff]
    %v6048 = vld [vmem:[#allocation15 + $0xa60] sm:$0xff]
    %v6049 = vld [vmem:[#allocation15 + $0xa68] sm:$0xff]
    %v6050 = vld [vmem:[#allocation15 + $0xa70] sm:$0xff]
    %v6051 = vld [vmem:[#allocation15 + $0xa78] sm:$0xff]
    %v6052 = vld [vmem:[#allocation15 + $0xa80] sm:$0xff]
    %v6053 = vld [vmem:[#allocation15 + $0xa88] sm:$0xff]
    %v6054 = vld [vmem:[#allocation15 + $0xa90] sm:$0xff]
    %v6055 = vld [vmem:[#allocation15 + $0xa98] sm:$0xff]
    %v6056 = vld [vmem:[#allocation15 + $0xaa0] sm:$0xff]
    %v6057 = vld [vmem:[#allocation15 + $0xaa8] sm:$0xff]
    %v6058 = vld [vmem:[#allocation15 + $0xab0] sm:$0xff]
    %v6059 = vld [vmem:[#allocation15 + $0xab8] sm:$0xff]
    %v6060 = vld [vmem:[#allocation15 + $0xac0] sm:$0xff]
    %v6061 = vld [vmem:[#allocation15 + $0xac8] sm:$0xff]
    %v6062 = vld [vmem:[#allocation15 + $0xad0] sm:$0xff]
    %v6063 = vld [vmem:[#allocation15 + $0xad8] sm:$0xff]
    %v6064 = vld [vmem:[#allocation15 + $0xae0] sm:$0xff]
    %v6065 = vld [vmem:[#allocation15 + $0xae8] sm:$0xff]
    %v6066 = vld [vmem:[#allocation15 + $0xaf0] sm:$0xff]
    %v6067 = vld [vmem:[#allocation15 + $0xaf8] sm:$0xff]
    %v6068 = vld [vmem:[#allocation15 + $0xb00] sm:$0xff]
    %v6069 = vld [vmem:[#allocation15 + $0xb08] sm:$0xff]
    %v6070 = vld [vmem:[#allocation15 + $0xb10] sm:$0xff]
    %v6071 = vld [vmem:[#allocation15 + $0xb18] sm:$0xff]
    %v6072 = vld [vmem:[#allocation15 + $0xb20] sm:$0xff]
    %v6073 = vld [vmem:[#allocation15 + $0xb28] sm:$0xff]
    %v6074 = vld [vmem:[#allocation15 + $0xb30] sm:$0xff]
    %v6075 = vld [vmem:[#allocation15 + $0xb38] sm:$0xff]
    %v6076 = vld [vmem:[#allocation15 + $0xb40] sm:$0xff]
    %v6077 = vld [vmem:[#allocation15 + $0xb48] sm:$0xff]
    %v6078 = vld [vmem:[#allocation15 + $0xb50] sm:$0xff]
    %v6079 = vld [vmem:[#allocation15 + $0xb58] sm:$0xff]
    %v6080 = vld [vmem:[#allocation15 + $0xb60] sm:$0xff]
    %v6081 = vld [vmem:[#allocation15 + $0xb68] sm:$0xff]
    %v6082 = vld [vmem:[#allocation15 + $0xb70] sm:$0xff]
    %v6083 = vld [vmem:[#allocation15 + $0xb78] sm:$0xff]
    %v6084 = vld [vmem:[#allocation15 + $0xb80] sm:$0xff]
    %v6085 = vld [vmem:[#allocation15 + $0xb88] sm:$0xff]
    %v6086 = vld [vmem:[#allocation15 + $0xb90] sm:$0xff]
    %v6087 = vld [vmem:[#allocation15 + $0xb98] sm:$0xff]
    %v6088 = vld [vmem:[#allocation15 + $0xba0] sm:$0xff]
    %v6089 = vld [vmem:[#allocation15 + $0xba8] sm:$0xff]
    %v6090 = vld [vmem:[#allocation15 + $0xbb0] sm:$0xff]
    %v6091 = vld [vmem:[#allocation15 + $0xbb8] sm:$0xff]
    %v6092 = vld [vmem:[#allocation15 + $0xbc0] sm:$0xff]
    %v6093 = vld [vmem:[#allocation15 + $0xbc8] sm:$0xff]
    %v6094 = vld [vmem:[#allocation15 + $0xbd0] sm:$0xff]
    %v6095 = vld [vmem:[#allocation15 + $0xbd8] sm:$0xff]
    %v6096 = vld [vmem:[#allocation15 + $0xbe0] sm:$0xff]
    %v6097 = vld [vmem:[#allocation15 + $0xbe8] sm:$0xff]
    %v6098 = vld [vmem:[#allocation15 + $0xbf0] sm:$0xff]
    %v6099 = vld [vmem:[#allocation15 + $0xbf8] sm:$0xff]
    %v6100 = vld [vmem:[#allocation15 + $0xc00] sm:$0xff]
    %v6101 = vld [vmem:[#allocation15 + $0xc08] sm:$0xff]
    %v6102 = vld [vmem:[#allocation15 + $0xc10] sm:$0xff]
    %v6103 = vld [vmem:[#allocation15 + $0xc18] sm:$0xff]
    %v6104 = vld [vmem:[#allocation15 + $0xc20] sm:$0xff]
    %v6105 = vld [vmem:[#allocation15 + $0xc28] sm:$0xff]
    %v6106 = vld [vmem:[#allocation15 + $0xc30] sm:$0xff]
    %v6107 = vld [vmem:[#allocation15 + $0xc38] sm:$0xff]
    %v6108 = vld [vmem:[#allocation15 + $0xc40] sm:$0xff]
    %v6109 = vld [vmem:[#allocation15 + $0xc48] sm:$0xff]
    %v6110 = vld [vmem:[#allocation15 + $0xc50] sm:$0xff]
    %v6111 = vld [vmem:[#allocation15 + $0xc58] sm:$0xff]
    %v6112 = vld [vmem:[#allocation15 + $0xc60] sm:$0xff]
    %v6113 = vld [vmem:[#allocation15 + $0xc68] sm:$0xff]
    %v6114 = vld [vmem:[#allocation15 + $0xc70] sm:$0xff]
    %v6115 = vld [vmem:[#allocation15 + $0xc78] sm:$0xff]
    %v6116 = vld [vmem:[#allocation15 + $0xc80] sm:$0xff]
    %v6117 = vld [vmem:[#allocation15 + $0xc88] sm:$0xff]
    %v6118 = vld [vmem:[#allocation15 + $0xc90] sm:$0xff]
    %v6119 = vld [vmem:[#allocation15 + $0xc98] sm:$0xff]
    %v6120 = vld [vmem:[#allocation15 + $0xca0] sm:$0xff]
    %v6121 = vld [vmem:[#allocation15 + $0xca8] sm:$0xff]
    %v6122 = vld [vmem:[#allocation15 + $0xcb0] sm:$0xff]
    %v6123 = vld [vmem:[#allocation15 + $0xcb8] sm:$0xff]
    %v6124 = vld [vmem:[#allocation15 + $0xcc0] sm:$0xff]
    %v6125 = vld [vmem:[#allocation15 + $0xcc8] sm:$0xff]
    %v6126 = vld [vmem:[#allocation15 + $0xcd0] sm:$0xff]
    %v6127 = vld [vmem:[#allocation15 + $0xcd8] sm:$0xff]
    %v6128 = vld [vmem:[#allocation15 + $0xce0] sm:$0xff]
    %v6129 = vld [vmem:[#allocation15 + $0xce8] sm:$0xff]
    %v6130 = vld [vmem:[#allocation15 + $0xcf0] sm:$0xff]
    %v6131 = vld [vmem:[#allocation15 + $0xcf8] sm:$0xff]
    %v6132 = vld [vmem:[#allocation15 + $0xd00] sm:$0xff]
    %v6133 = vld [vmem:[#allocation15 + $0xd08] sm:$0xff]
    %v6134 = vld [vmem:[#allocation15 + $0xd10] sm:$0xff]
    %v6135 = vld [vmem:[#allocation15 + $0xd18] sm:$0xff]
    %v6136 = vld [vmem:[#allocation15 + $0xd20] sm:$0xff]
    %v6137 = vld [vmem:[#allocation15 + $0xd28] sm:$0xff]
    %v6138 = vld [vmem:[#allocation15 + $0xd30] sm:$0xff]
    %v6139 = vld [vmem:[#allocation15 + $0xd38] sm:$0xff]
    %v6140 = vld [vmem:[#allocation15 + $0xd40] sm:$0xff]
    %v6141 = vld [vmem:[#allocation15 + $0xd48] sm:$0xff]
    %v6142 = vld [vmem:[#allocation15 + $0xd50] sm:$0xff]
    %v6143 = vld [vmem:[#allocation15 + $0xd58] sm:$0xff]
    %v6144 = vld [vmem:[#allocation15 + $0xd60] sm:$0xff]
    %v6145 = vld [vmem:[#allocation15 + $0xd68] sm:$0xff]
    %v6146 = vld [vmem:[#allocation15 + $0xd70] sm:$0xff]
    %v6147 = vld [vmem:[#allocation15 + $0xd78] sm:$0xff]
    %v6148 = vld [vmem:[#allocation15 + $0xd80] sm:$0xff]
    %v6149 = vld [vmem:[#allocation15 + $0xd88] sm:$0xff]
    %v6150 = vld [vmem:[#allocation15 + $0xd90] sm:$0xff]
    %v6151 = vld [vmem:[#allocation15 + $0xd98] sm:$0xff]
    %v6152 = vld [vmem:[#allocation15 + $0xda0] sm:$0xff]
    %v6153 = vld [vmem:[#allocation15 + $0xda8] sm:$0xff]
    %v6154 = vld [vmem:[#allocation15 + $0xdb0] sm:$0xff]
    %v6155 = vld [vmem:[#allocation15 + $0xdb8] sm:$0xff]
    %v6156 = vld [vmem:[#allocation15 + $0xdc0] sm:$0xff]
    %v6157 = vld [vmem:[#allocation15 + $0xdc8] sm:$0xff]
    %v6158 = vld [vmem:[#allocation15 + $0xdd0] sm:$0xff]
    %v6159 = vld [vmem:[#allocation15 + $0xdd8] sm:$0xff]
    %v6160 = vld [vmem:[#allocation15 + $0xde0] sm:$0xff]
    %v6161 = vld [vmem:[#allocation15 + $0xde8] sm:$0xff]
    %v6162 = vld [vmem:[#allocation15 + $0xdf0] sm:$0xff]
    %v6163 = vld [vmem:[#allocation15 + $0xdf8] sm:$0xff]
    %v6164 = vld [vmem:[#allocation15 + $0xe00] sm:$0xff]
    %v6165 = vld [vmem:[#allocation15 + $0xe08] sm:$0xff]
    %v6166 = vld [vmem:[#allocation15 + $0xe10] sm:$0xff]
    %v6167 = vld [vmem:[#allocation15 + $0xe18] sm:$0xff]
    %v6168 = vld [vmem:[#allocation15 + $0xe20] sm:$0xff]
    %v6169 = vld [vmem:[#allocation15 + $0xe28] sm:$0xff]
    %v6170 = vld [vmem:[#allocation15 + $0xe30] sm:$0xff]
    %v6171 = vld [vmem:[#allocation15 + $0xe38] sm:$0xff]
    %v6172 = vld [vmem:[#allocation15 + $0xe40] sm:$0xff]
    %v6173 = vld [vmem:[#allocation15 + $0xe48] sm:$0xff]
    %v6174 = vld [vmem:[#allocation15 + $0xe50] sm:$0xff]
    %v6175 = vld [vmem:[#allocation15 + $0xe58] sm:$0xff]
    %v6176 = vld [vmem:[#allocation15 + $0xe60] sm:$0xff]
    %v6177 = vld [vmem:[#allocation15 + $0xe68] sm:$0xff]
    %v6178 = vld [vmem:[#allocation15 + $0xe70] sm:$0xff]
    %v6179 = vld [vmem:[#allocation15 + $0xe78] sm:$0xff]
    %v6180 = vld [vmem:[#allocation15 + $0xe80] sm:$0xff]
    %v6181 = vld [vmem:[#allocation15 + $0xe88] sm:$0xff]
    %v6182 = vld [vmem:[#allocation15 + $0xe90] sm:$0xff]
    %v6183 = vld [vmem:[#allocation15 + $0xe98] sm:$0xff]
    %v6184 = vld [vmem:[#allocation15 + $0xea0] sm:$0xff]
    %v6185 = vld [vmem:[#allocation15 + $0xea8] sm:$0xff]
    %v6186 = vld [vmem:[#allocation15 + $0xeb0] sm:$0xff]
    %v6187 = vld [vmem:[#allocation15 + $0xeb8] sm:$0xff]
    %v6188 = vld [vmem:[#allocation15 + $0xec0] sm:$0xff]
    %v6189 = vld [vmem:[#allocation15 + $0xec8] sm:$0xff]
    %v6190 = vld [vmem:[#allocation15 + $0xed0] sm:$0xff]
    %v6191 = vld [vmem:[#allocation15 + $0xed8] sm:$0xff]
    %v6192 = vld [vmem:[#allocation15 + $0xee0] sm:$0xff]
    %v6193 = vld [vmem:[#allocation15 + $0xee8] sm:$0xff]
    %v6194 = vld [vmem:[#allocation15 + $0xef0] sm:$0xff]
    %v6195 = vld [vmem:[#allocation15 + $0xef8] sm:$0xff]
    %v6196 = vld [vmem:[#allocation15 + $0xf00] sm:$0xff]
    %v6197 = vld [vmem:[#allocation15 + $0xf08] sm:$0xff]
    %v6198 = vld [vmem:[#allocation15 + $0xf10] sm:$0xff]
    %v6199 = vld [vmem:[#allocation15 + $0xf18] sm:$0xff]
    %v6200 = vld [vmem:[#allocation15 + $0xf20] sm:$0xff]
    %v6201 = vld [vmem:[#allocation15 + $0xf28] sm:$0xff]
    %v6202 = vld [vmem:[#allocation15 + $0xf30] sm:$0xff]
    %v6203 = vld [vmem:[#allocation15 + $0xf38] sm:$0xff]
    %v6204 = vld [vmem:[#allocation15 + $0xf40] sm:$0xff]
    %v6205 = vld [vmem:[#allocation15 + $0xf48] sm:$0xff]
    %v6206 = vld [vmem:[#allocation15 + $0xf50] sm:$0xff]
    %v6207 = vld [vmem:[#allocation15 + $0xf58] sm:$0xff]
    %v6208 = vld [vmem:[#allocation15 + $0xf60] sm:$0xff]
    %v6209 = vld [vmem:[#allocation15 + $0xf68] sm:$0xff]
    %v6210 = vld [vmem:[#allocation15 + $0xf70] sm:$0xff]
    %v6211 = vld [vmem:[#allocation15 + $0xf78] sm:$0xff]
    %v6212 = vld [vmem:[#allocation15 + $0xf80] sm:$0xff]
    %v6213 = vld [vmem:[#allocation15 + $0xf88] sm:$0xff]
    %v6214 = vld [vmem:[#allocation15 + $0xf90] sm:$0xff]
    %v6215 = vld [vmem:[#allocation15 + $0xf98] sm:$0xff]
    %v6216 = vld [vmem:[#allocation15 + $0xfa0] sm:$0xff]
    %v6217 = vld [vmem:[#allocation15 + $0xfa8] sm:$0xff]
    %v6218 = vld [vmem:[#allocation15 + $0xfb0] sm:$0xff]
    %v6219 = vld [vmem:[#allocation15 + $0xfb8] sm:$0xff]
    %v6220 = vld [vmem:[#allocation15 + $0xfc0] sm:$0xff]
    %v6221 = vld [vmem:[#allocation15 + $0xfc8] sm:$0xff]
    %v6222 = vld [vmem:[#allocation15 + $0xfd0] sm:$0xff]
    %v6223 = vld [vmem:[#allocation15 + $0xfd8] sm:$0xff]
    %v6224 = vld [vmem:[#allocation15 + $0xfe0] sm:$0xff]
    %v6225 = vld [vmem:[#allocation15 + $0xfe8] sm:$0xff]
    %v6226 = vld [vmem:[#allocation15 + $0xff0] sm:$0xff]
    %v6227 = vld [vmem:[#allocation15 + $0xff8] sm:$0xff]
    %v6228 = vld [vmem:[#allocation15 + $0x1000] sm:$0xff]
    %v6229 = vld [vmem:[#allocation15 + $0x1008] sm:$0xff]
    %v6230 = vld [vmem:[#allocation15 + $0x1010] sm:$0xff]
    %v6231 = vld [vmem:[#allocation15 + $0x1018] sm:$0xff]
    %v6232 = vld [vmem:[#allocation15 + $0x1020] sm:$0xff]
    %v6233 = vld [vmem:[#allocation15 + $0x1028] sm:$0xff]
    %v6234 = vld [vmem:[#allocation15 + $0x1030] sm:$0xff]
    %v6235 = vld [vmem:[#allocation15 + $0x1038] sm:$0xff]
    %v6236 = vld [vmem:[#allocation15 + $0x1040] sm:$0xff]
    %v6237 = vld [vmem:[#allocation15 + $0x1048] sm:$0xff]
    %v6238 = vld [vmem:[#allocation15 + $0x1050] sm:$0xff]
    %v6239 = vld [vmem:[#allocation15 + $0x1058] sm:$0xff]
    %v6240 = vld [vmem:[#allocation15 + $0x1060] sm:$0xff]
    %v6241 = vld [vmem:[#allocation15 + $0x1068] sm:$0xff]
    %v6242 = vld [vmem:[#allocation15 + $0x1070] sm:$0xff]
    %v6243 = vld [vmem:[#allocation15 + $0x1078] sm:$0xff]
    %v6244 = vld [vmem:[#allocation15 + $0x1080] sm:$0xff]
    %v6245 = vld [vmem:[#allocation15 + $0x1088] sm:$0xff]
    %v6246 = vld [vmem:[#allocation15 + $0x1090] sm:$0xff]
    %v6247 = vld [vmem:[#allocation15 + $0x1098] sm:$0xff]
    %v6248 = vld [vmem:[#allocation15 + $0x10a0] sm:$0xff]
    %v6249 = vld [vmem:[#allocation15 + $0x10a8] sm:$0xff]
    %v6250 = vld [vmem:[#allocation15 + $0x10b0] sm:$0xff]
    %v6251 = vld [vmem:[#allocation15 + $0x10b8] sm:$0xff]
    %v6252 = vld [vmem:[#allocation15 + $0x10c0] sm:$0xff]
    %v6253 = vld [vmem:[#allocation15 + $0x10c8] sm:$0xff]
    %v6254 = vld [vmem:[#allocation15 + $0x10d0] sm:$0xff]
    %v6255 = vld [vmem:[#allocation15 + $0x10d8] sm:$0xff]
    %v6256 = vld [vmem:[#allocation15 + $0x10e0] sm:$0xff]
    %v6257 = vld [vmem:[#allocation15 + $0x10e8] sm:$0xff]
    %v6258 = vld [vmem:[#allocation15 + $0x10f0] sm:$0xff]
    %v6259 = vld [vmem:[#allocation15 + $0x10f8] sm:$0xff]
    %v6260 = vld [vmem:[#allocation15 + $0x1100] sm:$0xff]
    %v6261 = vld [vmem:[#allocation15 + $0x1108] sm:$0xff]
    %v6262 = vld [vmem:[#allocation15 + $0x1110] sm:$0xff]
    %v6263 = vld [vmem:[#allocation15 + $0x1118] sm:$0xff]
    %v6264 = vld [vmem:[#allocation15 + $0x1120] sm:$0xff]
    %v6265 = vld [vmem:[#allocation15 + $0x1128] sm:$0xff]
    %v6266 = vld [vmem:[#allocation15 + $0x1130] sm:$0xff]
    %v6267 = vld [vmem:[#allocation15 + $0x1138] sm:$0xff]
    %v6268 = vld [vmem:[#allocation15 + $0x1140] sm:$0xff]
    %v6269 = vld [vmem:[#allocation15 + $0x1148] sm:$0xff]
    %v6270 = vld [vmem:[#allocation15 + $0x1150] sm:$0xff]
    %v6271 = vld [vmem:[#allocation15 + $0x1158] sm:$0xff]
    %v6272 = vld [vmem:[#allocation15 + $0x1160] sm:$0xff]
    %v6273 = vld [vmem:[#allocation15 + $0x1168] sm:$0xff]
    %v6274 = vld [vmem:[#allocation15 + $0x1170] sm:$0xff]
    %v6275 = vld [vmem:[#allocation15 + $0x1178] sm:$0xff]
    %v6276 = vld [vmem:[#allocation15 + $0x1180] sm:$0xff]
    %v6277 = vld [vmem:[#allocation15 + $0x1188] sm:$0xff]
    %v6278 = vld [vmem:[#allocation15 + $0x1190] sm:$0xff]
    %v6279 = vld [vmem:[#allocation15 + $0x1198] sm:$0xff]
    %v6280 = vld [vmem:[#allocation15 + $0x11a0] sm:$0xff]
    %v6281 = vld [vmem:[#allocation15 + $0x11a8] sm:$0xff]
    %v6282 = vld [vmem:[#allocation15 + $0x11b0] sm:$0xff]
    %v6283 = vld [vmem:[#allocation15 + $0x11b8] sm:$0xff]
    %v6284 = vld [vmem:[#allocation15 + $0x11c0] sm:$0xff]
    %v6285 = vld [vmem:[#allocation15 + $0x11c8] sm:$0xff]
    %v6286 = vld [vmem:[#allocation15 + $0x11d0] sm:$0xff]
    %v6287 = vld [vmem:[#allocation15 + $0x11d8] sm:$0xff]
    %v6288 = vld [vmem:[#allocation15 + $0x11e0] sm:$0xff]
    %v6289 = vld [vmem:[#allocation15 + $0x11e8] sm:$0xff]
    %v6290 = vld [vmem:[#allocation15 + $0x11f0] sm:$0xff]
    %v6291 = vld [vmem:[#allocation15 + $0x11f8] sm:$0xff]
    %v6292 = vld [vmem:[#allocation15 + $0x1200] sm:$0xff]
    %v6293 = vld [vmem:[#allocation15 + $0x1208] sm:$0xff]
    %v6294 = vld [vmem:[#allocation15 + $0x1210] sm:$0xff]
    %v6295 = vld [vmem:[#allocation15 + $0x1218] sm:$0xff]
    %v6296 = vld [vmem:[#allocation15 + $0x1220] sm:$0xff]
    %v6297 = vld [vmem:[#allocation15 + $0x1228] sm:$0xff]
    %v6298 = vld [vmem:[#allocation15 + $0x1230] sm:$0xff]
    %v6299 = vld [vmem:[#allocation15 + $0x1238] sm:$0xff]
    %v6300 = vld [vmem:[#allocation15 + $0x1240] sm:$0xff]
    %v6301 = vld [vmem:[#allocation15 + $0x1248] sm:$0xff]
    %v6302 = vld [vmem:[#allocation15 + $0x1250] sm:$0xff]
    %v6303 = vld [vmem:[#allocation15 + $0x1258] sm:$0xff]
    %v6304 = vld [vmem:[#allocation15 + $0x1260] sm:$0xff]
    %v6305 = vld [vmem:[#allocation15 + $0x1268] sm:$0xff]
    %v6306 = vld [vmem:[#allocation15 + $0x1270] sm:$0xff]
    %v6307 = vld [vmem:[#allocation15 + $0x1278] sm:$0xff]
    %v6308 = vld [vmem:[#allocation15 + $0x1280] sm:$0xff]
    %v6309 = vld [vmem:[#allocation15 + $0x1288] sm:$0xff]
    %v6310 = vld [vmem:[#allocation15 + $0x1290] sm:$0xff]
    %v6311 = vld [vmem:[#allocation15 + $0x1298] sm:$0xff]
    %v6312 = vld [vmem:[#allocation15 + $0x12a0] sm:$0xff]
    %v6313 = vld [vmem:[#allocation15 + $0x12a8] sm:$0xff]
    %v6314 = vld [vmem:[#allocation15 + $0x12b0] sm:$0xff]
    %v6315 = vld [vmem:[#allocation15 + $0x12b8] sm:$0xff]
    %v6316 = vld [vmem:[#allocation15 + $0x12c0] sm:$0xff]
    %v6317 = vld [vmem:[#allocation15 + $0x12c8] sm:$0xff]
    %v6318 = vld [vmem:[#allocation15 + $0x12d0] sm:$0xff]
    %v6319 = vld [vmem:[#allocation15 + $0x12d8] sm:$0xff]
    %v6320 = vld [vmem:[#allocation15 + $0x12e0] sm:$0xff]
    %v6321 = vld [vmem:[#allocation15 + $0x12e8] sm:$0xff]
    %v6322 = vld [vmem:[#allocation15 + $0x12f0] sm:$0xff]
    %v6323 = vld [vmem:[#allocation15 + $0x12f8] sm:$0xff]
    %v6324 = vld [vmem:[#allocation15 + $0x1300] sm:$0xff]
    %v6325 = vld [vmem:[#allocation15 + $0x1308] sm:$0xff]
    %v6326 = vld [vmem:[#allocation15 + $0x1310] sm:$0xff]
    %v6327 = vld [vmem:[#allocation15 + $0x1318] sm:$0xff]
    %v6328 = vld [vmem:[#allocation15 + $0x1320] sm:$0xff]
    %v6329 = vld [vmem:[#allocation15 + $0x1328] sm:$0xff]
    %v6330 = vld [vmem:[#allocation15 + $0x1330] sm:$0xff]
    %v6331 = vld [vmem:[#allocation15 + $0x1338] sm:$0xff]
    %v6332 = vld [vmem:[#allocation15 + $0x1340] sm:$0xff]
    %v6333 = vld [vmem:[#allocation15 + $0x1348] sm:$0xff]
    %v6334 = vld [vmem:[#allocation15 + $0x1350] sm:$0xff]
    %v6335 = vld [vmem:[#allocation15 + $0x1358] sm:$0xff]
    %v6336 = vld [vmem:[#allocation15 + $0x1360] sm:$0xff]
    %v6337 = vld [vmem:[#allocation15 + $0x1368] sm:$0xff]
    %v6338 = vld [vmem:[#allocation15 + $0x1370] sm:$0xff]
    %v6339 = vld [vmem:[#allocation15 + $0x1378] sm:$0xff]
    %v6340 = vld [vmem:[#allocation15 + $0x1380] sm:$0xff]
    %v6341 = vld [vmem:[#allocation15 + $0x1388] sm:$0xff]
    %v6342 = vld [vmem:[#allocation15 + $0x1390] sm:$0xff]
    %v6343 = vld [vmem:[#allocation15 + $0x1398] sm:$0xff]
    %v6344 = vld [vmem:[#allocation15 + $0x13a0] sm:$0xff]
    %v6345 = vld [vmem:[#allocation15 + $0x13a8] sm:$0xff]
    %v6346 = vld [vmem:[#allocation15 + $0x13b0] sm:$0xff]
    %v6347 = vld [vmem:[#allocation15 + $0x13b8] sm:$0xff]
    %v6348 = vld [vmem:[#allocation15 + $0x13c0] sm:$0xff]
    %v6349 = vld [vmem:[#allocation15 + $0x13c8] sm:$0xff]
    %v6350 = vld [vmem:[#allocation15 + $0x13d0] sm:$0xff]
    %v6351 = vld [vmem:[#allocation15 + $0x13d8] sm:$0xff]
    %v6352 = vld [vmem:[#allocation15 + $0x13e0] sm:$0xff]
    %v6353 = vld [vmem:[#allocation15 + $0x13e8] sm:$0xff]
    %v6354 = vld [vmem:[#allocation15 + $0x13f0] sm:$0xff]
    %v6355 = vld [vmem:[#allocation15 + $0x13f8] sm:$0xff]
    %v6356 = vld [vmem:[#allocation15 + $0x1400] sm:$0xff]
    %v6357 = vld [vmem:[#allocation15 + $0x1408] sm:$0xff]
    %v6358 = vld [vmem:[#allocation15 + $0x1410] sm:$0xff]
    %v6359 = vld [vmem:[#allocation15 + $0x1418] sm:$0xff]
    %v6360 = vld [vmem:[#allocation15 + $0x1420] sm:$0xff]
    %v6361 = vld [vmem:[#allocation15 + $0x1428] sm:$0xff]
    %v6362 = vld [vmem:[#allocation15 + $0x1430] sm:$0xff]
    %v6363 = vld [vmem:[#allocation15 + $0x1438] sm:$0xff]
    %v6364 = vld [vmem:[#allocation15 + $0x1440] sm:$0xff]
    %v6365 = vld [vmem:[#allocation15 + $0x1448] sm:$0xff]
    %v6366 = vld [vmem:[#allocation15 + $0x1450] sm:$0xff]
    %v6367 = vld [vmem:[#allocation15 + $0x1458] sm:$0xff]
    %v6368 = vld [vmem:[#allocation15 + $0x1460] sm:$0xff]
    %v6369 = vld [vmem:[#allocation15 + $0x1468] sm:$0xff]
    %v6370 = vld [vmem:[#allocation15 + $0x1470] sm:$0xff]
    %v6371 = vld [vmem:[#allocation15 + $0x1478] sm:$0xff]
    %v6372 = vld [vmem:[#allocation15 + $0x1480] sm:$0xff]
    %v6373 = vld [vmem:[#allocation15 + $0x1488] sm:$0xff]
    %v6374 = vld [vmem:[#allocation15 + $0x1490] sm:$0xff]
    %v6375 = vld [vmem:[#allocation15 + $0x1498] sm:$0xff]
    %v6376 = vld [vmem:[#allocation15 + $0x14a0] sm:$0xff]
    %v6377 = vld [vmem:[#allocation15 + $0x14a8] sm:$0xff]
    %v6378 = vld [vmem:[#allocation15 + $0x14b0] sm:$0xff]
    %v6379 = vld [vmem:[#allocation15 + $0x14b8] sm:$0xff]
    %v6380 = vld [vmem:[#allocation15 + $0x14c0] sm:$0xff]
    %v6381 = vld [vmem:[#allocation15 + $0x14c8] sm:$0xff]
    %v6382 = vld [vmem:[#allocation15 + $0x14d0] sm:$0xff]
    %v6383 = vld [vmem:[#allocation15 + $0x14d8] sm:$0xff]
    %v6384 = vld [vmem:[#allocation15 + $0x14e0] sm:$0xff]
    %v6385 = vld [vmem:[#allocation15 + $0x14e8] sm:$0xff]
    %v6386 = vld [vmem:[#allocation15 + $0x14f0] sm:$0xff]
    %v6387 = vld [vmem:[#allocation15 + $0x14f8] sm:$0xff]
    %v6388 = vld [vmem:[#allocation15 + $0x1500] sm:$0xff]
    %v6389 = vld [vmem:[#allocation15 + $0x1508] sm:$0xff]
    %v6390 = vld [vmem:[#allocation15 + $0x1510] sm:$0xff]
    %v6391 = vld [vmem:[#allocation15 + $0x1518] sm:$0xff]
    %v6392 = vld [vmem:[#allocation15 + $0x1520] sm:$0xff]
    %v6393 = vld [vmem:[#allocation15 + $0x1528] sm:$0xff]
    %v6394 = vld [vmem:[#allocation15 + $0x1530] sm:$0xff]
    %v6395 = vld [vmem:[#allocation15 + $0x1538] sm:$0xff]
    %v6396 = vld [vmem:[#allocation15 + $0x1540] sm:$0xff]
    %v6397 = vld [vmem:[#allocation15 + $0x1548] sm:$0xff]
    %v6398 = vld [vmem:[#allocation15 + $0x1550] sm:$0xff]
    %v6399 = vld [vmem:[#allocation15 + $0x1558] sm:$0xff]
    %v6400 = vld [vmem:[#allocation15 + $0x1560] sm:$0xff]
    %v6401 = vld [vmem:[#allocation15 + $0x1568] sm:$0xff]
    %v6402 = vld [vmem:[#allocation15 + $0x1570] sm:$0xff]
    %v6403 = vld [vmem:[#allocation15 + $0x1578] sm:$0xff]
    %v6404 = vld [vmem:[#allocation15 + $0x1580] sm:$0xff]
    %v6405 = vld [vmem:[#allocation15 + $0x1588] sm:$0xff]
    %v6406 = vld [vmem:[#allocation15 + $0x1590] sm:$0xff]
    %v6407 = vld [vmem:[#allocation15 + $0x1598] sm:$0xff]
    %v6408 = vld [vmem:[#allocation15 + $0x15a0] sm:$0xff]
    %v6409 = vld [vmem:[#allocation15 + $0x15a8] sm:$0xff]
    %v6410 = vld [vmem:[#allocation15 + $0x15b0] sm:$0xff]
    %v6411 = vld [vmem:[#allocation15 + $0x15b8] sm:$0xff]
    %v6412 = vld [vmem:[#allocation15 + $0x15c0] sm:$0xff]
    %v6413 = vld [vmem:[#allocation15 + $0x15c8] sm:$0xff]
    %v6414 = vld [vmem:[#allocation15 + $0x15d0] sm:$0xff]
    %v6415 = vld [vmem:[#allocation15 + $0x15d8] sm:$0xff]
    %v6416 = vld [vmem:[#allocation15 + $0x15e0] sm:$0xff]
    %v6417 = vld [vmem:[#allocation15 + $0x15e8] sm:$0xff]
    %v6418 = vld [vmem:[#allocation15 + $0x15f0] sm:$0xff]
    %v6419 = vld [vmem:[#allocation15 + $0x15f8] sm:$0xff]
    %v6420 = vld [vmem:[#allocation15 + $0x1600] sm:$0xff]
    %v6421 = vld [vmem:[#allocation15 + $0x1608] sm:$0xff]
    %v6422 = vld [vmem:[#allocation15 + $0x1610] sm:$0xff]
    %v6423 = vld [vmem:[#allocation15 + $0x1618] sm:$0xff]
    %v6424 = vld [vmem:[#allocation15 + $0x1620] sm:$0xff]
    %v6425 = vld [vmem:[#allocation15 + $0x1628] sm:$0xff]
    %v6426 = vld [vmem:[#allocation15 + $0x1630] sm:$0xff]
    %v6427 = vld [vmem:[#allocation15 + $0x1638] sm:$0xff]
    %v6428 = vld [vmem:[#allocation15 + $0x1640] sm:$0xff]
    %v6429 = vld [vmem:[#allocation15 + $0x1648] sm:$0xff]
    %v6430 = vld [vmem:[#allocation15 + $0x1650] sm:$0xff]
    %v6431 = vld [vmem:[#allocation15 + $0x1658] sm:$0xff]
    %v6432 = vld [vmem:[#allocation15 + $0x1660] sm:$0xff]
    %v6433 = vld [vmem:[#allocation15 + $0x1668] sm:$0xff]
    %v6434 = vld [vmem:[#allocation15 + $0x1670] sm:$0xff]
    %v6435 = vld [vmem:[#allocation15 + $0x1678] sm:$0xff]
    %v6436 = vld [vmem:[#allocation15 + $0x1680] sm:$0xff]
    %v6437 = vld [vmem:[#allocation15 + $0x1688] sm:$0xff]
    %v6438 = vld [vmem:[#allocation15 + $0x1690] sm:$0xff]
    %v6439 = vld [vmem:[#allocation15 + $0x1698] sm:$0xff]
    %v6440 = vld [vmem:[#allocation15 + $0x16a0] sm:$0xff]
    %v6441 = vld [vmem:[#allocation15 + $0x16a8] sm:$0xff]
    %v6442 = vld [vmem:[#allocation15 + $0x16b0] sm:$0xff]
    %v6443 = vld [vmem:[#allocation15 + $0x16b8] sm:$0xff]
    %v6444 = vld [vmem:[#allocation15 + $0x16c0] sm:$0xff]
    %v6445 = vld [vmem:[#allocation15 + $0x16c8] sm:$0xff]
    %v6446 = vld [vmem:[#allocation15 + $0x16d0] sm:$0xff]
    %v6447 = vld [vmem:[#allocation15 + $0x16d8] sm:$0xff]
    %v6448 = vld [vmem:[#allocation15 + $0x16e0] sm:$0xff]
    %v6449 = vld [vmem:[#allocation15 + $0x16e8] sm:$0xff]
    %v6450 = vld [vmem:[#allocation15 + $0x16f0] sm:$0xff]
    %v6451 = vld [vmem:[#allocation15 + $0x16f8] sm:$0xff]
    %v6452 = vld [vmem:[#allocation15 + $0x1700] sm:$0xff]
    %v6453 = vld [vmem:[#allocation15 + $0x1708] sm:$0xff]
    %v6454 = vld [vmem:[#allocation15 + $0x1710] sm:$0xff]
    %v6455 = vld [vmem:[#allocation15 + $0x1718] sm:$0xff]
    %v6456 = vld [vmem:[#allocation15 + $0x1720] sm:$0xff]
    %v6457 = vld [vmem:[#allocation15 + $0x1728] sm:$0xff]
    %v6458 = vld [vmem:[#allocation15 + $0x1730] sm:$0xff]
    %v6459 = vld [vmem:[#allocation15 + $0x1738] sm:$0xff]
    %v6460 = vld [vmem:[#allocation15 + $0x1740] sm:$0xff]
    %v6461 = vld [vmem:[#allocation15 + $0x1748] sm:$0xff]
    %v6462 = vld [vmem:[#allocation15 + $0x1750] sm:$0xff]
    %v6463 = vld [vmem:[#allocation15 + $0x1758] sm:$0xff]
    %v6464 = vld [vmem:[#allocation15 + $0x1760] sm:$0xff]
    %v6465 = vld [vmem:[#allocation15 + $0x1768] sm:$0xff]
    %v6466 = vld [vmem:[#allocation15 + $0x1770] sm:$0xff]
    %v6467 = vld [vmem:[#allocation15 + $0x1778] sm:$0xff]
    %v6468 = vld [vmem:[#allocation15 + $0x1780] sm:$0xff]
    %v6469 = vld [vmem:[#allocation15 + $0x1788] sm:$0xff]
    %v6470 = vld [vmem:[#allocation15 + $0x1790] sm:$0xff]
    %v6471 = vld [vmem:[#allocation15 + $0x1798] sm:$0xff]
    %v6472 = vld [vmem:[#allocation15 + $0x17a0] sm:$0xff]
    %v6473 = vld [vmem:[#allocation15 + $0x17a8] sm:$0xff]
    %v6474 = vld [vmem:[#allocation15 + $0x17b0] sm:$0xff]
    %v6475 = vld [vmem:[#allocation15 + $0x17b8] sm:$0xff]
    %v6476 = vld [vmem:[#allocation15 + $0x17c0] sm:$0xff]
    %v6477 = vld [vmem:[#allocation15 + $0x17c8] sm:$0xff]
    %v6478 = vld [vmem:[#allocation15 + $0x17d0] sm:$0xff]
    %v6479 = vld [vmem:[#allocation15 + $0x17d8] sm:$0xff]
    %v6480 = vld [vmem:[#allocation15 + $0x17e0] sm:$0xff]
    %v6481 = vld [vmem:[#allocation15 + $0x17e8] sm:$0xff]
    %v6482 = vld [vmem:[#allocation15 + $0x17f0] sm:$0xff]
    %v6483 = vld [vmem:[#allocation15 + $0x17f8] sm:$0xff]
    %v6484 = vld [vmem:[#allocation15 + $0x1800] sm:$0xff]
    %v6485 = vld [vmem:[#allocation15 + $0x1808] sm:$0xff]
    %v6486 = vld [vmem:[#allocation15 + $0x1810] sm:$0xff]
    %v6487 = vld [vmem:[#allocation15 + $0x1818] sm:$0xff]
    %v6488 = vld [vmem:[#allocation15 + $0x1820] sm:$0xff]
    %v6489 = vld [vmem:[#allocation15 + $0x1828] sm:$0xff]
    %v6490 = vld [vmem:[#allocation15 + $0x1830] sm:$0xff]
    %v6491 = vld [vmem:[#allocation15 + $0x1838] sm:$0xff]
    %v6492 = vld [vmem:[#allocation15 + $0x1840] sm:$0xff]
    %v6493 = vld [vmem:[#allocation15 + $0x1848] sm:$0xff]
    %v6494 = vld [vmem:[#allocation15 + $0x1850] sm:$0xff]
    %v6495 = vld [vmem:[#allocation15 + $0x1858] sm:$0xff]
    %v6496 = vld [vmem:[#allocation15 + $0x1860] sm:$0xff]
    %v6497 = vld [vmem:[#allocation15 + $0x1868] sm:$0xff]
    %v6498 = vld [vmem:[#allocation15 + $0x1870] sm:$0xff]
    %v6499 = vld [vmem:[#allocation15 + $0x1878] sm:$0xff]
    %v6500 = vld [vmem:[#allocation15 + $0x1880] sm:$0xff]
    %v6501 = vld [vmem:[#allocation15 + $0x1888] sm:$0xff]
    %v6502 = vld [vmem:[#allocation15 + $0x1890] sm:$0xff]
    %v6503 = vld [vmem:[#allocation15 + $0x1898] sm:$0xff]
    %v6504 = vld [vmem:[#allocation15 + $0x18a0] sm:$0xff]
    %v6505 = vld [vmem:[#allocation15 + $0x18a8] sm:$0xff]
    %v6506 = vld [vmem:[#allocation15 + $0x18b0] sm:$0xff]
    %v6507 = vld [vmem:[#allocation15 + $0x18b8] sm:$0xff]
    %v6508 = vld [vmem:[#allocation15 + $0x18c0] sm:$0xff]
    %v6509 = vld [vmem:[#allocation15 + $0x18c8] sm:$0xff]
    %v6510 = vld [vmem:[#allocation15 + $0x18d0] sm:$0xff]
    %v6511 = vld [vmem:[#allocation15 + $0x18d8] sm:$0xff]
    %v6512 = vld [vmem:[#allocation15 + $0x18e0] sm:$0xff]
    %v6513 = vld [vmem:[#allocation15 + $0x18e8] sm:$0xff]
    %v6514 = vld [vmem:[#allocation15 + $0x18f0] sm:$0xff]
    %v6515 = vld [vmem:[#allocation15 + $0x18f8] sm:$0xff]
    %v6516 = vld [vmem:[#allocation15 + $0x1900] sm:$0xff]
    %v6517 = vld [vmem:[#allocation15 + $0x1908] sm:$0xff]
    %v6518 = vld [vmem:[#allocation15 + $0x1910] sm:$0xff]
    %v6519 = vld [vmem:[#allocation15 + $0x1918] sm:$0xff]
    %v6520 = vld [vmem:[#allocation15 + $0x1920] sm:$0xff]
    %v6521 = vld [vmem:[#allocation15 + $0x1928] sm:$0xff]
    %v6522 = vld [vmem:[#allocation15 + $0x1930] sm:$0xff]
    %v6523 = vld [vmem:[#allocation15 + $0x1938] sm:$0xff]
    %v6524 = vld [vmem:[#allocation15 + $0x1940] sm:$0xff]
    %v6525 = vld [vmem:[#allocation15 + $0x1948] sm:$0xff]
    %v6526 = vld [vmem:[#allocation15 + $0x1950] sm:$0xff]
    %v6527 = vld [vmem:[#allocation15 + $0x1958] sm:$0xff]
    %v6528 = vld [vmem:[#allocation15 + $0x1960] sm:$0xff]
    %v6529 = vld [vmem:[#allocation15 + $0x1968] sm:$0xff]
    %v6530 = vld [vmem:[#allocation15 + $0x1970] sm:$0xff]
    %v6531 = vld [vmem:[#allocation15 + $0x1978] sm:$0xff]
    %v6532 = vld [vmem:[#allocation15 + $0x1980] sm:$0xff]
    %v6533 = vld [vmem:[#allocation15 + $0x1988] sm:$0xff]
    %v6534 = vld [vmem:[#allocation15 + $0x1990] sm:$0xff]
    %v6535 = vld [vmem:[#allocation15 + $0x1998] sm:$0xff]
    %v6536 = vld [vmem:[#allocation15 + $0x19a0] sm:$0xff]
    %v6537 = vld [vmem:[#allocation15 + $0x19a8] sm:$0xff]
    %v6538 = vld [vmem:[#allocation15 + $0x19b0] sm:$0xff]
    %v6539 = vld [vmem:[#allocation15 + $0x19b8] sm:$0xff]
    %v6540 = vld [vmem:[#allocation15 + $0x19c0] sm:$0xff]
    %v6541 = vld [vmem:[#allocation15 + $0x19c8] sm:$0xff]
    %v6542 = vld [vmem:[#allocation15 + $0x19d0] sm:$0xff]
    %v6543 = vld [vmem:[#allocation15 + $0x19d8] sm:$0xff]
    %v6544 = vld [vmem:[#allocation15 + $0x19e0] sm:$0xff]
    %v6545 = vld [vmem:[#allocation15 + $0x19e8] sm:$0xff]
    %v6546 = vld [vmem:[#allocation15 + $0x19f0] sm:$0xff]
    %v6547 = vld [vmem:[#allocation15 + $0x19f8] sm:$0xff]
    %v6548 = vld [vmem:[#allocation15 + $0x1a00] sm:$0xff]
    %v6549 = vld [vmem:[#allocation15 + $0x1a08] sm:$0xff]
    %v6550 = vld [vmem:[#allocation15 + $0x1a10] sm:$0xff]
    %v6551 = vld [vmem:[#allocation15 + $0x1a18] sm:$0xff]
    %v6552 = vld [vmem:[#allocation15 + $0x1a20] sm:$0xff]
    %v6553 = vld [vmem:[#allocation15 + $0x1a28] sm:$0xff]
    %v6554 = vld [vmem:[#allocation15 + $0x1a30] sm:$0xff]
    %v6555 = vld [vmem:[#allocation15 + $0x1a38] sm:$0xff]
    %v6556 = vld [vmem:[#allocation15 + $0x1a40] sm:$0xff]
    %v6557 = vld [vmem:[#allocation15 + $0x1a48] sm:$0xff]
    %v6558 = vld [vmem:[#allocation15 + $0x1a50] sm:$0xff]
    %v6559 = vld [vmem:[#allocation15 + $0x1a58] sm:$0xff]
    %v6560 = vld [vmem:[#allocation15 + $0x1a60] sm:$0xff]
    %v6561 = vld [vmem:[#allocation15 + $0x1a68] sm:$0xff]
    %v6562 = vld [vmem:[#allocation15 + $0x1a70] sm:$0xff]
    %v6563 = vld [vmem:[#allocation15 + $0x1a78] sm:$0xff]
    %v6564 = vld [vmem:[#allocation15 + $0x1a80] sm:$0xff]
    %v6565 = vld [vmem:[#allocation15 + $0x1a88] sm:$0xff]
    %v6566 = vld [vmem:[#allocation15 + $0x1a90] sm:$0xff]
    %v6567 = vld [vmem:[#allocation15 + $0x1a98] sm:$0xff]
    %v6568 = vld [vmem:[#allocation15 + $0x1aa0] sm:$0xff]
    %v6569 = vld [vmem:[#allocation15 + $0x1aa8] sm:$0xff]
    %v6570 = vld [vmem:[#allocation15 + $0x1ab0] sm:$0xff]
    %v6571 = vld [vmem:[#allocation15 + $0x1ab8] sm:$0xff]
    %v6572 = vld [vmem:[#allocation15 + $0x1ac0] sm:$0xff]
    %v6573 = vld [vmem:[#allocation15 + $0x1ac8] sm:$0xff]
    %v6574 = vld [vmem:[#allocation15 + $0x1ad0] sm:$0xff]
    %v6575 = vld [vmem:[#allocation15 + $0x1ad8] sm:$0xff]
    %v6576 = vld [vmem:[#allocation15 + $0x1ae0] sm:$0xff]
    %v6577 = vld [vmem:[#allocation15 + $0x1ae8] sm:$0xff]
    %v6578 = vld [vmem:[#allocation15 + $0x1af0] sm:$0xff]
    %v6579 = vld [vmem:[#allocation15 + $0x1af8] sm:$0xff]
    %v6580 = vld [vmem:[#allocation15 + $0x1b00] sm:$0xff]
    %v6581 = vld [vmem:[#allocation15 + $0x1b08] sm:$0xff]
    %v6582 = vld [vmem:[#allocation15 + $0x1b10] sm:$0xff]
    %v6583 = vld [vmem:[#allocation15 + $0x1b18] sm:$0xff]
    %v6584 = vld [vmem:[#allocation15 + $0x1b20] sm:$0xff]
    %v6585 = vld [vmem:[#allocation15 + $0x1b28] sm:$0xff]
    %v6586 = vld [vmem:[#allocation15 + $0x1b30] sm:$0xff]
    %v6587 = vld [vmem:[#allocation15 + $0x1b38] sm:$0xff]
    %v6588 = vld [vmem:[#allocation15 + $0x1b40] sm:$0xff]
    %v6589 = vld [vmem:[#allocation15 + $0x1b48] sm:$0xff]
    %v6590 = vld [vmem:[#allocation15 + $0x1b50] sm:$0xff]
    %v6591 = vld [vmem:[#allocation15 + $0x1b58] sm:$0xff]
    %v6592 = vld [vmem:[#allocation15 + $0x1b60] sm:$0xff]
    %v6593 = vld [vmem:[#allocation15 + $0x1b68] sm:$0xff]
    %v6594 = vld [vmem:[#allocation15 + $0x1b70] sm:$0xff]
    %v6595 = vld [vmem:[#allocation15 + $0x1b78] sm:$0xff]
    %v6596 = vld [vmem:[#allocation15 + $0x1b80] sm:$0xff]
    %v6597 = vld [vmem:[#allocation15 + $0x1b88] sm:$0xff]
    %v6598 = vld [vmem:[#allocation15 + $0x1b90] sm:$0xff]
    %v6599 = vld [vmem:[#allocation15 + $0x1b98] sm:$0xff]
    %v6600 = vld [vmem:[#allocation15 + $0x1ba0] sm:$0xff]
    %v6601 = vld [vmem:[#allocation15 + $0x1ba8] sm:$0xff]
    %v6602 = vld [vmem:[#allocation15 + $0x1bb0] sm:$0xff]
    %v6603 = vld [vmem:[#allocation15 + $0x1bb8] sm:$0xff]
    %v6604 = vld [vmem:[#allocation15 + $0x1bc0] sm:$0xff]
    %v6605 = vld [vmem:[#allocation15 + $0x1bc8] sm:$0xff]
    %v6606 = vld [vmem:[#allocation15 + $0x1bd0] sm:$0xff]
    %v6607 = vld [vmem:[#allocation15 + $0x1bd8] sm:$0xff]
    %v6608 = vld [vmem:[#allocation15 + $0x1be0] sm:$0xff]
    %v6609 = vld [vmem:[#allocation15 + $0x1be8] sm:$0xff]
    %v6610 = vld [vmem:[#allocation15 + $0x1bf0] sm:$0xff]
    %v6611 = vld [vmem:[#allocation15 + $0x1bf8] sm:$0xff]
    %v6612 = vld [vmem:[#allocation15 + $0x1c00] sm:$0xff]
    %v6613 = vld [vmem:[#allocation15 + $0x1c08] sm:$0xff]
    %v6614 = vld [vmem:[#allocation15 + $0x1c10] sm:$0xff]
    %v6615 = vld [vmem:[#allocation15 + $0x1c18] sm:$0xff]
    %v6616 = vld [vmem:[#allocation15 + $0x1c20] sm:$0xff]
    %v6617 = vld [vmem:[#allocation15 + $0x1c28] sm:$0xff]
    %v6618 = vld [vmem:[#allocation15 + $0x1c30] sm:$0xff]
    %v6619 = vld [vmem:[#allocation15 + $0x1c38] sm:$0xff]
    %v6620 = vld [vmem:[#allocation15 + $0x1c40] sm:$0xff]
    %v6621 = vld [vmem:[#allocation15 + $0x1c48] sm:$0xff]
    %v6622 = vld [vmem:[#allocation15 + $0x1c50] sm:$0xff]
    %v6623 = vld [vmem:[#allocation15 + $0x1c58] sm:$0xff]
    %v6624 = vld [vmem:[#allocation15 + $0x1c60] sm:$0xff]
    %v6625 = vld [vmem:[#allocation15 + $0x1c68] sm:$0xff]
    %v6626 = vld [vmem:[#allocation15 + $0x1c70] sm:$0xff]
    %v6627 = vld [vmem:[#allocation15 + $0x1c78] sm:$0xff]
    %v6628 = vld [vmem:[#allocation15 + $0x1c80] sm:$0xff]
    %v6629 = vld [vmem:[#allocation15 + $0x1c88] sm:$0xff]
    %v6630 = vld [vmem:[#allocation15 + $0x1c90] sm:$0xff]
    %v6631 = vld [vmem:[#allocation15 + $0x1c98] sm:$0xff]
    %v6632 = vld [vmem:[#allocation15 + $0x1ca0] sm:$0xff]
    %v6633 = vld [vmem:[#allocation15 + $0x1ca8] sm:$0xff]
    %v6634 = vld [vmem:[#allocation15 + $0x1cb0] sm:$0xff]
    %v6635 = vld [vmem:[#allocation15 + $0x1cb8] sm:$0xff]
    %v6636 = vld [vmem:[#allocation15 + $0x1cc0] sm:$0xff]
    %v6637 = vld [vmem:[#allocation15 + $0x1cc8] sm:$0xff]
    %v6638 = vld [vmem:[#allocation15 + $0x1cd0] sm:$0xff]
    %v6639 = vld [vmem:[#allocation15 + $0x1cd8] sm:$0xff]
    %v6640 = vld [vmem:[#allocation15 + $0x1ce0] sm:$0xff]
    %v6641 = vld [vmem:[#allocation15 + $0x1ce8] sm:$0xff]
    %v6642 = vld [vmem:[#allocation15 + $0x1cf0] sm:$0xff]
    %v6643 = vld [vmem:[#allocation15 + $0x1cf8] sm:$0xff]
    %v6644 = vld [vmem:[#allocation15 + $0x1d00] sm:$0xff]
    %v6645 = vld [vmem:[#allocation15 + $0x1d08] sm:$0xff]
    %v6646 = vld [vmem:[#allocation15 + $0x1d10] sm:$0xff]
    %v6647 = vld [vmem:[#allocation15 + $0x1d18] sm:$0xff]
    %v6648 = vld [vmem:[#allocation15 + $0x1d20] sm:$0xff]
    %v6649 = vld [vmem:[#allocation15 + $0x1d28] sm:$0xff]
    %v6650 = vld [vmem:[#allocation15 + $0x1d30] sm:$0xff]
    %v6651 = vld [vmem:[#allocation15 + $0x1d38] sm:$0xff]
    %v6652 = vld [vmem:[#allocation15 + $0x1d40] sm:$0xff]
    %v6653 = vld [vmem:[#allocation15 + $0x1d48] sm:$0xff]
    %v6654 = vld [vmem:[#allocation15 + $0x1d50] sm:$0xff]
    %v6655 = vld [vmem:[#allocation15 + $0x1d58] sm:$0xff]
    %v6656 = vld [vmem:[#allocation15 + $0x1d60] sm:$0xff]
    %v6657 = vld [vmem:[#allocation15 + $0x1d68] sm:$0xff]
    %v6658 = vld [vmem:[#allocation15 + $0x1d70] sm:$0xff]
    %v6659 = vld [vmem:[#allocation15 + $0x1d78] sm:$0xff]
    %v6660 = vld [vmem:[#allocation15 + $0x1d80] sm:$0xff]
    %v6661 = vld [vmem:[#allocation15 + $0x1d88] sm:$0xff]
    %v6662 = vld [vmem:[#allocation15 + $0x1d90] sm:$0xff]
    %v6663 = vld [vmem:[#allocation15 + $0x1d98] sm:$0xff]
    %v6664 = vld [vmem:[#allocation15 + $0x1da0] sm:$0xff]
    %v6665 = vld [vmem:[#allocation15 + $0x1da8] sm:$0xff]
    %v6666 = vld [vmem:[#allocation15 + $0x1db0] sm:$0xff]
    %v6667 = vld [vmem:[#allocation15 + $0x1db8] sm:$0xff]
    %v6668 = vld [vmem:[#allocation15 + $0x1dc0] sm:$0xff]
    %v6669 = vld [vmem:[#allocation15 + $0x1dc8] sm:$0xff]
    %v6670 = vld [vmem:[#allocation15 + $0x1dd0] sm:$0xff]
    %v6671 = vld [vmem:[#allocation15 + $0x1dd8] sm:$0xff]
    %v6672 = vld [vmem:[#allocation15 + $0x1de0] sm:$0xff]
    %v6673 = vld [vmem:[#allocation15 + $0x1de8] sm:$0xff]
    %v6674 = vld [vmem:[#allocation15 + $0x1df0] sm:$0xff]
    %v6675 = vld [vmem:[#allocation15 + $0x1df8] sm:$0xff]
    %v6676 = vld [vmem:[#allocation15 + $0x1e00] sm:$0xff]
    %v6677 = vld [vmem:[#allocation15 + $0x1e08] sm:$0xff]
    %v6678 = vld [vmem:[#allocation15 + $0x1e10] sm:$0xff]
    %v6679 = vld [vmem:[#allocation15 + $0x1e18] sm:$0xff]
    %v6680 = vld [vmem:[#allocation15 + $0x1e20] sm:$0xff]
    %v6681 = vld [vmem:[#allocation15 + $0x1e28] sm:$0xff]
    %v6682 = vld [vmem:[#allocation15 + $0x1e30] sm:$0xff]
    %v6683 = vld [vmem:[#allocation15 + $0x1e38] sm:$0xff]
    %v6684 = vld [vmem:[#allocation15 + $0x1e40] sm:$0xff]
    %v6685 = vld [vmem:[#allocation15 + $0x1e48] sm:$0xff]
    %v6686 = vld [vmem:[#allocation15 + $0x1e50] sm:$0xff]
    %v6687 = vld [vmem:[#allocation15 + $0x1e58] sm:$0xff]
    %v6688 = vld [vmem:[#allocation15 + $0x1e60] sm:$0xff]
    %v6689 = vld [vmem:[#allocation15 + $0x1e68] sm:$0xff]
    %v6690 = vld [vmem:[#allocation15 + $0x1e70] sm:$0xff]
    %v6691 = vld [vmem:[#allocation15 + $0x1e78] sm:$0xff]
    %v6692 = vld [vmem:[#allocation15 + $0x1e80] sm:$0xff]
    %v6693 = vld [vmem:[#allocation15 + $0x1e88] sm:$0xff]
    %v6694 = vld [vmem:[#allocation15 + $0x1e90] sm:$0xff]
    %v6695 = vld [vmem:[#allocation15 + $0x1e98] sm:$0xff]
    %v6696 = vld [vmem:[#allocation15 + $0x1ea0] sm:$0xff]
    %v6697 = vld [vmem:[#allocation15 + $0x1ea8] sm:$0xff]
    %v6698 = vld [vmem:[#allocation15 + $0x1eb0] sm:$0xff]
    %v6699 = vld [vmem:[#allocation15 + $0x1eb8] sm:$0xff]
    %v6700 = vld [vmem:[#allocation15 + $0x1ec0] sm:$0xff]
    %v6701 = vld [vmem:[#allocation15 + $0x1ec8] sm:$0xff]
    %v6702 = vld [vmem:[#allocation15 + $0x1ed0] sm:$0xff]
    %v6703 = vld [vmem:[#allocation15 + $0x1ed8] sm:$0xff]
    %v6704 = vld [vmem:[#allocation15 + $0x1ee0] sm:$0xff]
    %v6705 = vld [vmem:[#allocation15 + $0x1ee8] sm:$0xff]
    %v6706 = vld [vmem:[#allocation15 + $0x1ef0] sm:$0xff]
    %v6707 = vld [vmem:[#allocation15 + $0x1ef8] sm:$0xff]
    %v6708 = vld [vmem:[#allocation15 + $0x1f00] sm:$0xff]
    %v6709 = vld [vmem:[#allocation15 + $0x1f08] sm:$0xff]
    %v6710 = vld [vmem:[#allocation15 + $0x1f10] sm:$0xff]
    %v6711 = vld [vmem:[#allocation15 + $0x1f18] sm:$0xff]
    %v6712 = vld [vmem:[#allocation15 + $0x1f20] sm:$0xff]
    %v6713 = vld [vmem:[#allocation15 + $0x1f28] sm:$0xff]
    %v6714 = vld [vmem:[#allocation15 + $0x1f30] sm:$0xff]
    %v6715 = vld [vmem:[#allocation15 + $0x1f38] sm:$0xff]
    %v6716 = vld [vmem:[#allocation15 + $0x1f40] sm:$0xff]
    %v6717 = vld [vmem:[#allocation15 + $0x1f48] sm:$0xff]
    %v6718 = vld [vmem:[#allocation15 + $0x1f50] sm:$0xff]
    %v6719 = vld [vmem:[#allocation15 + $0x1f58] sm:$0xff]
    %v6720 = vld [vmem:[#allocation15 + $0x1f60] sm:$0xff]
    %v6721 = vld [vmem:[#allocation15 + $0x1f68] sm:$0xff]
    %v6722 = vld [vmem:[#allocation15 + $0x1f70] sm:$0xff]
    %v6723 = vld [vmem:[#allocation15 + $0x1f78] sm:$0xff]
    %v6724 = vld [vmem:[#allocation15 + $0x1f80] sm:$0xff]
    %v6725 = vld [vmem:[#allocation15 + $0x1f88] sm:$0xff]
    %v6726 = vld [vmem:[#allocation15 + $0x1f90] sm:$0xff]
    %v6727 = vld [vmem:[#allocation15 + $0x1f98] sm:$0xff]
    %v6728 = vld [vmem:[#allocation15 + $0x1fa0] sm:$0xff]
    %v6729 = vld [vmem:[#allocation15 + $0x1fa8] sm:$0xff]
    %v6730 = vld [vmem:[#allocation15 + $0x1fb0] sm:$0xff]
    %v6731 = vld [vmem:[#allocation15 + $0x1fb8] sm:$0xff]
    %v6732 = vld [vmem:[#allocation15 + $0x1fc0] sm:$0xff]
    %v6733 = vld [vmem:[#allocation15 + $0x1fc8] sm:$0xff]
    %v6734 = vld [vmem:[#allocation15 + $0x1fd0] sm:$0xff]
    %v6735 = vld [vmem:[#allocation15 + $0x1fd8] sm:$0xff]
    %v6736 = vld [vmem:[#allocation15 + $0x1fe0] sm:$0xff]
    %v6737 = vld [vmem:[#allocation15 + $0x1fe8] sm:$0xff]
    %v6738 = vld [vmem:[#allocation15 + $0x1ff0] sm:$0xff]
    %v6739 = vld [vmem:[#allocation15 + $0x1ff8] sm:$0xff]
    %v6740 = vld [vmem:[#allocation16] sm:$0x3]
    %v6742 = vlaneseq
    %v6743 = vshrl.u32 %v6742, 7
    %v6744 = vsub.s32 0, %v6743
    %v6745 = vrot.slane %v6740, %v6744
    %v6746 = vlaneseq
    %v6747 = vshrl.u32 %v6746, 7
    %v6748 = vsub.s32 1, %v6747
    %v6749 = vrot.slane %v6740, %v6748
    %v7776 = vunpack.c.l.b16 %v5716
    %v7777 = vunpack.c.h.b16 %v5716
    %v7778 = vunpack.c.l.b16 %v5717
    %v7779 = vunpack.c.h.b16 %v5717
    %v7780 = vunpack.c.l.b16 %v5718
    %v7781 = vunpack.c.h.b16 %v5718
    %v7782 = vunpack.c.l.b16 %v5719
    %v7783 = vunpack.c.h.b16 %v5719
    %v7784 = vunpack.c.l.b16 %v5720
    %v7785 = vunpack.c.h.b16 %v5720
    %v7786 = vunpack.c.l.b16 %v5721
    %v7787 = vunpack.c.h.b16 %v5721
    %v7788 = vunpack.c.l.b16 %v5722
    %v7789 = vunpack.c.h.b16 %v5722
    %v7790 = vunpack.c.l.b16 %v5723
    %v7791 = vunpack.c.h.b16 %v5723
    %v7792 = vunpack.c.l.b16 %v5724
    %v7793 = vunpack.c.h.b16 %v5724
    %v7794 = vunpack.c.l.b16 %v5725
    %v7795 = vunpack.c.h.b16 %v5725
    %v7796 = vunpack.c.l.b16 %v5726
    %v7797 = vunpack.c.h.b16 %v5726
    %v7798 = vunpack.c.l.b16 %v5727
    %v7799 = vunpack.c.h.b16 %v5727
    %v7800 = vunpack.c.l.b16 %v5728
    %v7801 = vunpack.c.h.b16 %v5728
    %v7802 = vunpack.c.l.b16 %v5729
    %v7803 = vunpack.c.h.b16 %v5729
    %v7804 = vunpack.c.l.b16 %v5730
    %v7805 = vunpack.c.h.b16 %v5730
    %v7806 = vunpack.c.l.b16 %v5731
    %v7807 = vunpack.c.h.b16 %v5731
    %v7808 = vunpack.c.l.b16 %v5732
    %v7809 = vunpack.c.h.b16 %v5732
    %v7810 = vunpack.c.l.b16 %v5733
    %v7811 = vunpack.c.h.b16 %v5733
    %v7812 = vunpack.c.l.b16 %v5734
    %v7813 = vunpack.c.h.b16 %v5734
    %v7814 = vunpack.c.l.b16 %v5735
    %v7815 = vunpack.c.h.b16 %v5735
    %v7816 = vunpack.c.l.b16 %v5736
    %v7817 = vunpack.c.h.b16 %v5736
    %v7818 = vunpack.c.l.b16 %v5737
    %v7819 = vunpack.c.h.b16 %v5737
    %v7820 = vunpack.c.l.b16 %v5738
    %v7821 = vunpack.c.h.b16 %v5738
    %v7822 = vunpack.c.l.b16 %v5739
    %v7823 = vunpack.c.h.b16 %v5739
    %v7824 = vunpack.c.l.b16 %v5740
    %v7825 = vunpack.c.h.b16 %v5740
    %v7826 = vunpack.c.l.b16 %v5741
    %v7827 = vunpack.c.h.b16 %v5741
    %v7828 = vunpack.c.l.b16 %v5742
    %v7829 = vunpack.c.h.b16 %v5742
    %v7830 = vunpack.c.l.b16 %v5743
    %v7831 = vunpack.c.h.b16 %v5743
    %v7832 = vunpack.c.l.b16 %v5744
    %v7833 = vunpack.c.h.b16 %v5744
    %v7834 = vunpack.c.l.b16 %v5745
    %v7835 = vunpack.c.h.b16 %v5745
    %v7836 = vunpack.c.l.b16 %v5746
    %v7837 = vunpack.c.h.b16 %v5746
    %v7838 = vunpack.c.l.b16 %v5747
    %v7839 = vunpack.c.h.b16 %v5747
    %v7840 = vunpack.c.l.b16 %v5748
    %v7841 = vunpack.c.h.b16 %v5748
    %v7842 = vunpack.c.l.b16 %v5749
    %v7843 = vunpack.c.h.b16 %v5749
    %v7844 = vunpack.c.l.b16 %v5750
    %v7845 = vunpack.c.h.b16 %v5750
    %v7846 = vunpack.c.l.b16 %v5751
    %v7847 = vunpack.c.h.b16 %v5751
    %v7848 = vunpack.c.l.b16 %v5752
    %v7849 = vunpack.c.h.b16 %v5752
    %v7850 = vunpack.c.l.b16 %v5753
    %v7851 = vunpack.c.h.b16 %v5753
    %v7852 = vunpack.c.l.b16 %v5754
    %v7853 = vunpack.c.h.b16 %v5754
    %v7854 = vunpack.c.l.b16 %v5755
    %v7855 = vunpack.c.h.b16 %v5755
    %v7856 = vunpack.c.l.b16 %v5756
    %v7857 = vunpack.c.h.b16 %v5756
    %v7858 = vunpack.c.l.b16 %v5757
    %v7859 = vunpack.c.h.b16 %v5757
    %v7860 = vunpack.c.l.b16 %v5758
    %v7861 = vunpack.c.h.b16 %v5758
    %v7862 = vunpack.c.l.b16 %v5759
    %v7863 = vunpack.c.h.b16 %v5759
    %v7864 = vunpack.c.l.b16 %v5760
    %v7865 = vunpack.c.h.b16 %v5760
    %v7866 = vunpack.c.l.b16 %v5761
    %v7867 = vunpack.c.h.b16 %v5761
    %v7868 = vunpack.c.l.b16 %v5762
    %v7869 = vunpack.c.h.b16 %v5762
    %v7870 = vunpack.c.l.b16 %v5763
    %v7871 = vunpack.c.h.b16 %v5763
    %v7872 = vunpack.c.l.b16 %v5764
    %v7873 = vunpack.c.h.b16 %v5764
    %v7874 = vunpack.c.l.b16 %v5765
    %v7875 = vunpack.c.h.b16 %v5765
    %v7876 = vunpack.c.l.b16 %v5766
    %v7877 = vunpack.c.h.b16 %v5766
    %v7878 = vunpack.c.l.b16 %v5767
    %v7879 = vunpack.c.h.b16 %v5767
    %v7880 = vunpack.c.l.b16 %v5768
    %v7881 = vunpack.c.h.b16 %v5768
    %v7882 = vunpack.c.l.b16 %v5769
    %v7883 = vunpack.c.h.b16 %v5769
    %v7884 = vunpack.c.l.b16 %v5770
    %v7885 = vunpack.c.h.b16 %v5770
    %v7886 = vunpack.c.l.b16 %v5771
    %v7887 = vunpack.c.h.b16 %v5771
    %v7888 = vunpack.c.l.b16 %v5772
    %v7889 = vunpack.c.h.b16 %v5772
    %v7890 = vunpack.c.l.b16 %v5773
    %v7891 = vunpack.c.h.b16 %v5773
    %v7892 = vunpack.c.l.b16 %v5774
    %v7893 = vunpack.c.h.b16 %v5774
    %v7894 = vunpack.c.l.b16 %v5775
    %v7895 = vunpack.c.h.b16 %v5775
    %v7896 = vunpack.c.l.b16 %v5776
    %v7897 = vunpack.c.h.b16 %v5776
    %v7898 = vunpack.c.l.b16 %v5777
    %v7899 = vunpack.c.h.b16 %v5777
    %v7900 = vunpack.c.l.b16 %v5778
    %v7901 = vunpack.c.h.b16 %v5778
    %v7902 = vunpack.c.l.b16 %v5779
    %v7903 = vunpack.c.h.b16 %v5779
    %v7904 = vunpack.c.l.b16 %v5780
    %v7905 = vunpack.c.h.b16 %v5780
    %v7906 = vunpack.c.l.b16 %v5781
    %v7907 = vunpack.c.h.b16 %v5781
    %v7908 = vunpack.c.l.b16 %v5782
    %v7909 = vunpack.c.h.b16 %v5782
    %v7910 = vunpack.c.l.b16 %v5783
    %v7911 = vunpack.c.h.b16 %v5783
    %v7912 = vunpack.c.l.b16 %v5784
    %v7913 = vunpack.c.h.b16 %v5784
    %v7914 = vunpack.c.l.b16 %v5785
    %v7915 = vunpack.c.h.b16 %v5785
    %v7916 = vunpack.c.l.b16 %v5786
    %v7917 = vunpack.c.h.b16 %v5786
    %v7918 = vunpack.c.l.b16 %v5787
    %v7919 = vunpack.c.h.b16 %v5787
    %v7920 = vunpack.c.l.b16 %v5788
    %v7921 = vunpack.c.h.b16 %v5788
    %v7922 = vunpack.c.l.b16 %v5789
    %v7923 = vunpack.c.h.b16 %v5789
    %v7924 = vunpack.c.l.b16 %v5790
    %v7925 = vunpack.c.h.b16 %v5790
    %v7926 = vunpack.c.l.b16 %v5791
    %v7927 = vunpack.c.h.b16 %v5791
    %v7928 = vunpack.c.l.b16 %v5792
    %v7929 = vunpack.c.h.b16 %v5792
    %v7930 = vunpack.c.l.b16 %v5793
    %v7931 = vunpack.c.h.b16 %v5793
    %v7932 = vunpack.c.l.b16 %v5794
    %v7933 = vunpack.c.h.b16 %v5794
    %v7934 = vunpack.c.l.b16 %v5795
    %v7935 = vunpack.c.h.b16 %v5795
    %v7936 = vunpack.c.l.b16 %v5796
    %v7937 = vunpack.c.h.b16 %v5796
    %v7938 = vunpack.c.l.b16 %v5797
    %v7939 = vunpack.c.h.b16 %v5797
    %v7940 = vunpack.c.l.b16 %v5798
    %v7941 = vunpack.c.h.b16 %v5798
    %v7942 = vunpack.c.l.b16 %v5799
    %v7943 = vunpack.c.h.b16 %v5799
    %v7944 = vunpack.c.l.b16 %v5800
    %v7945 = vunpack.c.h.b16 %v5800
    %v7946 = vunpack.c.l.b16 %v5801
    %v7947 = vunpack.c.h.b16 %v5801
    %v7948 = vunpack.c.l.b16 %v5802
    %v7949 = vunpack.c.h.b16 %v5802
    %v7950 = vunpack.c.l.b16 %v5803
    %v7951 = vunpack.c.h.b16 %v5803
    %v7952 = vunpack.c.l.b16 %v5804
    %v7953 = vunpack.c.h.b16 %v5804
    %v7954 = vunpack.c.l.b16 %v5805
    %v7955 = vunpack.c.h.b16 %v5805
    %v7956 = vunpack.c.l.b16 %v5806
    %v7957 = vunpack.c.h.b16 %v5806
    %v7958 = vunpack.c.l.b16 %v5807
    %v7959 = vunpack.c.h.b16 %v5807
    %v7960 = vunpack.c.l.b16 %v5808
    %v7961 = vunpack.c.h.b16 %v5808
    %v7962 = vunpack.c.l.b16 %v5809
    %v7963 = vunpack.c.h.b16 %v5809
    %v7964 = vunpack.c.l.b16 %v5810
    %v7965 = vunpack.c.h.b16 %v5810
    %v7966 = vunpack.c.l.b16 %v5811
    %v7967 = vunpack.c.h.b16 %v5811
    %v7968 = vunpack.c.l.b16 %v5812
    %v7969 = vunpack.c.h.b16 %v5812
    %v7970 = vunpack.c.l.b16 %v5813
    %v7971 = vunpack.c.h.b16 %v5813
    %v7972 = vunpack.c.l.b16 %v5814
    %v7973 = vunpack.c.h.b16 %v5814
    %v7974 = vunpack.c.l.b16 %v5815
    %v7975 = vunpack.c.h.b16 %v5815
    %v7976 = vunpack.c.l.b16 %v5816
    %v7977 = vunpack.c.h.b16 %v5816
    %v7978 = vunpack.c.l.b16 %v5817
    %v7979 = vunpack.c.h.b16 %v5817
    %v7980 = vunpack.c.l.b16 %v5818
    %v7981 = vunpack.c.h.b16 %v5818
    %v7982 = vunpack.c.l.b16 %v5819
    %v7983 = vunpack.c.h.b16 %v5819
    %v7984 = vunpack.c.l.b16 %v5820
    %v7985 = vunpack.c.h.b16 %v5820
    %v7986 = vunpack.c.l.b16 %v5821
    %v7987 = vunpack.c.h.b16 %v5821
    %v7988 = vunpack.c.l.b16 %v5822
    %v7989 = vunpack.c.h.b16 %v5822
    %v7990 = vunpack.c.l.b16 %v5823
    %v7991 = vunpack.c.h.b16 %v5823
    %v7992 = vunpack.c.l.b16 %v5824
    %v7993 = vunpack.c.h.b16 %v5824
    %v7994 = vunpack.c.l.b16 %v5825
    %v7995 = vunpack.c.h.b16 %v5825
    %v7996 = vunpack.c.l.b16 %v5826
    %v7997 = vunpack.c.h.b16 %v5826
    %v7998 = vunpack.c.l.b16 %v5827
    %v7999 = vunpack.c.h.b16 %v5827
    %v8000 = vunpack.c.l.b16 %v5828
    %v8001 = vunpack.c.h.b16 %v5828
    %v8002 = vunpack.c.l.b16 %v5829
    %v8003 = vunpack.c.h.b16 %v5829
    %v8004 = vunpack.c.l.b16 %v5830
    %v8005 = vunpack.c.h.b16 %v5830
    %v8006 = vunpack.c.l.b16 %v5831
    %v8007 = vunpack.c.h.b16 %v5831
    %v8008 = vunpack.c.l.b16 %v5832
    %v8009 = vunpack.c.h.b16 %v5832
    %v8010 = vunpack.c.l.b16 %v5833
    %v8011 = vunpack.c.h.b16 %v5833
    %v8012 = vunpack.c.l.b16 %v5834
    %v8013 = vunpack.c.h.b16 %v5834
    %v8014 = vunpack.c.l.b16 %v5835
    %v8015 = vunpack.c.h.b16 %v5835
    %v8016 = vunpack.c.l.b16 %v5836
    %v8017 = vunpack.c.h.b16 %v5836
    %v8018 = vunpack.c.l.b16 %v5837
    %v8019 = vunpack.c.h.b16 %v5837
    %v8020 = vunpack.c.l.b16 %v5838
    %v8021 = vunpack.c.h.b16 %v5838
    %v8022 = vunpack.c.l.b16 %v5839
    %v8023 = vunpack.c.h.b16 %v5839
    %v8024 = vunpack.c.l.b16 %v5840
    %v8025 = vunpack.c.h.b16 %v5840
    %v8026 = vunpack.c.l.b16 %v5841
    %v8027 = vunpack.c.h.b16 %v5841
    %v8028 = vunpack.c.l.b16 %v5842
    %v8029 = vunpack.c.h.b16 %v5842
    %v8030 = vunpack.c.l.b16 %v5843
    %v8031 = vunpack.c.h.b16 %v5843
    %v8032 = vunpack.c.l.b16 %v5844
    %v8033 = vunpack.c.h.b16 %v5844
    %v8034 = vunpack.c.l.b16 %v5845
    %v8035 = vunpack.c.h.b16 %v5845
    %v8036 = vunpack.c.l.b16 %v5846
    %v8037 = vunpack.c.h.b16 %v5846
    %v8038 = vunpack.c.l.b16 %v5847
    %v8039 = vunpack.c.h.b16 %v5847
    %v8040 = vunpack.c.l.b16 %v5848
    %v8041 = vunpack.c.h.b16 %v5848
    %v8042 = vunpack.c.l.b16 %v5849
    %v8043 = vunpack.c.h.b16 %v5849
    %v8044 = vunpack.c.l.b16 %v5850
    %v8045 = vunpack.c.h.b16 %v5850
    %v8046 = vunpack.c.l.b16 %v5851
    %v8047 = vunpack.c.h.b16 %v5851
    %v8048 = vunpack.c.l.b16 %v5852
    %v8049 = vunpack.c.h.b16 %v5852
    %v8050 = vunpack.c.l.b16 %v5853
    %v8051 = vunpack.c.h.b16 %v5853
    %v8052 = vunpack.c.l.b16 %v5854
    %v8053 = vunpack.c.h.b16 %v5854
    %v8054 = vunpack.c.l.b16 %v5855
    %v8055 = vunpack.c.h.b16 %v5855
    %v8056 = vunpack.c.l.b16 %v5856
    %v8057 = vunpack.c.h.b16 %v5856
    %v8058 = vunpack.c.l.b16 %v5857
    %v8059 = vunpack.c.h.b16 %v5857
    %v8060 = vunpack.c.l.b16 %v5858
    %v8061 = vunpack.c.h.b16 %v5858
    %v8062 = vunpack.c.l.b16 %v5859
    %v8063 = vunpack.c.h.b16 %v5859
    %v8064 = vunpack.c.l.b16 %v5860
    %v8065 = vunpack.c.h.b16 %v5860
    %v8066 = vunpack.c.l.b16 %v5861
    %v8067 = vunpack.c.h.b16 %v5861
    %v8068 = vunpack.c.l.b16 %v5862
    %v8069 = vunpack.c.h.b16 %v5862
    %v8070 = vunpack.c.l.b16 %v5863
    %v8071 = vunpack.c.h.b16 %v5863
    %v8072 = vunpack.c.l.b16 %v5864
    %v8073 = vunpack.c.h.b16 %v5864
    %v8074 = vunpack.c.l.b16 %v5865
    %v8075 = vunpack.c.h.b16 %v5865
    %v8076 = vunpack.c.l.b16 %v5866
    %v8077 = vunpack.c.h.b16 %v5866
    %v8078 = vunpack.c.l.b16 %v5867
    %v8079 = vunpack.c.h.b16 %v5867
    %v8080 = vunpack.c.l.b16 %v5868
    %v8081 = vunpack.c.h.b16 %v5868
    %v8082 = vunpack.c.l.b16 %v5869
    %v8083 = vunpack.c.h.b16 %v5869
    %v8084 = vunpack.c.l.b16 %v5870
    %v8085 = vunpack.c.h.b16 %v5870
    %v8086 = vunpack.c.l.b16 %v5871
    %v8087 = vunpack.c.h.b16 %v5871
    %v8088 = vunpack.c.l.b16 %v5872
    %v8089 = vunpack.c.h.b16 %v5872
    %v8090 = vunpack.c.l.b16 %v5873
    %v8091 = vunpack.c.h.b16 %v5873
    %v8092 = vunpack.c.l.b16 %v5874
    %v8093 = vunpack.c.h.b16 %v5874
    %v8094 = vunpack.c.l.b16 %v5875
    %v8095 = vunpack.c.h.b16 %v5875
    %v8096 = vunpack.c.l.b16 %v5876
    %v8097 = vunpack.c.h.b16 %v5876
    %v8098 = vunpack.c.l.b16 %v5877
    %v8099 = vunpack.c.h.b16 %v5877
    %v8100 = vunpack.c.l.b16 %v5878
    %v8101 = vunpack.c.h.b16 %v5878
    %v8102 = vunpack.c.l.b16 %v5879
    %v8103 = vunpack.c.h.b16 %v5879
    %v8104 = vunpack.c.l.b16 %v5880
    %v8105 = vunpack.c.h.b16 %v5880
    %v8106 = vunpack.c.l.b16 %v5881
    %v8107 = vunpack.c.h.b16 %v5881
    %v8108 = vunpack.c.l.b16 %v5882
    %v8109 = vunpack.c.h.b16 %v5882
    %v8110 = vunpack.c.l.b16 %v5883
    %v8111 = vunpack.c.h.b16 %v5883
    %v8112 = vunpack.c.l.b16 %v5884
    %v8113 = vunpack.c.h.b16 %v5884
    %v8114 = vunpack.c.l.b16 %v5885
    %v8115 = vunpack.c.h.b16 %v5885
    %v8116 = vunpack.c.l.b16 %v5886
    %v8117 = vunpack.c.h.b16 %v5886
    %v8118 = vunpack.c.l.b16 %v5887
    %v8119 = vunpack.c.h.b16 %v5887
    %v8120 = vunpack.c.l.b16 %v5888
    %v8121 = vunpack.c.h.b16 %v5888
    %v8122 = vunpack.c.l.b16 %v5889
    %v8123 = vunpack.c.h.b16 %v5889
    %v8124 = vunpack.c.l.b16 %v5890
    %v8125 = vunpack.c.h.b16 %v5890
    %v8126 = vunpack.c.l.b16 %v5891
    %v8127 = vunpack.c.h.b16 %v5891
    %v8128 = vunpack.c.l.b16 %v5892
    %v8129 = vunpack.c.h.b16 %v5892
    %v8130 = vunpack.c.l.b16 %v5893
    %v8131 = vunpack.c.h.b16 %v5893
    %v8132 = vunpack.c.l.b16 %v5894
    %v8133 = vunpack.c.h.b16 %v5894
    %v8134 = vunpack.c.l.b16 %v5895
    %v8135 = vunpack.c.h.b16 %v5895
    %v8136 = vunpack.c.l.b16 %v5896
    %v8137 = vunpack.c.h.b16 %v5896
    %v8138 = vunpack.c.l.b16 %v5897
    %v8139 = vunpack.c.h.b16 %v5897
    %v8140 = vunpack.c.l.b16 %v5898
    %v8141 = vunpack.c.h.b16 %v5898
    %v8142 = vunpack.c.l.b16 %v5899
    %v8143 = vunpack.c.h.b16 %v5899
    %v8144 = vunpack.c.l.b16 %v5900
    %v8145 = vunpack.c.h.b16 %v5900
    %v8146 = vunpack.c.l.b16 %v5901
    %v8147 = vunpack.c.h.b16 %v5901
    %v8148 = vunpack.c.l.b16 %v5902
    %v8149 = vunpack.c.h.b16 %v5902
    %v8150 = vunpack.c.l.b16 %v5903
    %v8151 = vunpack.c.h.b16 %v5903
    %v8152 = vunpack.c.l.b16 %v5904
    %v8153 = vunpack.c.h.b16 %v5904
    %v8154 = vunpack.c.l.b16 %v5905
    %v8155 = vunpack.c.h.b16 %v5905
    %v8156 = vunpack.c.l.b16 %v5906
    %v8157 = vunpack.c.h.b16 %v5906
    %v8158 = vunpack.c.l.b16 %v5907
    %v8159 = vunpack.c.h.b16 %v5907
    %v8160 = vunpack.c.l.b16 %v5908
    %v8161 = vunpack.c.h.b16 %v5908
    %v8162 = vunpack.c.l.b16 %v5909
    %v8163 = vunpack.c.h.b16 %v5909
    %v8164 = vunpack.c.l.b16 %v5910
    %v8165 = vunpack.c.h.b16 %v5910
    %v8166 = vunpack.c.l.b16 %v5911
    %v8167 = vunpack.c.h.b16 %v5911
    %v8168 = vunpack.c.l.b16 %v5912
    %v8169 = vunpack.c.h.b16 %v5912
    %v8170 = vunpack.c.l.b16 %v5913
    %v8171 = vunpack.c.h.b16 %v5913
    %v8172 = vunpack.c.l.b16 %v5914
    %v8173 = vunpack.c.h.b16 %v5914
    %v8174 = vunpack.c.l.b16 %v5915
    %v8175 = vunpack.c.h.b16 %v5915
    %v8176 = vunpack.c.l.b16 %v5916
    %v8177 = vunpack.c.h.b16 %v5916
    %v8178 = vunpack.c.l.b16 %v5917
    %v8179 = vunpack.c.h.b16 %v5917
    %v8180 = vunpack.c.l.b16 %v5918
    %v8181 = vunpack.c.h.b16 %v5918
    %v8182 = vunpack.c.l.b16 %v5919
    %v8183 = vunpack.c.h.b16 %v5919
    %v8184 = vunpack.c.l.b16 %v5920
    %v8185 = vunpack.c.h.b16 %v5920
    %v8186 = vunpack.c.l.b16 %v5921
    %v8187 = vunpack.c.h.b16 %v5921
    %v8188 = vunpack.c.l.b16 %v5922
    %v8189 = vunpack.c.h.b16 %v5922
    %v8190 = vunpack.c.l.b16 %v5923
    %v8191 = vunpack.c.h.b16 %v5923
    %v8192 = vunpack.c.l.b16 %v5924
    %v8193 = vunpack.c.h.b16 %v5924
    %v8194 = vunpack.c.l.b16 %v5925
    %v8195 = vunpack.c.h.b16 %v5925
    %v8196 = vunpack.c.l.b16 %v5926
    %v8197 = vunpack.c.h.b16 %v5926
    %v8198 = vunpack.c.l.b16 %v5927
    %v8199 = vunpack.c.h.b16 %v5927
    %v8200 = vunpack.c.l.b16 %v5928
    %v8201 = vunpack.c.h.b16 %v5928
    %v8202 = vunpack.c.l.b16 %v5929
    %v8203 = vunpack.c.h.b16 %v5929
    %v8204 = vunpack.c.l.b16 %v5930
    %v8205 = vunpack.c.h.b16 %v5930
    %v8206 = vunpack.c.l.b16 %v5931
    %v8207 = vunpack.c.h.b16 %v5931
    %v8208 = vunpack.c.l.b16 %v5932
    %v8209 = vunpack.c.h.b16 %v5932
    %v8210 = vunpack.c.l.b16 %v5933
    %v8211 = vunpack.c.h.b16 %v5933
    %v8212 = vunpack.c.l.b16 %v5934
    %v8213 = vunpack.c.h.b16 %v5934
    %v8214 = vunpack.c.l.b16 %v5935
    %v8215 = vunpack.c.h.b16 %v5935
    %v8216 = vunpack.c.l.b16 %v5936
    %v8217 = vunpack.c.h.b16 %v5936
    %v8218 = vunpack.c.l.b16 %v5937
    %v8219 = vunpack.c.h.b16 %v5937
    %v8220 = vunpack.c.l.b16 %v5938
    %v8221 = vunpack.c.h.b16 %v5938
    %v8222 = vunpack.c.l.b16 %v5939
    %v8223 = vunpack.c.h.b16 %v5939
    %v8224 = vunpack.c.l.b16 %v5940
    %v8225 = vunpack.c.h.b16 %v5940
    %v8226 = vunpack.c.l.b16 %v5941
    %v8227 = vunpack.c.h.b16 %v5941
    %v8228 = vunpack.c.l.b16 %v5942
    %v8229 = vunpack.c.h.b16 %v5942
    %v8230 = vunpack.c.l.b16 %v5943
    %v8231 = vunpack.c.h.b16 %v5943
    %v8232 = vunpack.c.l.b16 %v5944
    %v8233 = vunpack.c.h.b16 %v5944
    %v8234 = vunpack.c.l.b16 %v5945
    %v8235 = vunpack.c.h.b16 %v5945
    %v8236 = vunpack.c.l.b16 %v5946
    %v8237 = vunpack.c.h.b16 %v5946
    %v8238 = vunpack.c.l.b16 %v5947
    %v8239 = vunpack.c.h.b16 %v5947
    %v8240 = vunpack.c.l.b16 %v5948
    %v8241 = vunpack.c.h.b16 %v5948
    %v8242 = vunpack.c.l.b16 %v5949
    %v8243 = vunpack.c.h.b16 %v5949
    %v8244 = vunpack.c.l.b16 %v5950
    %v8245 = vunpack.c.h.b16 %v5950
    %v8246 = vunpack.c.l.b16 %v5951
    %v8247 = vunpack.c.h.b16 %v5951
    %v8248 = vunpack.c.l.b16 %v5952
    %v8249 = vunpack.c.h.b16 %v5952
    %v8250 = vunpack.c.l.b16 %v5953
    %v8251 = vunpack.c.h.b16 %v5953
    %v8252 = vunpack.c.l.b16 %v5954
    %v8253 = vunpack.c.h.b16 %v5954
    %v8254 = vunpack.c.l.b16 %v5955
    %v8255 = vunpack.c.h.b16 %v5955
    %v8256 = vunpack.c.l.b16 %v5956
    %v8257 = vunpack.c.h.b16 %v5956
    %v8258 = vunpack.c.l.b16 %v5957
    %v8259 = vunpack.c.h.b16 %v5957
    %v8260 = vunpack.c.l.b16 %v5958
    %v8261 = vunpack.c.h.b16 %v5958
    %v8262 = vunpack.c.l.b16 %v5959
    %v8263 = vunpack.c.h.b16 %v5959
    %v8264 = vunpack.c.l.b16 %v5960
    %v8265 = vunpack.c.h.b16 %v5960
    %v8266 = vunpack.c.l.b16 %v5961
    %v8267 = vunpack.c.h.b16 %v5961
    %v8268 = vunpack.c.l.b16 %v5962
    %v8269 = vunpack.c.h.b16 %v5962
    %v8270 = vunpack.c.l.b16 %v5963
    %v8271 = vunpack.c.h.b16 %v5963
    %v8272 = vunpack.c.l.b16 %v5964
    %v8273 = vunpack.c.h.b16 %v5964
    %v8274 = vunpack.c.l.b16 %v5965
    %v8275 = vunpack.c.h.b16 %v5965
    %v8276 = vunpack.c.l.b16 %v5966
    %v8277 = vunpack.c.h.b16 %v5966
    %v8278 = vunpack.c.l.b16 %v5967
    %v8279 = vunpack.c.h.b16 %v5967
    %v8280 = vunpack.c.l.b16 %v5968
    %v8281 = vunpack.c.h.b16 %v5968
    %v8282 = vunpack.c.l.b16 %v5969
    %v8283 = vunpack.c.h.b16 %v5969
    %v8284 = vunpack.c.l.b16 %v5970
    %v8285 = vunpack.c.h.b16 %v5970
    %v8286 = vunpack.c.l.b16 %v5971
    %v8287 = vunpack.c.h.b16 %v5971
    %v8288 = vunpack.c.l.b16 %v5972
    %v8289 = vunpack.c.h.b16 %v5972
    %v8290 = vunpack.c.l.b16 %v5973
    %v8291 = vunpack.c.h.b16 %v5973
    %v8292 = vunpack.c.l.b16 %v5974
    %v8293 = vunpack.c.h.b16 %v5974
    %v8294 = vunpack.c.l.b16 %v5975
    %v8295 = vunpack.c.h.b16 %v5975
    %v8296 = vunpack.c.l.b16 %v5976
    %v8297 = vunpack.c.h.b16 %v5976
    %v8298 = vunpack.c.l.b16 %v5977
    %v8299 = vunpack.c.h.b16 %v5977
    %v8300 = vunpack.c.l.b16 %v5978
    %v8301 = vunpack.c.h.b16 %v5978
    %v8302 = vunpack.c.l.b16 %v5979
    %v8303 = vunpack.c.h.b16 %v5979
    %v8304 = vunpack.c.l.b16 %v5980
    %v8305 = vunpack.c.h.b16 %v5980
    %v8306 = vunpack.c.l.b16 %v5981
    %v8307 = vunpack.c.h.b16 %v5981
    %v8308 = vunpack.c.l.b16 %v5982
    %v8309 = vunpack.c.h.b16 %v5982
    %v8310 = vunpack.c.l.b16 %v5983
    %v8311 = vunpack.c.h.b16 %v5983
    %v8312 = vunpack.c.l.b16 %v5984
    %v8313 = vunpack.c.h.b16 %v5984
    %v8314 = vunpack.c.l.b16 %v5985
    %v8315 = vunpack.c.h.b16 %v5985
    %v8316 = vunpack.c.l.b16 %v5986
    %v8317 = vunpack.c.h.b16 %v5986
    %v8318 = vunpack.c.l.b16 %v5987
    %v8319 = vunpack.c.h.b16 %v5987
    %v8320 = vunpack.c.l.b16 %v5988
    %v8321 = vunpack.c.h.b16 %v5988
    %v8322 = vunpack.c.l.b16 %v5989
    %v8323 = vunpack.c.h.b16 %v5989
    %v8324 = vunpack.c.l.b16 %v5990
    %v8325 = vunpack.c.h.b16 %v5990
    %v8326 = vunpack.c.l.b16 %v5991
    %v8327 = vunpack.c.h.b16 %v5991
    %v8328 = vunpack.c.l.b16 %v5992
    %v8329 = vunpack.c.h.b16 %v5992
    %v8330 = vunpack.c.l.b16 %v5993
    %v8331 = vunpack.c.h.b16 %v5993
    %v8332 = vunpack.c.l.b16 %v5994
    %v8333 = vunpack.c.h.b16 %v5994
    %v8334 = vunpack.c.l.b16 %v5995
    %v8335 = vunpack.c.h.b16 %v5995
    %v8336 = vunpack.c.l.b16 %v5996
    %v8337 = vunpack.c.h.b16 %v5996
    %v8338 = vunpack.c.l.b16 %v5997
    %v8339 = vunpack.c.h.b16 %v5997
    %v8340 = vunpack.c.l.b16 %v5998
    %v8341 = vunpack.c.h.b16 %v5998
    %v8342 = vunpack.c.l.b16 %v5999
    %v8343 = vunpack.c.h.b16 %v5999
    %v8344 = vunpack.c.l.b16 %v6000
    %v8345 = vunpack.c.h.b16 %v6000
    %v8346 = vunpack.c.l.b16 %v6001
    %v8347 = vunpack.c.h.b16 %v6001
    %v8348 = vunpack.c.l.b16 %v6002
    %v8349 = vunpack.c.h.b16 %v6002
    %v8350 = vunpack.c.l.b16 %v6003
    %v8351 = vunpack.c.h.b16 %v6003
    %v8352 = vunpack.c.l.b16 %v6004
    %v8353 = vunpack.c.h.b16 %v6004
    %v8354 = vunpack.c.l.b16 %v6005
    %v8355 = vunpack.c.h.b16 %v6005
    %v8356 = vunpack.c.l.b16 %v6006
    %v8357 = vunpack.c.h.b16 %v6006
    %v8358 = vunpack.c.l.b16 %v6007
    %v8359 = vunpack.c.h.b16 %v6007
    %v8360 = vunpack.c.l.b16 %v6008
    %v8361 = vunpack.c.h.b16 %v6008
    %v8362 = vunpack.c.l.b16 %v6009
    %v8363 = vunpack.c.h.b16 %v6009
    %v8364 = vunpack.c.l.b16 %v6010
    %v8365 = vunpack.c.h.b16 %v6010
    %v8366 = vunpack.c.l.b16 %v6011
    %v8367 = vunpack.c.h.b16 %v6011
    %v8368 = vunpack.c.l.b16 %v6012
    %v8369 = vunpack.c.h.b16 %v6012
    %v8370 = vunpack.c.l.b16 %v6013
    %v8371 = vunpack.c.h.b16 %v6013
    %v8372 = vunpack.c.l.b16 %v6014
    %v8373 = vunpack.c.h.b16 %v6014
    %v8374 = vunpack.c.l.b16 %v6015
    %v8375 = vunpack.c.h.b16 %v6015
    %v8376 = vunpack.c.l.b16 %v6016
    %v8377 = vunpack.c.h.b16 %v6016
    %v8378 = vunpack.c.l.b16 %v6017
    %v8379 = vunpack.c.h.b16 %v6017
    %v8380 = vunpack.c.l.b16 %v6018
    %v8381 = vunpack.c.h.b16 %v6018
    %v8382 = vunpack.c.l.b16 %v6019
    %v8383 = vunpack.c.h.b16 %v6019
    %v8384 = vunpack.c.l.b16 %v6020
    %v8385 = vunpack.c.h.b16 %v6020
    %v8386 = vunpack.c.l.b16 %v6021
    %v8387 = vunpack.c.h.b16 %v6021
    %v8388 = vunpack.c.l.b16 %v6022
    %v8389 = vunpack.c.h.b16 %v6022
    %v8390 = vunpack.c.l.b16 %v6023
    %v8391 = vunpack.c.h.b16 %v6023
    %v8392 = vunpack.c.l.b16 %v6024
    %v8393 = vunpack.c.h.b16 %v6024
    %v8394 = vunpack.c.l.b16 %v6025
    %v8395 = vunpack.c.h.b16 %v6025
    %v8396 = vunpack.c.l.b16 %v6026
    %v8397 = vunpack.c.h.b16 %v6026
    %v8398 = vunpack.c.l.b16 %v6027
    %v8399 = vunpack.c.h.b16 %v6027
    %v8400 = vunpack.c.l.b16 %v6028
    %v8401 = vunpack.c.h.b16 %v6028
    %v8402 = vunpack.c.l.b16 %v6029
    %v8403 = vunpack.c.h.b16 %v6029
    %v8404 = vunpack.c.l.b16 %v6030
    %v8405 = vunpack.c.h.b16 %v6030
    %v8406 = vunpack.c.l.b16 %v6031
    %v8407 = vunpack.c.h.b16 %v6031
    %v8408 = vunpack.c.l.b16 %v6032
    %v8409 = vunpack.c.h.b16 %v6032
    %v8410 = vunpack.c.l.b16 %v6033
    %v8411 = vunpack.c.h.b16 %v6033
    %v8412 = vunpack.c.l.b16 %v6034
    %v8413 = vunpack.c.h.b16 %v6034
    %v8414 = vunpack.c.l.b16 %v6035
    %v8415 = vunpack.c.h.b16 %v6035
    %v8416 = vunpack.c.l.b16 %v6036
    %v8417 = vunpack.c.h.b16 %v6036
    %v8418 = vunpack.c.l.b16 %v6037
    %v8419 = vunpack.c.h.b16 %v6037
    %v8420 = vunpack.c.l.b16 %v6038
    %v8421 = vunpack.c.h.b16 %v6038
    %v8422 = vunpack.c.l.b16 %v6039
    %v8423 = vunpack.c.h.b16 %v6039
    %v8424 = vunpack.c.l.b16 %v6040
    %v8425 = vunpack.c.h.b16 %v6040
    %v8426 = vunpack.c.l.b16 %v6041
    %v8427 = vunpack.c.h.b16 %v6041
    %v8428 = vunpack.c.l.b16 %v6042
    %v8429 = vunpack.c.h.b16 %v6042
    %v8430 = vunpack.c.l.b16 %v6043
    %v8431 = vunpack.c.h.b16 %v6043
    %v8432 = vunpack.c.l.b16 %v6044
    %v8433 = vunpack.c.h.b16 %v6044
    %v8434 = vunpack.c.l.b16 %v6045
    %v8435 = vunpack.c.h.b16 %v6045
    %v8436 = vunpack.c.l.b16 %v6046
    %v8437 = vunpack.c.h.b16 %v6046
    %v8438 = vunpack.c.l.b16 %v6047
    %v8439 = vunpack.c.h.b16 %v6047
    %v8440 = vunpack.c.l.b16 %v6048
    %v8441 = vunpack.c.h.b16 %v6048
    %v8442 = vunpack.c.l.b16 %v6049
    %v8443 = vunpack.c.h.b16 %v6049
    %v8444 = vunpack.c.l.b16 %v6050
    %v8445 = vunpack.c.h.b16 %v6050
    %v8446 = vunpack.c.l.b16 %v6051
    %v8447 = vunpack.c.h.b16 %v6051
    %v8448 = vunpack.c.l.b16 %v6052
    %v8449 = vunpack.c.h.b16 %v6052
    %v8450 = vunpack.c.l.b16 %v6053
    %v8451 = vunpack.c.h.b16 %v6053
    %v8452 = vunpack.c.l.b16 %v6054
    %v8453 = vunpack.c.h.b16 %v6054
    %v8454 = vunpack.c.l.b16 %v6055
    %v8455 = vunpack.c.h.b16 %v6055
    %v8456 = vunpack.c.l.b16 %v6056
    %v8457 = vunpack.c.h.b16 %v6056
    %v8458 = vunpack.c.l.b16 %v6057
    %v8459 = vunpack.c.h.b16 %v6057
    %v8460 = vunpack.c.l.b16 %v6058
    %v8461 = vunpack.c.h.b16 %v6058
    %v8462 = vunpack.c.l.b16 %v6059
    %v8463 = vunpack.c.h.b16 %v6059
    %v8464 = vunpack.c.l.b16 %v6060
    %v8465 = vunpack.c.h.b16 %v6060
    %v8466 = vunpack.c.l.b16 %v6061
    %v8467 = vunpack.c.h.b16 %v6061
    %v8468 = vunpack.c.l.b16 %v6062
    %v8469 = vunpack.c.h.b16 %v6062
    %v8470 = vunpack.c.l.b16 %v6063
    %v8471 = vunpack.c.h.b16 %v6063
    %v8472 = vunpack.c.l.b16 %v6064
    %v8473 = vunpack.c.h.b16 %v6064
    %v8474 = vunpack.c.l.b16 %v6065
    %v8475 = vunpack.c.h.b16 %v6065
    %v8476 = vunpack.c.l.b16 %v6066
    %v8477 = vunpack.c.h.b16 %v6066
    %v8478 = vunpack.c.l.b16 %v6067
    %v8479 = vunpack.c.h.b16 %v6067
    %v8480 = vunpack.c.l.b16 %v6068
    %v8481 = vunpack.c.h.b16 %v6068
    %v8482 = vunpack.c.l.b16 %v6069
    %v8483 = vunpack.c.h.b16 %v6069
    %v8484 = vunpack.c.l.b16 %v6070
    %v8485 = vunpack.c.h.b16 %v6070
    %v8486 = vunpack.c.l.b16 %v6071
    %v8487 = vunpack.c.h.b16 %v6071
    %v8488 = vunpack.c.l.b16 %v6072
    %v8489 = vunpack.c.h.b16 %v6072
    %v8490 = vunpack.c.l.b16 %v6073
    %v8491 = vunpack.c.h.b16 %v6073
    %v8492 = vunpack.c.l.b16 %v6074
    %v8493 = vunpack.c.h.b16 %v6074
    %v8494 = vunpack.c.l.b16 %v6075
    %v8495 = vunpack.c.h.b16 %v6075
    %v8496 = vunpack.c.l.b16 %v6076
    %v8497 = vunpack.c.h.b16 %v6076
    %v8498 = vunpack.c.l.b16 %v6077
    %v8499 = vunpack.c.h.b16 %v6077
    %v8500 = vunpack.c.l.b16 %v6078
    %v8501 = vunpack.c.h.b16 %v6078
    %v8502 = vunpack.c.l.b16 %v6079
    %v8503 = vunpack.c.h.b16 %v6079
    %v8504 = vunpack.c.l.b16 %v6080
    %v8505 = vunpack.c.h.b16 %v6080
    %v8506 = vunpack.c.l.b16 %v6081
    %v8507 = vunpack.c.h.b16 %v6081
    %v8508 = vunpack.c.l.b16 %v6082
    %v8509 = vunpack.c.h.b16 %v6082
    %v8510 = vunpack.c.l.b16 %v6083
    %v8511 = vunpack.c.h.b16 %v6083
    %v8512 = vunpack.c.l.b16 %v6084
    %v8513 = vunpack.c.h.b16 %v6084
    %v8514 = vunpack.c.l.b16 %v6085
    %v8515 = vunpack.c.h.b16 %v6085
    %v8516 = vunpack.c.l.b16 %v6086
    %v8517 = vunpack.c.h.b16 %v6086
    %v8518 = vunpack.c.l.b16 %v6087
    %v8519 = vunpack.c.h.b16 %v6087
    %v8520 = vunpack.c.l.b16 %v6088
    %v8521 = vunpack.c.h.b16 %v6088
    %v8522 = vunpack.c.l.b16 %v6089
    %v8523 = vunpack.c.h.b16 %v6089
    %v8524 = vunpack.c.l.b16 %v6090
    %v8525 = vunpack.c.h.b16 %v6090
    %v8526 = vunpack.c.l.b16 %v6091
    %v8527 = vunpack.c.h.b16 %v6091
    %v8528 = vunpack.c.l.b16 %v6092
    %v8529 = vunpack.c.h.b16 %v6092
    %v8530 = vunpack.c.l.b16 %v6093
    %v8531 = vunpack.c.h.b16 %v6093
    %v8532 = vunpack.c.l.b16 %v6094
    %v8533 = vunpack.c.h.b16 %v6094
    %v8534 = vunpack.c.l.b16 %v6095
    %v8535 = vunpack.c.h.b16 %v6095
    %v8536 = vunpack.c.l.b16 %v6096
    %v8537 = vunpack.c.h.b16 %v6096
    %v8538 = vunpack.c.l.b16 %v6097
    %v8539 = vunpack.c.h.b16 %v6097
    %v8540 = vunpack.c.l.b16 %v6098
    %v8541 = vunpack.c.h.b16 %v6098
    %v8542 = vunpack.c.l.b16 %v6099
    %v8543 = vunpack.c.h.b16 %v6099
    %v8544 = vunpack.c.l.b16 %v6100
    %v8545 = vunpack.c.h.b16 %v6100
    %v8546 = vunpack.c.l.b16 %v6101
    %v8547 = vunpack.c.h.b16 %v6101
    %v8548 = vunpack.c.l.b16 %v6102
    %v8549 = vunpack.c.h.b16 %v6102
    %v8550 = vunpack.c.l.b16 %v6103
    %v8551 = vunpack.c.h.b16 %v6103
    %v8552 = vunpack.c.l.b16 %v6104
    %v8553 = vunpack.c.h.b16 %v6104
    %v8554 = vunpack.c.l.b16 %v6105
    %v8555 = vunpack.c.h.b16 %v6105
    %v8556 = vunpack.c.l.b16 %v6106
    %v8557 = vunpack.c.h.b16 %v6106
    %v8558 = vunpack.c.l.b16 %v6107
    %v8559 = vunpack.c.h.b16 %v6107
    %v8560 = vunpack.c.l.b16 %v6108
    %v8561 = vunpack.c.h.b16 %v6108
    %v8562 = vunpack.c.l.b16 %v6109
    %v8563 = vunpack.c.h.b16 %v6109
    %v8564 = vunpack.c.l.b16 %v6110
    %v8565 = vunpack.c.h.b16 %v6110
    %v8566 = vunpack.c.l.b16 %v6111
    %v8567 = vunpack.c.h.b16 %v6111
    %v8568 = vunpack.c.l.b16 %v6112
    %v8569 = vunpack.c.h.b16 %v6112
    %v8570 = vunpack.c.l.b16 %v6113
    %v8571 = vunpack.c.h.b16 %v6113
    %v8572 = vunpack.c.l.b16 %v6114
    %v8573 = vunpack.c.h.b16 %v6114
    %v8574 = vunpack.c.l.b16 %v6115
    %v8575 = vunpack.c.h.b16 %v6115
    %v8576 = vunpack.c.l.b16 %v6116
    %v8577 = vunpack.c.h.b16 %v6116
    %v8578 = vunpack.c.l.b16 %v6117
    %v8579 = vunpack.c.h.b16 %v6117
    %v8580 = vunpack.c.l.b16 %v6118
    %v8581 = vunpack.c.h.b16 %v6118
    %v8582 = vunpack.c.l.b16 %v6119
    %v8583 = vunpack.c.h.b16 %v6119
    %v8584 = vunpack.c.l.b16 %v6120
    %v8585 = vunpack.c.h.b16 %v6120
    %v8586 = vunpack.c.l.b16 %v6121
    %v8587 = vunpack.c.h.b16 %v6121
    %v8588 = vunpack.c.l.b16 %v6122
    %v8589 = vunpack.c.h.b16 %v6122
    %v8590 = vunpack.c.l.b16 %v6123
    %v8591 = vunpack.c.h.b16 %v6123
    %v8592 = vunpack.c.l.b16 %v6124
    %v8593 = vunpack.c.h.b16 %v6124
    %v8594 = vunpack.c.l.b16 %v6125
    %v8595 = vunpack.c.h.b16 %v6125
    %v8596 = vunpack.c.l.b16 %v6126
    %v8597 = vunpack.c.h.b16 %v6126
    %v8598 = vunpack.c.l.b16 %v6127
    %v8599 = vunpack.c.h.b16 %v6127
    %v8600 = vunpack.c.l.b16 %v6128
    %v8601 = vunpack.c.h.b16 %v6128
    %v8602 = vunpack.c.l.b16 %v6129
    %v8603 = vunpack.c.h.b16 %v6129
    %v8604 = vunpack.c.l.b16 %v6130
    %v8605 = vunpack.c.h.b16 %v6130
    %v8606 = vunpack.c.l.b16 %v6131
    %v8607 = vunpack.c.h.b16 %v6131
    %v8608 = vunpack.c.l.b16 %v6132
    %v8609 = vunpack.c.h.b16 %v6132
    %v8610 = vunpack.c.l.b16 %v6133
    %v8611 = vunpack.c.h.b16 %v6133
    %v8612 = vunpack.c.l.b16 %v6134
    %v8613 = vunpack.c.h.b16 %v6134
    %v8614 = vunpack.c.l.b16 %v6135
    %v8615 = vunpack.c.h.b16 %v6135
    %v8616 = vunpack.c.l.b16 %v6136
    %v8617 = vunpack.c.h.b16 %v6136
    %v8618 = vunpack.c.l.b16 %v6137
    %v8619 = vunpack.c.h.b16 %v6137
    %v8620 = vunpack.c.l.b16 %v6138
    %v8621 = vunpack.c.h.b16 %v6138
    %v8622 = vunpack.c.l.b16 %v6139
    %v8623 = vunpack.c.h.b16 %v6139
    %v8624 = vunpack.c.l.b16 %v6140
    %v8625 = vunpack.c.h.b16 %v6140
    %v8626 = vunpack.c.l.b16 %v6141
    %v8627 = vunpack.c.h.b16 %v6141
    %v8628 = vunpack.c.l.b16 %v6142
    %v8629 = vunpack.c.h.b16 %v6142
    %v8630 = vunpack.c.l.b16 %v6143
    %v8631 = vunpack.c.h.b16 %v6143
    %v8632 = vunpack.c.l.b16 %v6144
    %v8633 = vunpack.c.h.b16 %v6144
    %v8634 = vunpack.c.l.b16 %v6145
    %v8635 = vunpack.c.h.b16 %v6145
    %v8636 = vunpack.c.l.b16 %v6146
    %v8637 = vunpack.c.h.b16 %v6146
    %v8638 = vunpack.c.l.b16 %v6147
    %v8639 = vunpack.c.h.b16 %v6147
    %v8640 = vunpack.c.l.b16 %v6148
    %v8641 = vunpack.c.h.b16 %v6148
    %v8642 = vunpack.c.l.b16 %v6149
    %v8643 = vunpack.c.h.b16 %v6149
    %v8644 = vunpack.c.l.b16 %v6150
    %v8645 = vunpack.c.h.b16 %v6150
    %v8646 = vunpack.c.l.b16 %v6151
    %v8647 = vunpack.c.h.b16 %v6151
    %v8648 = vunpack.c.l.b16 %v6152
    %v8649 = vunpack.c.h.b16 %v6152
    %v8650 = vunpack.c.l.b16 %v6153
    %v8651 = vunpack.c.h.b16 %v6153
    %v8652 = vunpack.c.l.b16 %v6154
    %v8653 = vunpack.c.h.b16 %v6154
    %v8654 = vunpack.c.l.b16 %v6155
    %v8655 = vunpack.c.h.b16 %v6155
    %v8656 = vunpack.c.l.b16 %v6156
    %v8657 = vunpack.c.h.b16 %v6156
    %v8658 = vunpack.c.l.b16 %v6157
    %v8659 = vunpack.c.h.b16 %v6157
    %v8660 = vunpack.c.l.b16 %v6158
    %v8661 = vunpack.c.h.b16 %v6158
    %v8662 = vunpack.c.l.b16 %v6159
    %v8663 = vunpack.c.h.b16 %v6159
    %v8664 = vunpack.c.l.b16 %v6160
    %v8665 = vunpack.c.h.b16 %v6160
    %v8666 = vunpack.c.l.b16 %v6161
    %v8667 = vunpack.c.h.b16 %v6161
    %v8668 = vunpack.c.l.b16 %v6162
    %v8669 = vunpack.c.h.b16 %v6162
    %v8670 = vunpack.c.l.b16 %v6163
    %v8671 = vunpack.c.h.b16 %v6163
    %v8672 = vunpack.c.l.b16 %v6164
    %v8673 = vunpack.c.h.b16 %v6164
    %v8674 = vunpack.c.l.b16 %v6165
    %v8675 = vunpack.c.h.b16 %v6165
    %v8676 = vunpack.c.l.b16 %v6166
    %v8677 = vunpack.c.h.b16 %v6166
    %v8678 = vunpack.c.l.b16 %v6167
    %v8679 = vunpack.c.h.b16 %v6167
    %v8680 = vunpack.c.l.b16 %v6168
    %v8681 = vunpack.c.h.b16 %v6168
    %v8682 = vunpack.c.l.b16 %v6169
    %v8683 = vunpack.c.h.b16 %v6169
    %v8684 = vunpack.c.l.b16 %v6170
    %v8685 = vunpack.c.h.b16 %v6170
    %v8686 = vunpack.c.l.b16 %v6171
    %v8687 = vunpack.c.h.b16 %v6171
    %v8688 = vunpack.c.l.b16 %v6172
    %v8689 = vunpack.c.h.b16 %v6172
    %v8690 = vunpack.c.l.b16 %v6173
    %v8691 = vunpack.c.h.b16 %v6173
    %v8692 = vunpack.c.l.b16 %v6174
    %v8693 = vunpack.c.h.b16 %v6174
    %v8694 = vunpack.c.l.b16 %v6175
    %v8695 = vunpack.c.h.b16 %v6175
    %v8696 = vunpack.c.l.b16 %v6176
    %v8697 = vunpack.c.h.b16 %v6176
    %v8698 = vunpack.c.l.b16 %v6177
    %v8699 = vunpack.c.h.b16 %v6177
    %v8700 = vunpack.c.l.b16 %v6178
    %v8701 = vunpack.c.h.b16 %v6178
    %v8702 = vunpack.c.l.b16 %v6179
    %v8703 = vunpack.c.h.b16 %v6179
    %v8704 = vunpack.c.l.b16 %v6180
    %v8705 = vunpack.c.h.b16 %v6180
    %v8706 = vunpack.c.l.b16 %v6181
    %v8707 = vunpack.c.h.b16 %v6181
    %v8708 = vunpack.c.l.b16 %v6182
    %v8709 = vunpack.c.h.b16 %v6182
    %v8710 = vunpack.c.l.b16 %v6183
    %v8711 = vunpack.c.h.b16 %v6183
    %v8712 = vunpack.c.l.b16 %v6184
    %v8713 = vunpack.c.h.b16 %v6184
    %v8714 = vunpack.c.l.b16 %v6185
    %v8715 = vunpack.c.h.b16 %v6185
    %v8716 = vunpack.c.l.b16 %v6186
    %v8717 = vunpack.c.h.b16 %v6186
    %v8718 = vunpack.c.l.b16 %v6187
    %v8719 = vunpack.c.h.b16 %v6187
    %v8720 = vunpack.c.l.b16 %v6188
    %v8721 = vunpack.c.h.b16 %v6188
    %v8722 = vunpack.c.l.b16 %v6189
    %v8723 = vunpack.c.h.b16 %v6189
    %v8724 = vunpack.c.l.b16 %v6190
    %v8725 = vunpack.c.h.b16 %v6190
    %v8726 = vunpack.c.l.b16 %v6191
    %v8727 = vunpack.c.h.b16 %v6191
    %v8728 = vunpack.c.l.b16 %v6192
    %v8729 = vunpack.c.h.b16 %v6192
    %v8730 = vunpack.c.l.b16 %v6193
    %v8731 = vunpack.c.h.b16 %v6193
    %v8732 = vunpack.c.l.b16 %v6194
    %v8733 = vunpack.c.h.b16 %v6194
    %v8734 = vunpack.c.l.b16 %v6195
    %v8735 = vunpack.c.h.b16 %v6195
    %v8736 = vunpack.c.l.b16 %v6196
    %v8737 = vunpack.c.h.b16 %v6196
    %v8738 = vunpack.c.l.b16 %v6197
    %v8739 = vunpack.c.h.b16 %v6197
    %v8740 = vunpack.c.l.b16 %v6198
    %v8741 = vunpack.c.h.b16 %v6198
    %v8742 = vunpack.c.l.b16 %v6199
    %v8743 = vunpack.c.h.b16 %v6199
    %v8744 = vunpack.c.l.b16 %v6200
    %v8745 = vunpack.c.h.b16 %v6200
    %v8746 = vunpack.c.l.b16 %v6201
    %v8747 = vunpack.c.h.b16 %v6201
    %v8748 = vunpack.c.l.b16 %v6202
    %v8749 = vunpack.c.h.b16 %v6202
    %v8750 = vunpack.c.l.b16 %v6203
    %v8751 = vunpack.c.h.b16 %v6203
    %v8752 = vunpack.c.l.b16 %v6204
    %v8753 = vunpack.c.h.b16 %v6204
    %v8754 = vunpack.c.l.b16 %v6205
    %v8755 = vunpack.c.h.b16 %v6205
    %v8756 = vunpack.c.l.b16 %v6206
    %v8757 = vunpack.c.h.b16 %v6206
    %v8758 = vunpack.c.l.b16 %v6207
    %v8759 = vunpack.c.h.b16 %v6207
    %v8760 = vunpack.c.l.b16 %v6208
    %v8761 = vunpack.c.h.b16 %v6208
    %v8762 = vunpack.c.l.b16 %v6209
    %v8763 = vunpack.c.h.b16 %v6209
    %v8764 = vunpack.c.l.b16 %v6210
    %v8765 = vunpack.c.h.b16 %v6210
    %v8766 = vunpack.c.l.b16 %v6211
    %v8767 = vunpack.c.h.b16 %v6211
    %v8768 = vunpack.c.l.b16 %v6212
    %v8769 = vunpack.c.h.b16 %v6212
    %v8770 = vunpack.c.l.b16 %v6213
    %v8771 = vunpack.c.h.b16 %v6213
    %v8772 = vunpack.c.l.b16 %v6214
    %v8773 = vunpack.c.h.b16 %v6214
    %v8774 = vunpack.c.l.b16 %v6215
    %v8775 = vunpack.c.h.b16 %v6215
    %v8776 = vunpack.c.l.b16 %v6216
    %v8777 = vunpack.c.h.b16 %v6216
    %v8778 = vunpack.c.l.b16 %v6217
    %v8779 = vunpack.c.h.b16 %v6217
    %v8780 = vunpack.c.l.b16 %v6218
    %v8781 = vunpack.c.h.b16 %v6218
    %v8782 = vunpack.c.l.b16 %v6219
    %v8783 = vunpack.c.h.b16 %v6219
    %v8784 = vunpack.c.l.b16 %v6220
    %v8785 = vunpack.c.h.b16 %v6220
    %v8786 = vunpack.c.l.b16 %v6221
    %v8787 = vunpack.c.h.b16 %v6221
    %v8788 = vunpack.c.l.b16 %v6222
    %v8789 = vunpack.c.h.b16 %v6222
    %v8790 = vunpack.c.l.b16 %v6223
    %v8791 = vunpack.c.h.b16 %v6223
    %v8792 = vunpack.c.l.b16 %v6224
    %v8793 = vunpack.c.h.b16 %v6224
    %v8794 = vunpack.c.l.b16 %v6225
    %v8795 = vunpack.c.h.b16 %v6225
    %v8796 = vunpack.c.l.b16 %v6226
    %v8797 = vunpack.c.h.b16 %v6226
    %v8798 = vunpack.c.l.b16 %v6227
    %v8799 = vunpack.c.h.b16 %v6227
    %v8800 = vunpack.c.l.b16 %v6228
    %v8801 = vunpack.c.h.b16 %v6228
    %v8802 = vunpack.c.l.b16 %v6229
    %v8803 = vunpack.c.h.b16 %v6229
    %v8804 = vunpack.c.l.b16 %v6230
    %v8805 = vunpack.c.h.b16 %v6230
    %v8806 = vunpack.c.l.b16 %v6231
    %v8807 = vunpack.c.h.b16 %v6231
    %v8808 = vunpack.c.l.b16 %v6232
    %v8809 = vunpack.c.h.b16 %v6232
    %v8810 = vunpack.c.l.b16 %v6233
    %v8811 = vunpack.c.h.b16 %v6233
    %v8812 = vunpack.c.l.b16 %v6234
    %v8813 = vunpack.c.h.b16 %v6234
    %v8814 = vunpack.c.l.b16 %v6235
    %v8815 = vunpack.c.h.b16 %v6235
    %v8816 = vunpack.c.l.b16 %v6236
    %v8817 = vunpack.c.h.b16 %v6236
    %v8818 = vunpack.c.l.b16 %v6237
    %v8819 = vunpack.c.h.b16 %v6237
    %v8820 = vunpack.c.l.b16 %v6238
    %v8821 = vunpack.c.h.b16 %v6238
    %v8822 = vunpack.c.l.b16 %v6239
    %v8823 = vunpack.c.h.b16 %v6239
    %v8824 = vunpack.c.l.b16 %v6240
    %v8825 = vunpack.c.h.b16 %v6240
    %v8826 = vunpack.c.l.b16 %v6241
    %v8827 = vunpack.c.h.b16 %v6241
    %v8828 = vunpack.c.l.b16 %v6242
    %v8829 = vunpack.c.h.b16 %v6242
    %v8830 = vunpack.c.l.b16 %v6243
    %v8831 = vunpack.c.h.b16 %v6243
    %v8832 = vunpack.c.l.b16 %v6244
    %v8833 = vunpack.c.h.b16 %v6244
    %v8834 = vunpack.c.l.b16 %v6245
    %v8835 = vunpack.c.h.b16 %v6245
    %v8836 = vunpack.c.l.b16 %v6246
    %v8837 = vunpack.c.h.b16 %v6246
    %v8838 = vunpack.c.l.b16 %v6247
    %v8839 = vunpack.c.h.b16 %v6247
    %v8840 = vunpack.c.l.b16 %v6248
    %v8841 = vunpack.c.h.b16 %v6248
    %v8842 = vunpack.c.l.b16 %v6249
    %v8843 = vunpack.c.h.b16 %v6249
    %v8844 = vunpack.c.l.b16 %v6250
    %v8845 = vunpack.c.h.b16 %v6250
    %v8846 = vunpack.c.l.b16 %v6251
    %v8847 = vunpack.c.h.b16 %v6251
    %v8848 = vunpack.c.l.b16 %v6252
    %v8849 = vunpack.c.h.b16 %v6252
    %v8850 = vunpack.c.l.b16 %v6253
    %v8851 = vunpack.c.h.b16 %v6253
    %v8852 = vunpack.c.l.b16 %v6254
    %v8853 = vunpack.c.h.b16 %v6254
    %v8854 = vunpack.c.l.b16 %v6255
    %v8855 = vunpack.c.h.b16 %v6255
    %v8856 = vunpack.c.l.b16 %v6256
    %v8857 = vunpack.c.h.b16 %v6256
    %v8858 = vunpack.c.l.b16 %v6257
    %v8859 = vunpack.c.h.b16 %v6257
    %v8860 = vunpack.c.l.b16 %v6258
    %v8861 = vunpack.c.h.b16 %v6258
    %v8862 = vunpack.c.l.b16 %v6259
    %v8863 = vunpack.c.h.b16 %v6259
    %v8864 = vunpack.c.l.b16 %v6260
    %v8865 = vunpack.c.h.b16 %v6260
    %v8866 = vunpack.c.l.b16 %v6261
    %v8867 = vunpack.c.h.b16 %v6261
    %v8868 = vunpack.c.l.b16 %v6262
    %v8869 = vunpack.c.h.b16 %v6262
    %v8870 = vunpack.c.l.b16 %v6263
    %v8871 = vunpack.c.h.b16 %v6263
    %v8872 = vunpack.c.l.b16 %v6264
    %v8873 = vunpack.c.h.b16 %v6264
    %v8874 = vunpack.c.l.b16 %v6265
    %v8875 = vunpack.c.h.b16 %v6265
    %v8876 = vunpack.c.l.b16 %v6266
    %v8877 = vunpack.c.h.b16 %v6266
    %v8878 = vunpack.c.l.b16 %v6267
    %v8879 = vunpack.c.h.b16 %v6267
    %v8880 = vunpack.c.l.b16 %v6268
    %v8881 = vunpack.c.h.b16 %v6268
    %v8882 = vunpack.c.l.b16 %v6269
    %v8883 = vunpack.c.h.b16 %v6269
    %v8884 = vunpack.c.l.b16 %v6270
    %v8885 = vunpack.c.h.b16 %v6270
    %v8886 = vunpack.c.l.b16 %v6271
    %v8887 = vunpack.c.h.b16 %v6271
    %v8888 = vunpack.c.l.b16 %v6272
    %v8889 = vunpack.c.h.b16 %v6272
    %v8890 = vunpack.c.l.b16 %v6273
    %v8891 = vunpack.c.h.b16 %v6273
    %v8892 = vunpack.c.l.b16 %v6274
    %v8893 = vunpack.c.h.b16 %v6274
    %v8894 = vunpack.c.l.b16 %v6275
    %v8895 = vunpack.c.h.b16 %v6275
    %v8896 = vunpack.c.l.b16 %v6276
    %v8897 = vunpack.c.h.b16 %v6276
    %v8898 = vunpack.c.l.b16 %v6277
    %v8899 = vunpack.c.h.b16 %v6277
    %v8900 = vunpack.c.l.b16 %v6278
    %v8901 = vunpack.c.h.b16 %v6278
    %v8902 = vunpack.c.l.b16 %v6279
    %v8903 = vunpack.c.h.b16 %v6279
    %v8904 = vunpack.c.l.b16 %v6280
    %v8905 = vunpack.c.h.b16 %v6280
    %v8906 = vunpack.c.l.b16 %v6281
    %v8907 = vunpack.c.h.b16 %v6281
    %v8908 = vunpack.c.l.b16 %v6282
    %v8909 = vunpack.c.h.b16 %v6282
    %v8910 = vunpack.c.l.b16 %v6283
    %v8911 = vunpack.c.h.b16 %v6283
    %v8912 = vunpack.c.l.b16 %v6284
    %v8913 = vunpack.c.h.b16 %v6284
    %v8914 = vunpack.c.l.b16 %v6285
    %v8915 = vunpack.c.h.b16 %v6285
    %v8916 = vunpack.c.l.b16 %v6286
    %v8917 = vunpack.c.h.b16 %v6286
    %v8918 = vunpack.c.l.b16 %v6287
    %v8919 = vunpack.c.h.b16 %v6287
    %v8920 = vunpack.c.l.b16 %v6288
    %v8921 = vunpack.c.h.b16 %v6288
    %v8922 = vunpack.c.l.b16 %v6289
    %v8923 = vunpack.c.h.b16 %v6289
    %v8924 = vunpack.c.l.b16 %v6290
    %v8925 = vunpack.c.h.b16 %v6290
    %v8926 = vunpack.c.l.b16 %v6291
    %v8927 = vunpack.c.h.b16 %v6291
    %v8928 = vunpack.c.l.b16 %v6292
    %v8929 = vunpack.c.h.b16 %v6292
    %v8930 = vunpack.c.l.b16 %v6293
    %v8931 = vunpack.c.h.b16 %v6293
    %v8932 = vunpack.c.l.b16 %v6294
    %v8933 = vunpack.c.h.b16 %v6294
    %v8934 = vunpack.c.l.b16 %v6295
    %v8935 = vunpack.c.h.b16 %v6295
    %v8936 = vunpack.c.l.b16 %v6296
    %v8937 = vunpack.c.h.b16 %v6296
    %v8938 = vunpack.c.l.b16 %v6297
    %v8939 = vunpack.c.h.b16 %v6297
    %v8940 = vunpack.c.l.b16 %v6298
    %v8941 = vunpack.c.h.b16 %v6298
    %v8942 = vunpack.c.l.b16 %v6299
    %v8943 = vunpack.c.h.b16 %v6299
    %v8944 = vunpack.c.l.b16 %v6300
    %v8945 = vunpack.c.h.b16 %v6300
    %v8946 = vunpack.c.l.b16 %v6301
    %v8947 = vunpack.c.h.b16 %v6301
    %v8948 = vunpack.c.l.b16 %v6302
    %v8949 = vunpack.c.h.b16 %v6302
    %v8950 = vunpack.c.l.b16 %v6303
    %v8951 = vunpack.c.h.b16 %v6303
    %v8952 = vunpack.c.l.b16 %v6304
    %v8953 = vunpack.c.h.b16 %v6304
    %v8954 = vunpack.c.l.b16 %v6305
    %v8955 = vunpack.c.h.b16 %v6305
    %v8956 = vunpack.c.l.b16 %v6306
    %v8957 = vunpack.c.h.b16 %v6306
    %v8958 = vunpack.c.l.b16 %v6307
    %v8959 = vunpack.c.h.b16 %v6307
    %v8960 = vunpack.c.l.b16 %v6308
    %v8961 = vunpack.c.h.b16 %v6308
    %v8962 = vunpack.c.l.b16 %v6309
    %v8963 = vunpack.c.h.b16 %v6309
    %v8964 = vunpack.c.l.b16 %v6310
    %v8965 = vunpack.c.h.b16 %v6310
    %v8966 = vunpack.c.l.b16 %v6311
    %v8967 = vunpack.c.h.b16 %v6311
    %v8968 = vunpack.c.l.b16 %v6312
    %v8969 = vunpack.c.h.b16 %v6312
    %v8970 = vunpack.c.l.b16 %v6313
    %v8971 = vunpack.c.h.b16 %v6313
    %v8972 = vunpack.c.l.b16 %v6314
    %v8973 = vunpack.c.h.b16 %v6314
    %v8974 = vunpack.c.l.b16 %v6315
    %v8975 = vunpack.c.h.b16 %v6315
    %v8976 = vunpack.c.l.b16 %v6316
    %v8977 = vunpack.c.h.b16 %v6316
    %v8978 = vunpack.c.l.b16 %v6317
    %v8979 = vunpack.c.h.b16 %v6317
    %v8980 = vunpack.c.l.b16 %v6318
    %v8981 = vunpack.c.h.b16 %v6318
    %v8982 = vunpack.c.l.b16 %v6319
    %v8983 = vunpack.c.h.b16 %v6319
    %v8984 = vunpack.c.l.b16 %v6320
    %v8985 = vunpack.c.h.b16 %v6320
    %v8986 = vunpack.c.l.b16 %v6321
    %v8987 = vunpack.c.h.b16 %v6321
    %v8988 = vunpack.c.l.b16 %v6322
    %v8989 = vunpack.c.h.b16 %v6322
    %v8990 = vunpack.c.l.b16 %v6323
    %v8991 = vunpack.c.h.b16 %v6323
    %v8992 = vunpack.c.l.b16 %v6324
    %v8993 = vunpack.c.h.b16 %v6324
    %v8994 = vunpack.c.l.b16 %v6325
    %v8995 = vunpack.c.h.b16 %v6325
    %v8996 = vunpack.c.l.b16 %v6326
    %v8997 = vunpack.c.h.b16 %v6326
    %v8998 = vunpack.c.l.b16 %v6327
    %v8999 = vunpack.c.h.b16 %v6327
    %v9000 = vunpack.c.l.b16 %v6328
    %v9001 = vunpack.c.h.b16 %v6328
    %v9002 = vunpack.c.l.b16 %v6329
    %v9003 = vunpack.c.h.b16 %v6329
    %v9004 = vunpack.c.l.b16 %v6330
    %v9005 = vunpack.c.h.b16 %v6330
    %v9006 = vunpack.c.l.b16 %v6331
    %v9007 = vunpack.c.h.b16 %v6331
    %v9008 = vunpack.c.l.b16 %v6332
    %v9009 = vunpack.c.h.b16 %v6332
    %v9010 = vunpack.c.l.b16 %v6333
    %v9011 = vunpack.c.h.b16 %v6333
    %v9012 = vunpack.c.l.b16 %v6334
    %v9013 = vunpack.c.h.b16 %v6334
    %v9014 = vunpack.c.l.b16 %v6335
    %v9015 = vunpack.c.h.b16 %v6335
    %v9016 = vunpack.c.l.b16 %v6336
    %v9017 = vunpack.c.h.b16 %v6336
    %v9018 = vunpack.c.l.b16 %v6337
    %v9019 = vunpack.c.h.b16 %v6337
    %v9020 = vunpack.c.l.b16 %v6338
    %v9021 = vunpack.c.h.b16 %v6338
    %v9022 = vunpack.c.l.b16 %v6339
    %v9023 = vunpack.c.h.b16 %v6339
    %v9024 = vunpack.c.l.b16 %v6340
    %v9025 = vunpack.c.h.b16 %v6340
    %v9026 = vunpack.c.l.b16 %v6341
    %v9027 = vunpack.c.h.b16 %v6341
    %v9028 = vunpack.c.l.b16 %v6342
    %v9029 = vunpack.c.h.b16 %v6342
    %v9030 = vunpack.c.l.b16 %v6343
    %v9031 = vunpack.c.h.b16 %v6343
    %v9032 = vunpack.c.l.b16 %v6344
    %v9033 = vunpack.c.h.b16 %v6344
    %v9034 = vunpack.c.l.b16 %v6345
    %v9035 = vunpack.c.h.b16 %v6345
    %v9036 = vunpack.c.l.b16 %v6346
    %v9037 = vunpack.c.h.b16 %v6346
    %v9038 = vunpack.c.l.b16 %v6347
    %v9039 = vunpack.c.h.b16 %v6347
    %v9040 = vunpack.c.l.b16 %v6348
    %v9041 = vunpack.c.h.b16 %v6348
    %v9042 = vunpack.c.l.b16 %v6349
    %v9043 = vunpack.c.h.b16 %v6349
    %v9044 = vunpack.c.l.b16 %v6350
    %v9045 = vunpack.c.h.b16 %v6350
    %v9046 = vunpack.c.l.b16 %v6351
    %v9047 = vunpack.c.h.b16 %v6351
    %v9048 = vunpack.c.l.b16 %v6352
    %v9049 = vunpack.c.h.b16 %v6352
    %v9050 = vunpack.c.l.b16 %v6353
    %v9051 = vunpack.c.h.b16 %v6353
    %v9052 = vunpack.c.l.b16 %v6354
    %v9053 = vunpack.c.h.b16 %v6354
    %v9054 = vunpack.c.l.b16 %v6355
    %v9055 = vunpack.c.h.b16 %v6355
    %v9056 = vunpack.c.l.b16 %v6356
    %v9057 = vunpack.c.h.b16 %v6356
    %v9058 = vunpack.c.l.b16 %v6357
    %v9059 = vunpack.c.h.b16 %v6357
    %v9060 = vunpack.c.l.b16 %v6358
    %v9061 = vunpack.c.h.b16 %v6358
    %v9062 = vunpack.c.l.b16 %v6359
    %v9063 = vunpack.c.h.b16 %v6359
    %v9064 = vunpack.c.l.b16 %v6360
    %v9065 = vunpack.c.h.b16 %v6360
    %v9066 = vunpack.c.l.b16 %v6361
    %v9067 = vunpack.c.h.b16 %v6361
    %v9068 = vunpack.c.l.b16 %v6362
    %v9069 = vunpack.c.h.b16 %v6362
    %v9070 = vunpack.c.l.b16 %v6363
    %v9071 = vunpack.c.h.b16 %v6363
    %v9072 = vunpack.c.l.b16 %v6364
    %v9073 = vunpack.c.h.b16 %v6364
    %v9074 = vunpack.c.l.b16 %v6365
    %v9075 = vunpack.c.h.b16 %v6365
    %v9076 = vunpack.c.l.b16 %v6366
    %v9077 = vunpack.c.h.b16 %v6366
    %v9078 = vunpack.c.l.b16 %v6367
    %v9079 = vunpack.c.h.b16 %v6367
    %v9080 = vunpack.c.l.b16 %v6368
    %v9081 = vunpack.c.h.b16 %v6368
    %v9082 = vunpack.c.l.b16 %v6369
    %v9083 = vunpack.c.h.b16 %v6369
    %v9084 = vunpack.c.l.b16 %v6370
    %v9085 = vunpack.c.h.b16 %v6370
    %v9086 = vunpack.c.l.b16 %v6371
    %v9087 = vunpack.c.h.b16 %v6371
    %v9088 = vunpack.c.l.b16 %v6372
    %v9089 = vunpack.c.h.b16 %v6372
    %v9090 = vunpack.c.l.b16 %v6373
    %v9091 = vunpack.c.h.b16 %v6373
    %v9092 = vunpack.c.l.b16 %v6374
    %v9093 = vunpack.c.h.b16 %v6374
    %v9094 = vunpack.c.l.b16 %v6375
    %v9095 = vunpack.c.h.b16 %v6375
    %v9096 = vunpack.c.l.b16 %v6376
    %v9097 = vunpack.c.h.b16 %v6376
    %v9098 = vunpack.c.l.b16 %v6377
    %v9099 = vunpack.c.h.b16 %v6377
    %v9100 = vunpack.c.l.b16 %v6378
    %v9101 = vunpack.c.h.b16 %v6378
    %v9102 = vunpack.c.l.b16 %v6379
    %v9103 = vunpack.c.h.b16 %v6379
    %v9104 = vunpack.c.l.b16 %v6380
    %v9105 = vunpack.c.h.b16 %v6380
    %v9106 = vunpack.c.l.b16 %v6381
    %v9107 = vunpack.c.h.b16 %v6381
    %v9108 = vunpack.c.l.b16 %v6382
    %v9109 = vunpack.c.h.b16 %v6382
    %v9110 = vunpack.c.l.b16 %v6383
    %v9111 = vunpack.c.h.b16 %v6383
    %v9112 = vunpack.c.l.b16 %v6384
    %v9113 = vunpack.c.h.b16 %v6384
    %v9114 = vunpack.c.l.b16 %v6385
    %v9115 = vunpack.c.h.b16 %v6385
    %v9116 = vunpack.c.l.b16 %v6386
    %v9117 = vunpack.c.h.b16 %v6386
    %v9118 = vunpack.c.l.b16 %v6387
    %v9119 = vunpack.c.h.b16 %v6387
    %v9120 = vunpack.c.l.b16 %v6388
    %v9121 = vunpack.c.h.b16 %v6388
    %v9122 = vunpack.c.l.b16 %v6389
    %v9123 = vunpack.c.h.b16 %v6389
    %v9124 = vunpack.c.l.b16 %v6390
    %v9125 = vunpack.c.h.b16 %v6390
    %v9126 = vunpack.c.l.b16 %v6391
    %v9127 = vunpack.c.h.b16 %v6391
    %v9128 = vunpack.c.l.b16 %v6392
    %v9129 = vunpack.c.h.b16 %v6392
    %v9130 = vunpack.c.l.b16 %v6393
    %v9131 = vunpack.c.h.b16 %v6393
    %v9132 = vunpack.c.l.b16 %v6394
    %v9133 = vunpack.c.h.b16 %v6394
    %v9134 = vunpack.c.l.b16 %v6395
    %v9135 = vunpack.c.h.b16 %v6395
    %v9136 = vunpack.c.l.b16 %v6396
    %v9137 = vunpack.c.h.b16 %v6396
    %v9138 = vunpack.c.l.b16 %v6397
    %v9139 = vunpack.c.h.b16 %v6397
    %v9140 = vunpack.c.l.b16 %v6398
    %v9141 = vunpack.c.h.b16 %v6398
    %v9142 = vunpack.c.l.b16 %v6399
    %v9143 = vunpack.c.h.b16 %v6399
    %v9144 = vunpack.c.l.b16 %v6400
    %v9145 = vunpack.c.h.b16 %v6400
    %v9146 = vunpack.c.l.b16 %v6401
    %v9147 = vunpack.c.h.b16 %v6401
    %v9148 = vunpack.c.l.b16 %v6402
    %v9149 = vunpack.c.h.b16 %v6402
    %v9150 = vunpack.c.l.b16 %v6403
    %v9151 = vunpack.c.h.b16 %v6403
    %v9152 = vunpack.c.l.b16 %v6404
    %v9153 = vunpack.c.h.b16 %v6404
    %v9154 = vunpack.c.l.b16 %v6405
    %v9155 = vunpack.c.h.b16 %v6405
    %v9156 = vunpack.c.l.b16 %v6406
    %v9157 = vunpack.c.h.b16 %v6406
    %v9158 = vunpack.c.l.b16 %v6407
    %v9159 = vunpack.c.h.b16 %v6407
    %v9160 = vunpack.c.l.b16 %v6408
    %v9161 = vunpack.c.h.b16 %v6408
    %v9162 = vunpack.c.l.b16 %v6409
    %v9163 = vunpack.c.h.b16 %v6409
    %v9164 = vunpack.c.l.b16 %v6410
    %v9165 = vunpack.c.h.b16 %v6410
    %v9166 = vunpack.c.l.b16 %v6411
    %v9167 = vunpack.c.h.b16 %v6411
    %v9168 = vunpack.c.l.b16 %v6412
    %v9169 = vunpack.c.h.b16 %v6412
    %v9170 = vunpack.c.l.b16 %v6413
    %v9171 = vunpack.c.h.b16 %v6413
    %v9172 = vunpack.c.l.b16 %v6414
    %v9173 = vunpack.c.h.b16 %v6414
    %v9174 = vunpack.c.l.b16 %v6415
    %v9175 = vunpack.c.h.b16 %v6415
    %v9176 = vunpack.c.l.b16 %v6416
    %v9177 = vunpack.c.h.b16 %v6416
    %v9178 = vunpack.c.l.b16 %v6417
    %v9179 = vunpack.c.h.b16 %v6417
    %v9180 = vunpack.c.l.b16 %v6418
    %v9181 = vunpack.c.h.b16 %v6418
    %v9182 = vunpack.c.l.b16 %v6419
    %v9183 = vunpack.c.h.b16 %v6419
    %v9184 = vunpack.c.l.b16 %v6420
    %v9185 = vunpack.c.h.b16 %v6420
    %v9186 = vunpack.c.l.b16 %v6421
    %v9187 = vunpack.c.h.b16 %v6421
    %v9188 = vunpack.c.l.b16 %v6422
    %v9189 = vunpack.c.h.b16 %v6422
    %v9190 = vunpack.c.l.b16 %v6423
    %v9191 = vunpack.c.h.b16 %v6423
    %v9192 = vunpack.c.l.b16 %v6424
    %v9193 = vunpack.c.h.b16 %v6424
    %v9194 = vunpack.c.l.b16 %v6425
    %v9195 = vunpack.c.h.b16 %v6425
    %v9196 = vunpack.c.l.b16 %v6426
    %v9197 = vunpack.c.h.b16 %v6426
    %v9198 = vunpack.c.l.b16 %v6427
    %v9199 = vunpack.c.h.b16 %v6427
    %v9200 = vunpack.c.l.b16 %v6428
    %v9201 = vunpack.c.h.b16 %v6428
    %v9202 = vunpack.c.l.b16 %v6429
    %v9203 = vunpack.c.h.b16 %v6429
    %v9204 = vunpack.c.l.b16 %v6430
    %v9205 = vunpack.c.h.b16 %v6430
    %v9206 = vunpack.c.l.b16 %v6431
    %v9207 = vunpack.c.h.b16 %v6431
    %v9208 = vunpack.c.l.b16 %v6432
    %v9209 = vunpack.c.h.b16 %v6432
    %v9210 = vunpack.c.l.b16 %v6433
    %v9211 = vunpack.c.h.b16 %v6433
    %v9212 = vunpack.c.l.b16 %v6434
    %v9213 = vunpack.c.h.b16 %v6434
    %v9214 = vunpack.c.l.b16 %v6435
    %v9215 = vunpack.c.h.b16 %v6435
    %v9216 = vunpack.c.l.b16 %v6436
    %v9217 = vunpack.c.h.b16 %v6436
    %v9218 = vunpack.c.l.b16 %v6437
    %v9219 = vunpack.c.h.b16 %v6437
    %v9220 = vunpack.c.l.b16 %v6438
    %v9221 = vunpack.c.h.b16 %v6438
    %v9222 = vunpack.c.l.b16 %v6439
    %v9223 = vunpack.c.h.b16 %v6439
    %v9224 = vunpack.c.l.b16 %v6440
    %v9225 = vunpack.c.h.b16 %v6440
    %v9226 = vunpack.c.l.b16 %v6441
    %v9227 = vunpack.c.h.b16 %v6441
    %v9228 = vunpack.c.l.b16 %v6442
    %v9229 = vunpack.c.h.b16 %v6442
    %v9230 = vunpack.c.l.b16 %v6443
    %v9231 = vunpack.c.h.b16 %v6443
    %v9232 = vunpack.c.l.b16 %v6444
    %v9233 = vunpack.c.h.b16 %v6444
    %v9234 = vunpack.c.l.b16 %v6445
    %v9235 = vunpack.c.h.b16 %v6445
    %v9236 = vunpack.c.l.b16 %v6446
    %v9237 = vunpack.c.h.b16 %v6446
    %v9238 = vunpack.c.l.b16 %v6447
    %v9239 = vunpack.c.h.b16 %v6447
    %v9240 = vunpack.c.l.b16 %v6448
    %v9241 = vunpack.c.h.b16 %v6448
    %v9242 = vunpack.c.l.b16 %v6449
    %v9243 = vunpack.c.h.b16 %v6449
    %v9244 = vunpack.c.l.b16 %v6450
    %v9245 = vunpack.c.h.b16 %v6450
    %v9246 = vunpack.c.l.b16 %v6451
    %v9247 = vunpack.c.h.b16 %v6451
    %v9248 = vunpack.c.l.b16 %v6452
    %v9249 = vunpack.c.h.b16 %v6452
    %v9250 = vunpack.c.l.b16 %v6453
    %v9251 = vunpack.c.h.b16 %v6453
    %v9252 = vunpack.c.l.b16 %v6454
    %v9253 = vunpack.c.h.b16 %v6454
    %v9254 = vunpack.c.l.b16 %v6455
    %v9255 = vunpack.c.h.b16 %v6455
    %v9256 = vunpack.c.l.b16 %v6456
    %v9257 = vunpack.c.h.b16 %v6456
    %v9258 = vunpack.c.l.b16 %v6457
    %v9259 = vunpack.c.h.b16 %v6457
    %v9260 = vunpack.c.l.b16 %v6458
    %v9261 = vunpack.c.h.b16 %v6458
    %v9262 = vunpack.c.l.b16 %v6459
    %v9263 = vunpack.c.h.b16 %v6459
    %v9264 = vunpack.c.l.b16 %v6460
    %v9265 = vunpack.c.h.b16 %v6460
    %v9266 = vunpack.c.l.b16 %v6461
    %v9267 = vunpack.c.h.b16 %v6461
    %v9268 = vunpack.c.l.b16 %v6462
    %v9269 = vunpack.c.h.b16 %v6462
    %v9270 = vunpack.c.l.b16 %v6463
    %v9271 = vunpack.c.h.b16 %v6463
    %v9272 = vunpack.c.l.b16 %v6464
    %v9273 = vunpack.c.h.b16 %v6464
    %v9274 = vunpack.c.l.b16 %v6465
    %v9275 = vunpack.c.h.b16 %v6465
    %v9276 = vunpack.c.l.b16 %v6466
    %v9277 = vunpack.c.h.b16 %v6466
    %v9278 = vunpack.c.l.b16 %v6467
    %v9279 = vunpack.c.h.b16 %v6467
    %v9280 = vunpack.c.l.b16 %v6468
    %v9281 = vunpack.c.h.b16 %v6468
    %v9282 = vunpack.c.l.b16 %v6469
    %v9283 = vunpack.c.h.b16 %v6469
    %v9284 = vunpack.c.l.b16 %v6470
    %v9285 = vunpack.c.h.b16 %v6470
    %v9286 = vunpack.c.l.b16 %v6471
    %v9287 = vunpack.c.h.b16 %v6471
    %v9288 = vunpack.c.l.b16 %v6472
    %v9289 = vunpack.c.h.b16 %v6472
    %v9290 = vunpack.c.l.b16 %v6473
    %v9291 = vunpack.c.h.b16 %v6473
    %v9292 = vunpack.c.l.b16 %v6474
    %v9293 = vunpack.c.h.b16 %v6474
    %v9294 = vunpack.c.l.b16 %v6475
    %v9295 = vunpack.c.h.b16 %v6475
    %v9296 = vunpack.c.l.b16 %v6476
    %v9297 = vunpack.c.h.b16 %v6476
    %v9298 = vunpack.c.l.b16 %v6477
    %v9299 = vunpack.c.h.b16 %v6477
    %v9300 = vunpack.c.l.b16 %v6478
    %v9301 = vunpack.c.h.b16 %v6478
    %v9302 = vunpack.c.l.b16 %v6479
    %v9303 = vunpack.c.h.b16 %v6479
    %v9304 = vunpack.c.l.b16 %v6480
    %v9305 = vunpack.c.h.b16 %v6480
    %v9306 = vunpack.c.l.b16 %v6481
    %v9307 = vunpack.c.h.b16 %v6481
    %v9308 = vunpack.c.l.b16 %v6482
    %v9309 = vunpack.c.h.b16 %v6482
    %v9310 = vunpack.c.l.b16 %v6483
    %v9311 = vunpack.c.h.b16 %v6483
    %v9312 = vunpack.c.l.b16 %v6484
    %v9313 = vunpack.c.h.b16 %v6484
    %v9314 = vunpack.c.l.b16 %v6485
    %v9315 = vunpack.c.h.b16 %v6485
    %v9316 = vunpack.c.l.b16 %v6486
    %v9317 = vunpack.c.h.b16 %v6486
    %v9318 = vunpack.c.l.b16 %v6487
    %v9319 = vunpack.c.h.b16 %v6487
    %v9320 = vunpack.c.l.b16 %v6488
    %v9321 = vunpack.c.h.b16 %v6488
    %v9322 = vunpack.c.l.b16 %v6489
    %v9323 = vunpack.c.h.b16 %v6489
    %v9324 = vunpack.c.l.b16 %v6490
    %v9325 = vunpack.c.h.b16 %v6490
    %v9326 = vunpack.c.l.b16 %v6491
    %v9327 = vunpack.c.h.b16 %v6491
    %v9328 = vunpack.c.l.b16 %v6492
    %v9329 = vunpack.c.h.b16 %v6492
    %v9330 = vunpack.c.l.b16 %v6493
    %v9331 = vunpack.c.h.b16 %v6493
    %v9332 = vunpack.c.l.b16 %v6494
    %v9333 = vunpack.c.h.b16 %v6494
    %v9334 = vunpack.c.l.b16 %v6495
    %v9335 = vunpack.c.h.b16 %v6495
    %v9336 = vunpack.c.l.b16 %v6496
    %v9337 = vunpack.c.h.b16 %v6496
    %v9338 = vunpack.c.l.b16 %v6497
    %v9339 = vunpack.c.h.b16 %v6497
    %v9340 = vunpack.c.l.b16 %v6498
    %v9341 = vunpack.c.h.b16 %v6498
    %v9342 = vunpack.c.l.b16 %v6499
    %v9343 = vunpack.c.h.b16 %v6499
    %v9344 = vunpack.c.l.b16 %v6500
    %v9345 = vunpack.c.h.b16 %v6500
    %v9346 = vunpack.c.l.b16 %v6501
    %v9347 = vunpack.c.h.b16 %v6501
    %v9348 = vunpack.c.l.b16 %v6502
    %v9349 = vunpack.c.h.b16 %v6502
    %v9350 = vunpack.c.l.b16 %v6503
    %v9351 = vunpack.c.h.b16 %v6503
    %v9352 = vunpack.c.l.b16 %v6504
    %v9353 = vunpack.c.h.b16 %v6504
    %v9354 = vunpack.c.l.b16 %v6505
    %v9355 = vunpack.c.h.b16 %v6505
    %v9356 = vunpack.c.l.b16 %v6506
    %v9357 = vunpack.c.h.b16 %v6506
    %v9358 = vunpack.c.l.b16 %v6507
    %v9359 = vunpack.c.h.b16 %v6507
    %v9360 = vunpack.c.l.b16 %v6508
    %v9361 = vunpack.c.h.b16 %v6508
    %v9362 = vunpack.c.l.b16 %v6509
    %v9363 = vunpack.c.h.b16 %v6509
    %v9364 = vunpack.c.l.b16 %v6510
    %v9365 = vunpack.c.h.b16 %v6510
    %v9366 = vunpack.c.l.b16 %v6511
    %v9367 = vunpack.c.h.b16 %v6511
    %v9368 = vunpack.c.l.b16 %v6512
    %v9369 = vunpack.c.h.b16 %v6512
    %v9370 = vunpack.c.l.b16 %v6513
    %v9371 = vunpack.c.h.b16 %v6513
    %v9372 = vunpack.c.l.b16 %v6514
    %v9373 = vunpack.c.h.b16 %v6514
    %v9374 = vunpack.c.l.b16 %v6515
    %v9375 = vunpack.c.h.b16 %v6515
    %v9376 = vunpack.c.l.b16 %v6516
    %v9377 = vunpack.c.h.b16 %v6516
    %v9378 = vunpack.c.l.b16 %v6517
    %v9379 = vunpack.c.h.b16 %v6517
    %v9380 = vunpack.c.l.b16 %v6518
    %v9381 = vunpack.c.h.b16 %v6518
    %v9382 = vunpack.c.l.b16 %v6519
    %v9383 = vunpack.c.h.b16 %v6519
    %v9384 = vunpack.c.l.b16 %v6520
    %v9385 = vunpack.c.h.b16 %v6520
    %v9386 = vunpack.c.l.b16 %v6521
    %v9387 = vunpack.c.h.b16 %v6521
    %v9388 = vunpack.c.l.b16 %v6522
    %v9389 = vunpack.c.h.b16 %v6522
    %v9390 = vunpack.c.l.b16 %v6523
    %v9391 = vunpack.c.h.b16 %v6523
    %v9392 = vunpack.c.l.b16 %v6524
    %v9393 = vunpack.c.h.b16 %v6524
    %v9394 = vunpack.c.l.b16 %v6525
    %v9395 = vunpack.c.h.b16 %v6525
    %v9396 = vunpack.c.l.b16 %v6526
    %v9397 = vunpack.c.h.b16 %v6526
    %v9398 = vunpack.c.l.b16 %v6527
    %v9399 = vunpack.c.h.b16 %v6527
    %v9400 = vunpack.c.l.b16 %v6528
    %v9401 = vunpack.c.h.b16 %v6528
    %v9402 = vunpack.c.l.b16 %v6529
    %v9403 = vunpack.c.h.b16 %v6529
    %v9404 = vunpack.c.l.b16 %v6530
    %v9405 = vunpack.c.h.b16 %v6530
    %v9406 = vunpack.c.l.b16 %v6531
    %v9407 = vunpack.c.h.b16 %v6531
    %v9408 = vunpack.c.l.b16 %v6532
    %v9409 = vunpack.c.h.b16 %v6532
    %v9410 = vunpack.c.l.b16 %v6533
    %v9411 = vunpack.c.h.b16 %v6533
    %v9412 = vunpack.c.l.b16 %v6534
    %v9413 = vunpack.c.h.b16 %v6534
    %v9414 = vunpack.c.l.b16 %v6535
    %v9415 = vunpack.c.h.b16 %v6535
    %v9416 = vunpack.c.l.b16 %v6536
    %v9417 = vunpack.c.h.b16 %v6536
    %v9418 = vunpack.c.l.b16 %v6537
    %v9419 = vunpack.c.h.b16 %v6537
    %v9420 = vunpack.c.l.b16 %v6538
    %v9421 = vunpack.c.h.b16 %v6538
    %v9422 = vunpack.c.l.b16 %v6539
    %v9423 = vunpack.c.h.b16 %v6539
    %v9424 = vunpack.c.l.b16 %v6540
    %v9425 = vunpack.c.h.b16 %v6540
    %v9426 = vunpack.c.l.b16 %v6541
    %v9427 = vunpack.c.h.b16 %v6541
    %v9428 = vunpack.c.l.b16 %v6542
    %v9429 = vunpack.c.h.b16 %v6542
    %v9430 = vunpack.c.l.b16 %v6543
    %v9431 = vunpack.c.h.b16 %v6543
    %v9432 = vunpack.c.l.b16 %v6544
    %v9433 = vunpack.c.h.b16 %v6544
    %v9434 = vunpack.c.l.b16 %v6545
    %v9435 = vunpack.c.h.b16 %v6545
    %v9436 = vunpack.c.l.b16 %v6546
    %v9437 = vunpack.c.h.b16 %v6546
    %v9438 = vunpack.c.l.b16 %v6547
    %v9439 = vunpack.c.h.b16 %v6547
    %v9440 = vunpack.c.l.b16 %v6548
    %v9441 = vunpack.c.h.b16 %v6548
    %v9442 = vunpack.c.l.b16 %v6549
    %v9443 = vunpack.c.h.b16 %v6549
    %v9444 = vunpack.c.l.b16 %v6550
    %v9445 = vunpack.c.h.b16 %v6550
    %v9446 = vunpack.c.l.b16 %v6551
    %v9447 = vunpack.c.h.b16 %v6551
    %v9448 = vunpack.c.l.b16 %v6552
    %v9449 = vunpack.c.h.b16 %v6552
    %v9450 = vunpack.c.l.b16 %v6553
    %v9451 = vunpack.c.h.b16 %v6553
    %v9452 = vunpack.c.l.b16 %v6554
    %v9453 = vunpack.c.h.b16 %v6554
    %v9454 = vunpack.c.l.b16 %v6555
    %v9455 = vunpack.c.h.b16 %v6555
    %v9456 = vunpack.c.l.b16 %v6556
    %v9457 = vunpack.c.h.b16 %v6556
    %v9458 = vunpack.c.l.b16 %v6557
    %v9459 = vunpack.c.h.b16 %v6557
    %v9460 = vunpack.c.l.b16 %v6558
    %v9461 = vunpack.c.h.b16 %v6558
    %v9462 = vunpack.c.l.b16 %v6559
    %v9463 = vunpack.c.h.b16 %v6559
    %v9464 = vunpack.c.l.b16 %v6560
    %v9465 = vunpack.c.h.b16 %v6560
    %v9466 = vunpack.c.l.b16 %v6561
    %v9467 = vunpack.c.h.b16 %v6561
    %v9468 = vunpack.c.l.b16 %v6562
    %v9469 = vunpack.c.h.b16 %v6562
    %v9470 = vunpack.c.l.b16 %v6563
    %v9471 = vunpack.c.h.b16 %v6563
    %v9472 = vunpack.c.l.b16 %v6564
    %v9473 = vunpack.c.h.b16 %v6564
    %v9474 = vunpack.c.l.b16 %v6565
    %v9475 = vunpack.c.h.b16 %v6565
    %v9476 = vunpack.c.l.b16 %v6566
    %v9477 = vunpack.c.h.b16 %v6566
    %v9478 = vunpack.c.l.b16 %v6567
    %v9479 = vunpack.c.h.b16 %v6567
    %v9480 = vunpack.c.l.b16 %v6568
    %v9481 = vunpack.c.h.b16 %v6568
    %v9482 = vunpack.c.l.b16 %v6569
    %v9483 = vunpack.c.h.b16 %v6569
    %v9484 = vunpack.c.l.b16 %v6570
    %v9485 = vunpack.c.h.b16 %v6570
    %v9486 = vunpack.c.l.b16 %v6571
    %v9487 = vunpack.c.h.b16 %v6571
    %v9488 = vunpack.c.l.b16 %v6572
    %v9489 = vunpack.c.h.b16 %v6572
    %v9490 = vunpack.c.l.b16 %v6573
    %v9491 = vunpack.c.h.b16 %v6573
    %v9492 = vunpack.c.l.b16 %v6574
    %v9493 = vunpack.c.h.b16 %v6574
    %v9494 = vunpack.c.l.b16 %v6575
    %v9495 = vunpack.c.h.b16 %v6575
    %v9496 = vunpack.c.l.b16 %v6576
    %v9497 = vunpack.c.h.b16 %v6576
    %v9498 = vunpack.c.l.b16 %v6577
    %v9499 = vunpack.c.h.b16 %v6577
    %v9500 = vunpack.c.l.b16 %v6578
    %v9501 = vunpack.c.h.b16 %v6578
    %v9502 = vunpack.c.l.b16 %v6579
    %v9503 = vunpack.c.h.b16 %v6579
    %v9504 = vunpack.c.l.b16 %v6580
    %v9505 = vunpack.c.h.b16 %v6580
    %v9506 = vunpack.c.l.b16 %v6581
    %v9507 = vunpack.c.h.b16 %v6581
    %v9508 = vunpack.c.l.b16 %v6582
    %v9509 = vunpack.c.h.b16 %v6582
    %v9510 = vunpack.c.l.b16 %v6583
    %v9511 = vunpack.c.h.b16 %v6583
    %v9512 = vunpack.c.l.b16 %v6584
    %v9513 = vunpack.c.h.b16 %v6584
    %v9514 = vunpack.c.l.b16 %v6585
    %v9515 = vunpack.c.h.b16 %v6585
    %v9516 = vunpack.c.l.b16 %v6586
    %v9517 = vunpack.c.h.b16 %v6586
    %v9518 = vunpack.c.l.b16 %v6587
    %v9519 = vunpack.c.h.b16 %v6587
    %v9520 = vunpack.c.l.b16 %v6588
    %v9521 = vunpack.c.h.b16 %v6588
    %v9522 = vunpack.c.l.b16 %v6589
    %v9523 = vunpack.c.h.b16 %v6589
    %v9524 = vunpack.c.l.b16 %v6590
    %v9525 = vunpack.c.h.b16 %v6590
    %v9526 = vunpack.c.l.b16 %v6591
    %v9527 = vunpack.c.h.b16 %v6591
    %v9528 = vunpack.c.l.b16 %v6592
    %v9529 = vunpack.c.h.b16 %v6592
    %v9530 = vunpack.c.l.b16 %v6593
    %v9531 = vunpack.c.h.b16 %v6593
    %v9532 = vunpack.c.l.b16 %v6594
    %v9533 = vunpack.c.h.b16 %v6594
    %v9534 = vunpack.c.l.b16 %v6595
    %v9535 = vunpack.c.h.b16 %v6595
    %v9536 = vunpack.c.l.b16 %v6596
    %v9537 = vunpack.c.h.b16 %v6596
    %v9538 = vunpack.c.l.b16 %v6597
    %v9539 = vunpack.c.h.b16 %v6597
    %v9540 = vunpack.c.l.b16 %v6598
    %v9541 = vunpack.c.h.b16 %v6598
    %v9542 = vunpack.c.l.b16 %v6599
    %v9543 = vunpack.c.h.b16 %v6599
    %v9544 = vunpack.c.l.b16 %v6600
    %v9545 = vunpack.c.h.b16 %v6600
    %v9546 = vunpack.c.l.b16 %v6601
    %v9547 = vunpack.c.h.b16 %v6601
    %v9548 = vunpack.c.l.b16 %v6602
    %v9549 = vunpack.c.h.b16 %v6602
    %v9550 = vunpack.c.l.b16 %v6603
    %v9551 = vunpack.c.h.b16 %v6603
    %v9552 = vunpack.c.l.b16 %v6604
    %v9553 = vunpack.c.h.b16 %v6604
    %v9554 = vunpack.c.l.b16 %v6605
    %v9555 = vunpack.c.h.b16 %v6605
    %v9556 = vunpack.c.l.b16 %v6606
    %v9557 = vunpack.c.h.b16 %v6606
    %v9558 = vunpack.c.l.b16 %v6607
    %v9559 = vunpack.c.h.b16 %v6607
    %v9560 = vunpack.c.l.b16 %v6608
    %v9561 = vunpack.c.h.b16 %v6608
    %v9562 = vunpack.c.l.b16 %v6609
    %v9563 = vunpack.c.h.b16 %v6609
    %v9564 = vunpack.c.l.b16 %v6610
    %v9565 = vunpack.c.h.b16 %v6610
    %v9566 = vunpack.c.l.b16 %v6611
    %v9567 = vunpack.c.h.b16 %v6611
    %v9568 = vunpack.c.l.b16 %v6612
    %v9569 = vunpack.c.h.b16 %v6612
    %v9570 = vunpack.c.l.b16 %v6613
    %v9571 = vunpack.c.h.b16 %v6613
    %v9572 = vunpack.c.l.b16 %v6614
    %v9573 = vunpack.c.h.b16 %v6614
    %v9574 = vunpack.c.l.b16 %v6615
    %v9575 = vunpack.c.h.b16 %v6615
    %v9576 = vunpack.c.l.b16 %v6616
    %v9577 = vunpack.c.h.b16 %v6616
    %v9578 = vunpack.c.l.b16 %v6617
    %v9579 = vunpack.c.h.b16 %v6617
    %v9580 = vunpack.c.l.b16 %v6618
    %v9581 = vunpack.c.h.b16 %v6618
    %v9582 = vunpack.c.l.b16 %v6619
    %v9583 = vunpack.c.h.b16 %v6619
    %v9584 = vunpack.c.l.b16 %v6620
    %v9585 = vunpack.c.h.b16 %v6620
    %v9586 = vunpack.c.l.b16 %v6621
    %v9587 = vunpack.c.h.b16 %v6621
    %v9588 = vunpack.c.l.b16 %v6622
    %v9589 = vunpack.c.h.b16 %v6622
    %v9590 = vunpack.c.l.b16 %v6623
    %v9591 = vunpack.c.h.b16 %v6623
    %v9592 = vunpack.c.l.b16 %v6624
    %v9593 = vunpack.c.h.b16 %v6624
    %v9594 = vunpack.c.l.b16 %v6625
    %v9595 = vunpack.c.h.b16 %v6625
    %v9596 = vunpack.c.l.b16 %v6626
    %v9597 = vunpack.c.h.b16 %v6626
    %v9598 = vunpack.c.l.b16 %v6627
    %v9599 = vunpack.c.h.b16 %v6627
    %v9600 = vunpack.c.l.b16 %v6628
    %v9601 = vunpack.c.h.b16 %v6628
    %v9602 = vunpack.c.l.b16 %v6629
    %v9603 = vunpack.c.h.b16 %v6629
    %v9604 = vunpack.c.l.b16 %v6630
    %v9605 = vunpack.c.h.b16 %v6630
    %v9606 = vunpack.c.l.b16 %v6631
    %v9607 = vunpack.c.h.b16 %v6631
    %v9608 = vunpack.c.l.b16 %v6632
    %v9609 = vunpack.c.h.b16 %v6632
    %v9610 = vunpack.c.l.b16 %v6633
    %v9611 = vunpack.c.h.b16 %v6633
    %v9612 = vunpack.c.l.b16 %v6634
    %v9613 = vunpack.c.h.b16 %v6634
    %v9614 = vunpack.c.l.b16 %v6635
    %v9615 = vunpack.c.h.b16 %v6635
    %v9616 = vunpack.c.l.b16 %v6636
    %v9617 = vunpack.c.h.b16 %v6636
    %v9618 = vunpack.c.l.b16 %v6637
    %v9619 = vunpack.c.h.b16 %v6637
    %v9620 = vunpack.c.l.b16 %v6638
    %v9621 = vunpack.c.h.b16 %v6638
    %v9622 = vunpack.c.l.b16 %v6639
    %v9623 = vunpack.c.h.b16 %v6639
    %v9624 = vunpack.c.l.b16 %v6640
    %v9625 = vunpack.c.h.b16 %v6640
    %v9626 = vunpack.c.l.b16 %v6641
    %v9627 = vunpack.c.h.b16 %v6641
    %v9628 = vunpack.c.l.b16 %v6642
    %v9629 = vunpack.c.h.b16 %v6642
    %v9630 = vunpack.c.l.b16 %v6643
    %v9631 = vunpack.c.h.b16 %v6643
    %v9632 = vunpack.c.l.b16 %v6644
    %v9633 = vunpack.c.h.b16 %v6644
    %v9634 = vunpack.c.l.b16 %v6645
    %v9635 = vunpack.c.h.b16 %v6645
    %v9636 = vunpack.c.l.b16 %v6646
    %v9637 = vunpack.c.h.b16 %v6646
    %v9638 = vunpack.c.l.b16 %v6647
    %v9639 = vunpack.c.h.b16 %v6647
    %v9640 = vunpack.c.l.b16 %v6648
    %v9641 = vunpack.c.h.b16 %v6648
    %v9642 = vunpack.c.l.b16 %v6649
    %v9643 = vunpack.c.h.b16 %v6649
    %v9644 = vunpack.c.l.b16 %v6650
    %v9645 = vunpack.c.h.b16 %v6650
    %v9646 = vunpack.c.l.b16 %v6651
    %v9647 = vunpack.c.h.b16 %v6651
    %v9648 = vunpack.c.l.b16 %v6652
    %v9649 = vunpack.c.h.b16 %v6652
    %v9650 = vunpack.c.l.b16 %v6653
    %v9651 = vunpack.c.h.b16 %v6653
    %v9652 = vunpack.c.l.b16 %v6654
    %v9653 = vunpack.c.h.b16 %v6654
    %v9654 = vunpack.c.l.b16 %v6655
    %v9655 = vunpack.c.h.b16 %v6655
    %v9656 = vunpack.c.l.b16 %v6656
    %v9657 = vunpack.c.h.b16 %v6656
    %v9658 = vunpack.c.l.b16 %v6657
    %v9659 = vunpack.c.h.b16 %v6657
    %v9660 = vunpack.c.l.b16 %v6658
    %v9661 = vunpack.c.h.b16 %v6658
    %v9662 = vunpack.c.l.b16 %v6659
    %v9663 = vunpack.c.h.b16 %v6659
    %v9664 = vunpack.c.l.b16 %v6660
    %v9665 = vunpack.c.h.b16 %v6660
    %v9666 = vunpack.c.l.b16 %v6661
    %v9667 = vunpack.c.h.b16 %v6661
    %v9668 = vunpack.c.l.b16 %v6662
    %v9669 = vunpack.c.h.b16 %v6662
    %v9670 = vunpack.c.l.b16 %v6663
    %v9671 = vunpack.c.h.b16 %v6663
    %v9672 = vunpack.c.l.b16 %v6664
    %v9673 = vunpack.c.h.b16 %v6664
    %v9674 = vunpack.c.l.b16 %v6665
    %v9675 = vunpack.c.h.b16 %v6665
    %v9676 = vunpack.c.l.b16 %v6666
    %v9677 = vunpack.c.h.b16 %v6666
    %v9678 = vunpack.c.l.b16 %v6667
    %v9679 = vunpack.c.h.b16 %v6667
    %v9680 = vunpack.c.l.b16 %v6668
    %v9681 = vunpack.c.h.b16 %v6668
    %v9682 = vunpack.c.l.b16 %v6669
    %v9683 = vunpack.c.h.b16 %v6669
    %v9684 = vunpack.c.l.b16 %v6670
    %v9685 = vunpack.c.h.b16 %v6670
    %v9686 = vunpack.c.l.b16 %v6671
    %v9687 = vunpack.c.h.b16 %v6671
    %v9688 = vunpack.c.l.b16 %v6672
    %v9689 = vunpack.c.h.b16 %v6672
    %v9690 = vunpack.c.l.b16 %v6673
    %v9691 = vunpack.c.h.b16 %v6673
    %v9692 = vunpack.c.l.b16 %v6674
    %v9693 = vunpack.c.h.b16 %v6674
    %v9694 = vunpack.c.l.b16 %v6675
    %v9695 = vunpack.c.h.b16 %v6675
    %v9696 = vunpack.c.l.b16 %v6676
    %v9697 = vunpack.c.h.b16 %v6676
    %v9698 = vunpack.c.l.b16 %v6677
    %v9699 = vunpack.c.h.b16 %v6677
    %v9700 = vunpack.c.l.b16 %v6678
    %v9701 = vunpack.c.h.b16 %v6678
    %v9702 = vunpack.c.l.b16 %v6679
    %v9703 = vunpack.c.h.b16 %v6679
    %v9704 = vunpack.c.l.b16 %v6680
    %v9705 = vunpack.c.h.b16 %v6680
    %v9706 = vunpack.c.l.b16 %v6681
    %v9707 = vunpack.c.h.b16 %v6681
    %v9708 = vunpack.c.l.b16 %v6682
    %v9709 = vunpack.c.h.b16 %v6682
    %v9710 = vunpack.c.l.b16 %v6683
    %v9711 = vunpack.c.h.b16 %v6683
    %v9712 = vunpack.c.l.b16 %v6684
    %v9713 = vunpack.c.h.b16 %v6684
    %v9714 = vunpack.c.l.b16 %v6685
    %v9715 = vunpack.c.h.b16 %v6685
    %v9716 = vunpack.c.l.b16 %v6686
    %v9717 = vunpack.c.h.b16 %v6686
    %v9718 = vunpack.c.l.b16 %v6687
    %v9719 = vunpack.c.h.b16 %v6687
    %v9720 = vunpack.c.l.b16 %v6688
    %v9721 = vunpack.c.h.b16 %v6688
    %v9722 = vunpack.c.l.b16 %v6689
    %v9723 = vunpack.c.h.b16 %v6689
    %v9724 = vunpack.c.l.b16 %v6690
    %v9725 = vunpack.c.h.b16 %v6690
    %v9726 = vunpack.c.l.b16 %v6691
    %v9727 = vunpack.c.h.b16 %v6691
    %v9728 = vunpack.c.l.b16 %v6692
    %v9729 = vunpack.c.h.b16 %v6692
    %v9730 = vunpack.c.l.b16 %v6693
    %v9731 = vunpack.c.h.b16 %v6693
    %v9732 = vunpack.c.l.b16 %v6694
    %v9733 = vunpack.c.h.b16 %v6694
    %v9734 = vunpack.c.l.b16 %v6695
    %v9735 = vunpack.c.h.b16 %v6695
    %v9736 = vunpack.c.l.b16 %v6696
    %v9737 = vunpack.c.h.b16 %v6696
    %v9738 = vunpack.c.l.b16 %v6697
    %v9739 = vunpack.c.h.b16 %v6697
    %v9740 = vunpack.c.l.b16 %v6698
    %v9741 = vunpack.c.h.b16 %v6698
    %v9742 = vunpack.c.l.b16 %v6699
    %v9743 = vunpack.c.h.b16 %v6699
    %v9744 = vunpack.c.l.b16 %v6700
    %v9745 = vunpack.c.h.b16 %v6700
    %v9746 = vunpack.c.l.b16 %v6701
    %v9747 = vunpack.c.h.b16 %v6701
    %v9748 = vunpack.c.l.b16 %v6702
    %v9749 = vunpack.c.h.b16 %v6702
    %v9750 = vunpack.c.l.b16 %v6703
    %v9751 = vunpack.c.h.b16 %v6703
    %v9752 = vunpack.c.l.b16 %v6704
    %v9753 = vunpack.c.h.b16 %v6704
    %v9754 = vunpack.c.l.b16 %v6705
    %v9755 = vunpack.c.h.b16 %v6705
    %v9756 = vunpack.c.l.b16 %v6706
    %v9757 = vunpack.c.h.b16 %v6706
    %v9758 = vunpack.c.l.b16 %v6707
    %v9759 = vunpack.c.h.b16 %v6707
    %v9760 = vunpack.c.l.b16 %v6708
    %v9761 = vunpack.c.h.b16 %v6708
    %v9762 = vunpack.c.l.b16 %v6709
    %v9763 = vunpack.c.h.b16 %v6709
    %v9764 = vunpack.c.l.b16 %v6710
    %v9765 = vunpack.c.h.b16 %v6710
    %v9766 = vunpack.c.l.b16 %v6711
    %v9767 = vunpack.c.h.b16 %v6711
    %v9768 = vunpack.c.l.b16 %v6712
    %v9769 = vunpack.c.h.b16 %v6712
    %v9770 = vunpack.c.l.b16 %v6713
    %v9771 = vunpack.c.h.b16 %v6713
    %v9772 = vunpack.c.l.b16 %v6714
    %v9773 = vunpack.c.h.b16 %v6714
    %v9774 = vunpack.c.l.b16 %v6715
    %v9775 = vunpack.c.h.b16 %v6715
    %v9776 = vunpack.c.l.b16 %v6716
    %v9777 = vunpack.c.h.b16 %v6716
    %v9778 = vunpack.c.l.b16 %v6717
    %v9779 = vunpack.c.h.b16 %v6717
    %v9780 = vunpack.c.l.b16 %v6718
    %v9781 = vunpack.c.h.b16 %v6718
    %v9782 = vunpack.c.l.b16 %v6719
    %v9783 = vunpack.c.h.b16 %v6719
    %v9784 = vunpack.c.l.b16 %v6720
    %v9785 = vunpack.c.h.b16 %v6720
    %v9786 = vunpack.c.l.b16 %v6721
    %v9787 = vunpack.c.h.b16 %v6721
    %v9788 = vunpack.c.l.b16 %v6722
    %v9789 = vunpack.c.h.b16 %v6722
    %v9790 = vunpack.c.l.b16 %v6723
    %v9791 = vunpack.c.h.b16 %v6723
    %v9792 = vunpack.c.l.b16 %v6724
    %v9793 = vunpack.c.h.b16 %v6724
    %v9794 = vunpack.c.l.b16 %v6725
    %v9795 = vunpack.c.h.b16 %v6725
    %v9796 = vunpack.c.l.b16 %v6726
    %v9797 = vunpack.c.h.b16 %v6726
    %v9798 = vunpack.c.l.b16 %v6727
    %v9799 = vunpack.c.h.b16 %v6727
    %v9800 = vunpack.c.l.b16 %v6728
    %v9801 = vunpack.c.h.b16 %v6728
    %v9802 = vunpack.c.l.b16 %v6729
    %v9803 = vunpack.c.h.b16 %v6729
    %v9804 = vunpack.c.l.b16 %v6730
    %v9805 = vunpack.c.h.b16 %v6730
    %v9806 = vunpack.c.l.b16 %v6731
    %v9807 = vunpack.c.h.b16 %v6731
    %v9808 = vunpack.c.l.b16 %v6732
    %v9809 = vunpack.c.h.b16 %v6732
    %v9810 = vunpack.c.l.b16 %v6733
    %v9811 = vunpack.c.h.b16 %v6733
    %v9812 = vunpack.c.l.b16 %v6734
    %v9813 = vunpack.c.h.b16 %v6734
    %v9814 = vunpack.c.l.b16 %v6735
    %v9815 = vunpack.c.h.b16 %v6735
    %v9816 = vunpack.c.l.b16 %v6736
    %v9817 = vunpack.c.h.b16 %v6736
    %v9818 = vunpack.c.l.b16 %v6737
    %v9819 = vunpack.c.h.b16 %v6737
    %v9820 = vunpack.c.l.b16 %v6738
    %v9821 = vunpack.c.h.b16 %v6738
    %v9822 = vunpack.c.l.b16 %v6739
    %v9823 = vunpack.c.h.b16 %v6739
    %v9824 = vpack.c.b16 %v7778, %v7776
    %v9825 = vpack.c.b16 %v7779, %v7777
    %v9826 = vpack.c.b16 %v7782, %v7780
    %v9827 = vpack.c.b16 %v7783, %v7781
    %v9828 = vpack.c.b16 %v7786, %v7784
    %v9829 = vpack.c.b16 %v7787, %v7785
    %v9830 = vpack.c.b16 %v7790, %v7788
    %v9831 = vpack.c.b16 %v7791, %v7789
    %v9832 = vpack.c.b16 %v7794, %v7792
    %v9833 = vpack.c.b16 %v7795, %v7793
    %v9834 = vpack.c.b16 %v7798, %v7796
    %v9835 = vpack.c.b16 %v7799, %v7797
    %v9836 = vpack.c.b16 %v7802, %v7800
    %v9837 = vpack.c.b16 %v7803, %v7801
    %v9838 = vpack.c.b16 %v7806, %v7804
    %v9839 = vpack.c.b16 %v7807, %v7805
    %v9840 = vpack.c.b16 %v7810, %v7808
    %v9841 = vpack.c.b16 %v7811, %v7809
    %v9842 = vpack.c.b16 %v7814, %v7812
    %v9843 = vpack.c.b16 %v7815, %v7813
    %v9844 = vpack.c.b16 %v7818, %v7816
    %v9845 = vpack.c.b16 %v7819, %v7817
    %v9846 = vpack.c.b16 %v7822, %v7820
    %v9847 = vpack.c.b16 %v7823, %v7821
    %v9848 = vpack.c.b16 %v7826, %v7824
    %v9849 = vpack.c.b16 %v7827, %v7825
    %v9850 = vpack.c.b16 %v7830, %v7828
    %v9851 = vpack.c.b16 %v7831, %v7829
    %v9852 = vpack.c.b16 %v7834, %v7832
    %v9853 = vpack.c.b16 %v7835, %v7833
    %v9854 = vpack.c.b16 %v7838, %v7836
    %v9855 = vpack.c.b16 %v7839, %v7837
    %v9856 = vpack.c.b16 %v7842, %v7840
    %v9857 = vpack.c.b16 %v7843, %v7841
    %v9858 = vpack.c.b16 %v7846, %v7844
    %v9859 = vpack.c.b16 %v7847, %v7845
    %v9860 = vpack.c.b16 %v7850, %v7848
    %v9861 = vpack.c.b16 %v7851, %v7849
    %v9862 = vpack.c.b16 %v7854, %v7852
    %v9863 = vpack.c.b16 %v7855, %v7853
    %v9864 = vpack.c.b16 %v7858, %v7856
    %v9865 = vpack.c.b16 %v7859, %v7857
    %v9866 = vpack.c.b16 %v7862, %v7860
    %v9867 = vpack.c.b16 %v7863, %v7861
    %v9868 = vpack.c.b16 %v7866, %v7864
    %v9869 = vpack.c.b16 %v7867, %v7865
    %v9870 = vpack.c.b16 %v7870, %v7868
    %v9871 = vpack.c.b16 %v7871, %v7869
    %v9872 = vpack.c.b16 %v7874, %v7872
    %v9873 = vpack.c.b16 %v7875, %v7873
    %v9874 = vpack.c.b16 %v7878, %v7876
    %v9875 = vpack.c.b16 %v7879, %v7877
    %v9876 = vpack.c.b16 %v7882, %v7880
    %v9877 = vpack.c.b16 %v7883, %v7881
    %v9878 = vpack.c.b16 %v7886, %v7884
    %v9879 = vpack.c.b16 %v7887, %v7885
    %v9880 = vpack.c.b16 %v7890, %v7888
    %v9881 = vpack.c.b16 %v7891, %v7889
    %v9882 = vpack.c.b16 %v7894, %v7892
    %v9883 = vpack.c.b16 %v7895, %v7893
    %v9884 = vpack.c.b16 %v7898, %v7896
    %v9885 = vpack.c.b16 %v7899, %v7897
    %v9886 = vpack.c.b16 %v7902, %v7900
    %v9887 = vpack.c.b16 %v7903, %v7901
    %v9888 = vpack.c.b16 %v7906, %v7904
    %v9889 = vpack.c.b16 %v7907, %v7905
    %v9890 = vpack.c.b16 %v7910, %v7908
    %v9891 = vpack.c.b16 %v7911, %v7909
    %v9892 = vpack.c.b16 %v7914, %v7912
    %v9893 = vpack.c.b16 %v7915, %v7913
    %v9894 = vpack.c.b16 %v7918, %v7916
    %v9895 = vpack.c.b16 %v7919, %v7917
    %v9896 = vpack.c.b16 %v7922, %v7920
    %v9897 = vpack.c.b16 %v7923, %v7921
    %v9898 = vpack.c.b16 %v7926, %v7924
    %v9899 = vpack.c.b16 %v7927, %v7925
    %v9900 = vpack.c.b16 %v7930, %v7928
    %v9901 = vpack.c.b16 %v7931, %v7929
    %v9902 = vpack.c.b16 %v7934, %v7932
    %v9903 = vpack.c.b16 %v7935, %v7933
    %v9904 = vpack.c.b16 %v7938, %v7936
    %v9905 = vpack.c.b16 %v7939, %v7937
    %v9906 = vpack.c.b16 %v7942, %v7940
    %v9907 = vpack.c.b16 %v7943, %v7941
    %v9908 = vpack.c.b16 %v7946, %v7944
    %v9909 = vpack.c.b16 %v7947, %v7945
    %v9910 = vpack.c.b16 %v7950, %v7948
    %v9911 = vpack.c.b16 %v7951, %v7949
    %v9912 = vpack.c.b16 %v7954, %v7952
    %v9913 = vpack.c.b16 %v7955, %v7953
    %v9914 = vpack.c.b16 %v7958, %v7956
    %v9915 = vpack.c.b16 %v7959, %v7957
    %v9916 = vpack.c.b16 %v7962, %v7960
    %v9917 = vpack.c.b16 %v7963, %v7961
    %v9918 = vpack.c.b16 %v7966, %v7964
    %v9919 = vpack.c.b16 %v7967, %v7965
    %v9920 = vpack.c.b16 %v7970, %v7968
    %v9921 = vpack.c.b16 %v7971, %v7969
    %v9922 = vpack.c.b16 %v7974, %v7972
    %v9923 = vpack.c.b16 %v7975, %v7973
    %v9924 = vpack.c.b16 %v7978, %v7976
    %v9925 = vpack.c.b16 %v7979, %v7977
    %v9926 = vpack.c.b16 %v7982, %v7980
    %v9927 = vpack.c.b16 %v7983, %v7981
    %v9928 = vpack.c.b16 %v7986, %v7984
    %v9929 = vpack.c.b16 %v7987, %v7985
    %v9930 = vpack.c.b16 %v7990, %v7988
    %v9931 = vpack.c.b16 %v7991, %v7989
    %v9932 = vpack.c.b16 %v7994, %v7992
    %v9933 = vpack.c.b16 %v7995, %v7993
    %v9934 = vpack.c.b16 %v7998, %v7996
    %v9935 = vpack.c.b16 %v7999, %v7997
    %v9936 = vpack.c.b16 %v8002, %v8000
    %v9937 = vpack.c.b16 %v8003, %v8001
    %v9938 = vpack.c.b16 %v8006, %v8004
    %v9939 = vpack.c.b16 %v8007, %v8005
    %v9940 = vpack.c.b16 %v8010, %v8008
    %v9941 = vpack.c.b16 %v8011, %v8009
    %v9942 = vpack.c.b16 %v8014, %v8012
    %v9943 = vpack.c.b16 %v8015, %v8013
    %v9944 = vpack.c.b16 %v8018, %v8016
    %v9945 = vpack.c.b16 %v8019, %v8017
    %v9946 = vpack.c.b16 %v8022, %v8020
    %v9947 = vpack.c.b16 %v8023, %v8021
    %v9948 = vpack.c.b16 %v8026, %v8024
    %v9949 = vpack.c.b16 %v8027, %v8025
    %v9950 = vpack.c.b16 %v8030, %v8028
    %v9951 = vpack.c.b16 %v8031, %v8029
    %v9952 = vpack.c.b16 %v8034, %v8032
    %v9953 = vpack.c.b16 %v8035, %v8033
    %v9954 = vpack.c.b16 %v8038, %v8036
    %v9955 = vpack.c.b16 %v8039, %v8037
    %v9956 = vpack.c.b16 %v8042, %v8040
    %v9957 = vpack.c.b16 %v8043, %v8041
    %v9958 = vpack.c.b16 %v8046, %v8044
    %v9959 = vpack.c.b16 %v8047, %v8045
    %v9960 = vpack.c.b16 %v8050, %v8048
    %v9961 = vpack.c.b16 %v8051, %v8049
    %v9962 = vpack.c.b16 %v8054, %v8052
    %v9963 = vpack.c.b16 %v8055, %v8053
    %v9964 = vpack.c.b16 %v8058, %v8056
    %v9965 = vpack.c.b16 %v8059, %v8057
    %v9966 = vpack.c.b16 %v8062, %v8060
    %v9967 = vpack.c.b16 %v8063, %v8061
    %v9968 = vpack.c.b16 %v8066, %v8064
    %v9969 = vpack.c.b16 %v8067, %v8065
    %v9970 = vpack.c.b16 %v8070, %v8068
    %v9971 = vpack.c.b16 %v8071, %v8069
    %v9972 = vpack.c.b16 %v8074, %v8072
    %v9973 = vpack.c.b16 %v8075, %v8073
    %v9974 = vpack.c.b16 %v8078, %v8076
    %v9975 = vpack.c.b16 %v8079, %v8077
    %v9976 = vpack.c.b16 %v8082, %v8080
    %v9977 = vpack.c.b16 %v8083, %v8081
    %v9978 = vpack.c.b16 %v8086, %v8084
    %v9979 = vpack.c.b16 %v8087, %v8085
    %v9980 = vpack.c.b16 %v8090, %v8088
    %v9981 = vpack.c.b16 %v8091, %v8089
    %v9982 = vpack.c.b16 %v8094, %v8092
    %v9983 = vpack.c.b16 %v8095, %v8093
    %v9984 = vpack.c.b16 %v8098, %v8096
    %v9985 = vpack.c.b16 %v8099, %v8097
    %v9986 = vpack.c.b16 %v8102, %v8100
    %v9987 = vpack.c.b16 %v8103, %v8101
    %v9988 = vpack.c.b16 %v8106, %v8104
    %v9989 = vpack.c.b16 %v8107, %v8105
    %v9990 = vpack.c.b16 %v8110, %v8108
    %v9991 = vpack.c.b16 %v8111, %v8109
    %v9992 = vpack.c.b16 %v8114, %v8112
    %v9993 = vpack.c.b16 %v8115, %v8113
    %v9994 = vpack.c.b16 %v8118, %v8116
    %v9995 = vpack.c.b16 %v8119, %v8117
    %v9996 = vpack.c.b16 %v8122, %v8120
    %v9997 = vpack.c.b16 %v8123, %v8121
    %v9998 = vpack.c.b16 %v8126, %v8124
    %v9999 = vpack.c.b16 %v8127, %v8125
    %v10000 = vpack.c.b16 %v8130, %v8128
    %v10001 = vpack.c.b16 %v8131, %v8129
    %v10002 = vpack.c.b16 %v8134, %v8132
    %v10003 = vpack.c.b16 %v8135, %v8133
    %v10004 = vpack.c.b16 %v8138, %v8136
    %v10005 = vpack.c.b16 %v8139, %v8137
    %v10006 = vpack.c.b16 %v8142, %v8140
    %v10007 = vpack.c.b16 %v8143, %v8141
    %v10008 = vpack.c.b16 %v8146, %v8144
    %v10009 = vpack.c.b16 %v8147, %v8145
    %v10010 = vpack.c.b16 %v8150, %v8148
    %v10011 = vpack.c.b16 %v8151, %v8149
    %v10012 = vpack.c.b16 %v8154, %v8152
    %v10013 = vpack.c.b16 %v8155, %v8153
    %v10014 = vpack.c.b16 %v8158, %v8156
    %v10015 = vpack.c.b16 %v8159, %v8157
    %v10016 = vpack.c.b16 %v8162, %v8160
    %v10017 = vpack.c.b16 %v8163, %v8161
    %v10018 = vpack.c.b16 %v8166, %v8164
    %v10019 = vpack.c.b16 %v8167, %v8165
    %v10020 = vpack.c.b16 %v8170, %v8168
    %v10021 = vpack.c.b16 %v8171, %v8169
    %v10022 = vpack.c.b16 %v8174, %v8172
    %v10023 = vpack.c.b16 %v8175, %v8173
    %v10024 = vpack.c.b16 %v8178, %v8176
    %v10025 = vpack.c.b16 %v8179, %v8177
    %v10026 = vpack.c.b16 %v8182, %v8180
    %v10027 = vpack.c.b16 %v8183, %v8181
    %v10028 = vpack.c.b16 %v8186, %v8184
    %v10029 = vpack.c.b16 %v8187, %v8185
    %v10030 = vpack.c.b16 %v8190, %v8188
    %v10031 = vpack.c.b16 %v8191, %v8189
    %v10032 = vpack.c.b16 %v8194, %v8192
    %v10033 = vpack.c.b16 %v8195, %v8193
    %v10034 = vpack.c.b16 %v8198, %v8196
    %v10035 = vpack.c.b16 %v8199, %v8197
    %v10036 = vpack.c.b16 %v8202, %v8200
    %v10037 = vpack.c.b16 %v8203, %v8201
    %v10038 = vpack.c.b16 %v8206, %v8204
    %v10039 = vpack.c.b16 %v8207, %v8205
    %v10040 = vpack.c.b16 %v8210, %v8208
    %v10041 = vpack.c.b16 %v8211, %v8209
    %v10042 = vpack.c.b16 %v8214, %v8212
    %v10043 = vpack.c.b16 %v8215, %v8213
    %v10044 = vpack.c.b16 %v8218, %v8216
    %v10045 = vpack.c.b16 %v8219, %v8217
    %v10046 = vpack.c.b16 %v8222, %v8220
    %v10047 = vpack.c.b16 %v8223, %v8221
    %v10048 = vpack.c.b16 %v8226, %v8224
    %v10049 = vpack.c.b16 %v8227, %v8225
    %v10050 = vpack.c.b16 %v8230, %v8228
    %v10051 = vpack.c.b16 %v8231, %v8229
    %v10052 = vpack.c.b16 %v8234, %v8232
    %v10053 = vpack.c.b16 %v8235, %v8233
    %v10054 = vpack.c.b16 %v8238, %v8236
    %v10055 = vpack.c.b16 %v8239, %v8237
    %v10056 = vpack.c.b16 %v8242, %v8240
    %v10057 = vpack.c.b16 %v8243, %v8241
    %v10058 = vpack.c.b16 %v8246, %v8244
    %v10059 = vpack.c.b16 %v8247, %v8245
    %v10060 = vpack.c.b16 %v8250, %v8248
    %v10061 = vpack.c.b16 %v8251, %v8249
    %v10062 = vpack.c.b16 %v8254, %v8252
    %v10063 = vpack.c.b16 %v8255, %v8253
    %v10064 = vpack.c.b16 %v8258, %v8256
    %v10065 = vpack.c.b16 %v8259, %v8257
    %v10066 = vpack.c.b16 %v8262, %v8260
    %v10067 = vpack.c.b16 %v8263, %v8261
    %v10068 = vpack.c.b16 %v8266, %v8264
    %v10069 = vpack.c.b16 %v8267, %v8265
    %v10070 = vpack.c.b16 %v8270, %v8268
    %v10071 = vpack.c.b16 %v8271, %v8269
    %v10072 = vpack.c.b16 %v8274, %v8272
    %v10073 = vpack.c.b16 %v8275, %v8273
    %v10074 = vpack.c.b16 %v8278, %v8276
    %v10075 = vpack.c.b16 %v8279, %v8277
    %v10076 = vpack.c.b16 %v8282, %v8280
    %v10077 = vpack.c.b16 %v8283, %v8281
    %v10078 = vpack.c.b16 %v8286, %v8284
    %v10079 = vpack.c.b16 %v8287, %v8285
    %v10080 = vpack.c.b16 %v8290, %v8288
    %v10081 = vpack.c.b16 %v8291, %v8289
    %v10082 = vpack.c.b16 %v8294, %v8292
    %v10083 = vpack.c.b16 %v8295, %v8293
    %v10084 = vpack.c.b16 %v8298, %v8296
    %v10085 = vpack.c.b16 %v8299, %v8297
    %v10086 = vpack.c.b16 %v8302, %v8300
    %v10087 = vpack.c.b16 %v8303, %v8301
    %v10088 = vpack.c.b16 %v8306, %v8304
    %v10089 = vpack.c.b16 %v8307, %v8305
    %v10090 = vpack.c.b16 %v8310, %v8308
    %v10091 = vpack.c.b16 %v8311, %v8309
    %v10092 = vpack.c.b16 %v8314, %v8312
    %v10093 = vpack.c.b16 %v8315, %v8313
    %v10094 = vpack.c.b16 %v8318, %v8316
    %v10095 = vpack.c.b16 %v8319, %v8317
    %v10096 = vpack.c.b16 %v8322, %v8320
    %v10097 = vpack.c.b16 %v8323, %v8321
    %v10098 = vpack.c.b16 %v8326, %v8324
    %v10099 = vpack.c.b16 %v8327, %v8325
    %v10100 = vpack.c.b16 %v8330, %v8328
    %v10101 = vpack.c.b16 %v8331, %v8329
    %v10102 = vpack.c.b16 %v8334, %v8332
    %v10103 = vpack.c.b16 %v8335, %v8333
    %v10104 = vpack.c.b16 %v8338, %v8336
    %v10105 = vpack.c.b16 %v8339, %v8337
    %v10106 = vpack.c.b16 %v8342, %v8340
    %v10107 = vpack.c.b16 %v8343, %v8341
    %v10108 = vpack.c.b16 %v8346, %v8344
    %v10109 = vpack.c.b16 %v8347, %v8345
    %v10110 = vpack.c.b16 %v8350, %v8348
    %v10111 = vpack.c.b16 %v8351, %v8349
    %v10112 = vpack.c.b16 %v8354, %v8352
    %v10113 = vpack.c.b16 %v8355, %v8353
    %v10114 = vpack.c.b16 %v8358, %v8356
    %v10115 = vpack.c.b16 %v8359, %v8357
    %v10116 = vpack.c.b16 %v8362, %v8360
    %v10117 = vpack.c.b16 %v8363, %v8361
    %v10118 = vpack.c.b16 %v8366, %v8364
    %v10119 = vpack.c.b16 %v8367, %v8365
    %v10120 = vpack.c.b16 %v8370, %v8368
    %v10121 = vpack.c.b16 %v8371, %v8369
    %v10122 = vpack.c.b16 %v8374, %v8372
    %v10123 = vpack.c.b16 %v8375, %v8373
    %v10124 = vpack.c.b16 %v8378, %v8376
    %v10125 = vpack.c.b16 %v8379, %v8377
    %v10126 = vpack.c.b16 %v8382, %v8380
    %v10127 = vpack.c.b16 %v8383, %v8381
    %v10128 = vpack.c.b16 %v8386, %v8384
    %v10129 = vpack.c.b16 %v8387, %v8385
    %v10130 = vpack.c.b16 %v8390, %v8388
    %v10131 = vpack.c.b16 %v8391, %v8389
    %v10132 = vpack.c.b16 %v8394, %v8392
    %v10133 = vpack.c.b16 %v8395, %v8393
    %v10134 = vpack.c.b16 %v8398, %v8396
    %v10135 = vpack.c.b16 %v8399, %v8397
    %v10136 = vpack.c.b16 %v8402, %v8400
    %v10137 = vpack.c.b16 %v8403, %v8401
    %v10138 = vpack.c.b16 %v8406, %v8404
    %v10139 = vpack.c.b16 %v8407, %v8405
    %v10140 = vpack.c.b16 %v8410, %v8408
    %v10141 = vpack.c.b16 %v8411, %v8409
    %v10142 = vpack.c.b16 %v8414, %v8412
    %v10143 = vpack.c.b16 %v8415, %v8413
    %v10144 = vpack.c.b16 %v8418, %v8416
    %v10145 = vpack.c.b16 %v8419, %v8417
    %v10146 = vpack.c.b16 %v8422, %v8420
    %v10147 = vpack.c.b16 %v8423, %v8421
    %v10148 = vpack.c.b16 %v8426, %v8424
    %v10149 = vpack.c.b16 %v8427, %v8425
    %v10150 = vpack.c.b16 %v8430, %v8428
    %v10151 = vpack.c.b16 %v8431, %v8429
    %v10152 = vpack.c.b16 %v8434, %v8432
    %v10153 = vpack.c.b16 %v8435, %v8433
    %v10154 = vpack.c.b16 %v8438, %v8436
    %v10155 = vpack.c.b16 %v8439, %v8437
    %v10156 = vpack.c.b16 %v8442, %v8440
    %v10157 = vpack.c.b16 %v8443, %v8441
    %v10158 = vpack.c.b16 %v8446, %v8444
    %v10159 = vpack.c.b16 %v8447, %v8445
    %v10160 = vpack.c.b16 %v8450, %v8448
    %v10161 = vpack.c.b16 %v8451, %v8449
    %v10162 = vpack.c.b16 %v8454, %v8452
    %v10163 = vpack.c.b16 %v8455, %v8453
    %v10164 = vpack.c.b16 %v8458, %v8456
    %v10165 = vpack.c.b16 %v8459, %v8457
    %v10166 = vpack.c.b16 %v8462, %v8460
    %v10167 = vpack.c.b16 %v8463, %v8461
    %v10168 = vpack.c.b16 %v8466, %v8464
    %v10169 = vpack.c.b16 %v8467, %v8465
    %v10170 = vpack.c.b16 %v8470, %v8468
    %v10171 = vpack.c.b16 %v8471, %v8469
    %v10172 = vpack.c.b16 %v8474, %v8472
    %v10173 = vpack.c.b16 %v8475, %v8473
    %v10174 = vpack.c.b16 %v8478, %v8476
    %v10175 = vpack.c.b16 %v8479, %v8477
    %v10176 = vpack.c.b16 %v8482, %v8480
    %v10177 = vpack.c.b16 %v8483, %v8481
    %v10178 = vpack.c.b16 %v8486, %v8484
    %v10179 = vpack.c.b16 %v8487, %v8485
    %v10180 = vpack.c.b16 %v8490, %v8488
    %v10181 = vpack.c.b16 %v8491, %v8489
    %v10182 = vpack.c.b16 %v8494, %v8492
    %v10183 = vpack.c.b16 %v8495, %v8493
    %v10184 = vpack.c.b16 %v8498, %v8496
    %v10185 = vpack.c.b16 %v8499, %v8497
    %v10186 = vpack.c.b16 %v8502, %v8500
    %v10187 = vpack.c.b16 %v8503, %v8501
    %v10188 = vpack.c.b16 %v8506, %v8504
    %v10189 = vpack.c.b16 %v8507, %v8505
    %v10190 = vpack.c.b16 %v8510, %v8508
    %v10191 = vpack.c.b16 %v8511, %v8509
    %v10192 = vpack.c.b16 %v8514, %v8512
    %v10193 = vpack.c.b16 %v8515, %v8513
    %v10194 = vpack.c.b16 %v8518, %v8516
    %v10195 = vpack.c.b16 %v8519, %v8517
    %v10196 = vpack.c.b16 %v8522, %v8520
    %v10197 = vpack.c.b16 %v8523, %v8521
    %v10198 = vpack.c.b16 %v8526, %v8524
    %v10199 = vpack.c.b16 %v8527, %v8525
    %v10200 = vpack.c.b16 %v8530, %v8528
    %v10201 = vpack.c.b16 %v8531, %v8529
    %v10202 = vpack.c.b16 %v8534, %v8532
    %v10203 = vpack.c.b16 %v8535, %v8533
    %v10204 = vpack.c.b16 %v8538, %v8536
    %v10205 = vpack.c.b16 %v8539, %v8537
    %v10206 = vpack.c.b16 %v8542, %v8540
    %v10207 = vpack.c.b16 %v8543, %v8541
    %v10208 = vpack.c.b16 %v8546, %v8544
    %v10209 = vpack.c.b16 %v8547, %v8545
    %v10210 = vpack.c.b16 %v8550, %v8548
    %v10211 = vpack.c.b16 %v8551, %v8549
    %v10212 = vpack.c.b16 %v8554, %v8552
    %v10213 = vpack.c.b16 %v8555, %v8553
    %v10214 = vpack.c.b16 %v8558, %v8556
    %v10215 = vpack.c.b16 %v8559, %v8557
    %v10216 = vpack.c.b16 %v8562, %v8560
    %v10217 = vpack.c.b16 %v8563, %v8561
    %v10218 = vpack.c.b16 %v8566, %v8564
    %v10219 = vpack.c.b16 %v8567, %v8565
    %v10220 = vpack.c.b16 %v8570, %v8568
    %v10221 = vpack.c.b16 %v8571, %v8569
    %v10222 = vpack.c.b16 %v8574, %v8572
    %v10223 = vpack.c.b16 %v8575, %v8573
    %v10224 = vpack.c.b16 %v8578, %v8576
    %v10225 = vpack.c.b16 %v8579, %v8577
    %v10226 = vpack.c.b16 %v8582, %v8580
    %v10227 = vpack.c.b16 %v8583, %v8581
    %v10228 = vpack.c.b16 %v8586, %v8584
    %v10229 = vpack.c.b16 %v8587, %v8585
    %v10230 = vpack.c.b16 %v8590, %v8588
    %v10231 = vpack.c.b16 %v8591, %v8589
    %v10232 = vpack.c.b16 %v8594, %v8592
    %v10233 = vpack.c.b16 %v8595, %v8593
    %v10234 = vpack.c.b16 %v8598, %v8596
    %v10235 = vpack.c.b16 %v8599, %v8597
    %v10236 = vpack.c.b16 %v8602, %v8600
    %v10237 = vpack.c.b16 %v8603, %v8601
    %v10238 = vpack.c.b16 %v8606, %v8604
    %v10239 = vpack.c.b16 %v8607, %v8605
    %v10240 = vpack.c.b16 %v8610, %v8608
    %v10241 = vpack.c.b16 %v8611, %v8609
    %v10242 = vpack.c.b16 %v8614, %v8612
    %v10243 = vpack.c.b16 %v8615, %v8613
    %v10244 = vpack.c.b16 %v8618, %v8616
    %v10245 = vpack.c.b16 %v8619, %v8617
    %v10246 = vpack.c.b16 %v8622, %v8620
    %v10247 = vpack.c.b16 %v8623, %v8621
    %v10248 = vpack.c.b16 %v8626, %v8624
    %v10249 = vpack.c.b16 %v8627, %v8625
    %v10250 = vpack.c.b16 %v8630, %v8628
    %v10251 = vpack.c.b16 %v8631, %v8629
    %v10252 = vpack.c.b16 %v8634, %v8632
    %v10253 = vpack.c.b16 %v8635, %v8633
    %v10254 = vpack.c.b16 %v8638, %v8636
    %v10255 = vpack.c.b16 %v8639, %v8637
    %v10256 = vpack.c.b16 %v8642, %v8640
    %v10257 = vpack.c.b16 %v8643, %v8641
    %v10258 = vpack.c.b16 %v8646, %v8644
    %v10259 = vpack.c.b16 %v8647, %v8645
    %v10260 = vpack.c.b16 %v8650, %v8648
    %v10261 = vpack.c.b16 %v8651, %v8649
    %v10262 = vpack.c.b16 %v8654, %v8652
    %v10263 = vpack.c.b16 %v8655, %v8653
    %v10264 = vpack.c.b16 %v8658, %v8656
    %v10265 = vpack.c.b16 %v8659, %v8657
    %v10266 = vpack.c.b16 %v8662, %v8660
    %v10267 = vpack.c.b16 %v8663, %v8661
    %v10268 = vpack.c.b16 %v8666, %v8664
    %v10269 = vpack.c.b16 %v8667, %v8665
    %v10270 = vpack.c.b16 %v8670, %v8668
    %v10271 = vpack.c.b16 %v8671, %v8669
    %v10272 = vpack.c.b16 %v8674, %v8672
    %v10273 = vpack.c.b16 %v8675, %v8673
    %v10274 = vpack.c.b16 %v8678, %v8676
    %v10275 = vpack.c.b16 %v8679, %v8677
    %v10276 = vpack.c.b16 %v8682, %v8680
    %v10277 = vpack.c.b16 %v8683, %v8681
    %v10278 = vpack.c.b16 %v8686, %v8684
    %v10279 = vpack.c.b16 %v8687, %v8685
    %v10280 = vpack.c.b16 %v8690, %v8688
    %v10281 = vpack.c.b16 %v8691, %v8689
    %v10282 = vpack.c.b16 %v8694, %v8692
    %v10283 = vpack.c.b16 %v8695, %v8693
    %v10284 = vpack.c.b16 %v8698, %v8696
    %v10285 = vpack.c.b16 %v8699, %v8697
    %v10286 = vpack.c.b16 %v8702, %v8700
    %v10287 = vpack.c.b16 %v8703, %v8701
    %v10288 = vpack.c.b16 %v8706, %v8704
    %v10289 = vpack.c.b16 %v8707, %v8705
    %v10290 = vpack.c.b16 %v8710, %v8708
    %v10291 = vpack.c.b16 %v8711, %v8709
    %v10292 = vpack.c.b16 %v8714, %v8712
    %v10293 = vpack.c.b16 %v8715, %v8713
    %v10294 = vpack.c.b16 %v8718, %v8716
    %v10295 = vpack.c.b16 %v8719, %v8717
    %v10296 = vpack.c.b16 %v8722, %v8720
    %v10297 = vpack.c.b16 %v8723, %v8721
    %v10298 = vpack.c.b16 %v8726, %v8724
    %v10299 = vpack.c.b16 %v8727, %v8725
    %v10300 = vpack.c.b16 %v8730, %v8728
    %v10301 = vpack.c.b16 %v8731, %v8729
    %v10302 = vpack.c.b16 %v8734, %v8732
    %v10303 = vpack.c.b16 %v8735, %v8733
    %v10304 = vpack.c.b16 %v8738, %v8736
    %v10305 = vpack.c.b16 %v8739, %v8737
    %v10306 = vpack.c.b16 %v8742, %v8740
    %v10307 = vpack.c.b16 %v8743, %v8741
    %v10308 = vpack.c.b16 %v8746, %v8744
    %v10309 = vpack.c.b16 %v8747, %v8745
    %v10310 = vpack.c.b16 %v8750, %v8748
    %v10311 = vpack.c.b16 %v8751, %v8749
    %v10312 = vpack.c.b16 %v8754, %v8752
    %v10313 = vpack.c.b16 %v8755, %v8753
    %v10314 = vpack.c.b16 %v8758, %v8756
    %v10315 = vpack.c.b16 %v8759, %v8757
    %v10316 = vpack.c.b16 %v8762, %v8760
    %v10317 = vpack.c.b16 %v8763, %v8761
    %v10318 = vpack.c.b16 %v8766, %v8764
    %v10319 = vpack.c.b16 %v8767, %v8765
    %v10320 = vpack.c.b16 %v8770, %v8768
    %v10321 = vpack.c.b16 %v8771, %v8769
    %v10322 = vpack.c.b16 %v8774, %v8772
    %v10323 = vpack.c.b16 %v8775, %v8773
    %v10324 = vpack.c.b16 %v8778, %v8776
    %v10325 = vpack.c.b16 %v8779, %v8777
    %v10326 = vpack.c.b16 %v8782, %v8780
    %v10327 = vpack.c.b16 %v8783, %v8781
    %v10328 = vpack.c.b16 %v8786, %v8784
    %v10329 = vpack.c.b16 %v8787, %v8785
    %v10330 = vpack.c.b16 %v8790, %v8788
    %v10331 = vpack.c.b16 %v8791, %v8789
    %v10332 = vpack.c.b16 %v8794, %v8792
    %v10333 = vpack.c.b16 %v8795, %v8793
    %v10334 = vpack.c.b16 %v8798, %v8796
    %v10335 = vpack.c.b16 %v8799, %v8797
    %v10336 = vpack.c.b16 %v8802, %v8800
    %v10337 = vpack.c.b16 %v8803, %v8801
    %v10338 = vpack.c.b16 %v8806, %v8804
    %v10339 = vpack.c.b16 %v8807, %v8805
    %v10340 = vpack.c.b16 %v8810, %v8808
    %v10341 = vpack.c.b16 %v8811, %v8809
    %v10342 = vpack.c.b16 %v8814, %v8812
    %v10343 = vpack.c.b16 %v8815, %v8813
    %v10344 = vpack.c.b16 %v8818, %v8816
    %v10345 = vpack.c.b16 %v8819, %v8817
    %v10346 = vpack.c.b16 %v8822, %v8820
    %v10347 = vpack.c.b16 %v8823, %v8821
    %v10348 = vpack.c.b16 %v8826, %v8824
    %v10349 = vpack.c.b16 %v8827, %v8825
    %v10350 = vpack.c.b16 %v8830, %v8828
    %v10351 = vpack.c.b16 %v8831, %v8829
    %v10352 = vpack.c.b16 %v8834, %v8832
    %v10353 = vpack.c.b16 %v8835, %v8833
    %v10354 = vpack.c.b16 %v8838, %v8836
    %v10355 = vpack.c.b16 %v8839, %v8837
    %v10356 = vpack.c.b16 %v8842, %v8840
    %v10357 = vpack.c.b16 %v8843, %v8841
    %v10358 = vpack.c.b16 %v8846, %v8844
    %v10359 = vpack.c.b16 %v8847, %v8845
    %v10360 = vpack.c.b16 %v8850, %v8848
    %v10361 = vpack.c.b16 %v8851, %v8849
    %v10362 = vpack.c.b16 %v8854, %v8852
    %v10363 = vpack.c.b16 %v8855, %v8853
    %v10364 = vpack.c.b16 %v8858, %v8856
    %v10365 = vpack.c.b16 %v8859, %v8857
    %v10366 = vpack.c.b16 %v8862, %v8860
    %v10367 = vpack.c.b16 %v8863, %v8861
    %v10368 = vpack.c.b16 %v8866, %v8864
    %v10369 = vpack.c.b16 %v8867, %v8865
    %v10370 = vpack.c.b16 %v8870, %v8868
    %v10371 = vpack.c.b16 %v8871, %v8869
    %v10372 = vpack.c.b16 %v8874, %v8872
    %v10373 = vpack.c.b16 %v8875, %v8873
    %v10374 = vpack.c.b16 %v8878, %v8876
    %v10375 = vpack.c.b16 %v8879, %v8877
    %v10376 = vpack.c.b16 %v8882, %v8880
    %v10377 = vpack.c.b16 %v8883, %v8881
    %v10378 = vpack.c.b16 %v8886, %v8884
    %v10379 = vpack.c.b16 %v8887, %v8885
    %v10380 = vpack.c.b16 %v8890, %v8888
    %v10381 = vpack.c.b16 %v8891, %v8889
    %v10382 = vpack.c.b16 %v8894, %v8892
    %v10383 = vpack.c.b16 %v8895, %v8893
    %v10384 = vpack.c.b16 %v8898, %v8896
    %v10385 = vpack.c.b16 %v8899, %v8897
    %v10386 = vpack.c.b16 %v8902, %v8900
    %v10387 = vpack.c.b16 %v8903, %v8901
    %v10388 = vpack.c.b16 %v8906, %v8904
    %v10389 = vpack.c.b16 %v8907, %v8905
    %v10390 = vpack.c.b16 %v8910, %v8908
    %v10391 = vpack.c.b16 %v8911, %v8909
    %v10392 = vpack.c.b16 %v8914, %v8912
    %v10393 = vpack.c.b16 %v8915, %v8913
    %v10394 = vpack.c.b16 %v8918, %v8916
    %v10395 = vpack.c.b16 %v8919, %v8917
    %v10396 = vpack.c.b16 %v8922, %v8920
    %v10397 = vpack.c.b16 %v8923, %v8921
    %v10398 = vpack.c.b16 %v8926, %v8924
    %v10399 = vpack.c.b16 %v8927, %v8925
    %v10400 = vpack.c.b16 %v8930, %v8928
    %v10401 = vpack.c.b16 %v8931, %v8929
    %v10402 = vpack.c.b16 %v8934, %v8932
    %v10403 = vpack.c.b16 %v8935, %v8933
    %v10404 = vpack.c.b16 %v8938, %v8936
    %v10405 = vpack.c.b16 %v8939, %v8937
    %v10406 = vpack.c.b16 %v8942, %v8940
    %v10407 = vpack.c.b16 %v8943, %v8941
    %v10408 = vpack.c.b16 %v8946, %v8944
    %v10409 = vpack.c.b16 %v8947, %v8945
    %v10410 = vpack.c.b16 %v8950, %v8948
    %v10411 = vpack.c.b16 %v8951, %v8949
    %v10412 = vpack.c.b16 %v8954, %v8952
    %v10413 = vpack.c.b16 %v8955, %v8953
    %v10414 = vpack.c.b16 %v8958, %v8956
    %v10415 = vpack.c.b16 %v8959, %v8957
    %v10416 = vpack.c.b16 %v8962, %v8960
    %v10417 = vpack.c.b16 %v8963, %v8961
    %v10418 = vpack.c.b16 %v8966, %v8964
    %v10419 = vpack.c.b16 %v8967, %v8965
    %v10420 = vpack.c.b16 %v8970, %v8968
    %v10421 = vpack.c.b16 %v8971, %v8969
    %v10422 = vpack.c.b16 %v8974, %v8972
    %v10423 = vpack.c.b16 %v8975, %v8973
    %v10424 = vpack.c.b16 %v8978, %v8976
    %v10425 = vpack.c.b16 %v8979, %v8977
    %v10426 = vpack.c.b16 %v8982, %v8980
    %v10427 = vpack.c.b16 %v8983, %v8981
    %v10428 = vpack.c.b16 %v8986, %v8984
    %v10429 = vpack.c.b16 %v8987, %v8985
    %v10430 = vpack.c.b16 %v8990, %v8988
    %v10431 = vpack.c.b16 %v8991, %v8989
    %v10432 = vpack.c.b16 %v8994, %v8992
    %v10433 = vpack.c.b16 %v8995, %v8993
    %v10434 = vpack.c.b16 %v8998, %v8996
    %v10435 = vpack.c.b16 %v8999, %v8997
    %v10436 = vpack.c.b16 %v9002, %v9000
    %v10437 = vpack.c.b16 %v9003, %v9001
    %v10438 = vpack.c.b16 %v9006, %v9004
    %v10439 = vpack.c.b16 %v9007, %v9005
    %v10440 = vpack.c.b16 %v9010, %v9008
    %v10441 = vpack.c.b16 %v9011, %v9009
    %v10442 = vpack.c.b16 %v9014, %v9012
    %v10443 = vpack.c.b16 %v9015, %v9013
    %v10444 = vpack.c.b16 %v9018, %v9016
    %v10445 = vpack.c.b16 %v9019, %v9017
    %v10446 = vpack.c.b16 %v9022, %v9020
    %v10447 = vpack.c.b16 %v9023, %v9021
    %v10448 = vpack.c.b16 %v9026, %v9024
    %v10449 = vpack.c.b16 %v9027, %v9025
    %v10450 = vpack.c.b16 %v9030, %v9028
    %v10451 = vpack.c.b16 %v9031, %v9029
    %v10452 = vpack.c.b16 %v9034, %v9032
    %v10453 = vpack.c.b16 %v9035, %v9033
    %v10454 = vpack.c.b16 %v9038, %v9036
    %v10455 = vpack.c.b16 %v9039, %v9037
    %v10456 = vpack.c.b16 %v9042, %v9040
    %v10457 = vpack.c.b16 %v9043, %v9041
    %v10458 = vpack.c.b16 %v9046, %v9044
    %v10459 = vpack.c.b16 %v9047, %v9045
    %v10460 = vpack.c.b16 %v9050, %v9048
    %v10461 = vpack.c.b16 %v9051, %v9049
    %v10462 = vpack.c.b16 %v9054, %v9052
    %v10463 = vpack.c.b16 %v9055, %v9053
    %v10464 = vpack.c.b16 %v9058, %v9056
    %v10465 = vpack.c.b16 %v9059, %v9057
    %v10466 = vpack.c.b16 %v9062, %v9060
    %v10467 = vpack.c.b16 %v9063, %v9061
    %v10468 = vpack.c.b16 %v9066, %v9064
    %v10469 = vpack.c.b16 %v9067, %v9065
    %v10470 = vpack.c.b16 %v9070, %v9068
    %v10471 = vpack.c.b16 %v9071, %v9069
    %v10472 = vpack.c.b16 %v9074, %v9072
    %v10473 = vpack.c.b16 %v9075, %v9073
    %v10474 = vpack.c.b16 %v9078, %v9076
    %v10475 = vpack.c.b16 %v9079, %v9077
    %v10476 = vpack.c.b16 %v9082, %v9080
    %v10477 = vpack.c.b16 %v9083, %v9081
    %v10478 = vpack.c.b16 %v9086, %v9084
    %v10479 = vpack.c.b16 %v9087, %v9085
    %v10480 = vpack.c.b16 %v9090, %v9088
    %v10481 = vpack.c.b16 %v9091, %v9089
    %v10482 = vpack.c.b16 %v9094, %v9092
    %v10483 = vpack.c.b16 %v9095, %v9093
    %v10484 = vpack.c.b16 %v9098, %v9096
    %v10485 = vpack.c.b16 %v9099, %v9097
    %v10486 = vpack.c.b16 %v9102, %v9100
    %v10487 = vpack.c.b16 %v9103, %v9101
    %v10488 = vpack.c.b16 %v9106, %v9104
    %v10489 = vpack.c.b16 %v9107, %v9105
    %v10490 = vpack.c.b16 %v9110, %v9108
    %v10491 = vpack.c.b16 %v9111, %v9109
    %v10492 = vpack.c.b16 %v9114, %v9112
    %v10493 = vpack.c.b16 %v9115, %v9113
    %v10494 = vpack.c.b16 %v9118, %v9116
    %v10495 = vpack.c.b16 %v9119, %v9117
    %v10496 = vpack.c.b16 %v9122, %v9120
    %v10497 = vpack.c.b16 %v9123, %v9121
    %v10498 = vpack.c.b16 %v9126, %v9124
    %v10499 = vpack.c.b16 %v9127, %v9125
    %v10500 = vpack.c.b16 %v9130, %v9128
    %v10501 = vpack.c.b16 %v9131, %v9129
    %v10502 = vpack.c.b16 %v9134, %v9132
    %v10503 = vpack.c.b16 %v9135, %v9133
    %v10504 = vpack.c.b16 %v9138, %v9136
    %v10505 = vpack.c.b16 %v9139, %v9137
    %v10506 = vpack.c.b16 %v9142, %v9140
    %v10507 = vpack.c.b16 %v9143, %v9141
    %v10508 = vpack.c.b16 %v9146, %v9144
    %v10509 = vpack.c.b16 %v9147, %v9145
    %v10510 = vpack.c.b16 %v9150, %v9148
    %v10511 = vpack.c.b16 %v9151, %v9149
    %v10512 = vpack.c.b16 %v9154, %v9152
    %v10513 = vpack.c.b16 %v9155, %v9153
    %v10514 = vpack.c.b16 %v9158, %v9156
    %v10515 = vpack.c.b16 %v9159, %v9157
    %v10516 = vpack.c.b16 %v9162, %v9160
    %v10517 = vpack.c.b16 %v9163, %v9161
    %v10518 = vpack.c.b16 %v9166, %v9164
    %v10519 = vpack.c.b16 %v9167, %v9165
    %v10520 = vpack.c.b16 %v9170, %v9168
    %v10521 = vpack.c.b16 %v9171, %v9169
    %v10522 = vpack.c.b16 %v9174, %v9172
    %v10523 = vpack.c.b16 %v9175, %v9173
    %v10524 = vpack.c.b16 %v9178, %v9176
    %v10525 = vpack.c.b16 %v9179, %v9177
    %v10526 = vpack.c.b16 %v9182, %v9180
    %v10527 = vpack.c.b16 %v9183, %v9181
    %v10528 = vpack.c.b16 %v9186, %v9184
    %v10529 = vpack.c.b16 %v9187, %v9185
    %v10530 = vpack.c.b16 %v9190, %v9188
    %v10531 = vpack.c.b16 %v9191, %v9189
    %v10532 = vpack.c.b16 %v9194, %v9192
    %v10533 = vpack.c.b16 %v9195, %v9193
    %v10534 = vpack.c.b16 %v9198, %v9196
    %v10535 = vpack.c.b16 %v9199, %v9197
    %v10536 = vpack.c.b16 %v9202, %v9200
    %v10537 = vpack.c.b16 %v9203, %v9201
    %v10538 = vpack.c.b16 %v9206, %v9204
    %v10539 = vpack.c.b16 %v9207, %v9205
    %v10540 = vpack.c.b16 %v9210, %v9208
    %v10541 = vpack.c.b16 %v9211, %v9209
    %v10542 = vpack.c.b16 %v9214, %v9212
    %v10543 = vpack.c.b16 %v9215, %v9213
    %v10544 = vpack.c.b16 %v9218, %v9216
    %v10545 = vpack.c.b16 %v9219, %v9217
    %v10546 = vpack.c.b16 %v9222, %v9220
    %v10547 = vpack.c.b16 %v9223, %v9221
    %v10548 = vpack.c.b16 %v9226, %v9224
    %v10549 = vpack.c.b16 %v9227, %v9225
    %v10550 = vpack.c.b16 %v9230, %v9228
    %v10551 = vpack.c.b16 %v9231, %v9229
    %v10552 = vpack.c.b16 %v9234, %v9232
    %v10553 = vpack.c.b16 %v9235, %v9233
    %v10554 = vpack.c.b16 %v9238, %v9236
    %v10555 = vpack.c.b16 %v9239, %v9237
    %v10556 = vpack.c.b16 %v9242, %v9240
    %v10557 = vpack.c.b16 %v9243, %v9241
    %v10558 = vpack.c.b16 %v9246, %v9244
    %v10559 = vpack.c.b16 %v9247, %v9245
    %v10560 = vpack.c.b16 %v9250, %v9248
    %v10561 = vpack.c.b16 %v9251, %v9249
    %v10562 = vpack.c.b16 %v9254, %v9252
    %v10563 = vpack.c.b16 %v9255, %v9253
    %v10564 = vpack.c.b16 %v9258, %v9256
    %v10565 = vpack.c.b16 %v9259, %v9257
    %v10566 = vpack.c.b16 %v9262, %v9260
    %v10567 = vpack.c.b16 %v9263, %v9261
    %v10568 = vpack.c.b16 %v9266, %v9264
    %v10569 = vpack.c.b16 %v9267, %v9265
    %v10570 = vpack.c.b16 %v9270, %v9268
    %v10571 = vpack.c.b16 %v9271, %v9269
    %v10572 = vpack.c.b16 %v9274, %v9272
    %v10573 = vpack.c.b16 %v9275, %v9273
    %v10574 = vpack.c.b16 %v9278, %v9276
    %v10575 = vpack.c.b16 %v9279, %v9277
    %v10576 = vpack.c.b16 %v9282, %v9280
    %v10577 = vpack.c.b16 %v9283, %v9281
    %v10578 = vpack.c.b16 %v9286, %v9284
    %v10579 = vpack.c.b16 %v9287, %v9285
    %v10580 = vpack.c.b16 %v9290, %v9288
    %v10581 = vpack.c.b16 %v9291, %v9289
    %v10582 = vpack.c.b16 %v9294, %v9292
    %v10583 = vpack.c.b16 %v9295, %v9293
    %v10584 = vpack.c.b16 %v9298, %v9296
    %v10585 = vpack.c.b16 %v9299, %v9297
    %v10586 = vpack.c.b16 %v9302, %v9300
    %v10587 = vpack.c.b16 %v9303, %v9301
    %v10588 = vpack.c.b16 %v9306, %v9304
    %v10589 = vpack.c.b16 %v9307, %v9305
    %v10590 = vpack.c.b16 %v9310, %v9308
    %v10591 = vpack.c.b16 %v9311, %v9309
    %v10592 = vpack.c.b16 %v9314, %v9312
    %v10593 = vpack.c.b16 %v9315, %v9313
    %v10594 = vpack.c.b16 %v9318, %v9316
    %v10595 = vpack.c.b16 %v9319, %v9317
    %v10596 = vpack.c.b16 %v9322, %v9320
    %v10597 = vpack.c.b16 %v9323, %v9321
    %v10598 = vpack.c.b16 %v9326, %v9324
    %v10599 = vpack.c.b16 %v9327, %v9325
    %v10600 = vpack.c.b16 %v9330, %v9328
    %v10601 = vpack.c.b16 %v9331, %v9329
    %v10602 = vpack.c.b16 %v9334, %v9332
    %v10603 = vpack.c.b16 %v9335, %v9333
    %v10604 = vpack.c.b16 %v9338, %v9336
    %v10605 = vpack.c.b16 %v9339, %v9337
    %v10606 = vpack.c.b16 %v9342, %v9340
    %v10607 = vpack.c.b16 %v9343, %v9341
    %v10608 = vpack.c.b16 %v9346, %v9344
    %v10609 = vpack.c.b16 %v9347, %v9345
    %v10610 = vpack.c.b16 %v9350, %v9348
    %v10611 = vpack.c.b16 %v9351, %v9349
    %v10612 = vpack.c.b16 %v9354, %v9352
    %v10613 = vpack.c.b16 %v9355, %v9353
    %v10614 = vpack.c.b16 %v9358, %v9356
    %v10615 = vpack.c.b16 %v9359, %v9357
    %v10616 = vpack.c.b16 %v9362, %v9360
    %v10617 = vpack.c.b16 %v9363, %v9361
    %v10618 = vpack.c.b16 %v9366, %v9364
    %v10619 = vpack.c.b16 %v9367, %v9365
    %v10620 = vpack.c.b16 %v9370, %v9368
    %v10621 = vpack.c.b16 %v9371, %v9369
    %v10622 = vpack.c.b16 %v9374, %v9372
    %v10623 = vpack.c.b16 %v9375, %v9373
    %v10624 = vpack.c.b16 %v9378, %v9376
    %v10625 = vpack.c.b16 %v9379, %v9377
    %v10626 = vpack.c.b16 %v9382, %v9380
    %v10627 = vpack.c.b16 %v9383, %v9381
    %v10628 = vpack.c.b16 %v9386, %v9384
    %v10629 = vpack.c.b16 %v9387, %v9385
    %v10630 = vpack.c.b16 %v9390, %v9388
    %v10631 = vpack.c.b16 %v9391, %v9389
    %v10632 = vpack.c.b16 %v9394, %v9392
    %v10633 = vpack.c.b16 %v9395, %v9393
    %v10634 = vpack.c.b16 %v9398, %v9396
    %v10635 = vpack.c.b16 %v9399, %v9397
    %v10636 = vpack.c.b16 %v9402, %v9400
    %v10637 = vpack.c.b16 %v9403, %v9401
    %v10638 = vpack.c.b16 %v9406, %v9404
    %v10639 = vpack.c.b16 %v9407, %v9405
    %v10640 = vpack.c.b16 %v9410, %v9408
    %v10641 = vpack.c.b16 %v9411, %v9409
    %v10642 = vpack.c.b16 %v9414, %v9412
    %v10643 = vpack.c.b16 %v9415, %v9413
    %v10644 = vpack.c.b16 %v9418, %v9416
    %v10645 = vpack.c.b16 %v9419, %v9417
    %v10646 = vpack.c.b16 %v9422, %v9420
    %v10647 = vpack.c.b16 %v9423, %v9421
    %v10648 = vpack.c.b16 %v9426, %v9424
    %v10649 = vpack.c.b16 %v9427, %v9425
    %v10650 = vpack.c.b16 %v9430, %v9428
    %v10651 = vpack.c.b16 %v9431, %v9429
    %v10652 = vpack.c.b16 %v9434, %v9432
    %v10653 = vpack.c.b16 %v9435, %v9433
    %v10654 = vpack.c.b16 %v9438, %v9436
    %v10655 = vpack.c.b16 %v9439, %v9437
    %v10656 = vpack.c.b16 %v9442, %v9440
    %v10657 = vpack.c.b16 %v9443, %v9441
    %v10658 = vpack.c.b16 %v9446, %v9444
    %v10659 = vpack.c.b16 %v9447, %v9445
    %v10660 = vpack.c.b16 %v9450, %v9448
    %v10661 = vpack.c.b16 %v9451, %v9449
    %v10662 = vpack.c.b16 %v9454, %v9452
    %v10663 = vpack.c.b16 %v9455, %v9453
    %v10664 = vpack.c.b16 %v9458, %v9456
    %v10665 = vpack.c.b16 %v9459, %v9457
    %v10666 = vpack.c.b16 %v9462, %v9460
    %v10667 = vpack.c.b16 %v9463, %v9461
    %v10668 = vpack.c.b16 %v9466, %v9464
    %v10669 = vpack.c.b16 %v9467, %v9465
    %v10670 = vpack.c.b16 %v9470, %v9468
    %v10671 = vpack.c.b16 %v9471, %v9469
    %v10672 = vpack.c.b16 %v9474, %v9472
    %v10673 = vpack.c.b16 %v9475, %v9473
    %v10674 = vpack.c.b16 %v9478, %v9476
    %v10675 = vpack.c.b16 %v9479, %v9477
    %v10676 = vpack.c.b16 %v9482, %v9480
    %v10677 = vpack.c.b16 %v9483, %v9481
    %v10678 = vpack.c.b16 %v9486, %v9484
    %v10679 = vpack.c.b16 %v9487, %v9485
    %v10680 = vpack.c.b16 %v9490, %v9488
    %v10681 = vpack.c.b16 %v9491, %v9489
    %v10682 = vpack.c.b16 %v9494, %v9492
    %v10683 = vpack.c.b16 %v9495, %v9493
    %v10684 = vpack.c.b16 %v9498, %v9496
    %v10685 = vpack.c.b16 %v9499, %v9497
    %v10686 = vpack.c.b16 %v9502, %v9500
    %v10687 = vpack.c.b16 %v9503, %v9501
    %v10688 = vpack.c.b16 %v9506, %v9504
    %v10689 = vpack.c.b16 %v9507, %v9505
    %v10690 = vpack.c.b16 %v9510, %v9508
    %v10691 = vpack.c.b16 %v9511, %v9509
    %v10692 = vpack.c.b16 %v9514, %v9512
    %v10693 = vpack.c.b16 %v9515, %v9513
    %v10694 = vpack.c.b16 %v9518, %v9516
    %v10695 = vpack.c.b16 %v9519, %v9517
    %v10696 = vpack.c.b16 %v9522, %v9520
    %v10697 = vpack.c.b16 %v9523, %v9521
    %v10698 = vpack.c.b16 %v9526, %v9524
    %v10699 = vpack.c.b16 %v9527, %v9525
    %v10700 = vpack.c.b16 %v9530, %v9528
    %v10701 = vpack.c.b16 %v9531, %v9529
    %v10702 = vpack.c.b16 %v9534, %v9532
    %v10703 = vpack.c.b16 %v9535, %v9533
    %v10704 = vpack.c.b16 %v9538, %v9536
    %v10705 = vpack.c.b16 %v9539, %v9537
    %v10706 = vpack.c.b16 %v9542, %v9540
    %v10707 = vpack.c.b16 %v9543, %v9541
    %v10708 = vpack.c.b16 %v9546, %v9544
    %v10709 = vpack.c.b16 %v9547, %v9545
    %v10710 = vpack.c.b16 %v9550, %v9548
    %v10711 = vpack.c.b16 %v9551, %v9549
    %v10712 = vpack.c.b16 %v9554, %v9552
    %v10713 = vpack.c.b16 %v9555, %v9553
    %v10714 = vpack.c.b16 %v9558, %v9556
    %v10715 = vpack.c.b16 %v9559, %v9557
    %v10716 = vpack.c.b16 %v9562, %v9560
    %v10717 = vpack.c.b16 %v9563, %v9561
    %v10718 = vpack.c.b16 %v9566, %v9564
    %v10719 = vpack.c.b16 %v9567, %v9565
    %v10720 = vpack.c.b16 %v9570, %v9568
    %v10721 = vpack.c.b16 %v9571, %v9569
    %v10722 = vpack.c.b16 %v9574, %v9572
    %v10723 = vpack.c.b16 %v9575, %v9573
    %v10724 = vpack.c.b16 %v9578, %v9576
    %v10725 = vpack.c.b16 %v9579, %v9577
    %v10726 = vpack.c.b16 %v9582, %v9580
    %v10727 = vpack.c.b16 %v9583, %v9581
    %v10728 = vpack.c.b16 %v9586, %v9584
    %v10729 = vpack.c.b16 %v9587, %v9585
    %v10730 = vpack.c.b16 %v9590, %v9588
    %v10731 = vpack.c.b16 %v9591, %v9589
    %v10732 = vpack.c.b16 %v9594, %v9592
    %v10733 = vpack.c.b16 %v9595, %v9593
    %v10734 = vpack.c.b16 %v9598, %v9596
    %v10735 = vpack.c.b16 %v9599, %v9597
    %v10736 = vpack.c.b16 %v9602, %v9600
    %v10737 = vpack.c.b16 %v9603, %v9601
    %v10738 = vpack.c.b16 %v9606, %v9604
    %v10739 = vpack.c.b16 %v9607, %v9605
    %v10740 = vpack.c.b16 %v9610, %v9608
    %v10741 = vpack.c.b16 %v9611, %v9609
    %v10742 = vpack.c.b16 %v9614, %v9612
    %v10743 = vpack.c.b16 %v9615, %v9613
    %v10744 = vpack.c.b16 %v9618, %v9616
    %v10745 = vpack.c.b16 %v9619, %v9617
    %v10746 = vpack.c.b16 %v9622, %v9620
    %v10747 = vpack.c.b16 %v9623, %v9621
    %v10748 = vpack.c.b16 %v9626, %v9624
    %v10749 = vpack.c.b16 %v9627, %v9625
    %v10750 = vpack.c.b16 %v9630, %v9628
    %v10751 = vpack.c.b16 %v9631, %v9629
    %v10752 = vpack.c.b16 %v9634, %v9632
    %v10753 = vpack.c.b16 %v9635, %v9633
    %v10754 = vpack.c.b16 %v9638, %v9636
    %v10755 = vpack.c.b16 %v9639, %v9637
    %v10756 = vpack.c.b16 %v9642, %v9640
    %v10757 = vpack.c.b16 %v9643, %v9641
    %v10758 = vpack.c.b16 %v9646, %v9644
    %v10759 = vpack.c.b16 %v9647, %v9645
    %v10760 = vpack.c.b16 %v9650, %v9648
    %v10761 = vpack.c.b16 %v9651, %v9649
    %v10762 = vpack.c.b16 %v9654, %v9652
    %v10763 = vpack.c.b16 %v9655, %v9653
    %v10764 = vpack.c.b16 %v9658, %v9656
    %v10765 = vpack.c.b16 %v9659, %v9657
    %v10766 = vpack.c.b16 %v9662, %v9660
    %v10767 = vpack.c.b16 %v9663, %v9661
    %v10768 = vpack.c.b16 %v9666, %v9664
    %v10769 = vpack.c.b16 %v9667, %v9665
    %v10770 = vpack.c.b16 %v9670, %v9668
    %v10771 = vpack.c.b16 %v9671, %v9669
    %v10772 = vpack.c.b16 %v9674, %v9672
    %v10773 = vpack.c.b16 %v9675, %v9673
    %v10774 = vpack.c.b16 %v9678, %v9676
    %v10775 = vpack.c.b16 %v9679, %v9677
    %v10776 = vpack.c.b16 %v9682, %v9680
    %v10777 = vpack.c.b16 %v9683, %v9681
    %v10778 = vpack.c.b16 %v9686, %v9684
    %v10779 = vpack.c.b16 %v9687, %v9685
    %v10780 = vpack.c.b16 %v9690, %v9688
    %v10781 = vpack.c.b16 %v9691, %v9689
    %v10782 = vpack.c.b16 %v9694, %v9692
    %v10783 = vpack.c.b16 %v9695, %v9693
    %v10784 = vpack.c.b16 %v9698, %v9696
    %v10785 = vpack.c.b16 %v9699, %v9697
    %v10786 = vpack.c.b16 %v9702, %v9700
    %v10787 = vpack.c.b16 %v9703, %v9701
    %v10788 = vpack.c.b16 %v9706, %v9704
    %v10789 = vpack.c.b16 %v9707, %v9705
    %v10790 = vpack.c.b16 %v9710, %v9708
    %v10791 = vpack.c.b16 %v9711, %v9709
    %v10792 = vpack.c.b16 %v9714, %v9712
    %v10793 = vpack.c.b16 %v9715, %v9713
    %v10794 = vpack.c.b16 %v9718, %v9716
    %v10795 = vpack.c.b16 %v9719, %v9717
    %v10796 = vpack.c.b16 %v9722, %v9720
    %v10797 = vpack.c.b16 %v9723, %v9721
    %v10798 = vpack.c.b16 %v9726, %v9724
    %v10799 = vpack.c.b16 %v9727, %v9725
    %v10800 = vpack.c.b16 %v9730, %v9728
    %v10801 = vpack.c.b16 %v9731, %v9729
    %v10802 = vpack.c.b16 %v9734, %v9732
    %v10803 = vpack.c.b16 %v9735, %v9733
    %v10804 = vpack.c.b16 %v9738, %v9736
    %v10805 = vpack.c.b16 %v9739, %v9737
    %v10806 = vpack.c.b16 %v9742, %v9740
    %v10807 = vpack.c.b16 %v9743, %v9741
    %v10808 = vpack.c.b16 %v9746, %v9744
    %v10809 = vpack.c.b16 %v9747, %v9745
    %v10810 = vpack.c.b16 %v9750, %v9748
    %v10811 = vpack.c.b16 %v9751, %v9749
    %v10812 = vpack.c.b16 %v9754, %v9752
    %v10813 = vpack.c.b16 %v9755, %v9753
    %v10814 = vpack.c.b16 %v9758, %v9756
    %v10815 = vpack.c.b16 %v9759, %v9757
    %v10816 = vpack.c.b16 %v9762, %v9760
    %v10817 = vpack.c.b16 %v9763, %v9761
    %v10818 = vpack.c.b16 %v9766, %v9764
    %v10819 = vpack.c.b16 %v9767, %v9765
    %v10820 = vpack.c.b16 %v9770, %v9768
    %v10821 = vpack.c.b16 %v9771, %v9769
    %v10822 = vpack.c.b16 %v9774, %v9772
    %v10823 = vpack.c.b16 %v9775, %v9773
    %v10824 = vpack.c.b16 %v9778, %v9776
    %v10825 = vpack.c.b16 %v9779, %v9777
    %v10826 = vpack.c.b16 %v9782, %v9780
    %v10827 = vpack.c.b16 %v9783, %v9781
    %v10828 = vpack.c.b16 %v9786, %v9784
    %v10829 = vpack.c.b16 %v9787, %v9785
    %v10830 = vpack.c.b16 %v9790, %v9788
    %v10831 = vpack.c.b16 %v9791, %v9789
    %v10832 = vpack.c.b16 %v9794, %v9792
    %v10833 = vpack.c.b16 %v9795, %v9793
    %v10834 = vpack.c.b16 %v9798, %v9796
    %v10835 = vpack.c.b16 %v9799, %v9797
    %v10836 = vpack.c.b16 %v9802, %v9800
    %v10837 = vpack.c.b16 %v9803, %v9801
    %v10838 = vpack.c.b16 %v9806, %v9804
    %v10839 = vpack.c.b16 %v9807, %v9805
    %v10840 = vpack.c.b16 %v9810, %v9808
    %v10841 = vpack.c.b16 %v9811, %v9809
    %v10842 = vpack.c.b16 %v9814, %v9812
    %v10843 = vpack.c.b16 %v9815, %v9813
    %v10844 = vpack.c.b16 %v9818, %v9816
    %v10845 = vpack.c.b16 %v9819, %v9817
    %v10846 = vpack.c.b16 %v9822, %v9820
    %v10847 = vpack.c.b16 %v9823, %v9821
    %11872 = vmatprep.subr.bf16.mxu0 %v9825
    %11873 = vmatpush1.bf16.msra.mxu0 %v9824
    %11874 = vmatprep.subr.bf16.mxu0 %v9827
    %11875 = vmatpush1.bf16.msra.mxu0 %v9826
    %11876 = vmatprep.subr.bf16.mxu0 %v9829
    %11877 = vmatpush1.bf16.msra.mxu0 %v9828
    %11878 = vmatprep.subr.bf16.mxu0 %v9831
    %11879 = vmatpush1.bf16.msra.mxu0 %v9830
    %11880 = vmatprep.subr.bf16.mxu0 %v9833
    %11881 = vmatpush1.bf16.msra.mxu0 %v9832
    %11882 = vmatprep.subr.bf16.mxu0 %v9835
    %11883 = vmatpush1.bf16.msra.mxu0 %v9834
    %11884 = vmatprep.subr.bf16.mxu0 %v9837
    %11885 = vmatpush1.bf16.msra.mxu0 %v9836
    %11886 = vmatprep.subr.bf16.mxu0 %v9839
    %11887 = vmatpush1.bf16.msra.mxu0 %v9838
    %11888 = vmatprep.subr.bf16.mxu0 %v9841
    %11889 = vmatpush1.bf16.msra.mxu0 %v9840
    %11890 = vmatprep.subr.bf16.mxu0 %v9843
    %11891 = vmatpush1.bf16.msra.mxu0 %v9842
    %11892 = vmatprep.subr.bf16.mxu0 %v9845
    %11893 = vmatpush1.bf16.msra.mxu0 %v9844
    %11894 = vmatprep.subr.bf16.mxu0 %v9847
    %11895 = vmatpush1.bf16.msra.mxu0 %v9846
    %11896 = vmatprep.subr.bf16.mxu0 %v9849
    %11897 = vmatpush1.bf16.msra.mxu0 %v9848
    %11898 = vmatprep.subr.bf16.mxu0 %v9851
    %11899 = vmatpush1.bf16.msra.mxu0 %v9850
    %11900 = vmatprep.subr.bf16.mxu0 %v9853
    %11901 = vmatpush1.bf16.msra.mxu0 %v9852
    %11902 = vmatprep.subr.bf16.mxu0 %v9855
    %11903 = vmatpush1.bf16.msra.mxu0 %v9854
    %11904 = vmatprep.mubr.bf16.mxu0 %v5653
    %11905 = vmatmul.mubr.bf16.gmra.mrb[0].mxu0 %v5652
    %v11906 = vpop.f32.mrb[0].mxu0
    %v11907 = vadd.f32 %v6745, %v11906
    %v11908 = vpop.f32.mrb[0].mxu0
    %v11909 = vadd.f32 %v6749, %v11908
    %v11910 = vpop.f32.mrb[0].mxu0
    %v11911 = vpop.f32.mrb[0].mxu0
    %11912 = vdwg.mxu0
    %11913 = vmatprep.subr.bf16.mxu0 %v9857
    %11914 = vmatpush1.bf16.msra.mxu0 %v9856
    %11915 = vmatprep.subr.bf16.mxu0 %v9859
    %11916 = vmatpush1.bf16.msra.mxu0 %v9858
    %11917 = vmatprep.subr.bf16.mxu0 %v9861
    %11918 = vmatpush1.bf16.msra.mxu0 %v9860
    %11919 = vmatprep.subr.bf16.mxu0 %v9863
    %11920 = vmatpush1.bf16.msra.mxu0 %v9862
    %11921 = vmatprep.subr.bf16.mxu0 %v9865
    %11922 = vmatpush1.bf16.msra.mxu0 %v9864
    %11923 = vmatprep.subr.bf16.mxu0 %v9867
    %11924 = vmatpush1.bf16.msra.mxu0 %v9866
    %11925 = vmatprep.subr.bf16.mxu0 %v9869
    %11926 = vmatpush1.bf16.msra.mxu0 %v9868
    %11927 = vmatprep.subr.bf16.mxu0 %v9871
    %11928 = vmatpush1.bf16.msra.mxu0 %v9870
    %11929 = vmatprep.subr.bf16.mxu0 %v9873
    %11930 = vmatpush1.bf16.msra.mxu0 %v9872
    %11931 = vmatprep.subr.bf16.mxu0 %v9875
    %11932 = vmatpush1.bf16.msra.mxu0 %v9874
    %11933 = vmatprep.subr.bf16.mxu0 %v9877
    %11934 = vmatpush1.bf16.msra.mxu0 %v9876
    %11935 = vmatprep.subr.bf16.mxu0 %v9879
    %11936 = vmatpush1.bf16.msra.mxu0 %v9878
    %11937 = vmatprep.subr.bf16.mxu0 %v9881
    %11938 = vmatpush1.bf16.msra.mxu0 %v9880
    %11939 = vmatprep.subr.bf16.mxu0 %v9883
    %11940 = vmatpush1.bf16.msra.mxu0 %v9882
    %11941 = vmatprep.subr.bf16.mxu0 %v9885
    %11942 = vmatpush1.bf16.msra.mxu0 %v9884
    %11943 = vmatprep.subr.bf16.mxu0 %v9887
    %11944 = vmatpush1.bf16.msra.mxu0 %v9886
    %11945 = vmatprep.mubr.bf16.mxu0 %v5655
    %11946 = vmatmul.mubr.bf16.gmra.mrb[0].mxu0 %v5654
    %v11947 = vpop.f32.mrb[0].mxu0
    %v11948 = vadd.f32 %v11907, %v11947
    %v11949 = vpop.f32.mrb[0].mxu0
    %v11950 = vadd.f32 %v11909, %v11949
    %v11951 = vpop.f32.mrb[0].mxu0
    %v11952 = vpop.f32.mrb[0].mxu0
    %11953 = vdwg.mxu0
    %11954 = vmatprep.subr.bf16.mxu0 %v9889
    %11955 = vmatpush1.bf16.msra.mxu0 %v9888
    %11956 = vmatprep.subr.bf16.mxu0 %v9891
    %11957 = vmatpush1.bf16.msra.mxu0 %v9890
    %11958 = vmatprep.subr.bf16.mxu0 %v9893
    %11959 = vmatpush1.bf16.msra.mxu0 %v9892
    %11960 = vmatprep.subr.bf16.mxu0 %v9895
    %11961 = vmatpush1.bf16.msra.mxu0 %v9894
    %11962 = vmatprep.subr.bf16.mxu0 %v9897
    %11963 = vmatpush1.bf16.msra.mxu0 %v9896
    %11964 = vmatprep.subr.bf16.mxu0 %v9899
    %11965 = vmatpush1.bf16.msra.mxu0 %v9898
    %11966 = vmatprep.subr.bf16.mxu0 %v9901
    %11967 = vmatpush1.bf16.msra.mxu0 %v9900
    %11968 = vmatprep.subr.bf16.mxu0 %v9903
    %11969 = vmatpush1.bf16.msra.mxu0 %v9902
    %11970 = vmatprep.subr.bf16.mxu0 %v9905
    %11971 = vmatpush1.bf16.msra.mxu0 %v9904
    %11972 = vmatprep.subr.bf16.mxu0 %v9907
    %11973 = vmatpush1.bf16.msra.mxu0 %v9906
    %11974 = vmatprep.subr.bf16.mxu0 %v9909
    %11975 = vmatpush1.bf16.msra.mxu0 %v9908
    %11976 = vmatprep.subr.bf16.mxu0 %v9911
    %11977 = vmatpush1.bf16.msra.mxu0 %v9910
    %11978 = vmatprep.subr.bf16.mxu0 %v9913
    %11979 = vmatpush1.bf16.msra.mxu0 %v9912
    %11980 = vmatprep.subr.bf16.mxu0 %v9915
    %11981 = vmatpush1.bf16.msra.mxu0 %v9914
    %11982 = vmatprep.subr.bf16.mxu0 %v9917
    %11983 = vmatpush1.bf16.msra.mxu0 %v9916
    %11984 = vmatprep.subr.bf16.mxu0 %v9919
    %11985 = vmatpush1.bf16.msra.mxu0 %v9918
    %11986 = vmatprep.mubr.bf16.mxu0 %v5657
    %11987 = vmatmul.mubr.bf16.gmra.mrb[0].mxu0 %v5656
    %v11988 = vpop.f32.mrb[0].mxu0
    %v11989 = vadd.f32 %v11948, %v11988
    %v11990 = vpop.f32.mrb[0].mxu0
    %v11991 = vadd.f32 %v11950, %v11990
    %v11992 = vpop.f32.mrb[0].mxu0
    %v11993 = vpop.f32.mrb[0].mxu0
    %11994 = vdwg.mxu0
    %11995 = vmatprep.subr.bf16.mxu0 %v9921
    %11996 = vmatpush1.bf16.msra.mxu0 %v9920
    %11997 = vmatprep.subr.bf16.mxu0 %v9923
    %11998 = vmatpush1.bf16.msra.mxu0 %v9922
    %11999 = vmatprep.subr.bf16.mxu0 %v9925
    %12000 = vmatpush1.bf16.msra.mxu0 %v9924
    %12001 = vmatprep.subr.bf16.mxu0 %v9927
    %12002 = vmatpush1.bf16.msra.mxu0 %v9926
    %12003 = vmatprep.subr.bf16.mxu0 %v9929
    %12004 = vmatpush1.bf16.msra.mxu0 %v9928
    %12005 = vmatprep.subr.bf16.mxu0 %v9931
    %12006 = vmatpush1.bf16.msra.mxu0 %v9930
    %12007 = vmatprep.subr.bf16.mxu0 %v9933
    %12008 = vmatpush1.bf16.msra.mxu0 %v9932
    %12009 = vmatprep.subr.bf16.mxu0 %v9935
    %12010 = vmatpush1.bf16.msra.mxu0 %v9934
    %12011 = vmatprep.subr.bf16.mxu0 %v9937
    %12012 = vmatpush1.bf16.msra.mxu0 %v9936
    %12013 = vmatprep.subr.bf16.mxu0 %v9939
    %12014 = vmatpush1.bf16.msra.mxu0 %v9938
    %12015 = vmatprep.subr.bf16.mxu0 %v9941
    %12016 = vmatpush1.bf16.msra.mxu0 %v9940
    %12017 = vmatprep.subr.bf16.mxu0 %v9943
    %12018 = vmatpush1.bf16.msra.mxu0 %v9942
    %12019 = vmatprep.subr.bf16.mxu0 %v9945
    %12020 = vmatpush1.bf16.msra.mxu0 %v9944
    %12021 = vmatprep.subr.bf16.mxu0 %v9947
    %12022 = vmatpush1.bf16.msra.mxu0 %v9946
    %12023 = vmatprep.subr.bf16.mxu0 %v9949
    %12024 = vmatpush1.bf16.msra.mxu0 %v9948
    %12025 = vmatprep.subr.bf16.mxu0 %v9951
    %12026 = vmatpush1.bf16.msra.mxu0 %v9950
    %12027 = vmatprep.mubr.bf16.mxu0 %v5659
    %12028 = vmatmul.mubr.bf16.gmra.mrb[0].mxu0 %v5658
    %v12029 = vpop.f32.mrb[0].mxu0
    %v12030 = vadd.f32 %v11989, %v12029
    %v12031 = vpop.f32.mrb[0].mxu0
    %v12032 = vadd.f32 %v11991, %v12031
    %v12033 = vpop.f32.mrb[0].mxu0
    %v12034 = vpop.f32.mrb[0].mxu0
    %12035 = vdwg.mxu0
    %12036 = vmatprep.subr.bf16.mxu0 %v9953
    %12037 = vmatpush1.bf16.msra.mxu0 %v9952
    %12038 = vmatprep.subr.bf16.mxu0 %v9955
    %12039 = vmatpush1.bf16.msra.mxu0 %v9954
    %12040 = vmatprep.subr.bf16.mxu0 %v9957
    %12041 = vmatpush1.bf16.msra.mxu0 %v9956
    %12042 = vmatprep.subr.bf16.mxu0 %v9959
    %12043 = vmatpush1.bf16.msra.mxu0 %v9958
    %12044 = vmatprep.subr.bf16.mxu0 %v9961
    %12045 = vmatpush1.bf16.msra.mxu0 %v9960
    %12046 = vmatprep.subr.bf16.mxu0 %v9963
    %12047 = vmatpush1.bf16.msra.mxu0 %v9962
    %12048 = vmatprep.subr.bf16.mxu0 %v9965
    %12049 = vmatpush1.bf16.msra.mxu0 %v9964
    %12050 = vmatprep.subr.bf16.mxu0 %v9967
    %12051 = vmatpush1.bf16.msra.mxu0 %v9966
    %12052 = vmatprep.subr.bf16.mxu0 %v9969
    %12053 = vmatpush1.bf16.msra.mxu0 %v9968
    %12054 = vmatprep.subr.bf16.mxu0 %v9971
    %12055 = vmatpush1.bf16.msra.mxu0 %v9970
    %12056 = vmatprep.subr.bf16.mxu0 %v9973
    %12057 = vmatpush1.bf16.msra.mxu0 %v9972
    %12058 = vmatprep.subr.bf16.mxu0 %v9975
    %12059 = vmatpush1.bf16.msra.mxu0 %v9974
    %12060 = vmatprep.subr.bf16.mxu0 %v9977
    %12061 = vmatpush1.bf16.msra.mxu0 %v9976
    %12062 = vmatprep.subr.bf16.mxu0 %v9979
    %12063 = vmatpush1.bf16.msra.mxu0 %v9978
    %12064 = vmatprep.subr.bf16.mxu0 %v9981
    %12065 = vmatpush1.bf16.msra.mxu0 %v9980
    %12066 = vmatprep.subr.bf16.mxu0 %v9983
    %12067 = vmatpush1.bf16.msra.mxu0 %v9982
    %12068 = vmatprep.mubr.bf16.mxu0 %v5661
    %12069 = vmatmul.mubr.bf16.gmra.mrb[0].mxu0 %v5660
    %v12070 = vpop.f32.mrb[0].mxu0
    %v12071 = vadd.f32 %v12030, %v12070
    %v12072 = vpop.f32.mrb[0].mxu0
    %v12073 = vadd.f32 %v12032, %v12072
    %v12074 = vpop.f32.mrb[0].mxu0
    %v12075 = vpop.f32.mrb[0].mxu0
    %12076 = vdwg.mxu0
    %12077 = vmatprep.subr.bf16.mxu0 %v9985
    %12078 = vmatpush1.bf16.msra.mxu0 %v9984
    %12079 = vmatprep.subr.bf16.mxu0 %v9987
    %12080 = vmatpush1.bf16.msra.mxu0 %v9986
    %12081 = vmatprep.subr.bf16.mxu0 %v9989
    %12082 = vmatpush1.bf16.msra.mxu0 %v9988
    %12083 = vmatprep.subr.bf16.mxu0 %v9991
    %12084 = vmatpush1.bf16.msra.mxu0 %v9990
    %12085 = vmatprep.subr.bf16.mxu0 %v9993
    %12086 = vmatpush1.bf16.msra.mxu0 %v9992
    %12087 = vmatprep.subr.bf16.mxu0 %v9995
    %12088 = vmatpush1.bf16.msra.mxu0 %v9994
    %12089 = vmatprep.subr.bf16.mxu0 %v9997
    %12090 = vmatpush1.bf16.msra.mxu0 %v9996
    %12091 = vmatprep.subr.bf16.mxu0 %v9999
    %12092 = vmatpush1.bf16.msra.mxu0 %v9998
    %12093 = vmatprep.subr.bf16.mxu0 %v10001
    %12094 = vmatpush1.bf16.msra.mxu0 %v10000
    %12095 = vmatprep.subr.bf16.mxu0 %v10003
    %12096 = vmatpush1.bf16.msra.mxu0 %v10002
    %12097 = vmatprep.subr.bf16.mxu0 %v10005
    %12098 = vmatpush1.bf16.msra.mxu0 %v10004
    %12099 = vmatprep.subr.bf16.mxu0 %v10007
    %12100 = vmatpush1.bf16.msra.mxu0 %v10006
    %12101 = vmatprep.subr.bf16.mxu0 %v10009
    %12102 = vmatpush1.bf16.msra.mxu0 %v10008
    %12103 = vmatprep.subr.bf16.mxu0 %v10011
    %12104 = vmatpush1.bf16.msra.mxu0 %v10010
    %12105 = vmatprep.subr.bf16.mxu0 %v10013
    %12106 = vmatpush1.bf16.msra.mxu0 %v10012
    %12107 = vmatprep.subr.bf16.mxu0 %v10015
    %12108 = vmatpush1.bf16.msra.mxu0 %v10014
    %12109 = vmatprep.mubr.bf16.mxu0 %v5663
    %12110 = vmatmul.mubr.bf16.gmra.mrb[0].mxu0 %v5662
    %v12111 = vpop.f32.mrb[0].mxu0
    %v12112 = vadd.f32 %v12071, %v12111
    %v12113 = vpop.f32.mrb[0].mxu0
    %v12114 = vadd.f32 %v12073, %v12113
    %v12115 = vpop.f32.mrb[0].mxu0
    %v12116 = vpop.f32.mrb[0].mxu0
    %12117 = vdwg.mxu0
    %12118 = vmatprep.subr.bf16.mxu0 %v10017
    %12119 = vmatpush1.bf16.msra.mxu0 %v10016
    %12120 = vmatprep.subr.bf16.mxu0 %v10019
    %12121 = vmatpush1.bf16.msra.mxu0 %v10018
    %12122 = vmatprep.subr.bf16.mxu0 %v10021
    %12123 = vmatpush1.bf16.msra.mxu0 %v10020
    %12124 = vmatprep.subr.bf16.mxu0 %v10023
    %12125 = vmatpush1.bf16.msra.mxu0 %v10022
    %12126 = vmatprep.subr.bf16.mxu0 %v10025
    %12127 = vmatpush1.bf16.msra.mxu0 %v10024
    %12128 = vmatprep.subr.bf16.mxu0 %v10027
    %12129 = vmatpush1.bf16.msra.mxu0 %v10026
    %12130 = vmatprep.subr.bf16.mxu0 %v10029
    %12131 = vmatpush1.bf16.msra.mxu0 %v10028
    %12132 = vmatprep.subr.bf16.mxu0 %v10031
    %12133 = vmatpush1.bf16.msra.mxu0 %v10030
    %12134 = vmatprep.subr.bf16.mxu0 %v10033
    %12135 = vmatpush1.bf16.msra.mxu0 %v10032
    %12136 = vmatprep.subr.bf16.mxu0 %v10035
    %12137 = vmatpush1.bf16.msra.mxu0 %v10034
    %12138 = vmatprep.subr.bf16.mxu0 %v10037
    %12139 = vmatpush1.bf16.msra.mxu0 %v10036
    %12140 = vmatprep.subr.bf16.mxu0 %v10039
    %12141 = vmatpush1.bf16.msra.mxu0 %v10038
    %12142 = vmatprep.subr.bf16.mxu0 %v10041
    %12143 = vmatpush1.bf16.msra.mxu0 %v10040
    %12144 = vmatprep.subr.bf16.mxu0 %v10043
    %12145 = vmatpush1.bf16.msra.mxu0 %v10042
    %12146 = vmatprep.subr.bf16.mxu0 %v10045
    %12147 = vmatpush1.bf16.msra.mxu0 %v10044
    %12148 = vmatprep.subr.bf16.mxu0 %v10047
    %12149 = vmatpush1.bf16.msra.mxu0 %v10046
    %12150 = vmatprep.mubr.bf16.mxu0 %v5665
    %12151 = vmatmul.mubr.bf16.gmra.mrb[0].mxu0 %v5664
    %v12152 = vpop.f32.mrb[0].mxu0
    %v12153 = vadd.f32 %v12112, %v12152
    %v12154 = vpop.f32.mrb[0].mxu0
    %v12155 = vadd.f32 %v12114, %v12154
    %v12156 = vpop.f32.mrb[0].mxu0
    %v12157 = vpop.f32.mrb[0].mxu0
    %12158 = vdwg.mxu0
    %12159 = vmatprep.subr.bf16.mxu0 %v10049
    %12160 = vmatpush1.bf16.msra.mxu0 %v10048
    %12161 = vmatprep.subr.bf16.mxu0 %v10051
    %12162 = vmatpush1.bf16.msra.mxu0 %v10050
    %12163 = vmatprep.subr.bf16.mxu0 %v10053
    %12164 = vmatpush1.bf16.msra.mxu0 %v10052
    %12165 = vmatprep.subr.bf16.mxu0 %v10055
    %12166 = vmatpush1.bf16.msra.mxu0 %v10054
    %12167 = vmatprep.subr.bf16.mxu0 %v10057
    %12168 = vmatpush1.bf16.msra.mxu0 %v10056
    %12169 = vmatprep.subr.bf16.mxu0 %v10059
    %12170 = vmatpush1.bf16.msra.mxu0 %v10058
    %12171 = vmatprep.subr.bf16.mxu0 %v10061
    %12172 = vmatpush1.bf16.msra.mxu0 %v10060
    %12173 = vmatprep.subr.bf16.mxu0 %v10063
    %12174 = vmatpush1.bf16.msra.mxu0 %v10062
    %12175 = vmatprep.subr.bf16.mxu0 %v10065
    %12176 = vmatpush1.bf16.msra.mxu0 %v10064
    %12177 = vmatprep.subr.bf16.mxu0 %v10067
    %12178 = vmatpush1.bf16.msra.mxu0 %v10066
    %12179 = vmatprep.subr.bf16.mxu0 %v10069
    %12180 = vmatpush1.bf16.msra.mxu0 %v10068
    %12181 = vmatprep.subr.bf16.mxu0 %v10071
    %12182 = vmatpush1.bf16.msra.mxu0 %v10070
    %12183 = vmatprep.subr.bf16.mxu0 %v10073
    %12184 = vmatpush1.bf16.msra.mxu0 %v10072
    %12185 = vmatprep.subr.bf16.mxu0 %v10075
    %12186 = vmatpush1.bf16.msra.mxu0 %v10074
    %12187 = vmatprep.subr.bf16.mxu0 %v10077
    %12188 = vmatpush1.bf16.msra.mxu0 %v10076
    %12189 = vmatprep.subr.bf16.mxu0 %v10079
    %12190 = vmatpush1.bf16.msra.mxu0 %v10078
    %12191 = vmatprep.mubr.bf16.mxu0 %v5667
    %12192 = vmatmul.mubr.bf16.gmra.mrb[0].mxu0 %v5666
    %v12193 = vpop.f32.mrb[0].mxu0
    %v12194 = vadd.f32 %v12153, %v12193
    %v12195 = vpop.f32.mrb[0].mxu0
    %v12196 = vadd.f32 %v12155, %v12195
    %v12197 = vpop.f32.mrb[0].mxu0
    %v12198 = vpop.f32.mrb[0].mxu0
    %12199 = vdwg.mxu0
    %12200 = vmatprep.subr.bf16.mxu0 %v10081
    %12201 = vmatpush1.bf16.msra.mxu0 %v10080
    %12202 = vmatprep.subr.bf16.mxu0 %v10083
    %12203 = vmatpush1.bf16.msra.mxu0 %v10082
    %12204 = vmatprep.subr.bf16.mxu0 %v10085
    %12205 = vmatpush1.bf16.msra.mxu0 %v10084
    %12206 = vmatprep.subr.bf16.mxu0 %v10087
    %12207 = vmatpush1.bf16.msra.mxu0 %v10086
    %12208 = vmatprep.subr.bf16.mxu0 %v10089
    %12209 = vmatpush1.bf16.msra.mxu0 %v10088
    %12210 = vmatprep.subr.bf16.mxu0 %v10091
    %12211 = vmatpush1.bf16.msra.mxu0 %v10090
    %12212 = vmatprep.subr.bf16.mxu0 %v10093
    %12213 = vmatpush1.bf16.msra.mxu0 %v10092
    %12214 = vmatprep.subr.bf16.mxu0 %v10095
    %12215 = vmatpush1.bf16.msra.mxu0 %v10094
    %12216 = vmatprep.subr.bf16.mxu0 %v10097
    %12217 = vmatpush1.bf16.msra.mxu0 %v10096
    %12218 = vmatprep.subr.bf16.mxu0 %v10099
    %12219 = vmatpush1.bf16.msra.mxu0 %v10098
    %12220 = vmatprep.subr.bf16.mxu0 %v10101
    %12221 = vmatpush1.bf16.msra.mxu0 %v10100
    %12222 = vmatprep.subr.bf16.mxu0 %v10103
    %12223 = vmatpush1.bf16.msra.mxu0 %v10102
    %12224 = vmatprep.subr.bf16.mxu0 %v10105
    %12225 = vmatpush1.bf16.msra.mxu0 %v10104
    %12226 = vmatprep.subr.bf16.mxu0 %v10107
    %12227 = vmatpush1.bf16.msra.mxu0 %v10106
    %12228 = vmatprep.subr.bf16.mxu0 %v10109
    %12229 = vmatpush1.bf16.msra.mxu0 %v10108
    %12230 = vmatprep.subr.bf16.mxu0 %v10111
    %12231 = vmatpush1.bf16.msra.mxu0 %v10110
    %12232 = vmatprep.mubr.bf16.mxu0 %v5669
    %12233 = vmatmul.mubr.bf16.gmra.mrb[0].mxu0 %v5668
    %v12234 = vpop.f32.mrb[0].mxu0
    %v12235 = vadd.f32 %v12194, %v12234
    %v12236 = vpop.f32.mrb[0].mxu0
    %v12237 = vadd.f32 %v12196, %v12236
    %v12238 = vpop.f32.mrb[0].mxu0
    %v12239 = vpop.f32.mrb[0].mxu0
    %12240 = vdwg.mxu0
    %12241 = vmatprep.subr.bf16.mxu0 %v10113
    %12242 = vmatpush1.bf16.msra.mxu0 %v10112
    %12243 = vmatprep.subr.bf16.mxu0 %v10115
    %12244 = vmatpush1.bf16.msra.mxu0 %v10114
    %12245 = vmatprep.subr.bf16.mxu0 %v10117
    %12246 = vmatpush1.bf16.msra.mxu0 %v10116
    %12247 = vmatprep.subr.bf16.mxu0 %v10119
    %12248 = vmatpush1.bf16.msra.mxu0 %v10118
    %12249 = vmatprep.subr.bf16.mxu0 %v10121
    %12250 = vmatpush1.bf16.msra.mxu0 %v10120
    %12251 = vmatprep.subr.bf16.mxu0 %v10123
    %12252 = vmatpush1.bf16.msra.mxu0 %v10122
    %12253 = vmatprep.subr.bf16.mxu0 %v10125
    %12254 = vmatpush1.bf16.msra.mxu0 %v10124
    %12255 = vmatprep.subr.bf16.mxu0 %v10127
    %12256 = vmatpush1.bf16.msra.mxu0 %v10126
    %12257 = vmatprep.subr.bf16.mxu0 %v10129
    %12258 = vmatpush1.bf16.msra.mxu0 %v10128
    %12259 = vmatprep.subr.bf16.mxu0 %v10131
    %12260 = vmatpush1.bf16.msra.mxu0 %v10130
    %12261 = vmatprep.subr.bf16.mxu0 %v10133
    %12262 = vmatpush1.bf16.msra.mxu0 %v10132
    %12263 = vmatprep.subr.bf16.mxu0 %v10135
    %12264 = vmatpush1.bf16.msra.mxu0 %v10134
    %12265 = vmatprep.subr.bf16.mxu0 %v10137
    %12266 = vmatpush1.bf16.msra.mxu0 %v10136
    %12267 = vmatprep.subr.bf16.mxu0 %v10139
    %12268 = vmatpush1.bf16.msra.mxu0 %v10138
    %12269 = vmatprep.subr.bf16.mxu0 %v10141
    %12270 = vmatpush1.bf16.msra.mxu0 %v10140
    %12271 = vmatprep.subr.bf16.mxu0 %v10143
    %12272 = vmatpush1.bf16.msra.mxu0 %v10142
    %12273 = vmatprep.mubr.bf16.mxu0 %v5671
    %12274 = vmatmul.mubr.bf16.gmra.mrb[0].mxu0 %v5670
    %v12275 = vpop.f32.mrb[0].mxu0
    %v12276 = vadd.f32 %v12235, %v12275
    %v12277 = vpop.f32.mrb[0].mxu0
    %v12278 = vadd.f32 %v12237, %v12277
    %v12279 = vpop.f32.mrb[0].mxu0
    %v12280 = vpop.f32.mrb[0].mxu0
    %12281 = vdwg.mxu0
    %12282 = vmatprep.subr.bf16.mxu0 %v10145
    %12283 = vmatpush1.bf16.msra.mxu0 %v10144
    %12284 = vmatprep.subr.bf16.mxu0 %v10147
    %12285 = vmatpush1.bf16.msra.mxu0 %v10146
    %12286 = vmatprep.subr.bf16.mxu0 %v10149
    %12287 = vmatpush1.bf16.msra.mxu0 %v10148
    %12288 = vmatprep.subr.bf16.mxu0 %v10151
    %12289 = vmatpush1.bf16.msra.mxu0 %v10150
    %12290 = vmatprep.subr.bf16.mxu0 %v10153
    %12291 = vmatpush1.bf16.msra.mxu0 %v10152
    %12292 = vmatprep.subr.bf16.mxu0 %v10155
    %12293 = vmatpush1.bf16.msra.mxu0 %v10154
    %12294 = vmatprep.subr.bf16.mxu0 %v10157
    %12295 = vmatpush1.bf16.msra.mxu0 %v10156
    %12296 = vmatprep.subr.bf16.mxu0 %v10159
    %12297 = vmatpush1.bf16.msra.mxu0 %v10158
    %12298 = vmatprep.subr.bf16.mxu0 %v10161
    %12299 = vmatpush1.bf16.msra.mxu0 %v10160
    %12300 = vmatprep.subr.bf16.mxu0 %v10163
    %12301 = vmatpush1.bf16.msra.mxu0 %v10162
    %12302 = vmatprep.subr.bf16.mxu0 %v10165
    %12303 = vmatpush1.bf16.msra.mxu0 %v10164
    %12304 = vmatprep.subr.bf16.mxu0 %v10167
    %12305 = vmatpush1.bf16.msra.mxu0 %v10166
    %12306 = vmatprep.subr.bf16.mxu0 %v10169
    %12307 = vmatpush1.bf16.msra.mxu0 %v10168
    %12308 = vmatprep.subr.bf16.mxu0 %v10171
    %12309 = vmatpush1.bf16.msra.mxu0 %v10170
    %12310 = vmatprep.subr.bf16.mxu0 %v10173
    %12311 = vmatpush1.bf16.msra.mxu0 %v10172
    %12312 = vmatprep.subr.bf16.mxu0 %v10175
    %12313 = vmatpush1.bf16.msra.mxu0 %v10174
    %12314 = vmatprep.mubr.bf16.mxu0 %v5673
    %12315 = vmatmul.mubr.bf16.gmra.mrb[0].mxu0 %v5672
    %v12316 = vpop.f32.mrb[0].mxu0
    %v12317 = vadd.f32 %v12276, %v12316
    %v12318 = vpop.f32.mrb[0].mxu0
    %v12319 = vadd.f32 %v12278, %v12318
    %v12320 = vpop.f32.mrb[0].mxu0
    %v12321 = vpop.f32.mrb[0].mxu0
    %12322 = vdwg.mxu0
    %12323 = vmatprep.subr.bf16.mxu0 %v10177
    %12324 = vmatpush1.bf16.msra.mxu0 %v10176
    %12325 = vmatprep.subr.bf16.mxu0 %v10179
    %12326 = vmatpush1.bf16.msra.mxu0 %v10178
    %12327 = vmatprep.subr.bf16.mxu0 %v10181
    %12328 = vmatpush1.bf16.msra.mxu0 %v10180
    %12329 = vmatprep.subr.bf16.mxu0 %v10183
    %12330 = vmatpush1.bf16.msra.mxu0 %v10182
    %12331 = vmatprep.subr.bf16.mxu0 %v10185
    %12332 = vmatpush1.bf16.msra.mxu0 %v10184
    %12333 = vmatprep.subr.bf16.mxu0 %v10187
    %12334 = vmatpush1.bf16.msra.mxu0 %v10186
    %12335 = vmatprep.subr.bf16.mxu0 %v10189
    %12336 = vmatpush1.bf16.msra.mxu0 %v10188
    %12337 = vmatprep.subr.bf16.mxu0 %v10191
    %12338 = vmatpush1.bf16.msra.mxu0 %v10190
    %12339 = vmatprep.subr.bf16.mxu0 %v10193
    %12340 = vmatpush1.bf16.msra.mxu0 %v10192
    %12341 = vmatprep.subr.bf16.mxu0 %v10195
    %12342 = vmatpush1.bf16.msra.mxu0 %v10194
    %12343 = vmatprep.subr.bf16.mxu0 %v10197
    %12344 = vmatpush1.bf16.msra.mxu0 %v10196
    %12345 = vmatprep.subr.bf16.mxu0 %v10199
    %12346 = vmatpush1.bf16.msra.mxu0 %v10198
    %12347 = vmatprep.subr.bf16.mxu0 %v10201
    %12348 = vmatpush1.bf16.msra.mxu0 %v10200
    %12349 = vmatprep.subr.bf16.mxu0 %v10203
    %12350 = vmatpush1.bf16.msra.mxu0 %v10202
    %12351 = vmatprep.subr.bf16.mxu0 %v10205
    %12352 = vmatpush1.bf16.msra.mxu0 %v10204
    %12353 = vmatprep.subr.bf16.mxu0 %v10207
    %12354 = vmatpush1.bf16.msra.mxu0 %v10206
    %12355 = vmatprep.mubr.bf16.mxu0 %v5675
    %12356 = vmatmul.mubr.bf16.gmra.mrb[0].mxu0 %v5674
    %v12357 = vpop.f32.mrb[0].mxu0
    %v12358 = vadd.f32 %v12317, %v12357
    %v12359 = vpop.f32.mrb[0].mxu0
    %v12360 = vadd.f32 %v12319, %v12359
    %v12361 = vpop.f32.mrb[0].mxu0
    %v12362 = vpop.f32.mrb[0].mxu0
    %12363 = vdwg.mxu0
    %12364 = vmatprep.subr.bf16.mxu0 %v10209
    %12365 = vmatpush1.bf16.msra.mxu0 %v10208
    %12366 = vmatprep.subr.bf16.mxu0 %v10211
    %12367 = vmatpush1.bf16.msra.mxu0 %v10210
    %12368 = vmatprep.subr.bf16.mxu0 %v10213
    %12369 = vmatpush1.bf16.msra.mxu0 %v10212
    %12370 = vmatprep.subr.bf16.mxu0 %v10215
    %12371 = vmatpush1.bf16.msra.mxu0 %v10214
    %12372 = vmatprep.subr.bf16.mxu0 %v10217
    %12373 = vmatpush1.bf16.msra.mxu0 %v10216
    %12374 = vmatprep.subr.bf16.mxu0 %v10219
    %12375 = vmatpush1.bf16.msra.mxu0 %v10218
    %12376 = vmatprep.subr.bf16.mxu0 %v10221
    %12377 = vmatpush1.bf16.msra.mxu0 %v10220
    %12378 = vmatprep.subr.bf16.mxu0 %v10223
    %12379 = vmatpush1.bf16.msra.mxu0 %v10222
    %12380 = vmatprep.subr.bf16.mxu0 %v10225
    %12381 = vmatpush1.bf16.msra.mxu0 %v10224
    %12382 = vmatprep.subr.bf16.mxu0 %v10227
    %12383 = vmatpush1.bf16.msra.mxu0 %v10226
    %12384 = vmatprep.subr.bf16.mxu0 %v10229
    %12385 = vmatpush1.bf16.msra.mxu0 %v10228
    %12386 = vmatprep.subr.bf16.mxu0 %v10231
    %12387 = vmatpush1.bf16.msra.mxu0 %v10230
    %12388 = vmatprep.subr.bf16.mxu0 %v10233
    %12389 = vmatpush1.bf16.msra.mxu0 %v10232
    %12390 = vmatprep.subr.bf16.mxu0 %v10235
    %12391 = vmatpush1.bf16.msra.mxu0 %v10234
    %12392 = vmatprep.subr.bf16.mxu0 %v10237
    %12393 = vmatpush1.bf16.msra.mxu0 %v10236
    %12394 = vmatprep.subr.bf16.mxu0 %v10239
    %12395 = vmatpush1.bf16.msra.mxu0 %v10238
    %12396 = vmatprep.mubr.bf16.mxu0 %v5677
    %12397 = vmatmul.mubr.bf16.gmra.mrb[0].mxu0 %v5676
    %v12398 = vpop.f32.mrb[0].mxu0
    %v12399 = vadd.f32 %v12358, %v12398
    %v12400 = vpop.f32.mrb[0].mxu0
    %v12401 = vadd.f32 %v12360, %v12400
    %v12402 = vpop.f32.mrb[0].mxu0
    %v12403 = vpop.f32.mrb[0].mxu0
    %12404 = vdwg.mxu0
    %12405 = vmatprep.subr.bf16.mxu0 %v10241
    %12406 = vmatpush1.bf16.msra.mxu0 %v10240
    %12407 = vmatprep.subr.bf16.mxu0 %v10243
    %12408 = vmatpush1.bf16.msra.mxu0 %v10242
    %12409 = vmatprep.subr.bf16.mxu0 %v10245
    %12410 = vmatpush1.bf16.msra.mxu0 %v10244
    %12411 = vmatprep.subr.bf16.mxu0 %v10247
    %12412 = vmatpush1.bf16.msra.mxu0 %v10246
    %12413 = vmatprep.subr.bf16.mxu0 %v10249
    %12414 = vmatpush1.bf16.msra.mxu0 %v10248
    %12415 = vmatprep.subr.bf16.mxu0 %v10251
    %12416 = vmatpush1.bf16.msra.mxu0 %v10250
    %12417 = vmatprep.subr.bf16.mxu0 %v10253
    %12418 = vmatpush1.bf16.msra.mxu0 %v10252
    %12419 = vmatprep.subr.bf16.mxu0 %v10255
    %12420 = vmatpush1.bf16.msra.mxu0 %v10254
    %12421 = vmatprep.subr.bf16.mxu0 %v10257
    %12422 = vmatpush1.bf16.msra.mxu0 %v10256
    %12423 = vmatprep.subr.bf16.mxu0 %v10259
    %12424 = vmatpush1.bf16.msra.mxu0 %v10258
    %12425 = vmatprep.subr.bf16.mxu0 %v10261
    %12426 = vmatpush1.bf16.msra.mxu0 %v10260
    %12427 = vmatprep.subr.bf16.mxu0 %v10263
    %12428 = vmatpush1.bf16.msra.mxu0 %v10262
    %12429 = vmatprep.subr.bf16.mxu0 %v10265
    %12430 = vmatpush1.bf16.msra.mxu0 %v10264
    %12431 = vmatprep.subr.bf16.mxu0 %v10267
    %12432 = vmatpush1.bf16.msra.mxu0 %v10266
    %12433 = vmatprep.subr.bf16.mxu0 %v10269
    %12434 = vmatpush1.bf16.msra.mxu0 %v10268
    %12435 = vmatprep.subr.bf16.mxu0 %v10271
    %12436 = vmatpush1.bf16.msra.mxu0 %v10270
    %12437 = vmatprep.mubr.bf16.mxu0 %v5679
    %12438 = vmatmul.mubr.bf16.gmra.mrb[0].mxu0 %v5678
    %v12439 = vpop.f32.mrb[0].mxu0
    %v12440 = vadd.f32 %v12399, %v12439
    %v12441 = vpop.f32.mrb[0].mxu0
    %v12442 = vadd.f32 %v12401, %v12441
    %v12443 = vpop.f32.mrb[0].mxu0
    %v12444 = vpop.f32.mrb[0].mxu0
    %12445 = vdwg.mxu0
    %12446 = vmatprep.subr.bf16.mxu0 %v10273
    %12447 = vmatpush1.bf16.msra.mxu0 %v10272
    %12448 = vmatprep.subr.bf16.mxu0 %v10275
    %12449 = vmatpush1.bf16.msra.mxu0 %v10274
    %12450 = vmatprep.subr.bf16.mxu0 %v10277
    %12451 = vmatpush1.bf16.msra.mxu0 %v10276
    %12452 = vmatprep.subr.bf16.mxu0 %v10279
    %12453 = vmatpush1.bf16.msra.mxu0 %v10278
    %12454 = vmatprep.subr.bf16.mxu0 %v10281
    %12455 = vmatpush1.bf16.msra.mxu0 %v10280
    %12456 = vmatprep.subr.bf16.mxu0 %v10283
    %12457 = vmatpush1.bf16.msra.mxu0 %v10282
    %12458 = vmatprep.subr.bf16.mxu0 %v10285
    %12459 = vmatpush1.bf16.msra.mxu0 %v10284
    %12460 = vmatprep.subr.bf16.mxu0 %v10287
    %12461 = vmatpush1.bf16.msra.mxu0 %v10286
    %12462 = vmatprep.subr.bf16.mxu0 %v10289
    %12463 = vmatpush1.bf16.msra.mxu0 %v10288
    %12464 = vmatprep.subr.bf16.mxu0 %v10291
    %12465 = vmatpush1.bf16.msra.mxu0 %v10290
    %12466 = vmatprep.subr.bf16.mxu0 %v10293
    %12467 = vmatpush1.bf16.msra.mxu0 %v10292
    %12468 = vmatprep.subr.bf16.mxu0 %v10295
    %12469 = vmatpush1.bf16.msra.mxu0 %v10294
    %12470 = vmatprep.subr.bf16.mxu0 %v10297
    %12471 = vmatpush1.bf16.msra.mxu0 %v10296
    %12472 = vmatprep.subr.bf16.mxu0 %v10299
    %12473 = vmatpush1.bf16.msra.mxu0 %v10298
    %12474 = vmatprep.subr.bf16.mxu0 %v10301
    %12475 = vmatpush1.bf16.msra.mxu0 %v10300
    %12476 = vmatprep.subr.bf16.mxu0 %v10303
    %12477 = vmatpush1.bf16.msra.mxu0 %v10302
    %12478 = vmatprep.mubr.bf16.mxu0 %v5681
    %12479 = vmatmul.mubr.bf16.gmra.mrb[0].mxu0 %v5680
    %v12480 = vpop.f32.mrb[0].mxu0
    %v12481 = vadd.f32 %v12440, %v12480
    %v12482 = vpop.f32.mrb[0].mxu0
    %v12483 = vadd.f32 %v12442, %v12482
    %v12484 = vpop.f32.mrb[0].mxu0
    %v12485 = vpop.f32.mrb[0].mxu0
    %12486 = vdwg.mxu0
    %12487 = vmatprep.subr.bf16.mxu0 %v10305
    %12488 = vmatpush1.bf16.msra.mxu0 %v10304
    %12489 = vmatprep.subr.bf16.mxu0 %v10307
    %12490 = vmatpush1.bf16.msra.mxu0 %v10306
    %12491 = vmatprep.subr.bf16.mxu0 %v10309
    %12492 = vmatpush1.bf16.msra.mxu0 %v10308
    %12493 = vmatprep.subr.bf16.mxu0 %v10311
    %12494 = vmatpush1.bf16.msra.mxu0 %v10310
    %12495 = vmatprep.subr.bf16.mxu0 %v10313
    %12496 = vmatpush1.bf16.msra.mxu0 %v10312
    %12497 = vmatprep.subr.bf16.mxu0 %v10315
    %12498 = vmatpush1.bf16.msra.mxu0 %v10314
    %12499 = vmatprep.subr.bf16.mxu0 %v10317
    %12500 = vmatpush1.bf16.msra.mxu0 %v10316
    %12501 = vmatprep.subr.bf16.mxu0 %v10319
    %12502 = vmatpush1.bf16.msra.mxu0 %v10318
    %12503 = vmatprep.subr.bf16.mxu0 %v10321
    %12504 = vmatpush1.bf16.msra.mxu0 %v10320
    %12505 = vmatprep.subr.bf16.mxu0 %v10323
    %12506 = vmatpush1.bf16.msra.mxu0 %v10322
    %12507 = vmatprep.subr.bf16.mxu0 %v10325
    %12508 = vmatpush1.bf16.msra.mxu0 %v10324
    %12509 = vmatprep.subr.bf16.mxu0 %v10327
    %12510 = vmatpush1.bf16.msra.mxu0 %v10326
    %12511 = vmatprep.subr.bf16.mxu0 %v10329
    %12512 = vmatpush1.bf16.msra.mxu0 %v10328
    %12513 = vmatprep.subr.bf16.mxu0 %v10331
    %12514 = vmatpush1.bf16.msra.mxu0 %v10330
    %12515 = vmatprep.subr.bf16.mxu0 %v10333
    %12516 = vmatpush1.bf16.msra.mxu0 %v10332
    %12517 = vmatprep.subr.bf16.mxu0 %v10335
    %12518 = vmatpush1.bf16.msra.mxu0 %v10334
    %12519 = vmatprep.mubr.bf16.mxu0 %v5683
    %12520 = vmatmul.mubr.bf16.gmra.mrb[0].mxu0 %v5682
    %v12521 = vpop.f32.mrb[0].mxu0
    %v12522 = vadd.f32 %v12481, %v12521
    %v12523 = vpop.f32.mrb[0].mxu0
    %v12524 = vadd.f32 %v12483, %v12523
    %v12525 = vpop.f32.mrb[0].mxu0
    %v12526 = vpop.f32.mrb[0].mxu0
    %12527 = vdwg.mxu0
    %12528 = vmatprep.subr.bf16.mxu0 %v10337
    %12529 = vmatpush1.bf16.msra.mxu0 %v10336
    %12530 = vmatprep.subr.bf16.mxu0 %v10339
    %12531 = vmatpush1.bf16.msra.mxu0 %v10338
    %12532 = vmatprep.subr.bf16.mxu0 %v10341
    %12533 = vmatpush1.bf16.msra.mxu0 %v10340
    %12534 = vmatprep.subr.bf16.mxu0 %v10343
    %12535 = vmatpush1.bf16.msra.mxu0 %v10342
    %12536 = vmatprep.subr.bf16.mxu0 %v10345
    %12537 = vmatpush1.bf16.msra.mxu0 %v10344
    %12538 = vmatprep.subr.bf16.mxu0 %v10347
    %12539 = vmatpush1.bf16.msra.mxu0 %v10346
    %12540 = vmatprep.subr.bf16.mxu0 %v10349
    %12541 = vmatpush1.bf16.msra.mxu0 %v10348
    %12542 = vmatprep.subr.bf16.mxu0 %v10351
    %12543 = vmatpush1.bf16.msra.mxu0 %v10350
    %12544 = vmatprep.subr.bf16.mxu0 %v10353
    %12545 = vmatpush1.bf16.msra.mxu0 %v10352
    %12546 = vmatprep.subr.bf16.mxu0 %v10355
    %12547 = vmatpush1.bf16.msra.mxu0 %v10354
    %12548 = vmatprep.subr.bf16.mxu0 %v10357
    %12549 = vmatpush1.bf16.msra.mxu0 %v10356
    %12550 = vmatprep.subr.bf16.mxu0 %v10359
    %12551 = vmatpush1.bf16.msra.mxu0 %v10358
    %12552 = vmatprep.subr.bf16.mxu0 %v10361
    %12553 = vmatpush1.bf16.msra.mxu0 %v10360
    %12554 = vmatprep.subr.bf16.mxu0 %v10363
    %12555 = vmatpush1.bf16.msra.mxu0 %v10362
    %12556 = vmatprep.subr.bf16.mxu0 %v10365
    %12557 = vmatpush1.bf16.msra.mxu0 %v10364
    %12558 = vmatprep.subr.bf16.mxu0 %v10367
    %12559 = vmatpush1.bf16.msra.mxu0 %v10366
    %12560 = vmatprep.mubr.bf16.mxu0 %v5685
    %12561 = vmatmul.mubr.bf16.gmra.mrb[0].mxu0 %v5684
    %v12562 = vpop.f32.mrb[0].mxu0
    %v12563 = vadd.f32 %v12522, %v12562
    %v12564 = vpop.f32.mrb[0].mxu0
    %v12565 = vadd.f32 %v12524, %v12564
    %v12566 = vpop.f32.mrb[0].mxu0
    %v12567 = vpop.f32.mrb[0].mxu0
    %12568 = vdwg.mxu0
    %12569 = vmatprep.subr.bf16.mxu0 %v10369
    %12570 = vmatpush1.bf16.msra.mxu0 %v10368
    %12571 = vmatprep.subr.bf16.mxu0 %v10371
    %12572 = vmatpush1.bf16.msra.mxu0 %v10370
    %12573 = vmatprep.subr.bf16.mxu0 %v10373
    %12574 = vmatpush1.bf16.msra.mxu0 %v10372
    %12575 = vmatprep.subr.bf16.mxu0 %v10375
    %12576 = vmatpush1.bf16.msra.mxu0 %v10374
    %12577 = vmatprep.subr.bf16.mxu0 %v10377
    %12578 = vmatpush1.bf16.msra.mxu0 %v10376
    %12579 = vmatprep.subr.bf16.mxu0 %v10379
    %12580 = vmatpush1.bf16.msra.mxu0 %v10378
    %12581 = vmatprep.subr.bf16.mxu0 %v10381
    %12582 = vmatpush1.bf16.msra.mxu0 %v10380
    %12583 = vmatprep.subr.bf16.mxu0 %v10383
    %12584 = vmatpush1.bf16.msra.mxu0 %v10382
    %12585 = vmatprep.subr.bf16.mxu0 %v10385
    %12586 = vmatpush1.bf16.msra.mxu0 %v10384
    %12587 = vmatprep.subr.bf16.mxu0 %v10387
    %12588 = vmatpush1.bf16.msra.mxu0 %v10386
    %12589 = vmatprep.subr.bf16.mxu0 %v10389
    %12590 = vmatpush1.bf16.msra.mxu0 %v10388
    %12591 = vmatprep.subr.bf16.mxu0 %v10391
    %12592 = vmatpush1.bf16.msra.mxu0 %v10390
    %12593 = vmatprep.subr.bf16.mxu0 %v10393
    %12594 = vmatpush1.bf16.msra.mxu0 %v10392
    %12595 = vmatprep.subr.bf16.mxu0 %v10395
    %12596 = vmatpush1.bf16.msra.mxu0 %v10394
    %12597 = vmatprep.subr.bf16.mxu0 %v10397
    %12598 = vmatpush1.bf16.msra.mxu0 %v10396
    %12599 = vmatprep.subr.bf16.mxu0 %v10399
    %12600 = vmatpush1.bf16.msra.mxu0 %v10398
    %12601 = vmatprep.mubr.bf16.mxu0 %v5687
    %12602 = vmatmul.mubr.bf16.gmra.mrb[0].mxu0 %v5686
    %v12603 = vpop.f32.mrb[0].mxu0
    %v12604 = vadd.f32 %v12563, %v12603
    %v12605 = vpop.f32.mrb[0].mxu0
    %v12606 = vadd.f32 %v12565, %v12605
    %v12607 = vpop.f32.mrb[0].mxu0
    %v12608 = vpop.f32.mrb[0].mxu0
    %12609 = vdwg.mxu0
    %12610 = vmatprep.subr.bf16.mxu0 %v10401
    %12611 = vmatpush1.bf16.msra.mxu0 %v10400
    %12612 = vmatprep.subr.bf16.mxu0 %v10403
    %12613 = vmatpush1.bf16.msra.mxu0 %v10402
    %12614 = vmatprep.subr.bf16.mxu0 %v10405
    %12615 = vmatpush1.bf16.msra.mxu0 %v10404
    %12616 = vmatprep.subr.bf16.mxu0 %v10407
    %12617 = vmatpush1.bf16.msra.mxu0 %v10406
    %12618 = vmatprep.subr.bf16.mxu0 %v10409
    %12619 = vmatpush1.bf16.msra.mxu0 %v10408
    %12620 = vmatprep.subr.bf16.mxu0 %v10411
    %12621 = vmatpush1.bf16.msra.mxu0 %v10410
    %12622 = vmatprep.subr.bf16.mxu0 %v10413
    %12623 = vmatpush1.bf16.msra.mxu0 %v10412
    %12624 = vmatprep.subr.bf16.mxu0 %v10415
    %12625 = vmatpush1.bf16.msra.mxu0 %v10414
    %12626 = vmatprep.subr.bf16.mxu0 %v10417
    %12627 = vmatpush1.bf16.msra.mxu0 %v10416
    %12628 = vmatprep.subr.bf16.mxu0 %v10419
    %12629 = vmatpush1.bf16.msra.mxu0 %v10418
    %12630 = vmatprep.subr.bf16.mxu0 %v10421
    %12631 = vmatpush1.bf16.msra.mxu0 %v10420
    %12632 = vmatprep.subr.bf16.mxu0 %v10423
    %12633 = vmatpush1.bf16.msra.mxu0 %v10422
    %12634 = vmatprep.subr.bf16.mxu0 %v10425
    %12635 = vmatpush1.bf16.msra.mxu0 %v10424
    %12636 = vmatprep.subr.bf16.mxu0 %v10427
    %12637 = vmatpush1.bf16.msra.mxu0 %v10426
    %12638 = vmatprep.subr.bf16.mxu0 %v10429
    %12639 = vmatpush1.bf16.msra.mxu0 %v10428
    %12640 = vmatprep.subr.bf16.mxu0 %v10431
    %12641 = vmatpush1.bf16.msra.mxu0 %v10430
    %12642 = vmatprep.mubr.bf16.mxu0 %v5689
    %12643 = vmatmul.mubr.bf16.gmra.mrb[0].mxu0 %v5688
    %v12644 = vpop.f32.mrb[0].mxu0
    %v12645 = vadd.f32 %v12604, %v12644
    %v12646 = vpop.f32.mrb[0].mxu0
    %v12647 = vadd.f32 %v12606, %v12646
    %v12648 = vpop.f32.mrb[0].mxu0
    %v12649 = vpop.f32.mrb[0].mxu0
    %12650 = vdwg.mxu0
    %12651 = vmatprep.subr.bf16.mxu0 %v10433
    %12652 = vmatpush1.bf16.msra.mxu0 %v10432
    %12653 = vmatprep.subr.bf16.mxu0 %v10435
    %12654 = vmatpush1.bf16.msra.mxu0 %v10434
    %12655 = vmatprep.subr.bf16.mxu0 %v10437
    %12656 = vmatpush1.bf16.msra.mxu0 %v10436
    %12657 = vmatprep.subr.bf16.mxu0 %v10439
    %12658 = vmatpush1.bf16.msra.mxu0 %v10438
    %12659 = vmatprep.subr.bf16.mxu0 %v10441
    %12660 = vmatpush1.bf16.msra.mxu0 %v10440
    %12661 = vmatprep.subr.bf16.mxu0 %v10443
    %12662 = vmatpush1.bf16.msra.mxu0 %v10442
    %12663 = vmatprep.subr.bf16.mxu0 %v10445
    %12664 = vmatpush1.bf16.msra.mxu0 %v10444
    %12665 = vmatprep.subr.bf16.mxu0 %v10447
    %12666 = vmatpush1.bf16.msra.mxu0 %v10446
    %12667 = vmatprep.subr.bf16.mxu0 %v10449
    %12668 = vmatpush1.bf16.msra.mxu0 %v10448
    %12669 = vmatprep.subr.bf16.mxu0 %v10451
    %12670 = vmatpush1.bf16.msra.mxu0 %v10450
    %12671 = vmatprep.subr.bf16.mxu0 %v10453
    %12672 = vmatpush1.bf16.msra.mxu0 %v10452
    %12673 = vmatprep.subr.bf16.mxu0 %v10455
    %12674 = vmatpush1.bf16.msra.mxu0 %v10454
    %12675 = vmatprep.subr.bf16.mxu0 %v10457
    %12676 = vmatpush1.bf16.msra.mxu0 %v10456
    %12677 = vmatprep.subr.bf16.mxu0 %v10459
    %12678 = vmatpush1.bf16.msra.mxu0 %v10458
    %12679 = vmatprep.subr.bf16.mxu0 %v10461
    %12680 = vmatpush1.bf16.msra.mxu0 %v10460
    %12681 = vmatprep.subr.bf16.mxu0 %v10463
    %12682 = vmatpush1.bf16.msra.mxu0 %v10462
    %12683 = vmatprep.mubr.bf16.mxu0 %v5691
    %12684 = vmatmul.mubr.bf16.gmra.mrb[0].mxu0 %v5690
    %v12685 = vpop.f32.mrb[0].mxu0
    %v12686 = vadd.f32 %v12645, %v12685
    %v12687 = vpop.f32.mrb[0].mxu0
    %v12688 = vadd.f32 %v12647, %v12687
    %v12689 = vpop.f32.mrb[0].mxu0
    %v12690 = vpop.f32.mrb[0].mxu0
    %12691 = vdwg.mxu0
    %12692 = vmatprep.subr.bf16.mxu0 %v10465
    %12693 = vmatpush1.bf16.msra.mxu0 %v10464
    %12694 = vmatprep.subr.bf16.mxu0 %v10467
    %12695 = vmatpush1.bf16.msra.mxu0 %v10466
    %12696 = vmatprep.subr.bf16.mxu0 %v10469
    %12697 = vmatpush1.bf16.msra.mxu0 %v10468
    %12698 = vmatprep.subr.bf16.mxu0 %v10471
    %12699 = vmatpush1.bf16.msra.mxu0 %v10470
    %12700 = vmatprep.subr.bf16.mxu0 %v10473
    %12701 = vmatpush1.bf16.msra.mxu0 %v10472
    %12702 = vmatprep.subr.bf16.mxu0 %v10475
    %12703 = vmatpush1.bf16.msra.mxu0 %v10474
    %12704 = vmatprep.subr.bf16.mxu0 %v10477
    %12705 = vmatpush1.bf16.msra.mxu0 %v10476
    %12706 = vmatprep.subr.bf16.mxu0 %v10479
    %12707 = vmatpush1.bf16.msra.mxu0 %v10478
    %12708 = vmatprep.subr.bf16.mxu0 %v10481
    %12709 = vmatpush1.bf16.msra.mxu0 %v10480
    %12710 = vmatprep.subr.bf16.mxu0 %v10483
    %12711 = vmatpush1.bf16.msra.mxu0 %v10482
    %12712 = vmatprep.subr.bf16.mxu0 %v10485
    %12713 = vmatpush1.bf16.msra.mxu0 %v10484
    %12714 = vmatprep.subr.bf16.mxu0 %v10487
    %12715 = vmatpush1.bf16.msra.mxu0 %v10486
    %12716 = vmatprep.subr.bf16.mxu0 %v10489
    %12717 = vmatpush1.bf16.msra.mxu0 %v10488
    %12718 = vmatprep.subr.bf16.mxu0 %v10491
    %12719 = vmatpush1.bf16.msra.mxu0 %v10490
    %12720 = vmatprep.subr.bf16.mxu0 %v10493
    %12721 = vmatpush1.bf16.msra.mxu0 %v10492
    %12722 = vmatprep.subr.bf16.mxu0 %v10495
    %12723 = vmatpush1.bf16.msra.mxu0 %v10494
    %12724 = vmatprep.mubr.bf16.mxu0 %v5693
    %12725 = vmatmul.mubr.bf16.gmra.mrb[0].mxu0 %v5692
    %v12726 = vpop.f32.mrb[0].mxu0
    %v12727 = vadd.f32 %v12686, %v12726
    %v12728 = vpop.f32.mrb[0].mxu0
    %v12729 = vadd.f32 %v12688, %v12728
    %v12730 = vpop.f32.mrb[0].mxu0
    %v12731 = vpop.f32.mrb[0].mxu0
    %12732 = vdwg.mxu0
    %12733 = vmatprep.subr.bf16.mxu0 %v10497
    %12734 = vmatpush1.bf16.msra.mxu0 %v10496
    %12735 = vmatprep.subr.bf16.mxu0 %v10499
    %12736 = vmatpush1.bf16.msra.mxu0 %v10498
    %12737 = vmatprep.subr.bf16.mxu0 %v10501
    %12738 = vmatpush1.bf16.msra.mxu0 %v10500
    %12739 = vmatprep.subr.bf16.mxu0 %v10503
    %12740 = vmatpush1.bf16.msra.mxu0 %v10502
    %12741 = vmatprep.subr.bf16.mxu0 %v10505
    %12742 = vmatpush1.bf16.msra.mxu0 %v10504
    %12743 = vmatprep.subr.bf16.mxu0 %v10507
    %12744 = vmatpush1.bf16.msra.mxu0 %v10506
    %12745 = vmatprep.subr.bf16.mxu0 %v10509
    %12746 = vmatpush1.bf16.msra.mxu0 %v10508
    %12747 = vmatprep.subr.bf16.mxu0 %v10511
    %12748 = vmatpush1.bf16.msra.mxu0 %v10510
    %12749 = vmatprep.subr.bf16.mxu0 %v10513
    %12750 = vmatpush1.bf16.msra.mxu0 %v10512
    %12751 = vmatprep.subr.bf16.mxu0 %v10515
    %12752 = vmatpush1.bf16.msra.mxu0 %v10514
    %12753 = vmatprep.subr.bf16.mxu0 %v10517
    %12754 = vmatpush1.bf16.msra.mxu0 %v10516
    %12755 = vmatprep.subr.bf16.mxu0 %v10519
    %12756 = vmatpush1.bf16.msra.mxu0 %v10518
    %12757 = vmatprep.subr.bf16.mxu0 %v10521
    %12758 = vmatpush1.bf16.msra.mxu0 %v10520
    %12759 = vmatprep.subr.bf16.mxu0 %v10523
    %12760 = vmatpush1.bf16.msra.mxu0 %v10522
    %12761 = vmatprep.subr.bf16.mxu0 %v10525
    %12762 = vmatpush1.bf16.msra.mxu0 %v10524
    %12763 = vmatprep.subr.bf16.mxu0 %v10527
    %12764 = vmatpush1.bf16.msra.mxu0 %v10526
    %12765 = vmatprep.mubr.bf16.mxu0 %v5695
    %12766 = vmatmul.mubr.bf16.gmra.mrb[0].mxu0 %v5694
    %v12767 = vpop.f32.mrb[0].mxu0
    %v12768 = vadd.f32 %v12727, %v12767
    %v12769 = vpop.f32.mrb[0].mxu0
    %v12770 = vadd.f32 %v12729, %v12769
    %v12771 = vpop.f32.mrb[0].mxu0
    %v12772 = vpop.f32.mrb[0].mxu0
    %12773 = vdwg.mxu0
    %12774 = vmatprep.subr.bf16.mxu0 %v10529
    %12775 = vmatpush1.bf16.msra.mxu0 %v10528
    %12776 = vmatprep.subr.bf16.mxu0 %v10531
    %12777 = vmatpush1.bf16.msra.mxu0 %v10530
    %12778 = vmatprep.subr.bf16.mxu0 %v10533
    %12779 = vmatpush1.bf16.msra.mxu0 %v10532
    %12780 = vmatprep.subr.bf16.mxu0 %v10535
    %12781 = vmatpush1.bf16.msra.mxu0 %v10534
    %12782 = vmatprep.subr.bf16.mxu0 %v10537
    %12783 = vmatpush1.bf16.msra.mxu0 %v10536
    %12784 = vmatprep.subr.bf16.mxu0 %v10539
    %12785 = vmatpush1.bf16.msra.mxu0 %v10538
    %12786 = vmatprep.subr.bf16.mxu0 %v10541
    %12787 = vmatpush1.bf16.msra.mxu0 %v10540
    %12788 = vmatprep.subr.bf16.mxu0 %v10543
    %12789 = vmatpush1.bf16.msra.mxu0 %v10542
    %12790 = vmatprep.subr.bf16.mxu0 %v10545
    %12791 = vmatpush1.bf16.msra.mxu0 %v10544
    %12792 = vmatprep.subr.bf16.mxu0 %v10547
    %12793 = vmatpush1.bf16.msra.mxu0 %v10546
    %12794 = vmatprep.subr.bf16.mxu0 %v10549
    %12795 = vmatpush1.bf16.msra.mxu0 %v10548
    %12796 = vmatprep.subr.bf16.mxu0 %v10551
    %12797 = vmatpush1.bf16.msra.mxu0 %v10550
    %12798 = vmatprep.subr.bf16.mxu0 %v10553
    %12799 = vmatpush1.bf16.msra.mxu0 %v10552
    %12800 = vmatprep.subr.bf16.mxu0 %v10555
    %12801 = vmatpush1.bf16.msra.mxu0 %v10554
    %12802 = vmatprep.subr.bf16.mxu0 %v10557
    %12803 = vmatpush1.bf16.msra.mxu0 %v10556
    %12804 = vmatprep.subr.bf16.mxu0 %v10559
    %12805 = vmatpush1.bf16.msra.mxu0 %v10558
    %12806 = vmatprep.mubr.bf16.mxu0 %v5697
    %12807 = vmatmul.mubr.bf16.gmra.mrb[0].mxu0 %v5696
    %v12808 = vpop.f32.mrb[0].mxu0
    %v12809 = vadd.f32 %v12768, %v12808
    %v12810 = vpop.f32.mrb[0].mxu0
    %v12811 = vadd.f32 %v12770, %v12810
    %v12812 = vpop.f32.mrb[0].mxu0
    %v12813 = vpop.f32.mrb[0].mxu0
    %12814 = vdwg.mxu0
    %12815 = vmatprep.subr.bf16.mxu0 %v10561
    %12816 = vmatpush1.bf16.msra.mxu0 %v10560
    %12817 = vmatprep.subr.bf16.mxu0 %v10563
    %12818 = vmatpush1.bf16.msra.mxu0 %v10562
    %12819 = vmatprep.subr.bf16.mxu0 %v10565
    %12820 = vmatpush1.bf16.msra.mxu0 %v10564
    %12821 = vmatprep.subr.bf16.mxu0 %v10567
    %12822 = vmatpush1.bf16.msra.mxu0 %v10566
    %12823 = vmatprep.subr.bf16.mxu0 %v10569
    %12824 = vmatpush1.bf16.msra.mxu0 %v10568
    %12825 = vmatprep.subr.bf16.mxu0 %v10571
    %12826 = vmatpush1.bf16.msra.mxu0 %v10570
    %12827 = vmatprep.subr.bf16.mxu0 %v10573
    %12828 = vmatpush1.bf16.msra.mxu0 %v10572
    %12829 = vmatprep.subr.bf16.mxu0 %v10575
    %12830 = vmatpush1.bf16.msra.mxu0 %v10574
    %12831 = vmatprep.subr.bf16.mxu0 %v10577
    %12832 = vmatpush1.bf16.msra.mxu0 %v10576
    %12833 = vmatprep.subr.bf16.mxu0 %v10579
    %12834 = vmatpush1.bf16.msra.mxu0 %v10578
    %12835 = vmatprep.subr.bf16.mxu0 %v10581
    %12836 = vmatpush1.bf16.msra.mxu0 %v10580
    %12837 = vmatprep.subr.bf16.mxu0 %v10583
    %12838 = vmatpush1.bf16.msra.mxu0 %v10582
    %12839 = vmatprep.subr.bf16.mxu0 %v10585
    %12840 = vmatpush1.bf16.msra.mxu0 %v10584
    %12841 = vmatprep.subr.bf16.mxu0 %v10587
    %12842 = vmatpush1.bf16.msra.mxu0 %v10586
    %12843 = vmatprep.subr.bf16.mxu0 %v10589
    %12844 = vmatpush1.bf16.msra.mxu0 %v10588
    %12845 = vmatprep.subr.bf16.mxu0 %v10591
    %12846 = vmatpush1.bf16.msra.mxu0 %v10590
    %12847 = vmatprep.mubr.bf16.mxu0 %v5699
    %12848 = vmatmul.mubr.bf16.gmra.mrb[0].mxu0 %v5698
    %v12849 = vpop.f32.mrb[0].mxu0
    %v12850 = vadd.f32 %v12809, %v12849
    %v12851 = vpop.f32.mrb[0].mxu0
    %v12852 = vadd.f32 %v12811, %v12851
    %v12853 = vpop.f32.mrb[0].mxu0
    %v12854 = vpop.f32.mrb[0].mxu0
    %12855 = vdwg.mxu0
    %12856 = vmatprep.subr.bf16.mxu0 %v10593
    %12857 = vmatpush1.bf16.msra.mxu0 %v10592
    %12858 = vmatprep.subr.bf16.mxu0 %v10595
    %12859 = vmatpush1.bf16.msra.mxu0 %v10594
    %12860 = vmatprep.subr.bf16.mxu0 %v10597
    %12861 = vmatpush1.bf16.msra.mxu0 %v10596
    %12862 = vmatprep.subr.bf16.mxu0 %v10599
    %12863 = vmatpush1.bf16.msra.mxu0 %v10598
    %12864 = vmatprep.subr.bf16.mxu0 %v10601
    %12865 = vmatpush1.bf16.msra.mxu0 %v10600
    %12866 = vmatprep.subr.bf16.mxu0 %v10603
    %12867 = vmatpush1.bf16.msra.mxu0 %v10602
    %12868 = vmatprep.subr.bf16.mxu0 %v10605
    %12869 = vmatpush1.bf16.msra.mxu0 %v10604
    %12870 = vmatprep.subr.bf16.mxu0 %v10607
    %12871 = vmatpush1.bf16.msra.mxu0 %v10606
    %12872 = vmatprep.subr.bf16.mxu0 %v10609
    %12873 = vmatpush1.bf16.msra.mxu0 %v10608
    %12874 = vmatprep.subr.bf16.mxu0 %v10611
    %12875 = vmatpush1.bf16.msra.mxu0 %v10610
    %12876 = vmatprep.subr.bf16.mxu0 %v10613
    %12877 = vmatpush1.bf16.msra.mxu0 %v10612
    %12878 = vmatprep.subr.bf16.mxu0 %v10615
    %12879 = vmatpush1.bf16.msra.mxu0 %v10614
    %12880 = vmatprep.subr.bf16.mxu0 %v10617
    %12881 = vmatpush1.bf16.msra.mxu0 %v10616
    %12882 = vmatprep.subr.bf16.mxu0 %v10619
    %12883 = vmatpush1.bf16.msra.mxu0 %v10618
    %12884 = vmatprep.subr.bf16.mxu0 %v10621
    %12885 = vmatpush1.bf16.msra.mxu0 %v10620
    %12886 = vmatprep.subr.bf16.mxu0 %v10623
    %12887 = vmatpush1.bf16.msra.mxu0 %v10622
    %12888 = vmatprep.mubr.bf16.mxu0 %v5701
    %12889 = vmatmul.mubr.bf16.gmra.mrb[0].mxu0 %v5700
    %v12890 = vpop.f32.mrb[0].mxu0
    %v12891 = vadd.f32 %v12850, %v12890
    %v12892 = vpop.f32.mrb[0].mxu0
    %v12893 = vadd.f32 %v12852, %v12892
    %v12894 = vpop.f32.mrb[0].mxu0
    %v12895 = vpop.f32.mrb[0].mxu0
    %12896 = vdwg.mxu0
    %12897 = vmatprep.subr.bf16.mxu0 %v10625
    %12898 = vmatpush1.bf16.msra.mxu0 %v10624
    %12899 = vmatprep.subr.bf16.mxu0 %v10627
    %12900 = vmatpush1.bf16.msra.mxu0 %v10626
    %12901 = vmatprep.subr.bf16.mxu0 %v10629
    %12902 = vmatpush1.bf16.msra.mxu0 %v10628
    %12903 = vmatprep.subr.bf16.mxu0 %v10631
    %12904 = vmatpush1.bf16.msra.mxu0 %v10630
    %12905 = vmatprep.subr.bf16.mxu0 %v10633
    %12906 = vmatpush1.bf16.msra.mxu0 %v10632
    %12907 = vmatprep.subr.bf16.mxu0 %v10635
    %12908 = vmatpush1.bf16.msra.mxu0 %v10634
    %12909 = vmatprep.subr.bf16.mxu0 %v10637
    %12910 = vmatpush1.bf16.msra.mxu0 %v10636
    %12911 = vmatprep.subr.bf16.mxu0 %v10639
    %12912 = vmatpush1.bf16.msra.mxu0 %v10638
    %12913 = vmatprep.subr.bf16.mxu0 %v10641
    %12914 = vmatpush1.bf16.msra.mxu0 %v10640
    %12915 = vmatprep.subr.bf16.mxu0 %v10643
    %12916 = vmatpush1.bf16.msra.mxu0 %v10642
    %12917 = vmatprep.subr.bf16.mxu0 %v10645
    %12918 = vmatpush1.bf16.msra.mxu0 %v10644
    %12919 = vmatprep.subr.bf16.mxu0 %v10647
    %12920 = vmatpush1.bf16.msra.mxu0 %v10646
    %12921 = vmatprep.subr.bf16.mxu0 %v10649
    %12922 = vmatpush1.bf16.msra.mxu0 %v10648
    %12923 = vmatprep.subr.bf16.mxu0 %v10651
    %12924 = vmatpush1.bf16.msra.mxu0 %v10650
    %12925 = vmatprep.subr.bf16.mxu0 %v10653
    %12926 = vmatpush1.bf16.msra.mxu0 %v10652
    %12927 = vmatprep.subr.bf16.mxu0 %v10655
    %12928 = vmatpush1.bf16.msra.mxu0 %v10654
    %12929 = vmatprep.mubr.bf16.mxu0 %v5703
    %12930 = vmatmul.mubr.bf16.gmra.mrb[0].mxu0 %v5702
    %v12931 = vpop.f32.mrb[0].mxu0
    %v12932 = vadd.f32 %v12891, %v12931
    %v12933 = vpop.f32.mrb[0].mxu0
    %v12934 = vadd.f32 %v12893, %v12933
    %v12935 = vpop.f32.mrb[0].mxu0
    %v12936 = vpop.f32.mrb[0].mxu0
    %12937 = vdwg.mxu0
    %12938 = vmatprep.subr.bf16.mxu0 %v10657
    %12939 = vmatpush1.bf16.msra.mxu0 %v10656
    %12940 = vmatprep.subr.bf16.mxu0 %v10659
    %12941 = vmatpush1.bf16.msra.mxu0 %v10658
    %12942 = vmatprep.subr.bf16.mxu0 %v10661
    %12943 = vmatpush1.bf16.msra.mxu0 %v10660
    %12944 = vmatprep.subr.bf16.mxu0 %v10663
    %12945 = vmatpush1.bf16.msra.mxu0 %v10662
    %12946 = vmatprep.subr.bf16.mxu0 %v10665
    %12947 = vmatpush1.bf16.msra.mxu0 %v10664
    %12948 = vmatprep.subr.bf16.mxu0 %v10667
    %12949 = vmatpush1.bf16.msra.mxu0 %v10666
    %12950 = vmatprep.subr.bf16.mxu0 %v10669
    %12951 = vmatpush1.bf16.msra.mxu0 %v10668
    %12952 = vmatprep.subr.bf16.mxu0 %v10671
    %12953 = vmatpush1.bf16.msra.mxu0 %v10670
    %12954 = vmatprep.subr.bf16.mxu0 %v10673
    %12955 = vmatpush1.bf16.msra.mxu0 %v10672
    %12956 = vmatprep.subr.bf16.mxu0 %v10675
    %12957 = vmatpush1.bf16.msra.mxu0 %v10674
    %12958 = vmatprep.subr.bf16.mxu0 %v10677
    %12959 = vmatpush1.bf16.msra.mxu0 %v10676
    %12960 = vmatprep.subr.bf16.mxu0 %v10679
    %12961 = vmatpush1.bf16.msra.mxu0 %v10678
    %12962 = vmatprep.subr.bf16.mxu0 %v10681
    %12963 = vmatpush1.bf16.msra.mxu0 %v10680
    %12964 = vmatprep.subr.bf16.mxu0 %v10683
    %12965 = vmatpush1.bf16.msra.mxu0 %v10682
    %12966 = vmatprep.subr.bf16.mxu0 %v10685
    %12967 = vmatpush1.bf16.msra.mxu0 %v10684
    %12968 = vmatprep.subr.bf16.mxu0 %v10687
    %12969 = vmatpush1.bf16.msra.mxu0 %v10686
    %12970 = vmatprep.mubr.bf16.mxu0 %v5705
    %12971 = vmatmul.mubr.bf16.gmra.mrb[0].mxu0 %v5704
    %v12972 = vpop.f32.mrb[0].mxu0
    %v12973 = vadd.f32 %v12932, %v12972
    %v12974 = vpop.f32.mrb[0].mxu0
    %v12975 = vadd.f32 %v12934, %v12974
    %v12976 = vpop.f32.mrb[0].mxu0
    %v12977 = vpop.f32.mrb[0].mxu0
    %12978 = vdwg.mxu0
    %12979 = vmatprep.subr.bf16.mxu0 %v10689
    %12980 = vmatpush1.bf16.msra.mxu0 %v10688
    %12981 = vmatprep.subr.bf16.mxu0 %v10691
    %12982 = vmatpush1.bf16.msra.mxu0 %v10690
    %12983 = vmatprep.subr.bf16.mxu0 %v10693
    %12984 = vmatpush1.bf16.msra.mxu0 %v10692
    %12985 = vmatprep.subr.bf16.mxu0 %v10695
    %12986 = vmatpush1.bf16.msra.mxu0 %v10694
    %12987 = vmatprep.subr.bf16.mxu0 %v10697
    %12988 = vmatpush1.bf16.msra.mxu0 %v10696
    %12989 = vmatprep.subr.bf16.mxu0 %v10699
    %12990 = vmatpush1.bf16.msra.mxu0 %v10698
    %12991 = vmatprep.subr.bf16.mxu0 %v10701
    %12992 = vmatpush1.bf16.msra.mxu0 %v10700
    %12993 = vmatprep.subr.bf16.mxu0 %v10703
    %12994 = vmatpush1.bf16.msra.mxu0 %v10702
    %12995 = vmatprep.subr.bf16.mxu0 %v10705
    %12996 = vmatpush1.bf16.msra.mxu0 %v10704
    %12997 = vmatprep.subr.bf16.mxu0 %v10707
    %12998 = vmatpush1.bf16.msra.mxu0 %v10706
    %12999 = vmatprep.subr.bf16.mxu0 %v10709
    %13000 = vmatpush1.bf16.msra.mxu0 %v10708
    %13001 = vmatprep.subr.bf16.mxu0 %v10711
    %13002 = vmatpush1.bf16.msra.mxu0 %v10710
    %13003 = vmatprep.subr.bf16.mxu0 %v10713
    %13004 = vmatpush1.bf16.msra.mxu0 %v10712
    %13005 = vmatprep.subr.bf16.mxu0 %v10715
    %13006 = vmatpush1.bf16.msra.mxu0 %v10714
    %13007 = vmatprep.subr.bf16.mxu0 %v10717
    %13008 = vmatpush1.bf16.msra.mxu0 %v10716
    %13009 = vmatprep.subr.bf16.mxu0 %v10719
    %13010 = vmatpush1.bf16.msra.mxu0 %v10718
    %13011 = vmatprep.mubr.bf16.mxu0 %v5707
    %13012 = vmatmul.mubr.bf16.gmra.mrb[0].mxu0 %v5706
    %v13013 = vpop.f32.mrb[0].mxu0
    %v13014 = vadd.f32 %v12973, %v13013
    %v13015 = vpop.f32.mrb[0].mxu0
    %v13016 = vadd.f32 %v12975, %v13015
    %v13017 = vpop.f32.mrb[0].mxu0
    %v13018 = vpop.f32.mrb[0].mxu0
    %13019 = vdwg.mxu0
    %13020 = vmatprep.subr.bf16.mxu0 %v10721
    %13021 = vmatpush1.bf16.msra.mxu0 %v10720
    %13022 = vmatprep.subr.bf16.mxu0 %v10723
    %13023 = vmatpush1.bf16.msra.mxu0 %v10722
    %13024 = vmatprep.subr.bf16.mxu0 %v10725
    %13025 = vmatpush1.bf16.msra.mxu0 %v10724
    %13026 = vmatprep.subr.bf16.mxu0 %v10727
    %13027 = vmatpush1.bf16.msra.mxu0 %v10726
    %13028 = vmatprep.subr.bf16.mxu0 %v10729
    %13029 = vmatpush1.bf16.msra.mxu0 %v10728
    %13030 = vmatprep.subr.bf16.mxu0 %v10731
    %13031 = vmatpush1.bf16.msra.mxu0 %v10730
    %13032 = vmatprep.subr.bf16.mxu0 %v10733
    %13033 = vmatpush1.bf16.msra.mxu0 %v10732
    %13034 = vmatprep.subr.bf16.mxu0 %v10735
    %13035 = vmatpush1.bf16.msra.mxu0 %v10734
    %13036 = vmatprep.subr.bf16.mxu0 %v10737
    %13037 = vmatpush1.bf16.msra.mxu0 %v10736
    %13038 = vmatprep.subr.bf16.mxu0 %v10739
    %13039 = vmatpush1.bf16.msra.mxu0 %v10738
    %13040 = vmatprep.subr.bf16.mxu0 %v10741
    %13041 = vmatpush1.bf16.msra.mxu0 %v10740
    %13042 = vmatprep.subr.bf16.mxu0 %v10743
    %13043 = vmatpush1.bf16.msra.mxu0 %v10742
    %13044 = vmatprep.subr.bf16.mxu0 %v10745
    %13045 = vmatpush1.bf16.msra.mxu0 %v10744
    %13046 = vmatprep.subr.bf16.mxu0 %v10747
    %13047 = vmatpush1.bf16.msra.mxu0 %v10746
    %13048 = vmatprep.subr.bf16.mxu0 %v10749
    %13049 = vmatpush1.bf16.msra.mxu0 %v10748
    %13050 = vmatprep.subr.bf16.mxu0 %v10751
    %13051 = vmatpush1.bf16.msra.mxu0 %v10750
    %13052 = vmatprep.mubr.bf16.mxu0 %v5709
    %13053 = vmatmul.mubr.bf16.gmra.mrb[0].mxu0 %v5708
    %v13054 = vpop.f32.mrb[0].mxu0
    %v13055 = vadd.f32 %v13014, %v13054
    %v13056 = vpop.f32.mrb[0].mxu0
    %v13057 = vadd.f32 %v13016, %v13056
    %v13058 = vpop.f32.mrb[0].mxu0
    %v13059 = vpop.f32.mrb[0].mxu0
    %13060 = vdwg.mxu0
    %13061 = vmatprep.subr.bf16.mxu0 %v10753
    %13062 = vmatpush1.bf16.msra.mxu0 %v10752
    %13063 = vmatprep.subr.bf16.mxu0 %v10755
    %13064 = vmatpush1.bf16.msra.mxu0 %v10754
    %13065 = vmatprep.subr.bf16.mxu0 %v10757
    %13066 = vmatpush1.bf16.msra.mxu0 %v10756
    %13067 = vmatprep.subr.bf16.mxu0 %v10759
    %13068 = vmatpush1.bf16.msra.mxu0 %v10758
    %13069 = vmatprep.subr.bf16.mxu0 %v10761
    %13070 = vmatpush1.bf16.msra.mxu0 %v10760
    %13071 = vmatprep.subr.bf16.mxu0 %v10763
    %13072 = vmatpush1.bf16.msra.mxu0 %v10762
    %13073 = vmatprep.subr.bf16.mxu0 %v10765
    %13074 = vmatpush1.bf16.msra.mxu0 %v10764
    %13075 = vmatprep.subr.bf16.mxu0 %v10767
    %13076 = vmatpush1.bf16.msra.mxu0 %v10766
    %13077 = vmatprep.subr.bf16.mxu0 %v10769
    %13078 = vmatpush1.bf16.msra.mxu0 %v10768
    %13079 = vmatprep.subr.bf16.mxu0 %v10771
    %13080 = vmatpush1.bf16.msra.mxu0 %v10770
    %13081 = vmatprep.subr.bf16.mxu0 %v10773
    %13082 = vmatpush1.bf16.msra.mxu0 %v10772
    %13083 = vmatprep.subr.bf16.mxu0 %v10775
    %13084 = vmatpush1.bf16.msra.mxu0 %v10774
    %13085 = vmatprep.subr.bf16.mxu0 %v10777
    %13086 = vmatpush1.bf16.msra.mxu0 %v10776
    %13087 = vmatprep.subr.bf16.mxu0 %v10779
    %13088 = vmatpush1.bf16.msra.mxu0 %v10778
    %13089 = vmatprep.subr.bf16.mxu0 %v10781
    %13090 = vmatpush1.bf16.msra.mxu0 %v10780
    %13091 = vmatprep.subr.bf16.mxu0 %v10783
    %13092 = vmatpush1.bf16.msra.mxu0 %v10782
    %13093 = vmatprep.mubr.bf16.mxu0 %v5711
    %13094 = vmatmul.mubr.bf16.gmra.mrb[0].mxu0 %v5710
    %v13095 = vpop.f32.mrb[0].mxu0
    %v13096 = vadd.f32 %v13055, %v13095
    %v13097 = vpop.f32.mrb[0].mxu0
    %v13098 = vadd.f32 %v13057, %v13097
    %v13099 = vpop.f32.mrb[0].mxu0
    %v13100 = vpop.f32.mrb[0].mxu0
    %13101 = vdwg.mxu0
    %13102 = vmatprep.subr.bf16.mxu0 %v10785
    %13103 = vmatpush1.bf16.msra.mxu0 %v10784
    %13104 = vmatprep.subr.bf16.mxu0 %v10787
    %13105 = vmatpush1.bf16.msra.mxu0 %v10786
    %13106 = vmatprep.subr.bf16.mxu0 %v10789
    %13107 = vmatpush1.bf16.msra.mxu0 %v10788
    %13108 = vmatprep.subr.bf16.mxu0 %v10791
    %13109 = vmatpush1.bf16.msra.mxu0 %v10790
    %13110 = vmatprep.subr.bf16.mxu0 %v10793
    %13111 = vmatpush1.bf16.msra.mxu0 %v10792
    %13112 = vmatprep.subr.bf16.mxu0 %v10795
    %13113 = vmatpush1.bf16.msra.mxu0 %v10794
    %13114 = vmatprep.subr.bf16.mxu0 %v10797
    %13115 = vmatpush1.bf16.msra.mxu0 %v10796
    %13116 = vmatprep.subr.bf16.mxu0 %v10799
    %13117 = vmatpush1.bf16.msra.mxu0 %v10798
    %13118 = vmatprep.subr.bf16.mxu0 %v10801
    %13119 = vmatpush1.bf16.msra.mxu0 %v10800
    %13120 = vmatprep.subr.bf16.mxu0 %v10803
    %13121 = vmatpush1.bf16.msra.mxu0 %v10802
    %13122 = vmatprep.subr.bf16.mxu0 %v10805
    %13123 = vmatpush1.bf16.msra.mxu0 %v10804
    %13124 = vmatprep.subr.bf16.mxu0 %v10807
    %13125 = vmatpush1.bf16.msra.mxu0 %v10806
    %13126 = vmatprep.subr.bf16.mxu0 %v10809
    %13127 = vmatpush1.bf16.msra.mxu0 %v10808
    %13128 = vmatprep.subr.bf16.mxu0 %v10811
    %13129 = vmatpush1.bf16.msra.mxu0 %v10810
    %13130 = vmatprep.subr.bf16.mxu0 %v10813
    %13131 = vmatpush1.bf16.msra.mxu0 %v10812
    %13132 = vmatprep.subr.bf16.mxu0 %v10815
    %13133 = vmatpush1.bf16.msra.mxu0 %v10814
    %13134 = vmatprep.mubr.bf16.mxu0 %v5713
    %13135 = vmatmul.mubr.bf16.gmra.mrb[0].mxu0 %v5712
    %v13136 = vpop.f32.mrb[0].mxu0
    %v13137 = vadd.f32 %v13096, %v13136
    %v13138 = vpop.f32.mrb[0].mxu0
    %v13139 = vadd.f32 %v13098, %v13138
    %v13140 = vpop.f32.mrb[0].mxu0
    %v13141 = vpop.f32.mrb[0].mxu0
    %13142 = vdwg.mxu0
    %13143 = vmatprep.subr.bf16.mxu0 %v10817
    %13144 = vmatpush1.bf16.msra.mxu0 %v10816
    %13145 = vmatprep.subr.bf16.mxu0 %v10819
    %13146 = vmatpush1.bf16.msra.mxu0 %v10818
    %13147 = vmatprep.subr.bf16.mxu0 %v10821
    %13148 = vmatpush1.bf16.msra.mxu0 %v10820
    %13149 = vmatprep.subr.bf16.mxu0 %v10823
    %13150 = vmatpush1.bf16.msra.mxu0 %v10822
    %13151 = vmatprep.subr.bf16.mxu0 %v10825
    %13152 = vmatpush1.bf16.msra.mxu0 %v10824
    %13153 = vmatprep.subr.bf16.mxu0 %v10827
    %13154 = vmatpush1.bf16.msra.mxu0 %v10826
    %13155 = vmatprep.subr.bf16.mxu0 %v10829
    %13156 = vmatpush1.bf16.msra.mxu0 %v10828
    %13157 = vmatprep.subr.bf16.mxu0 %v10831
    %13158 = vmatpush1.bf16.msra.mxu0 %v10830
    %13159 = vmatprep.subr.bf16.mxu0 %v10833
    %13160 = vmatpush1.bf16.msra.mxu0 %v10832
    %13161 = vmatprep.subr.bf16.mxu0 %v10835
    %13162 = vmatpush1.bf16.msra.mxu0 %v10834
    %13163 = vmatprep.subr.bf16.mxu0 %v10837
    %13164 = vmatpush1.bf16.msra.mxu0 %v10836
    %13165 = vmatprep.subr.bf16.mxu0 %v10839
    %13166 = vmatpush1.bf16.msra.mxu0 %v10838
    %13167 = vmatprep.subr.bf16.mxu0 %v10841
    %13168 = vmatpush1.bf16.msra.mxu0 %v10840
    %13169 = vmatprep.subr.bf16.mxu0 %v10843
    %13170 = vmatpush1.bf16.msra.mxu0 %v10842
    %13171 = vmatprep.subr.bf16.mxu0 %v10845
    %13172 = vmatpush1.bf16.msra.mxu0 %v10844
    %13173 = vmatprep.subr.bf16.mxu0 %v10847
    %13174 = vmatpush1.bf16.msra.mxu0 %v10846
    %13175 = vmatprep.mubr.bf16.mxu0 %v5715
    %13176 = vmatmul.mubr.bf16.gmra.mrb[0].mxu0 %v5714
    %v13177 = vpop.f32.mrb[0].mxu0
    %v13178 = vadd.f32 %v13137, %v13177
    %v13179 = vpop.f32.mrb[0].mxu0
    %v13180 = vadd.f32 %v13139, %v13179
    %v13181 = vpop.f32.mrb[0].mxu0
    %v13182 = vpop.f32.mrb[0].mxu0
    %13183 = vdwg.mxu0
    %v13184 = vmax.f32 %v13178, 0.0
    %v13185 = vmax.f32 %v13180, 0.0
    %v13186 = vld [vmem:[#allocation18] sm:$0x3]
    %v13188 = vlaneseq
    %v13189 = vshrl.u32 %v13188, 7
    %v13190 = vsub.s32 0, %v13189
    %v13191 = vrot.slane %v13186, %v13190
    %v13192 = vlaneseq
    %v13193 = vshrl.u32 %v13192, 7
    %v13194 = vsub.s32 1, %v13193
    %v13195 = vrot.slane %v13186, %v13194
    %v13198 = vmul.f32 %v13184, %v13191
    %v13199 = vmul.f32 %v13185, %v13195
    %vm13200 = vcmask 1041408
    %v13201 = vsel %vm13200, %v13198, 0.0
    %v13202 = vsel %vm13200, %v13199, 0.0
    %v13203 = vadd.f32 %v13201, %v13202
    %13204 = vadd.xlane.f32.xlu0 %v13203
    %v13205 = vpop.xlane.xlu0 %13204
    %v13206 = vld [vmem:[#allocation4] sm:$0x1]
    %v13208 = vlaneseq
    %v13209 = vshrl.u32 %v13208, 7
    %v13210 = vsub.s32 0, %v13209
    %v13211 = vrot.slane %v13206, %v13210
    %v13213 = vadd.f32 %v13205, %v13211
    %v13214 = vtanh.pop %v13213
    %vm13215 = vcmask 1024
    %13216 = vst.msk [vmem:[%s11] sm:$0x3] %vm13215, %v13214
    // Predicated region
    $region82: #{thunderbyte_forward.1} parent=1 // pred_check
      _
    $region83: #{thunderbyte_forward.1} parent=1 // pred_check_branch
      %13218 = sbr.rel (0) target = $region85
    $region84: #{thunderbyte_forward.1} parent=1 // pred_region
      _
    $region85: #{thunderbyte_forward.1} parent=1 // pred_fallthru
      _
    // Predicated region
    $region86: #{thunderbyte_forward.1} parent=1 // pred_check
      _
    $region87: #{thunderbyte_forward.1} parent=1 // pred_check_branch
      %13220 = sbr.rel (0) target = $region89
    $region88: #{thunderbyte_forward.1} parent=1 // pred_region
      _
    $region89: #{thunderbyte_forward.1} parent=1 // pred_fallthru
      _
    %13221 = vsyncpa [#allocation6], 1
    %13222 = vsyncpa [#allocation8], 1
    %13223 = vsyncpa [#allocation11], 1
    %13224 = vsyncpa [#allocation14], 1
    %13225 = vsyncpa [#allocation17], 1

</llo_original>
